<compile_context>
chip_gen: v7x
topology: tpu7x:2x2x1
jax: 0.10.0
libtpu: 0.0.40
codegen_flags: <defaults>
</compile_context>

<pallas_src>
import jax
import jax.numpy as jnp
from jax import lax
from jax.experimental import pallas as pl
from jax.experimental.pallas import tpu as pltpu


# ----------------------------------------------------------------------------
# Pallas kernels
# ----------------------------------------------------------------------------
def _gemm_bias_relu_kernel(x_ref, w_ref, b_ref, o_ref):
    # bf16 x bf16 -> f32 accumulate on the MXU; f32 epilogue; bf16 store.
    y = jnp.dot(x_ref[...], w_ref[...], preferred_element_type=jnp.float32)
    y = jnp.maximum(y + b_ref[...], 0.0)
    o_ref[...] = y.astype(o_ref.dtype)


def _conv4_fc_mu(p4_ref, w4_ref, b4_ref, wmu_ref, bmu_ref, y4_scr):
    """conv4 GEMM (+bias+ReLU) followed by fc_mu, all VMEM-resident.

    p4 rows are ordered (spatial_pos, batch); wmu is (n_pos, Cout4, Z) so the
    flatten before fc_mu is a sum of per-position GEMMs (no in-kernel reshape
    of sublanes into lanes).
    """
    y4 = jnp.dot(p4_ref[...], w4_ref[...], preferred_element_type=jnp.float32)
    y4_scr[...] = jnp.maximum(y4 + b4_ref[...], 0.0)
    n_pos = wmu_ref.shape[0]
    bb = y4_scr.shape[0] // n_pos
    z = bmu_ref.shape[1]
    mu = jnp.zeros((bb, z), jnp.float32)
    for s in range(n_pos):  # static unroll (n_pos = 16)
        mu = mu + jnp.dot(
            y4_scr[s * bb : (s + 1) * bb, :],
            wmu_ref[s],
            preferred_element_type=jnp.float32,
        )
    return mu + bmu_ref[...]


def _mu_kernel(p4_ref, w4_ref, b4_ref, wmu_ref, bmu_ref, mu_ref, y4_scr):
    mu_ref[...] = _conv4_fc_mu(p4_ref, w4_ref, b4_ref, wmu_ref, bmu_ref, y4_scr)


def _mu_sim_kernel(p4_ref, w4_ref, b4_ref, wmu_ref, bmu_ref, anc_ref,
                   mu_ref, sims_ref, idx_ref, mx_ref, y4_scr):
    mu = _conv4_fc_mu(p4_ref, w4_ref, b4_ref, wmu_ref, bmu_ref, y4_scr)
    mu_ref[...] = mu
    # torch.nn.functional.normalize: x / max(||x||_2, 1e-12)
    ss = jnp.sum(mu * mu, axis=1, keepdims=True)
    inv = pl.reciprocal(jnp.maximum(jnp.sqrt(ss), 1e-12), approx=True)
    e_n = mu * inv
    # anchors are pre-normalized once at init (they are constant).
    sims = lax.dot_general(
        e_n, anc_ref[...], (((1,), (1,)), ((), ())),
        preferred_element_type=jnp.float32,
    )  # (B, A)
    sims_ref[...] = sims
    mx = jnp.max(sims, axis=1, keepdims=True)
    col = lax.broadcasted_iota(jnp.int32, sims.shape, 1)
    n_anchors = sims.shape[1]
    idx = jnp.min(jnp.where(sims == mx, col, jnp.int32(n_anchors)),
                  axis=1, keepdims=True)  # first-max index (torch tie-break)
    idx_ref[...] = jnp.minimum(idx, n_anchors - 1)  # guard degenerate rows
    mx_ref[...] = mx


# ----------------------------------------------------------------------------
# Pallas wrappers
# ----------------------------------------------------------------------------
def gemm_bias_relu(x, w, b, *, block_m=1024, out_dtype=jnp.bfloat16):
    """y = relu(x @ w + b).  Rows are tiled with a 'parallel' grid when large."""
    M, K = x.shape
    N = w.shape[1]
    if M > block_m and M % block_m == 0:
        return pl.pallas_call(
            _gemm_bias_relu_kernel,
            out_shape=jax.ShapeDtypeStruct((M, N), out_dtype),
            grid=(M // block_m,),
            in_specs=[
                pl.BlockSpec((block_m, K), lambda i: (i, 0)),
                pl.BlockSpec((K, N), lambda i: (0, 0)),
                pl.BlockSpec((1, N), lambda i: (0, 0)),
            ],
            out_specs=pl.BlockSpec((block_m, N), lambda i: (i, 0)),
            compiler_params=pltpu.CompilerParams(
                dimension_semantics=("parallel",)),
        )(x, w, b)
    vmem = pl.BlockSpec(memory_space=pltpu.MemorySpace.VMEM)
    return pl.pallas_call(
        _gemm_bias_relu_kernel,
        out_shape=jax.ShapeDtypeStruct((M, N), out_dtype),
        in_specs=[vmem, vmem, vmem],
        out_specs=vmem,
    )(x, w, b)


def conv4_mu(p4, params):
    """Fused conv4 + fc_mu (anchor-encoding path)."""
    M4, _ = p4.shape
    N4 = params["w4"].shape[1]
    B = M4 // params["w_mu"].shape[0]
    Z = params["b_mu"].shape[1]
    vmem = pl.BlockSpec(memory_space=pltpu.MemorySpace.VMEM)
    return pl.pallas_call(
        _mu_kernel,
        out_shape=jax.ShapeDtypeStruct((B, Z), jnp.float32),
        in_specs=[vmem] * 5,
        out_specs=vmem,
        scratch_shapes=[pltpu.VMEM((M4, N4), jnp.float32)],
    )(p4, params["w4"], params["b4"], params["w_mu"], params["b_mu"])


def conv4_mu_sim(p4, anchors_n, params):
    """Fused conv4 + fc_mu + normalize + similarity + argmax/max."""
    M4, _ = p4.shape
    N4 = params["w4"].shape[1]
    B = M4 // params["w_mu"].shape[0]
    Z = params["b_mu"].shape[1]
    A = anchors_n.shape[0]
    vmem = pl.BlockSpec(memory_space=pltpu.MemorySpace.VMEM)
    return pl.pallas_call(
        _mu_sim_kernel,
        out_shape=(
            jax.ShapeDtypeStruct((B, Z), jnp.float32),
            jax.ShapeDtypeStruct((B, A), jnp.float32),
            jax.ShapeDtypeStruct((B, 1), jnp.int32),
            jax.ShapeDtypeStruct((B, 1), jnp.float32),
        ),
        in_specs=[vmem] * 6,
        out_specs=(vmem, vmem, vmem, vmem),
        scratch_shapes=[pltpu.VMEM((M4, N4), jnp.float32)],
    )(p4, params["w4"], params["b4"], params["w_mu"], params["b_mu"], anchors_n)


# ----------------------------------------------------------------------------
# Plain-JAX glue: NHWC im2col (pure data movement, fused by XLA under jit)
# ----------------------------------------------------------------------------
def im2col_nhwc(x, k, stride, pad):
    """x (B,H,W,C) -> (B, Ho, Wo, k*k, C); feature order (kh, kw, c)."""
    B, H, W, C = x.shape
    Ho = (H + 2 * pad - k) // stride + 1
    Wo = (W + 2 * pad - k) // stride + 1
    xp = jnp.pad(x, ((0, 0), (pad, pad), (pad, pad), (0, 0)))
    slabs = []
    for i in range(k):
        for j in range(k):
            slabs.append(
                xp[:, i : i + (Ho - 1) * stride + 1 : stride,
                      j : j + (Wo - 1) * stride + 1 : stride, :]
            )  # (B, Ho, Wo, C)
    col = jnp.stack(slabs, axis=3)  # (B, Ho, Wo, k*k, C)
    return col, Ho, Wo


def conv_block(x, w, b):
    """4x4 / stride-2 / pad-1 conv + bias + ReLU as a Pallas GEMM, NHWC in/out."""
    B = x.shape[0]
    col, Ho, Wo = im2col_nhwc(x, 4, 2, 1)
    patches = col.reshape(B * Ho * Wo, -1).astype(jnp.bfloat16)
    y = gemm_bias_relu(patches, w, b)
    return y.reshape(B, Ho, Wo, w.shape[1])  # pure metadata reshape


def conv4_patches(a3):
    """Build conv4 patches with rows ordered (spatial_pos, batch) so the fused
    tail kernel can slice per-position blocks contiguously."""
    B, _, _, C = a3.shape
    col, Ho, Wo = im2col_nhwc(a3, 4, 2, 1)          # (B, 4, 4, 16, C)
    col = col.transpose(1, 2, 0, 3, 4)               # (4, 4, B, 16, C)  (tiny)
    return col.reshape(Ho * Wo * B, 16 * C).astype(jnp.bfloat16)


# ----------------------------------------------------------------------------
# VAEBEV encoder (mu path) and Encoder.forward equivalent
# ----------------------------------------------------------------------------
def init_params(key, ch=16, z=32, in_ch=1, hw=64):
    # Weight layouts are chosen for the Pallas lowering; to load real torch
    # weights, permute conv weights (Cout,Cin,kh,kw)->((kh,kw,Cin),Cout) and
    # fc_mu rows from NCHW-flatten to (spatial_pos, channel) once at init.
    ks = jax.random.split(key, 6)
    chans = [in_ch, ch, 2 * ch, 4 * ch, 8 * ch]
    params = {}
    for li in range(4):
        cin, cout = chans[li], chans[li + 1]
        w = jax.random.normal(ks[li], (16 * cin, cout), jnp.float32) * 0.05
        if li == 0:
            w = w / 255.0  # fold the /255.0 input scaling into conv1 weights
        params[f"w{li + 1}"] = w.astype(jnp.bfloat16)
        params[f"b{li + 1}"] = jnp.zeros((1, cout), jnp.float32)
    n_pos = (hw // 16) * (hw // 16)  # 16 spatial positions after 4 stride-2 convs
    params["w_mu"] = (
        jax.random.normal(ks[4], (n_pos, chans[-1], z), jnp.float32) * 0.05
    )
    params["b_mu"] = jnp.zeros((1, z), jnp.float32)
    return params


def bev_features(img_nchw, params):
    """(B,1,H,W) raw-pixel image -> conv4 patch matrix (16*B, 1024) bf16."""
    x = jnp.transpose(img_nchw, (0, 2, 3, 1))  # NCHW -> NHWC (C=1: trivial)
    a1 = conv_block(x, params["w1"], params["b1"])   # (B,32,32,16)
    a2 = conv_block(a1, params["w2"], params["b2"])  # (B,16,16,32)
    a3 = conv_block(a2, params["w3"], params["b3"])  # (B, 8, 8,64)
    return conv4_patches(a3)


def encode_mu(img_nchw, params):
    """VAE encoder mu embedding, used for anchors at init time."""
    return conv4_mu(bev_features(img_nchw, params), params)


def encoder_forward(img_nchw, anchors_n, params):
    """Equivalent of Encoder.forward: (ys, (max_vals, max_idx), image_embed)."""
    p4 = bev_features(img_nchw, params)
    mu, sims, idx, mx = conv4_mu_sim(p4, anchors_n, params)
    ys = idx[:, 0]
    return ys, (mx[:, 0], ys), mu


if __name__ == "__main__":
    key = jax.random.PRNGKey(0)
    k_param, k_anchor, k_img = jax.random.split(key, 3)

    B, H, W, Z, A = 2, 64, 64, 32, 5
    params = init_params(k_param, ch=16, z=Z, in_ch=1, hw=H)

    # __init__ equivalent: encode synthetic anchor BEV images and pre-normalize
    # them once (they are constant -> per-forward anchor norm removed).
    anchor_imgs = jax.random.uniform(
        k_anchor, (A, 1, H, W), jnp.float32, minval=0.0, maxval=255.0
    )
    anchors_mu = jax.jit(encode_mu)(anchor_imgs, params)
    anchors_n = anchors_mu / jnp.maximum(
        jnp.linalg.norm(anchors_mu, axis=1, keepdims=True), 1e-12
    )

    # forward on a small batch of query images (raw 0..255 pixels)
    img = jax.random.uniform(k_img, (B, 1, H, W), jnp.float32, minval=0.0, maxval=255.0)

    fwd = jax.jit(encoder_forward)
    ys, (max_vals, max_idx), image_embed = fwd(img, anchors_n, params)
    jax.block_until_ready((ys, max_vals, max_idx, image_embed))

    assert ys.shape == (B,) and ys.dtype == jnp.int32
    assert max_vals.shape == (B,) and max_vals.dtype == jnp.float32
    assert image_embed.shape == (B, Z) and image_embed.dtype == jnp.float32
    assert max_idx.shape == (B,)
    print("KERNEL_OK")
</pallas_src>

<mosaic_0001>
module attributes {stable_mosaic.version = 11 : i64} {
  func.func @_gemm_bias_relu_kernel(%arg0: i32, %arg1: memref<1024x16xbf16, #tpu.memory_space<vmem>>, %arg2: memref<16x16xbf16, #tpu.memory_space<vmem>>, %arg3: memref<1x16xf32, #tpu.memory_space<vmem>>, %arg4: memref<1024x16xbf16, #tpu.memory_space<vmem>>) attributes {dimension_semantics = [#tpu.dimension_semantics<parallel>], iteration_bounds = array<i64: 5>, scalar_prefetch = 0 : i64, scratch_operands = 0 : i64, tpu.core_type = #tpu.core_type<tc>, window_params = [{transform_indices = @transform_0, window_bounds = array<i64: 1024, 16>}, {pipeline_mode = #tpu.pipeline_mode<synchronous>, transform_indices = @transform_1, window_bounds = array<i64: 16, 16>}, {pipeline_mode = #tpu.pipeline_mode<synchronous>, transform_indices = @transform_2, window_bounds = array<i64: 1, 16>}, {transform_indices = @transform_3, window_bounds = array<i64: 1024, 16>}]} {
    %c0 = arith.constant 0 : index
    %c0_0 = arith.constant 0 : index
    %0 = vector.load %arg1[%c0, %c0_0] : memref<1024x16xbf16, #tpu.memory_space<vmem>>, vector<1024x16xbf16>
    %c0_1 = arith.constant 0 : index
    %c0_2 = arith.constant 0 : index
    %1 = vector.load %arg2[%c0_1, %c0_2] : memref<16x16xbf16, #tpu.memory_space<vmem>>, vector<16x16xbf16>
    %cst = arith.constant dense<0.000000e+00> : vector<1024x16xf32>
    %2 = tpu.matmul %0, %1, %cst {dimension_numbers = #tpu.dot_dimension_numbers<[1], [0], [0], [1], [0, 0, 1, 1], [], []>} : vector<1024x16xbf16>, vector<16x16xbf16>, vector<1024x16xf32> -> vector<1024x16xf32>
    %c0_3 = arith.constant 0 : index
    %c0_4 = arith.constant 0 : index
    %3 = vector.load %arg3[%c0_3, %c0_4] : memref<1x16xf32, #tpu.memory_space<vmem>>, vector<1x16xf32>
    %4 = vector.broadcast %3 : vector<1x16xf32> to vector<1024x16xf32>
    %5 = arith.addf %2, %4 : vector<1024x16xf32>
    %cst_5 = arith.constant 0.000000e+00 : f32
    %6 = vector.broadcast %cst_5 : f32 to vector<1024x16xf32>
    %7 = arith.maximumf %5, %6 : vector<1024x16xf32>
    %8 = arith.truncf %7 : vector<1024x16xf32> to vector<1024x16xbf16>
    %c0_6 = arith.constant 0 : index
    %c0_7 = arith.constant 0 : index
    %9 = vector.load %arg4[%c0_6, %c0_7] : memref<1024x16xbf16, #tpu.memory_space<vmem>>, vector<1024x16xbf16>
    tpu.vector_store %arg4[%c0_6, %c0_7], %8 {strides = array<i32>} : memref<1024x16xbf16, #tpu.memory_space<vmem>>, vector<1024x16xbf16>,
    return
  }
  func.func @transform_0(%arg0: i32) -> (i32, i32) {
    %c0_i32 = arith.constant 0 : i32
    %c0_i32_0 = arith.constant 0 : i32
    return %arg0, %c0_i32 : i32, i32
  }
  func.func @transform_1(%arg0: i32) -> (i32, i32) {
    %c0_i32 = arith.constant 0 : i32
    %c0_i32_0 = arith.constant 0 : i32
    %c0_i32_1 = arith.constant 0 : i32
    return %c0_i32, %c0_i32_0 : i32, i32
  }
  func.func @transform_2(%arg0: i32) -> (i32, i32) {
    %c0_i32 = arith.constant 0 : i32
    %c0_i32_0 = arith.constant 0 : i32
    %c0_i32_1 = arith.constant 0 : i32
    return %c0_i32, %c0_i32_0 : i32, i32
  }
  func.func @transform_3(%arg0: i32) -> (i32, i32) {
    %c0_i32 = arith.constant 0 : i32
    %c0_i32_0 = arith.constant 0 : i32
    return %arg0, %c0_i32 : i32, i32
  }
}

module attributes {stable_mosaic.version = 11 : i64} {
  func.func @_gemm_bias_relu_kernel(%arg0: memref<1280x256xbf16, #tpu.memory_space<vmem>>, %arg1: memref<256x32xbf16, #tpu.memory_space<vmem>>, %arg2: memref<1x32xf32, #tpu.memory_space<vmem>>, %arg3: memref<1280x32xbf16, #tpu.memory_space<vmem>>) attributes {dimension_semantics = [], scalar_prefetch = 0 : i64, scratch_operands = 0 : i64, tpu.core_type = #tpu.core_type<tc>} {
    %c0 = arith.constant 0 : index
    %c0_0 = arith.constant 0 : index
    %0 = vector.load %arg0[%c0, %c0_0] : memref<1280x256xbf16, #tpu.memory_space<vmem>>, vector<1280x256xbf16>
    %c0_1 = arith.constant 0 : index
    %c0_2 = arith.constant 0 : index
    %1 = vector.load %arg1[%c0_1, %c0_2] : memref<256x32xbf16, #tpu.memory_space<vmem>>, vector<256x32xbf16>
    %cst = arith.constant dense<0.000000e+00> : vector<1280x32xf32>
    %2 = tpu.matmul %0, %1, %cst {dimension_numbers = #tpu.dot_dimension_numbers<[1], [0], [0], [1], [0, 0, 1, 1], [], []>} : vector<1280x256xbf16>, vector<256x32xbf16>, vector<1280x32xf32> -> vector<1280x32xf32>
    %c0_3 = arith.constant 0 : index
    %c0_4 = arith.constant 0 : index
    %3 = vector.load %arg2[%c0_3, %c0_4] : memref<1x32xf32, #tpu.memory_space<vmem>>, vector<1x32xf32>
    %4 = vector.broadcast %3 : vector<1x32xf32> to vector<1280x32xf32>
    %5 = arith.addf %2, %4 : vector<1280x32xf32>
    %cst_5 = arith.constant 0.000000e+00 : f32
    %6 = vector.broadcast %cst_5 : f32 to vector<1280x32xf32>
    %7 = arith.maximumf %5, %6 : vector<1280x32xf32>
    %8 = arith.truncf %7 : vector<1280x32xf32> to vector<1280x32xbf16>
    %c0_6 = arith.constant 0 : index
    %c0_7 = arith.constant 0 : index
    %9 = vector.load %arg3[%c0_6, %c0_7] : memref<1280x32xbf16, #tpu.memory_space<vmem>>, vector<1280x32xbf16>
    tpu.vector_store %arg3[%c0_6, %c0_7], %8 {strides = array<i32>} : memref<1280x32xbf16, #tpu.memory_space<vmem>>, vector<1280x32xbf16>,
    return
  }
}

module attributes {stable_mosaic.version = 11 : i64} {
  func.func @_gemm_bias_relu_kernel(%arg0: memref<320x512xbf16, #tpu.memory_space<vmem>>, %arg1: memref<512x64xbf16, #tpu.memory_space<vmem>>, %arg2: memref<1x64xf32, #tpu.memory_space<vmem>>, %arg3: memref<320x64xbf16, #tpu.memory_space<vmem>>) attributes {dimension_semantics = [], scalar_prefetch = 0 : i64, scratch_operands = 0 : i64, tpu.core_type = #tpu.core_type<tc>} {
    %c0 = arith.constant 0 : index
    %c0_0 = arith.constant 0 : index
    %0 = vector.load %arg0[%c0, %c0_0] : memref<320x512xbf16, #tpu.memory_space<vmem>>, vector<320x512xbf16>
    %c0_1 = arith.constant 0 : index
    %c0_2 = arith.constant 0 : index
    %1 = vector.load %arg1[%c0_1, %c0_2] : memref<512x64xbf16, #tpu.memory_space<vmem>>, vector<512x64xbf16>
    %cst = arith.constant dense<0.000000e+00> : vector<320x64xf32>
    %2 = tpu.matmul %0, %1, %cst {dimension_numbers = #tpu.dot_dimension_numbers<[1], [0], [0], [1], [0, 0, 1, 1], [], []>} : vector<320x512xbf16>, vector<512x64xbf16>, vector<320x64xf32> -> vector<320x64xf32>
    %c0_3 = arith.constant 0 : index
    %c0_4 = arith.constant 0 : index
    %3 = vector.load %arg2[%c0_3, %c0_4] : memref<1x64xf32, #tpu.memory_space<vmem>>, vector<1x64xf32>
    %4 = vector.broadcast %3 : vector<1x64xf32> to vector<320x64xf32>
    %5 = arith.addf %2, %4 : vector<320x64xf32>
    %cst_5 = arith.constant 0.000000e+00 : f32
    %6 = vector.broadcast %cst_5 : f32 to vector<320x64xf32>
    %7 = arith.maximumf %5, %6 : vector<320x64xf32>
    %8 = arith.truncf %7 : vector<320x64xf32> to vector<320x64xbf16>
    %c0_6 = arith.constant 0 : index
    %c0_7 = arith.constant 0 : index
    %9 = vector.load %arg3[%c0_6, %c0_7] : memref<320x64xbf16, #tpu.memory_space<vmem>>, vector<320x64xbf16>
    tpu.vector_store %arg3[%c0_6, %c0_7], %8 {strides = array<i32>} : memref<320x64xbf16, #tpu.memory_space<vmem>>, vector<320x64xbf16>,
    return
  }
}

module attributes {stable_mosaic.version = 11 : i64} {
  func.func @_mu_kernel(%arg0: memref<80x1024xbf16, #tpu.memory_space<vmem>>, %arg1: memref<1024x128xbf16, #tpu.memory_space<vmem>>, %arg2: memref<1x128xf32, #tpu.memory_space<vmem>>, %arg3: memref<16x128x32xf32, #tpu.memory_space<vmem>>, %arg4: memref<1x32xf32, #tpu.memory_space<vmem>>, %arg5: memref<5x32xf32, #tpu.memory_space<vmem>>, %arg6: memref<80x128xf32, #tpu.memory_space<vmem>>) attributes {dimension_semantics = [], scalar_prefetch = 0 : i64, scratch_operands = 1 : i64, tpu.core_type = #tpu.core_type<tc>} {
    %c0 = arith.constant 0 : index
    %c0_0 = arith.constant 0 : index
    %0 = vector.load %arg0[%c0, %c0_0] : memref<80x1024xbf16, #tpu.memory_space<vmem>>, vector<80x1024xbf16>
    %c0_1 = arith.constant 0 : index
    %c0_2 = arith.constant 0 : index
    %1 = vector.load %arg1[%c0_1, %c0_2] : memref<1024x128xbf16, #tpu.memory_space<vmem>>, vector<1024x128xbf16>
    %cst = arith.constant dense<0.000000e+00> : vector<80x128xf32>
    %2 = tpu.matmul %0, %1, %cst {dimension_numbers = #tpu.dot_dimension_numbers<[1], [0], [0], [1], [0, 0, 1, 1], [], []>} : vector<80x1024xbf16>, vector<1024x128xbf16>, vector<80x128xf32> -> vector<80x128xf32>
    %c0_3 = arith.constant 0 : index
    %c0_4 = arith.constant 0 : index
    %3 = vector.load %arg2[%c0_3, %c0_4] : memref<1x128xf32, #tpu.memory_space<vmem>>, vector<1x128xf32>
    %4 = vector.broadcast %3 : vector<1x128xf32> to vector<80x128xf32>
    %5 = arith.addf %2, %4 : vector<80x128xf32>
    %cst_5 = arith.constant 0.000000e+00 : f32
    %6 = vector.broadcast %cst_5 : f32 to vector<80x128xf32>
    %7 = arith.maximumf %5, %6 : vector<80x128xf32>
    %c0_6 = arith.constant 0 : index
    %c0_7 = arith.constant 0 : index
    %8 = vector.load %arg6[%c0_6, %c0_7] : memref<80x128xf32, #tpu.memory_space<vmem>>, vector<80x128xf32>
    tpu.vector_store %arg6[%c0_6, %c0_7], %7 {strides = array<i32>} : memref<80x128xf32, #tpu.memory_space<vmem>>, vector<80x128xf32>,
    %cst_8 = arith.constant 0.000000e+00 : f32
    %9 = vector.broadcast %cst_8 : f32 to vector<5x32xf32>
    %c0_9 = arith.constant 0 : index
    %c0_10 = arith.constant 0 : index
    %10 = vector.load %arg6[%c0_9, %c0_10] : memref<80x128xf32, #tpu.memory_space<vmem>>, vector<5x128xf32>
    %c0_11 = arith.constant 0 : index
    %c0_12 = arith.constant 0 : index
    %c0_13 = arith.constant 0 : index
    %11 = vector.load %arg3[%c0_11, %c0_12, %c0_13] : memref<16x128x32xf32, #tpu.memory_space<vmem>>, vector<1x128x32xf32>
    %12 = vector.shape_cast %11 : vector<1x128x32xf32> to vector<128x32xf32>
    %cst_14 = arith.constant dense<0.000000e+00> : vector<5x32xf32>
    %13 = tpu.matmul %10, %12, %cst_14 {dimension_numbers = #tpu.dot_dimension_numbers<[1], [0], [0], [1], [0, 0, 1, 1], [], []>} : vector<5x128xf32>, vector<128x32xf32>, vector<5x32xf32> -> vector<5x32xf32>
    %14 = arith.addf %9, %13 : vector<5x32xf32>
    %c5 = arith.constant 5 : index
    %c0_15 = arith.constant 0 : index
    %15 = vector.load %arg6[%c5, %c0_15] : memref<80x128xf32, #tpu.memory_space<vmem>>, vector<5x128xf32>
    %c1 = arith.constant 1 : index
    %c0_16 = arith.constant 0 : index
    %c0_17 = arith.constant 0 : index
    %16 = vector.load %arg3[%c1, %c0_16, %c0_17] : memref<16x128x32xf32, #tpu.memory_space<vmem>>, vector<1x128x32xf32>
    %17 = vector.shape_cast %16 : vector<1x128x32xf32> to vector<128x32xf32>
    %cst_18 = arith.constant dense<0.000000e+00> : vector<5x32xf32>
    %18 = tpu.matmul %15, %17, %cst_18 {dimension_numbers = #tpu.dot_dimension_numbers<[1], [0], [0], [1], [0, 0, 1, 1], [], []>} : vector<5x128xf32>, vector<128x32xf32>, vector<5x32xf32> -> vector<5x32xf32>
    %19 = arith.addf %14, %18 : vector<5x32xf32>
    %c10 = arith.constant 10 : index
    %c0_19 = arith.constant 0 : index
    %20 = vector.load %arg6[%c10, %c0_19] : memref<80x128xf32, #tpu.memory_space<vmem>>, vector<5x128xf32>
    %c2 = arith.constant 2 : index
    %c0_20 = arith.constant 0 : index
    %c0_21 = arith.constant 0 : index
    %21 = vector.load %arg3[%c2, %c0_20, %c0_21] : memref<16x128x32xf32, #tpu.memory_space<vmem>>, vector<1x128x32xf32>
    %22 = vector.shape_cast %21 : vector<1x128x32xf32> to vector<128x32xf32>
    %cst_22 = arith.constant dense<0.000000e+00> : vector<5x32xf32>
    %23 = tpu.matmul %20, %22, %cst_22 {dimension_numbers = #tpu.dot_dimension_numbers<[1], [0], [0], [1], [0, 0, 1, 1], [], []>} : vector<5x128xf32>, vector<128x32xf32>, vector<5x32xf32> -> vector<5x32xf32>
    %24 = arith.addf %19, %23 : vector<5x32xf32>
    %c15 = arith.constant 15 : index
    %c0_23 = arith.constant 0 : index
    %25 = vector.load %arg6[%c15, %c0_23] : memref<80x128xf32, #tpu.memory_space<vmem>>, vector<5x128xf32>
    %c3 = arith.constant 3 : index
    %c0_24 = arith.constant 0 : index
    %c0_25 = arith.constant 0 : index
    %26 = vector.load %arg3[%c3, %c0_24, %c0_25] : memref<16x128x32xf32, #tpu.memory_space<vmem>>, vector<1x128x32xf32>
    %27 = vector.shape_cast %26 : vector<1x128x32xf32> to vector<128x32xf32>
    %cst_26 = arith.constant dense<0.000000e+00> : vector<5x32xf32>
    %28 = tpu.matmul %25, %27, %cst_26 {dimension_numbers = #tpu.dot_dimension_numbers<[1], [0], [0], [1], [0, 0, 1, 1], [], []>} : vector<5x128xf32>, vector<128x32xf32>, vector<5x32xf32> -> vector<5x32xf32>
    %29 = arith.addf %24, %28 : vector<5x32xf32>
    %c20 = arith.constant 20 : index
    %c0_27 = arith.constant 0 : index
    %30 = vector.load %arg6[%c20, %c0_27] : memref<80x128xf32, #tpu.memory_space<vmem>>, vector<5x128xf32>
    %c4 = arith.constant 4 : index
    %c0_28 = arith.constant 0 : index
    %c0_29 = arith.constant 0 : index
    %31 = vector.load %arg3[%c4, %c0_28, %c0_29] : memref<16x128x32xf32, #tpu.memory_space<vmem>>, vector<1x128x32xf32>
    %32 = vector.shape_cast %31 : vector<1x128x32xf32> to vector<128x32xf32>
    %cst_30 = arith.constant dense<0.000000e+00> : vector<5x32xf32>
    %33 = tpu.matmul %30, %32, %cst_30 {dimension_numbers = #tpu.dot_dimension_numbers<[1], [0], [0], [1], [0, 0, 1, 1], [], []>} : vector<5x128xf32>, vector<128x32xf32>, vector<5x32xf32> -> vector<5x32xf32>
    %34 = arith.addf %29, %33 : vector<5x32xf32>
    %c25 = arith.constant 25 : index
    %c0_31 = arith.constant 0 : index
    %35 = vector.load %arg6[%c25, %c0_31] : memref<80x128xf32, #tpu.memory_space<vmem>>, vector<5x128xf32>
    %c5_32 = arith.constant 5 : index
    %c0_33 = arith.constant 0 : index
    %c0_34 = arith.constant 0 : index
    %36 = vector.load %arg3[%c5_32, %c0_33, %c0_34] : memref<16x128x32xf32, #tpu.memory_space<vmem>>, vector<1x128x32xf32>
    %37 = vector.shape_cast %36 : vector<1x128x32xf32> to vector<128x32xf32>
    %cst_35 = arith.constant dense<0.000000e+00> : vector<5x32xf32>
    %38 = tpu.matmul %35, %37, %cst_35 {dimension_numbers = #tpu.dot_dimension_numbers<[1], [0], [0], [1], [0, 0, 1, 1], [], []>} : vector<5x128xf32>, vector<128x32xf32>, vector<5x32xf32> -> vector<5x32xf32>
    %39 = arith.addf %34, %38 : vector<5x32xf32>
    %c30 = arith.constant 30 : index
    %c0_36 = arith.constant 0 : index
    %40 = vector.load %arg6[%c30, %c0_36] : memref<80x128xf32, #tpu.memory_space<vmem>>, vector<5x128xf32>
    %c6 = arith.constant 6 : index
    %c0_37 = arith.constant 0 : index
    %c0_38 = arith.constant 0 : index
    %41 = vector.load %arg3[%c6, %c0_37, %c0_38] : memref<16x128x32xf32, #tpu.memory_space<vmem>>, vector<1x128x32xf32>
    %42 = vector.shape_cast %41 : vector<1x128x32xf32> to vector<128x32xf32>
    %cst_39 = arith.constant dense<0.000000e+00> : vector<5x32xf32>
    %43 = tpu.matmul %40, %42, %cst_39 {dimension_numbers = #tpu.dot_dimension_numbers<[1], [0], [0], [1], [0, 0, 1, 1], [], []>} : vector<5x128xf32>, vector<128x32xf32>, vector<5x32xf32> -> vector<5x32xf32>
    %44 = arith.addf %39, %43 : vector<5x32xf32>
    %c35 = arith.constant 35 : index
    %c0_40 = arith.constant 0 : index
    %45 = vector.load %arg6[%c35, %c0_40] : memref<80x128xf32, #tpu.memory_space<vmem>>, vector<5x128xf32>
    %c7 = arith.constant 7 : index
    %c0_41 = arith.constant 0 : index
    %c0_42 = arith.constant 0 : index
    %46 = vector.load %arg3[%c7, %c0_41, %c0_42] : memref<16x128x32xf32, #tpu.memory_space<vmem>>, vector<1x128x32xf32>
    %47 = vector.shape_cast %46 : vector<1x128x32xf32> to vector<128x32xf32>
    %cst_43 = arith.constant dense<0.000000e+00> : vector<5x32xf32>
    %48 = tpu.matmul %45, %47, %cst_43 {dimension_numbers = #tpu.dot_dimension_numbers<[1], [0], [0], [1], [0, 0, 1, 1], [], []>} : vector<5x128xf32>, vector<128x32xf32>, vector<5x32xf32> -> vector<5x32xf32>
    %49 = arith.addf %44, %48 : vector<5x32xf32>
    %c40 = arith.constant 40 : index
    %c0_44 = arith.constant 0 : index
    %50 = vector.load %arg6[%c40, %c0_44] : memref<80x128xf32, #tpu.memory_space<vmem>>, vector<5x128xf32>
    %c8 = arith.constant 8 : index
    %c0_45 = arith.constant 0 : index
    %c0_46 = arith.constant 0 : index
    %51 = vector.load %arg3[%c8, %c0_45, %c0_46] : memref<16x128x32xf32, #tpu.memory_space<vmem>>, vector<1x128x32xf32>
    %52 = vector.shape_cast %51 : vector<1x128x32xf32> to vector<128x32xf32>
    %cst_47 = arith.constant dense<0.000000e+00> : vector<5x32xf32>
    %53 = tpu.matmul %50, %52, %cst_47 {dimension_numbers = #tpu.dot_dimension_numbers<[1], [0], [0], [1], [0, 0, 1, 1], [], []>} : vector<5x128xf32>, vector<128x32xf32>, vector<5x32xf32> -> vector<5x32xf32>
    %54 = arith.addf %49, %53 : vector<5x32xf32>
    %c45 = arith.constant 45 : index
    %c0_48 = arith.constant 0 : index
    %55 = vector.load %arg6[%c45, %c0_48] : memref<80x128xf32, #tpu.memory_space<vmem>>, vector<5x128xf32>
    %c9 = arith.constant 9 : index
    %c0_49 = arith.constant 0 : index
    %c0_50 = arith.constant 0 : index
    %56 = vector.load %arg3[%c9, %c0_49, %c0_50] : memref<16x128x32xf32, #tpu.memory_space<vmem>>, vector<1x128x32xf32>
    %57 = vector.shape_cast %56 : vector<1x128x32xf32> to vector<128x32xf32>
    %cst_51 = arith.constant dense<0.000000e+00> : vector<5x32xf32>
    %58 = tpu.matmul %55, %57, %cst_51 {dimension_numbers = #tpu.dot_dimension_numbers<[1], [0], [0], [1], [0, 0, 1, 1], [], []>} : vector<5x128xf32>, vector<128x32xf32>, vector<5x32xf32> -> vector<5x32xf32>
    %59 = arith.addf %54, %58 : vector<5x32xf32>
    %c50 = arith.constant 50 : index
    %c0_52 = arith.constant 0 : index
    %60 = vector.load %arg6[%c50, %c0_52] : memref<80x128xf32, #tpu.memory_space<vmem>>, vector<5x128xf32>
    %c10_53 = arith.constant 10 : index
    %c0_54 = arith.constant 0 : index
    %c0_55 = arith.constant 0 : index
    %61 = vector.load %arg3[%c10_53, %c0_54, %c0_55] : memref<16x128x32xf32, #tpu.memory_space<vmem>>, vector<1x128x32xf32>
    %62 = vector.shape_cast %61 : vector<1x128x32xf32> to vector<128x32xf32>
    %cst_56 = arith.constant dense<0.000000e+00> : vector<5x32xf32>
    %63 = tpu.matmul %60, %62, %cst_56 {dimension_numbers = #tpu.dot_dimension_numbers<[1], [0], [0], [1], [0, 0, 1, 1], [], []>} : vector<5x128xf32>, vector<128x32xf32>, vector<5x32xf32> -> vector<5x32xf32>
    %64 = arith.addf %59, %63 : vector<5x32xf32>
    %c55 = arith.constant 55 : index
    %c0_57 = arith.constant 0 : index
    %65 = vector.load %arg6[%c55, %c0_57] : memref<80x128xf32, #tpu.memory_space<vmem>>, vector<5x128xf32>
    %c11 = arith.constant 11 : index
    %c0_58 = arith.constant 0 : index
    %c0_59 = arith.constant 0 : index
    %66 = vector.load %arg3[%c11, %c0_58, %c0_59] : memref<16x128x32xf32, #tpu.memory_space<vmem>>, vector<1x128x32xf32>
    %67 = vector.shape_cast %66 : vector<1x128x32xf32> to vector<128x32xf32>
    %cst_60 = arith.constant dense<0.000000e+00> : vector<5x32xf32>
    %68 = tpu.matmul %65, %67, %cst_60 {dimension_numbers = #tpu.dot_dimension_numbers<[1], [0], [0], [1], [0, 0, 1, 1], [], []>} : vector<5x128xf32>, vector<128x32xf32>, vector<5x32xf32> -> vector<5x32xf32>
    %69 = arith.addf %64, %68 : vector<5x32xf32>
    %c60 = arith.constant 60 : index
    %c0_61 = arith.constant 0 : index
    %70 = vector.load %arg6[%c60, %c0_61] : memref<80x128xf32, #tpu.memory_space<vmem>>, vector<5x128xf32>
    %c12 = arith.constant 12 : index
    %c0_62 = arith.constant 0 : index
    %c0_63 = arith.constant 0 : index
    %71 = vector.load %arg3[%c12, %c0_62, %c0_63] : memref<16x128x32xf32, #tpu.memory_space<vmem>>, vector<1x128x32xf32>
    %72 = vector.shape_cast %71 : vector<1x128x32xf32> to vector<128x32xf32>
    %cst_64 = arith.constant dense<0.000000e+00> : vector<5x32xf32>
    %73 = tpu.matmul %70, %72, %cst_64 {dimension_numbers = #tpu.dot_dimension_numbers<[1], [0], [0], [1], [0, 0, 1, 1], [], []>} : vector<5x128xf32>, vector<128x32xf32>, vector<5x32xf32> -> vector<5x32xf32>
    %74 = arith.addf %69, %73 : vector<5x32xf32>
    %c65 = arith.constant 65 : index
    %c0_65 = arith.constant 0 : index
    %75 = vector.load %arg6[%c65, %c0_65] : memref<80x128xf32, #tpu.memory_space<vmem>>, vector<5x128xf32>
    %c13 = arith.constant 13 : index
    %c0_66 = arith.constant 0 : index
    %c0_67 = arith.constant 0 : index
    %76 = vector.load %arg3[%c13, %c0_66, %c0_67] : memref<16x128x32xf32, #tpu.memory_space<vmem>>, vector<1x128x32xf32>
    %77 = vector.shape_cast %76 : vector<1x128x32xf32> to vector<128x32xf32>
    %cst_68 = arith.constant dense<0.000000e+00> : vector<5x32xf32>
    %78 = tpu.matmul %75, %77, %cst_68 {dimension_numbers = #tpu.dot_dimension_numbers<[1], [0], [0], [1], [0, 0, 1, 1], [], []>} : vector<5x128xf32>, vector<128x32xf32>, vector<5x32xf32> -> vector<5x32xf32>
    %79 = arith.addf %74, %78 : vector<5x32xf32>
    %c70 = arith.constant 70 : index
    %c0_69 = arith.constant 0 : index
    %80 = vector.load %arg6[%c70, %c0_69] : memref<80x128xf32, #tpu.memory_space<vmem>>, vector<5x128xf32>
    %c14 = arith.constant 14 : index
    %c0_70 = arith.constant 0 : index
    %c0_71 = arith.constant 0 : index
    %81 = vector.load %arg3[%c14, %c0_70, %c0_71] : memref<16x128x32xf32, #tpu.memory_space<vmem>>, vector<1x128x32xf32>
    %82 = vector.shape_cast %81 : vector<1x128x32xf32> to vector<128x32xf32>
    %cst_72 = arith.constant dense<0.000000e+00> : vector<5x32xf32>
    %83 = tpu.matmul %80, %82, %cst_72 {dimension_numbers = #tpu.dot_dimension_numbers<[1], [0], [0], [1], [0, 0, 1, 1], [], []>} : vector<5x128xf32>, vector<128x32xf32>, vector<5x32xf32> -> vector<5x32xf32>
    %84 = arith.addf %79, %83 : vector<5x32xf32>
    %c75 = arith.constant 75 : index
    %c0_73 = arith.constant 0 : index
    %85 = vector.load %arg6[%c75, %c0_73] : memref<80x128xf32, #tpu.memory_space<vmem>>, vector<5x128xf32>
    %c15_74 = arith.constant 15 : index
    %c0_75 = arith.constant 0 : index
    %c0_76 = arith.constant 0 : index
    %86 = vector.load %arg3[%c15_74, %c0_75, %c0_76] : memref<16x128x32xf32, #tpu.memory_space<vmem>>, vector<1x128x32xf32>
    %87 = vector.shape_cast %86 : vector<1x128x32xf32> to vector<128x32xf32>
    %cst_77 = arith.constant dense<0.000000e+00> : vector<5x32xf32>
    %88 = tpu.matmul %85, %87, %cst_77 {dimension_numbers = #tpu.dot_dimension_numbers<[1], [0], [0], [1], [0, 0, 1, 1], [], []>} : vector<5x128xf32>, vector<128x32xf32>, vector<5x32xf32> -> vector<5x32xf32>
    %89 = arith.addf %84, %88 : vector<5x32xf32>
    %c0_78 = arith.constant 0 : index
    %c0_79 = arith.constant 0 : index
    %90 = vector.load %arg4[%c0_78, %c0_79] : memref<1x32xf32, #tpu.memory_space<vmem>>, vector<1x32xf32>
    %91 = vector.broadcast %90 : vector<1x32xf32> to vector<5x32xf32>
    %92 = arith.addf %89, %91 : vector<5x32xf32>
    %c0_80 = arith.constant 0 : index
    %c0_81 = arith.constant 0 : index
    %93 = vector.load %arg5[%c0_80, %c0_81] : memref<5x32xf32, #tpu.memory_space<vmem>>, vector<5x32xf32>
    tpu.vector_store %arg5[%c0_80, %c0_81], %92 {strides = array<i32>} : memref<5x32xf32, #tpu.memory_space<vmem>>, vector<5x32xf32>,
    return
  }
}

</mosaic_0001>

<llo_original>
// kernel: encode_mu.4
$region0: #{encode_mu.4}
  #allocation0 [shape = 'u32[]', space=smem, size = 0x4, offset = 0x4, fixed_abs, tag = 'smem constant byte address 0x4 - core index']
  #allocation1 [shape = 'u32[144,128]{1,0:T(1,128)}', space=vmem, size = 0x12000, scoped, tag = 'internal scratch']
  %s0 = inlined_call_operand.vmem [shape: bf16[5120,16], index: 0, kind: input, shape index: {}]
  %s1 = inlined_call_operand.vmem [shape: bf16[16,16], index: 1, kind: input, shape index: {}]
  %s2 = inlined_call_operand.vmem [shape: f32[1,16], index: 2, kind: input, shape index: {}]
  %s3 = inlined_call_operand.vmem [shape: bf16[5120,16], index: 3, kind: output, shape index: {}]
  %s4 = sld [smem:[#allocation0]]
  $region45: #{encode_mu.4} parent=0
    _
  %s6 = ssub.s32 1, %s4
  %s7 = scalar_select 0, %s6, %s4
  loop: start=0, step=1, limit=7
  $region2: #{encode_mu.4} parent=0 // loop_pre_header
    _
  $region3: #{encode_mu.4} parent=0 // loop_header
    %s9 = sphi 0, %s13
    %p10 = scmp.ge.s32.totalorder %s9, 7
    %s19 = sphi 0, %s21
    %s22 = sphi 0, %s19
    %s23 = sphi 0, %s22
    %s39 = sphi 0, %s23
    %s43 = sphi 0, %s43
    %s45 = sphi 0, %s43
    %s46 = sphi 0, %s45
    %s60 = sphi 0, %s46
    %s64 = sphi 0, %s64
    %s66 = sphi 0, %s64
    %s67 = sphi 0, %s66
    %s81 = sphi 0, %s67
    %s87 = sphi 0, %s89
    %s90 = sphi 0, %s87
    %s91 = sphi 0, %s90
    %s107 = sphi 0, %s91
  $region4: #{encode_mu.4} parent=0 // loop_header_branch
    %12 = sbr.rel (%p10) target = $region8
  $region5: #{encode_mu.4} parent=0 // loop_body
    %s14 = ssub.s32 %s9, 1
    %s15 = ssub.s32 %s9, 2
    %s16 = sadd.s32 %s9, 1
    %s17 = ssub.s32 %s9, %s16
    %p18 = scmp.eq.s32.totalorder %s17, 0
    %s20 = sadd.s32 %s19, 1
    %s21 = scalar_select %p18, %s19, %s20
    %p24 = pneg %p18
    %p25 = scmp.eq.s32.totalorder %s9, 4
    %p26 = por %p24, %p25
    %p27 = scmp.ne.s32.totalorder %s19, %s22
    %p28 = scmp.eq.s32.totalorder %s9, 0
    %p29 = por %p27, %p28
    %p30 = scmp.ne.s32.totalorder %s19, %s22
    %p31 = scmp.eq.s32.totalorder %s14, 4
    %p32 = por %p30, %p31
    %p33 = scmp.ne.s32.totalorder %s22, %s23
    %p34 = scmp.eq.s32.totalorder %s14, 0
    %p35 = por %p33, %p34
    %p36 = scmp.ne.s32.totalorder %s22, %s23
    %p37 = scmp.eq.s32.totalorder %s15, 4
    %p38 = por %p36, %p37
    %p40 = scmp.ne.s32.totalorder %s23, %s39
    %p41 = scmp.eq.s32.totalorder %s15, 0
    %p42 = por %p40, %p41
    %s44 = sadd.s32 %s43, 1
    %p47 = scmp.eq.s32.totalorder %s9, 4
    %p48 = scmp.ne.s32.totalorder %s43, %s45
    %p49 = scmp.eq.s32.totalorder %s9, 0
    %p50 = por %p48, %p49
    %p51 = scmp.ne.s32.totalorder %s43, %s45
    %p52 = scmp.eq.s32.totalorder %s14, 4
    %p53 = por %p51, %p52
    %p54 = scmp.ne.s32.totalorder %s45, %s46
    %p55 = scmp.eq.s32.totalorder %s14, 0
    %p56 = por %p54, %p55
    %p57 = scmp.ne.s32.totalorder %s45, %s46
    %p58 = scmp.eq.s32.totalorder %s15, 4
    %p59 = por %p57, %p58
    %p61 = scmp.ne.s32.totalorder %s46, %s60
    %p62 = scmp.eq.s32.totalorder %s15, 0
    %p63 = por %p61, %p62
    %s65 = sadd.s32 %s64, 1
    %p68 = scmp.eq.s32.totalorder %s9, 4
    %p69 = scmp.ne.s32.totalorder %s64, %s66
    %p70 = scmp.eq.s32.totalorder %s9, 0
    %p71 = por %p69, %p70
    %p72 = scmp.ne.s32.totalorder %s64, %s66
    %p73 = scmp.eq.s32.totalorder %s14, 4
    %p74 = por %p72, %p73
    %p75 = scmp.ne.s32.totalorder %s66, %s67
    %p76 = scmp.eq.s32.totalorder %s14, 0
    %p77 = por %p75, %p76
    %p78 = scmp.ne.s32.totalorder %s66, %s67
    %p79 = scmp.eq.s32.totalorder %s15, 4
    %p80 = por %p78, %p79
    %p82 = scmp.ne.s32.totalorder %s67, %s81
    %p83 = scmp.eq.s32.totalorder %s15, 0
    %p84 = por %p82, %p83
    %s85 = ssub.s32 %s9, %s16
    %p86 = scmp.eq.s32.totalorder %s85, 0
    %s88 = sadd.s32 %s87, 1
    %s89 = scalar_select %p86, %s87, %s88
    %p92 = pneg %p86
    %p93 = scmp.eq.s32.totalorder %s9, 4
    %p94 = por %p92, %p93
    %p95 = scmp.ne.s32.totalorder %s87, %s90
    %p96 = scmp.eq.s32.totalorder %s9, 0
    %p97 = por %p95, %p96
    %p98 = scmp.ne.s32.totalorder %s87, %s90
    %p99 = scmp.eq.s32.totalorder %s14, 4
    %p100 = por %p98, %p99
    %p101 = scmp.ne.s32.totalorder %s90, %s91
    %p102 = scmp.eq.s32.totalorder %s14, 0
    %p103 = por %p101, %p102
    %p104 = scmp.ne.s32.totalorder %s90, %s91
    %p105 = scmp.eq.s32.totalorder %s15, 4
    %p106 = por %p104, %p105
    %p108 = scmp.ne.s32.totalorder %s91, %s107
    %p109 = scmp.eq.s32.totalorder %s15, 0
    %p110 = por %p108, %p109
    %p111 = scmp.le.s32.totalorder 1, %s9
    %p112 = scmp.lt.s32.totalorder %s9, 6
    %p113 = pnand %p111, %p112
    %p114 = pneg %p113
    // Predicated region
    $region9: #{encode_mu.4} parent=5 // pred_check
      _
    $region10: #{encode_mu.4} parent=5 // pred_check_branch
      %116 = sbr.rel (%p113) target = $region12
    $region11: #{encode_mu.4} parent=5 // pred_region
      %s117 = ssub.s32 %s9, 1
      // Predicated region
      $region13: #{encode_mu.4} parent=11 // pred_check
        %p118 = pneg %p56
      $region14: #{encode_mu.4} parent=11 // pred_check_branch
        %120 = sbr.rel (%p118) target = $region16
      $region15: #{encode_mu.4} parent=11 // pred_region
        _
      $region16: #{encode_mu.4} parent=11 // pred_fallthru
        _
      // Predicated region
      $region17: #{encode_mu.4} parent=11 // pred_check
        %p121 = pneg %p77
      $region18: #{encode_mu.4} parent=11 // pred_check_branch
        %123 = sbr.rel (%p121) target = $region20
      $region19: #{encode_mu.4} parent=11 // pred_region
        _
      $region20: #{encode_mu.4} parent=11 // pred_fallthru
        _
    $region12: #{encode_mu.4} parent=5 // pred_fallthru
      _
    %p124 = scmp.lt.s32.totalorder %s9, 5
    // Predicated region
    $region21: #{encode_mu.4} parent=5 // pred_check
      %p125 = pneg %p124
    $region22: #{encode_mu.4} parent=5 // pred_check_branch
      %127 = sbr.rel (%p125) target = $region24
    $region23: #{encode_mu.4} parent=5 // pred_region
      // Predicated region
      $region25: #{encode_mu.4} parent=23 // pred_check
        %p128 = pneg %p29
      $region26: #{encode_mu.4} parent=23 // pred_check_branch
        %130 = sbr.rel (%p128) target = $region28
      $region27: #{encode_mu.4} parent=23 // pred_region
        %s131 = smul.u32 128, %s9
        %p132 = scmp.lt.s32.totalorder %s131, 639
        %s133 = scalar_select %p132, %s131, 639
        %s134 = smul.addr %s133, 4
        %s135 = scalar_lea.vmem %s0, %s134
        %s136 = smul.u32 128, %s9
      $region28: #{encode_mu.4} parent=23 // pred_fallthru
        _
    $region24: #{encode_mu.4} parent=5 // pred_fallthru
      _
    %p137 = scmp.le.s32.totalorder 1, %s9
    %p138 = scmp.lt.s32.totalorder %s9, 6
    %p139 = pnand %p137, %p138
    %p140 = pneg %p139
    // Predicated region
    $region29: #{encode_mu.4} parent=5 // pred_check
      _
    $region30: #{encode_mu.4} parent=5 // pred_check_branch
      %142 = sbr.rel (%p139) target = $region32
    $region31: #{encode_mu.4} parent=5 // pred_region
      %s143 = ssub.s32 %s9, 1
      %s144 = smul.u32 128, %s14
      %p145 = scmp.lt.s32.totalorder %s144, 639
      %s146 = scalar_select %p145, %s144, 639
      %s147 = smul.addr %s146, 4
      %s148 = scalar_lea.vmem %s0, %s147
      %p149 = pneg %p35
      %p150 = pneg %p32
      %p151 = pneg %p56
      %p152 = pneg %p53
      %p153 = pneg %p77
      %p154 = pneg %p74
      %p155 = pneg %p103
      %p156 = pneg %p100
      %s157 = smul.u32 128, %s14
      %p158 = scmp.lt.s32.totalorder %s157, 639
      %s159 = scalar_select %p158, %s157, 639
      %s160 = smul.addr %s159, 4
      %s161 = scalar_lea.vmem %s3, %s160
      %s162 = smul.u32 128, %s14
      %p163 = scmp.lt.s32.totalorder %s162, 639
      %s164 = scalar_select %p163, %s162, 639
      %s165 = smul.addr %s164, 4
      %s166 = scalar_lea.vmem %s0, %s165
      %s167 = smul.u32 128, %s14
      %s168 = smul.u32 128, %s14
      %p169 = scmp.lt.s32.totalorder %s168, 639
      %s170 = scalar_select %p169, %s168, 639
      %s171 = smul.addr %s170, 4
      %s172 = scalar_lea.vmem %s3, %s171
      %s173 = smul.u32 128, %s14
      %v175 = vld [vmem:[%s166] sm:$0xf]
      %v176 = vld [vmem:[%s166 + $0x4] sm:$0xf]
      %v177 = vld [vmem:[%s166 + $0x8] sm:$0xf]
      %v178 = vld [vmem:[%s166 + $0xc] sm:$0xf]
      %v179 = vld [vmem:[%s166 + $0x10] sm:$0xf]
      %v180 = vld [vmem:[%s166 + $0x14] sm:$0xf]
      %v181 = vld [vmem:[%s166 + $0x18] sm:$0xf]
      %v182 = vld [vmem:[%s166 + $0x1c] sm:$0xf]
      %v183 = vld [vmem:[%s166 + $0x20] sm:$0xf]
      %v184 = vld [vmem:[%s166 + $0x24] sm:$0xf]
      %v185 = vld [vmem:[%s166 + $0x28] sm:$0xf]
      %v186 = vld [vmem:[%s166 + $0x2c] sm:$0xf]
      %v187 = vld [vmem:[%s166 + $0x30] sm:$0xf]
      %v188 = vld [vmem:[%s166 + $0x34] sm:$0xf]
      %v189 = vld [vmem:[%s166 + $0x38] sm:$0xf]
      %v190 = vld [vmem:[%s166 + $0x3c] sm:$0xf]
      %v191 = vld [vmem:[%s166 + $0x40] sm:$0xf]
      %v192 = vld [vmem:[%s166 + $0x44] sm:$0xf]
      %v193 = vld [vmem:[%s166 + $0x48] sm:$0xf]
      %v194 = vld [vmem:[%s166 + $0x4c] sm:$0xf]
      %v195 = vld [vmem:[%s166 + $0x50] sm:$0xf]
      %v196 = vld [vmem:[%s166 + $0x54] sm:$0xf]
      %v197 = vld [vmem:[%s166 + $0x58] sm:$0xf]
      %v198 = vld [vmem:[%s166 + $0x5c] sm:$0xf]
      %v199 = vld [vmem:[%s166 + $0x60] sm:$0xf]
      %v200 = vld [vmem:[%s166 + $0x64] sm:$0xf]
      %v201 = vld [vmem:[%s166 + $0x68] sm:$0xf]
      %v202 = vld [vmem:[%s166 + $0x6c] sm:$0xf]
      %v203 = vld [vmem:[%s166 + $0x70] sm:$0xf]
      %v204 = vld [vmem:[%s166 + $0x74] sm:$0xf]
      %v205 = vld [vmem:[%s166 + $0x78] sm:$0xf]
      %v206 = vld [vmem:[%s166 + $0x7c] sm:$0xf]
      %v207 = vld [vmem:[%s166 + $0x80] sm:$0xf]
      %v208 = vld [vmem:[%s166 + $0x84] sm:$0xf]
      %v209 = vld [vmem:[%s166 + $0x88] sm:$0xf]
      %v210 = vld [vmem:[%s166 + $0x8c] sm:$0xf]
      %v211 = vld [vmem:[%s166 + $0x90] sm:$0xf]
      %v212 = vld [vmem:[%s166 + $0x94] sm:$0xf]
      %v213 = vld [vmem:[%s166 + $0x98] sm:$0xf]
      %v214 = vld [vmem:[%s166 + $0x9c] sm:$0xf]
      %v215 = vld [vmem:[%s166 + $0xa0] sm:$0xf]
      %v216 = vld [vmem:[%s166 + $0xa4] sm:$0xf]
      %v217 = vld [vmem:[%s166 + $0xa8] sm:$0xf]
      %v218 = vld [vmem:[%s166 + $0xac] sm:$0xf]
      %v219 = vld [vmem:[%s166 + $0xb0] sm:$0xf]
      %v220 = vld [vmem:[%s166 + $0xb4] sm:$0xf]
      %v221 = vld [vmem:[%s166 + $0xb8] sm:$0xf]
      %v222 = vld [vmem:[%s166 + $0xbc] sm:$0xf]
      %v223 = vld [vmem:[%s166 + $0xc0] sm:$0xf]
      %v224 = vld [vmem:[%s166 + $0xc4] sm:$0xf]
      %v225 = vld [vmem:[%s166 + $0xc8] sm:$0xf]
      %v226 = vld [vmem:[%s166 + $0xcc] sm:$0xf]
      %v227 = vld [vmem:[%s166 + $0xd0] sm:$0xf]
      %v228 = vld [vmem:[%s166 + $0xd4] sm:$0xf]
      %v229 = vld [vmem:[%s166 + $0xd8] sm:$0xf]
      %v230 = vld [vmem:[%s166 + $0xdc] sm:$0xf]
      %v231 = vld [vmem:[%s166 + $0xe0] sm:$0xf]
      %v232 = vld [vmem:[%s166 + $0xe4] sm:$0xf]
      %v233 = vld [vmem:[%s166 + $0xe8] sm:$0xf]
      %v234 = vld [vmem:[%s166 + $0xec] sm:$0xf]
      %v235 = vld [vmem:[%s166 + $0xf0] sm:$0xf]
      %v236 = vld [vmem:[%s166 + $0xf4] sm:$0xf]
      %v237 = vld [vmem:[%s166 + $0xf8] sm:$0xf]
      %v238 = vld [vmem:[%s166 + $0xfc] sm:$0xf]
      %v239 = vld [vmem:[%s166 + $0x100] sm:$0xf]
      %v240 = vld [vmem:[%s166 + $0x104] sm:$0xf]
      %v241 = vld [vmem:[%s166 + $0x108] sm:$0xf]
      %v242 = vld [vmem:[%s166 + $0x10c] sm:$0xf]
      %v243 = vld [vmem:[%s166 + $0x110] sm:$0xf]
      %v244 = vld [vmem:[%s166 + $0x114] sm:$0xf]
      %v245 = vld [vmem:[%s166 + $0x118] sm:$0xf]
      %v246 = vld [vmem:[%s166 + $0x11c] sm:$0xf]
      %v247 = vld [vmem:[%s166 + $0x120] sm:$0xf]
      %v248 = vld [vmem:[%s166 + $0x124] sm:$0xf]
      %v249 = vld [vmem:[%s166 + $0x128] sm:$0xf]
      %v250 = vld [vmem:[%s166 + $0x12c] sm:$0xf]
      %v251 = vld [vmem:[%s166 + $0x130] sm:$0xf]
      %v252 = vld [vmem:[%s166 + $0x134] sm:$0xf]
      %v253 = vld [vmem:[%s166 + $0x138] sm:$0xf]
      %v254 = vld [vmem:[%s166 + $0x13c] sm:$0xf]
      %v255 = vld [vmem:[%s166 + $0x140] sm:$0xf]
      %v256 = vld [vmem:[%s166 + $0x144] sm:$0xf]
      %v257 = vld [vmem:[%s166 + $0x148] sm:$0xf]
      %v258 = vld [vmem:[%s166 + $0x14c] sm:$0xf]
      %v259 = vld [vmem:[%s166 + $0x150] sm:$0xf]
      %v260 = vld [vmem:[%s166 + $0x154] sm:$0xf]
      %v261 = vld [vmem:[%s166 + $0x158] sm:$0xf]
      %v262 = vld [vmem:[%s166 + $0x15c] sm:$0xf]
      %v263 = vld [vmem:[%s166 + $0x160] sm:$0xf]
      %v264 = vld [vmem:[%s166 + $0x164] sm:$0xf]
      %v265 = vld [vmem:[%s166 + $0x168] sm:$0xf]
      %v266 = vld [vmem:[%s166 + $0x16c] sm:$0xf]
      %v267 = vld [vmem:[%s166 + $0x170] sm:$0xf]
      %v268 = vld [vmem:[%s166 + $0x174] sm:$0xf]
      %v269 = vld [vmem:[%s166 + $0x178] sm:$0xf]
      %v270 = vld [vmem:[%s166 + $0x17c] sm:$0xf]
      %v271 = vld [vmem:[%s166 + $0x180] sm:$0xf]
      %v272 = vld [vmem:[%s166 + $0x184] sm:$0xf]
      %v273 = vld [vmem:[%s166 + $0x188] sm:$0xf]
      %v274 = vld [vmem:[%s166 + $0x18c] sm:$0xf]
      %v275 = vld [vmem:[%s166 + $0x190] sm:$0xf]
      %v276 = vld [vmem:[%s166 + $0x194] sm:$0xf]
      %v277 = vld [vmem:[%s166 + $0x198] sm:$0xf]
      %v278 = vld [vmem:[%s166 + $0x19c] sm:$0xf]
      %v279 = vld [vmem:[%s166 + $0x1a0] sm:$0xf]
      %v280 = vld [vmem:[%s166 + $0x1a4] sm:$0xf]
      %v281 = vld [vmem:[%s166 + $0x1a8] sm:$0xf]
      %v282 = vld [vmem:[%s166 + $0x1ac] sm:$0xf]
      %v283 = vld [vmem:[%s166 + $0x1b0] sm:$0xf]
      %v284 = vld [vmem:[%s166 + $0x1b4] sm:$0xf]
      %v285 = vld [vmem:[%s166 + $0x1b8] sm:$0xf]
      %v286 = vld [vmem:[%s166 + $0x1bc] sm:$0xf]
      %v287 = vld [vmem:[%s166 + $0x1c0] sm:$0xf]
      %v288 = vld [vmem:[%s166 + $0x1c4] sm:$0xf]
      %v289 = vld [vmem:[%s166 + $0x1c8] sm:$0xf]
      %v290 = vld [vmem:[%s166 + $0x1cc] sm:$0xf]
      %v291 = vld [vmem:[%s166 + $0x1d0] sm:$0xf]
      %v292 = vld [vmem:[%s166 + $0x1d4] sm:$0xf]
      %v293 = vld [vmem:[%s166 + $0x1d8] sm:$0xf]
      %v294 = vld [vmem:[%s166 + $0x1dc] sm:$0xf]
      %v295 = vld [vmem:[%s166 + $0x1e0] sm:$0xf]
      %v296 = vld [vmem:[%s166 + $0x1e4] sm:$0xf]
      %v297 = vld [vmem:[%s166 + $0x1e8] sm:$0xf]
      %v298 = vld [vmem:[%s166 + $0x1ec] sm:$0xf]
      %v299 = vld [vmem:[%s166 + $0x1f0] sm:$0xf]
      %v300 = vld [vmem:[%s166 + $0x1f4] sm:$0xf]
      %v301 = vld [vmem:[%s166 + $0x1f8] sm:$0xf]
      %v302 = vld [vmem:[%s166 + $0x1fc] sm:$0xf]
      %v303 = vld [vmem:[%s1] sm:$0xf]
      %v304 = vld [vmem:[%s1 + $0x4] sm:$0xf]
      %v305 = vld [vmem:[%s2] sm:$0x1]
      %v307 = vlaneseq
      %v308 = vshrl.u32 %v307, 7
      %v309 = vsub.s32 0, %v308
      %v310 = vrot.slane %v305, %v309
      %v440 = vunpack.c.l.b16 %v175
      %v441 = vunpack.c.l.b16 %v176
      %v442 = vunpack.c.l.b16 %v177
      %v443 = vunpack.c.l.b16 %v178
      %v444 = vunpack.c.l.b16 %v179
      %v445 = vunpack.c.l.b16 %v180
      %v446 = vunpack.c.l.b16 %v181
      %v447 = vunpack.c.l.b16 %v182
      %v448 = vunpack.c.l.b16 %v183
      %v449 = vunpack.c.l.b16 %v184
      %v450 = vunpack.c.l.b16 %v185
      %v451 = vunpack.c.l.b16 %v186
      %v452 = vunpack.c.l.b16 %v187
      %v453 = vunpack.c.l.b16 %v188
      %v454 = vunpack.c.l.b16 %v189
      %v455 = vunpack.c.l.b16 %v190
      %v456 = vunpack.c.l.b16 %v191
      %v457 = vunpack.c.l.b16 %v192
      %v458 = vunpack.c.l.b16 %v193
      %v459 = vunpack.c.l.b16 %v194
      %v460 = vunpack.c.l.b16 %v195
      %v461 = vunpack.c.l.b16 %v196
      %v462 = vunpack.c.l.b16 %v197
      %v463 = vunpack.c.l.b16 %v198
      %v464 = vunpack.c.l.b16 %v199
      %v465 = vunpack.c.l.b16 %v200
      %v466 = vunpack.c.l.b16 %v201
      %v467 = vunpack.c.l.b16 %v202
      %v468 = vunpack.c.l.b16 %v203
      %v469 = vunpack.c.l.b16 %v204
      %v470 = vunpack.c.l.b16 %v205
      %v471 = vunpack.c.l.b16 %v206
      %v472 = vunpack.c.l.b16 %v207
      %v473 = vunpack.c.l.b16 %v208
      %v474 = vunpack.c.l.b16 %v209
      %v475 = vunpack.c.l.b16 %v210
      %v476 = vunpack.c.l.b16 %v211
      %v477 = vunpack.c.l.b16 %v212
      %v478 = vunpack.c.l.b16 %v213
      %v479 = vunpack.c.l.b16 %v214
      %v480 = vunpack.c.l.b16 %v215
      %v481 = vunpack.c.l.b16 %v216
      %v482 = vunpack.c.l.b16 %v217
      %v483 = vunpack.c.l.b16 %v218
      %v484 = vunpack.c.l.b16 %v219
      %v485 = vunpack.c.l.b16 %v220
      %v486 = vunpack.c.l.b16 %v221
      %v487 = vunpack.c.l.b16 %v222
      %v488 = vunpack.c.l.b16 %v223
      %v489 = vunpack.c.l.b16 %v224
      %v490 = vunpack.c.l.b16 %v225
      %v491 = vunpack.c.l.b16 %v226
      %v492 = vunpack.c.l.b16 %v227
      %v493 = vunpack.c.l.b16 %v228
      %v494 = vunpack.c.l.b16 %v229
      %v495 = vunpack.c.l.b16 %v230
      %v496 = vunpack.c.l.b16 %v231
      %v497 = vunpack.c.l.b16 %v232
      %v498 = vunpack.c.l.b16 %v233
      %v499 = vunpack.c.l.b16 %v234
      %v500 = vunpack.c.l.b16 %v235
      %v501 = vunpack.c.l.b16 %v236
      %v502 = vunpack.c.l.b16 %v237
      %v503 = vunpack.c.l.b16 %v238
      %v504 = vunpack.c.l.b16 %v239
      %v505 = vunpack.c.l.b16 %v240
      %v506 = vunpack.c.l.b16 %v241
      %v507 = vunpack.c.l.b16 %v242
      %v508 = vunpack.c.l.b16 %v243
      %v509 = vunpack.c.l.b16 %v244
      %v510 = vunpack.c.l.b16 %v245
      %v511 = vunpack.c.l.b16 %v246
      %v512 = vunpack.c.l.b16 %v247
      %v513 = vunpack.c.l.b16 %v248
      %v514 = vunpack.c.l.b16 %v249
      %v515 = vunpack.c.l.b16 %v250
      %v516 = vunpack.c.l.b16 %v251
      %v517 = vunpack.c.l.b16 %v252
      %v518 = vunpack.c.l.b16 %v253
      %v519 = vunpack.c.l.b16 %v254
      %v520 = vunpack.c.l.b16 %v255
      %v521 = vunpack.c.l.b16 %v256
      %v522 = vunpack.c.l.b16 %v257
      %v523 = vunpack.c.l.b16 %v258
      %v524 = vunpack.c.l.b16 %v259
      %v525 = vunpack.c.l.b16 %v260
      %v526 = vunpack.c.l.b16 %v261
      %v527 = vunpack.c.l.b16 %v262
      %v528 = vunpack.c.l.b16 %v263
      %v529 = vunpack.c.l.b16 %v264
      %v530 = vunpack.c.l.b16 %v265
      %v531 = vunpack.c.l.b16 %v266
      %v532 = vunpack.c.l.b16 %v267
      %v533 = vunpack.c.l.b16 %v268
      %v534 = vunpack.c.l.b16 %v269
      %v535 = vunpack.c.l.b16 %v270
      %v536 = vunpack.c.l.b16 %v271
      %v537 = vunpack.c.l.b16 %v272
      %v538 = vunpack.c.l.b16 %v273
      %v539 = vunpack.c.l.b16 %v274
      %v540 = vunpack.c.l.b16 %v275
      %v541 = vunpack.c.l.b16 %v276
      %v542 = vunpack.c.l.b16 %v277
      %v543 = vunpack.c.l.b16 %v278
      %v544 = vunpack.c.l.b16 %v279
      %v545 = vunpack.c.l.b16 %v280
      %v546 = vunpack.c.l.b16 %v281
      %v547 = vunpack.c.l.b16 %v282
      %v548 = vunpack.c.l.b16 %v283
      %v549 = vunpack.c.l.b16 %v284
      %v550 = vunpack.c.l.b16 %v285
      %v551 = vunpack.c.l.b16 %v286
      %v552 = vunpack.c.l.b16 %v287
      %v553 = vunpack.c.l.b16 %v288
      %v554 = vunpack.c.l.b16 %v289
      %v555 = vunpack.c.l.b16 %v290
      %v556 = vunpack.c.l.b16 %v291
      %v557 = vunpack.c.l.b16 %v292
      %v558 = vunpack.c.l.b16 %v293
      %v559 = vunpack.c.l.b16 %v294
      %v560 = vunpack.c.l.b16 %v295
      %v561 = vunpack.c.l.b16 %v296
      %v562 = vunpack.c.l.b16 %v297
      %v563 = vunpack.c.l.b16 %v298
      %v564 = vunpack.c.l.b16 %v299
      %v565 = vunpack.c.l.b16 %v300
      %v566 = vunpack.c.l.b16 %v301
      %v567 = vunpack.c.l.b16 %v302
      %v568 = vpack.c.b16 %v441, %v440
      %v569 = vpack.c.b16 %v443, %v442
      %v570 = vpack.c.b16 %v445, %v444
      %v571 = vpack.c.b16 %v447, %v446
      %v572 = vpack.c.b16 %v449, %v448
      %v573 = vpack.c.b16 %v451, %v450
      %v574 = vpack.c.b16 %v453, %v452
      %v575 = vpack.c.b16 %v455, %v454
      %v576 = vpack.c.b16 %v457, %v456
      %v577 = vpack.c.b16 %v459, %v458
      %v578 = vpack.c.b16 %v461, %v460
      %v579 = vpack.c.b16 %v463, %v462
      %v580 = vpack.c.b16 %v465, %v464
      %v581 = vpack.c.b16 %v467, %v466
      %v582 = vpack.c.b16 %v469, %v468
      %v583 = vpack.c.b16 %v471, %v470
      %v584 = vpack.c.b16 %v473, %v472
      %v585 = vpack.c.b16 %v475, %v474
      %v586 = vpack.c.b16 %v477, %v476
      %v587 = vpack.c.b16 %v479, %v478
      %v588 = vpack.c.b16 %v481, %v480
      %v589 = vpack.c.b16 %v483, %v482
      %v590 = vpack.c.b16 %v485, %v484
      %v591 = vpack.c.b16 %v487, %v486
      %v592 = vpack.c.b16 %v489, %v488
      %v593 = vpack.c.b16 %v491, %v490
      %v594 = vpack.c.b16 %v493, %v492
      %v595 = vpack.c.b16 %v495, %v494
      %v596 = vpack.c.b16 %v497, %v496
      %v597 = vpack.c.b16 %v499, %v498
      %v598 = vpack.c.b16 %v501, %v500
      %v599 = vpack.c.b16 %v503, %v502
      %v600 = vpack.c.b16 %v505, %v504
      %v601 = vpack.c.b16 %v507, %v506
      %v602 = vpack.c.b16 %v509, %v508
      %v603 = vpack.c.b16 %v511, %v510
      %v604 = vpack.c.b16 %v513, %v512
      %v605 = vpack.c.b16 %v515, %v514
      %v606 = vpack.c.b16 %v517, %v516
      %v607 = vpack.c.b16 %v519, %v518
      %v608 = vpack.c.b16 %v521, %v520
      %v609 = vpack.c.b16 %v523, %v522
      %v610 = vpack.c.b16 %v525, %v524
      %v611 = vpack.c.b16 %v527, %v526
      %v612 = vpack.c.b16 %v529, %v528
      %v613 = vpack.c.b16 %v531, %v530
      %v614 = vpack.c.b16 %v533, %v532
      %v615 = vpack.c.b16 %v535, %v534
      %v616 = vpack.c.b16 %v537, %v536
      %v617 = vpack.c.b16 %v539, %v538
      %v618 = vpack.c.b16 %v541, %v540
      %v619 = vpack.c.b16 %v543, %v542
      %v620 = vpack.c.b16 %v545, %v544
      %v621 = vpack.c.b16 %v547, %v546
      %v622 = vpack.c.b16 %v549, %v548
      %v623 = vpack.c.b16 %v551, %v550
      %v624 = vpack.c.b16 %v553, %v552
      %v625 = vpack.c.b16 %v555, %v554
      %v626 = vpack.c.b16 %v557, %v556
      %v627 = vpack.c.b16 %v559, %v558
      %v628 = vpack.c.b16 %v561, %v560
      %v629 = vpack.c.b16 %v563, %v562
      %v630 = vpack.c.b16 %v565, %v564
      %v631 = vpack.c.b16 %v567, %v566
      %v634 = vunpack.c.l.b16 %v303
      %v635 = vunpack.c.l.b16 %v304
      %v636 = vpack.c.b16 %v635, %v634
      %vm638 = vcmask 130048
      %v640 = vsel %vm638, %v568, 0
      %v643 = vsel %vm638, %v569, 0
      %v646 = vsel %vm638, %v570, 0
      %v649 = vsel %vm638, %v571, 0
      %v652 = vsel %vm638, %v572, 0
      %v655 = vsel %vm638, %v573, 0
      %v658 = vsel %vm638, %v574, 0
      %v661 = vsel %vm638, %v575, 0
      %v664 = vsel %vm638, %v576, 0
      %v667 = vsel %vm638, %v577, 0
      %v670 = vsel %vm638, %v578, 0
      %v673 = vsel %vm638, %v579, 0
      %v676 = vsel %vm638, %v580, 0
      %v679 = vsel %vm638, %v581, 0
      %v682 = vsel %vm638, %v582, 0
      %v685 = vsel %vm638, %v583, 0
      %v688 = vsel %vm638, %v584, 0
      %v691 = vsel %vm638, %v585, 0
      %v694 = vsel %vm638, %v586, 0
      %v697 = vsel %vm638, %v587, 0
      %v700 = vsel %vm638, %v588, 0
      %v703 = vsel %vm638, %v589, 0
      %v706 = vsel %vm638, %v590, 0
      %v709 = vsel %vm638, %v591, 0
      %v712 = vsel %vm638, %v592, 0
      %v715 = vsel %vm638, %v593, 0
      %v718 = vsel %vm638, %v594, 0
      %v721 = vsel %vm638, %v595, 0
      %v724 = vsel %vm638, %v596, 0
      %v727 = vsel %vm638, %v597, 0
      %v730 = vsel %vm638, %v598, 0
      %v733 = vsel %vm638, %v599, 0
      %v736 = vsel %vm638, %v600, 0
      %v739 = vsel %vm638, %v601, 0
      %v742 = vsel %vm638, %v602, 0
      %v745 = vsel %vm638, %v603, 0
      %v748 = vsel %vm638, %v604, 0
      %v751 = vsel %vm638, %v605, 0
      %v754 = vsel %vm638, %v606, 0
      %v757 = vsel %vm638, %v607, 0
      %v760 = vsel %vm638, %v608, 0
      %v763 = vsel %vm638, %v609, 0
      %v766 = vsel %vm638, %v610, 0
      %v769 = vsel %vm638, %v611, 0
      %v772 = vsel %vm638, %v612, 0
      %v775 = vsel %vm638, %v613, 0
      %v778 = vsel %vm638, %v614, 0
      %v781 = vsel %vm638, %v615, 0
      %v784 = vsel %vm638, %v616, 0
      %v787 = vsel %vm638, %v617, 0
      %v790 = vsel %vm638, %v618, 0
      %v793 = vsel %vm638, %v619, 0
      %v796 = vsel %vm638, %v620, 0
      %v799 = vsel %vm638, %v621, 0
      %v802 = vsel %vm638, %v622, 0
      %v805 = vsel %vm638, %v623, 0
      %v808 = vsel %vm638, %v624, 0
      %v811 = vsel %vm638, %v625, 0
      %v814 = vsel %vm638, %v626, 0
      %v817 = vsel %vm638, %v627, 0
      %v820 = vsel %vm638, %v628, 0
      %v823 = vsel %vm638, %v629, 0
      %v826 = vsel %vm638, %v630, 0
      %v829 = vsel %vm638, %v631, 0
      %831 = vmatprep.subr.bf16.mxu0 0
      %832 = vmatpush1.bf16.msra.mxu0 %v636
      %833 = vmatprep.subr.bf16.mxu0 0
      %834 = vmatpush1.bf16.msra.mxu0 0
      %835 = vmatprep.subr.bf16.mxu0 0
      %836 = vmatpush1.bf16.msra.mxu0 0
      %837 = vmatprep.subr.bf16.mxu0 0
      %838 = vmatpush1.bf16.msra.mxu0 0
      %839 = vmatprep.subr.bf16.mxu0 0
      %840 = vmatpush1.bf16.msra.mxu0 0
      %841 = vmatprep.subr.bf16.mxu0 0
      %842 = vmatpush1.bf16.msra.mxu0 0
      %843 = vmatprep.subr.bf16.mxu0 0
      %844 = vmatpush1.bf16.msra.mxu0 0
      %845 = vmatprep.subr.bf16.mxu0 0
      %846 = vmatpush1.bf16.msra.mxu0 0
      %847 = vmatprep.subr.bf16.mxu0 0
      %848 = vmatpush1.bf16.msra.mxu0 0
      %849 = vmatprep.subr.bf16.mxu0 0
      %850 = vmatpush1.bf16.msra.mxu0 0
      %851 = vmatprep.subr.bf16.mxu0 0
      %852 = vmatpush1.bf16.msra.mxu0 0
      %853 = vmatprep.subr.bf16.mxu0 0
      %854 = vmatpush1.bf16.msra.mxu0 0
      %855 = vmatprep.subr.bf16.mxu0 0
      %856 = vmatpush1.bf16.msra.mxu0 0
      %857 = vmatprep.subr.bf16.mxu0 0
      %858 = vmatpush1.bf16.msra.mxu0 0
      %859 = vmatprep.subr.bf16.mxu0 0
      %860 = vmatpush1.bf16.msra.mxu0 0
      %861 = vmatprep.subr.bf16.mxu0 0
      %862 = vmatpush1.bf16.msra.mxu0 0
      %863 = vmatprep.mubr.bf16.mxu0 0
      %864 = vmatmul.mubr.bf16.gmra.mrb[0].mxu0 %v640
      %v865 = vpop.f32.mrb[0].mxu0
      %v866 = vadd.f32 %v310, %v865
      %v867 = vpop.f32.mrb[0].mxu0
      %v868 = vpop.f32.mrb[0].mxu0
      %v869 = vadd.f32 %v310, %v868
      %v870 = vpop.f32.mrb[0].mxu0
      %871 = vmatprep.mubr.bf16.mxu0 0
      %872 = vmatmul.mubr.bf16.gmra.mrb[0].mxu0 %v643
      %v873 = vpop.f32.mrb[0].mxu0
      %v874 = vadd.f32 %v310, %v873
      %v875 = vpop.f32.mrb[0].mxu0
      %v876 = vpop.f32.mrb[0].mxu0
      %v877 = vadd.f32 %v310, %v876
      %v878 = vpop.f32.mrb[0].mxu0
      %879 = vmatprep.mubr.bf16.mxu0 0
      %880 = vmatmul.mubr.bf16.gmra.mrb[0].mxu0 %v646
      %v881 = vpop.f32.mrb[0].mxu0
      %v882 = vadd.f32 %v310, %v881
      %v883 = vpop.f32.mrb[0].mxu0
      %v884 = vpop.f32.mrb[0].mxu0
      %v885 = vadd.f32 %v310, %v884
      %v886 = vpop.f32.mrb[0].mxu0
      %887 = vmatprep.mubr.bf16.mxu0 0
      %888 = vmatmul.mubr.bf16.gmra.mrb[0].mxu0 %v649
      %v889 = vpop.f32.mrb[0].mxu0
      %v890 = vadd.f32 %v310, %v889
      %v891 = vpop.f32.mrb[0].mxu0
      %v892 = vpop.f32.mrb[0].mxu0
      %v893 = vadd.f32 %v310, %v892
      %v894 = vpop.f32.mrb[0].mxu0
      %895 = vmatprep.mubr.bf16.mxu0 0
      %896 = vmatmul.mubr.bf16.gmra.mrb[0].mxu0 %v652
      %v897 = vpop.f32.mrb[0].mxu0
      %v898 = vadd.f32 %v310, %v897
      %v899 = vpop.f32.mrb[0].mxu0
      %v900 = vpop.f32.mrb[0].mxu0
      %v901 = vadd.f32 %v310, %v900
      %v902 = vpop.f32.mrb[0].mxu0
      %903 = vmatprep.mubr.bf16.mxu0 0
      %904 = vmatmul.mubr.bf16.gmra.mrb[0].mxu0 %v655
      %v905 = vpop.f32.mrb[0].mxu0
      %v906 = vadd.f32 %v310, %v905
      %v907 = vpop.f32.mrb[0].mxu0
      %v908 = vpop.f32.mrb[0].mxu0
      %v909 = vadd.f32 %v310, %v908
      %v910 = vpop.f32.mrb[0].mxu0
      %911 = vmatprep.mubr.bf16.mxu0 0
      %912 = vmatmul.mubr.bf16.gmra.mrb[0].mxu0 %v658
      %v913 = vpop.f32.mrb[0].mxu0
      %v914 = vadd.f32 %v310, %v913
      %v915 = vpop.f32.mrb[0].mxu0
      %v916 = vpop.f32.mrb[0].mxu0
      %v917 = vadd.f32 %v310, %v916
      %v918 = vpop.f32.mrb[0].mxu0
      %919 = vmatprep.mubr.bf16.mxu0 0
      %920 = vmatmul.mubr.bf16.gmra.mrb[0].mxu0 %v661
      %v921 = vpop.f32.mrb[0].mxu0
      %v922 = vadd.f32 %v310, %v921
      %v923 = vpop.f32.mrb[0].mxu0
      %v924 = vpop.f32.mrb[0].mxu0
      %v925 = vadd.f32 %v310, %v924
      %v926 = vpop.f32.mrb[0].mxu0
      %927 = vmatprep.mubr.bf16.mxu0 0
      %928 = vmatmul.mubr.bf16.gmra.mrb[0].mxu0 %v664
      %v929 = vpop.f32.mrb[0].mxu0
      %v930 = vadd.f32 %v310, %v929
      %v931 = vpop.f32.mrb[0].mxu0
      %v932 = vpop.f32.mrb[0].mxu0
      %v933 = vadd.f32 %v310, %v932
      %v934 = vpop.f32.mrb[0].mxu0
      %935 = vmatprep.mubr.bf16.mxu0 0
      %936 = vmatmul.mubr.bf16.gmra.mrb[0].mxu0 %v667
      %v937 = vpop.f32.mrb[0].mxu0
      %v938 = vadd.f32 %v310, %v937
      %v939 = vpop.f32.mrb[0].mxu0
      %v940 = vpop.f32.mrb[0].mxu0
      %v941 = vadd.f32 %v310, %v940
      %v942 = vpop.f32.mrb[0].mxu0
      %943 = vmatprep.mubr.bf16.mxu0 0
      %944 = vmatmul.mubr.bf16.gmra.mrb[0].mxu0 %v670
      %v945 = vpop.f32.mrb[0].mxu0
      %v946 = vadd.f32 %v310, %v945
      %v947 = vpop.f32.mrb[0].mxu0
      %v948 = vpop.f32.mrb[0].mxu0
      %v949 = vadd.f32 %v310, %v948
      %v950 = vpop.f32.mrb[0].mxu0
      %951 = vmatprep.mubr.bf16.mxu0 0
      %952 = vmatmul.mubr.bf16.gmra.mrb[0].mxu0 %v673
      %v953 = vpop.f32.mrb[0].mxu0
      %v954 = vadd.f32 %v310, %v953
      %v955 = vpop.f32.mrb[0].mxu0
      %v956 = vpop.f32.mrb[0].mxu0
      %v957 = vadd.f32 %v310, %v956
      %v958 = vpop.f32.mrb[0].mxu0
      %959 = vmatprep.mubr.bf16.mxu0 0
      %960 = vmatmul.mubr.bf16.gmra.mrb[0].mxu0 %v676
      %v961 = vpop.f32.mrb[0].mxu0
      %v962 = vadd.f32 %v310, %v961
      %v963 = vpop.f32.mrb[0].mxu0
      %v964 = vpop.f32.mrb[0].mxu0
      %v965 = vadd.f32 %v310, %v964
      %v966 = vpop.f32.mrb[0].mxu0
      %967 = vmatprep.mubr.bf16.mxu0 0
      %968 = vmatmul.mubr.bf16.gmra.mrb[0].mxu0 %v679
      %v969 = vpop.f32.mrb[0].mxu0
      %v970 = vadd.f32 %v310, %v969
      %v971 = vpop.f32.mrb[0].mxu0
      %v972 = vpop.f32.mrb[0].mxu0
      %v973 = vadd.f32 %v310, %v972
      %v974 = vpop.f32.mrb[0].mxu0
      %975 = vmatprep.mubr.bf16.mxu0 0
      %976 = vmatmul.mubr.bf16.gmra.mrb[0].mxu0 %v682
      %v977 = vpop.f32.mrb[0].mxu0
      %v978 = vadd.f32 %v310, %v977
      %v979 = vpop.f32.mrb[0].mxu0
      %v980 = vpop.f32.mrb[0].mxu0
      %v981 = vadd.f32 %v310, %v980
      %v982 = vpop.f32.mrb[0].mxu0
      %983 = vmatprep.mubr.bf16.mxu0 0
      %984 = vmatmul.mubr.bf16.gmra.mrb[0].mxu0 %v685
      %v985 = vpop.f32.mrb[0].mxu0
      %v986 = vadd.f32 %v310, %v985
      %v987 = vpop.f32.mrb[0].mxu0
      %v988 = vpop.f32.mrb[0].mxu0
      %v989 = vadd.f32 %v310, %v988
      %v990 = vpop.f32.mrb[0].mxu0
      %991 = vmatprep.mubr.bf16.mxu0 0
      %992 = vmatmul.mubr.bf16.gmra.mrb[0].mxu0 %v688
      %v993 = vpop.f32.mrb[0].mxu0
      %v994 = vadd.f32 %v310, %v993
      %v995 = vpop.f32.mrb[0].mxu0
      %v996 = vpop.f32.mrb[0].mxu0
      %v997 = vadd.f32 %v310, %v996
      %v998 = vpop.f32.mrb[0].mxu0
      %999 = vmatprep.mubr.bf16.mxu0 0
      %1000 = vmatmul.mubr.bf16.gmra.mrb[0].mxu0 %v691
      %v1001 = vpop.f32.mrb[0].mxu0
      %v1002 = vadd.f32 %v310, %v1001
      %v1003 = vpop.f32.mrb[0].mxu0
      %v1004 = vpop.f32.mrb[0].mxu0
      %v1005 = vadd.f32 %v310, %v1004
      %v1006 = vpop.f32.mrb[0].mxu0
      %1007 = vmatprep.mubr.bf16.mxu0 0
      %1008 = vmatmul.mubr.bf16.gmra.mrb[0].mxu0 %v694
      %v1009 = vpop.f32.mrb[0].mxu0
      %v1010 = vadd.f32 %v310, %v1009
      %v1011 = vpop.f32.mrb[0].mxu0
      %v1012 = vpop.f32.mrb[0].mxu0
      %v1013 = vadd.f32 %v310, %v1012
      %v1014 = vpop.f32.mrb[0].mxu0
      %1015 = vmatprep.mubr.bf16.mxu0 0
      %1016 = vmatmul.mubr.bf16.gmra.mrb[0].mxu0 %v697
      %v1017 = vpop.f32.mrb[0].mxu0
      %v1018 = vadd.f32 %v310, %v1017
      %v1019 = vpop.f32.mrb[0].mxu0
      %v1020 = vpop.f32.mrb[0].mxu0
      %v1021 = vadd.f32 %v310, %v1020
      %v1022 = vpop.f32.mrb[0].mxu0
      %1023 = vmatprep.mubr.bf16.mxu0 0
      %1024 = vmatmul.mubr.bf16.gmra.mrb[0].mxu0 %v700
      %v1025 = vpop.f32.mrb[0].mxu0
      %v1026 = vadd.f32 %v310, %v1025
      %v1027 = vpop.f32.mrb[0].mxu0
      %v1028 = vpop.f32.mrb[0].mxu0
      %v1029 = vadd.f32 %v310, %v1028
      %v1030 = vpop.f32.mrb[0].mxu0
      %1031 = vmatprep.mubr.bf16.mxu0 0
      %1032 = vmatmul.mubr.bf16.gmra.mrb[0].mxu0 %v703
      %v1033 = vpop.f32.mrb[0].mxu0
      %v1034 = vadd.f32 %v310, %v1033
      %v1035 = vpop.f32.mrb[0].mxu0
      %v1036 = vpop.f32.mrb[0].mxu0
      %v1037 = vadd.f32 %v310, %v1036
      %v1038 = vpop.f32.mrb[0].mxu0
      %1039 = vmatprep.mubr.bf16.mxu0 0
      %1040 = vmatmul.mubr.bf16.gmra.mrb[0].mxu0 %v706
      %v1041 = vpop.f32.mrb[0].mxu0
      %v1042 = vadd.f32 %v310, %v1041
      %v1043 = vpop.f32.mrb[0].mxu0
      %v1044 = vpop.f32.mrb[0].mxu0
      %v1045 = vadd.f32 %v310, %v1044
      %v1046 = vpop.f32.mrb[0].mxu0
      %1047 = vmatprep.mubr.bf16.mxu0 0
      %1048 = vmatmul.mubr.bf16.gmra.mrb[0].mxu0 %v709
      %v1049 = vpop.f32.mrb[0].mxu0
      %v1050 = vadd.f32 %v310, %v1049
      %v1051 = vpop.f32.mrb[0].mxu0
      %v1052 = vpop.f32.mrb[0].mxu0
      %v1053 = vadd.f32 %v310, %v1052
      %v1054 = vpop.f32.mrb[0].mxu0
      %1055 = vmatprep.mubr.bf16.mxu0 0
      %1056 = vmatmul.mubr.bf16.gmra.mrb[0].mxu0 %v712
      %v1057 = vpop.f32.mrb[0].mxu0
      %v1058 = vadd.f32 %v310, %v1057
      %v1059 = vpop.f32.mrb[0].mxu0
      %v1060 = vpop.f32.mrb[0].mxu0
      %v1061 = vadd.f32 %v310, %v1060
      %v1062 = vpop.f32.mrb[0].mxu0
      %1063 = vmatprep.mubr.bf16.mxu0 0
      %1064 = vmatmul.mubr.bf16.gmra.mrb[0].mxu0 %v715
      %v1065 = vpop.f32.mrb[0].mxu0
      %v1066 = vadd.f32 %v310, %v1065
      %v1067 = vpop.f32.mrb[0].mxu0
      %v1068 = vpop.f32.mrb[0].mxu0
      %v1069 = vadd.f32 %v310, %v1068
      %v1070 = vpop.f32.mrb[0].mxu0
      %1071 = vmatprep.mubr.bf16.mxu0 0
      %1072 = vmatmul.mubr.bf16.gmra.mrb[0].mxu0 %v718
      %v1073 = vpop.f32.mrb[0].mxu0
      %v1074 = vadd.f32 %v310, %v1073
      %v1075 = vpop.f32.mrb[0].mxu0
      %v1076 = vpop.f32.mrb[0].mxu0
      %v1077 = vadd.f32 %v310, %v1076
      %v1078 = vpop.f32.mrb[0].mxu0
      %1079 = vmatprep.mubr.bf16.mxu0 0
      %1080 = vmatmul.mubr.bf16.gmra.mrb[0].mxu0 %v721
      %v1081 = vpop.f32.mrb[0].mxu0
      %v1082 = vadd.f32 %v310, %v1081
      %v1083 = vpop.f32.mrb[0].mxu0
      %v1084 = vpop.f32.mrb[0].mxu0
      %v1085 = vadd.f32 %v310, %v1084
      %v1086 = vpop.f32.mrb[0].mxu0
      %1087 = vmatprep.mubr.bf16.mxu0 0
      %1088 = vmatmul.mubr.bf16.gmra.mrb[0].mxu0 %v724
      %v1089 = vpop.f32.mrb[0].mxu0
      %v1090 = vadd.f32 %v310, %v1089
      %v1091 = vpop.f32.mrb[0].mxu0
      %v1092 = vpop.f32.mrb[0].mxu0
      %v1093 = vadd.f32 %v310, %v1092
      %v1094 = vpop.f32.mrb[0].mxu0
      %1095 = vmatprep.mubr.bf16.mxu0 0
      %1096 = vmatmul.mubr.bf16.gmra.mrb[0].mxu0 %v727
      %v1097 = vpop.f32.mrb[0].mxu0
      %v1098 = vadd.f32 %v310, %v1097
      %v1099 = vpop.f32.mrb[0].mxu0
      %v1100 = vpop.f32.mrb[0].mxu0
      %v1101 = vadd.f32 %v310, %v1100
      %v1102 = vpop.f32.mrb[0].mxu0
      %1103 = vmatprep.mubr.bf16.mxu0 0
      %1104 = vmatmul.mubr.bf16.gmra.mrb[0].mxu0 %v730
      %v1105 = vpop.f32.mrb[0].mxu0
      %v1106 = vadd.f32 %v310, %v1105
      %v1107 = vpop.f32.mrb[0].mxu0
      %v1108 = vpop.f32.mrb[0].mxu0
      %v1109 = vadd.f32 %v310, %v1108
      %v1110 = vpop.f32.mrb[0].mxu0
      %1111 = vmatprep.mubr.bf16.mxu0 0
      %1112 = vmatmul.mubr.bf16.gmra.mrb[0].mxu0 %v733
      %v1113 = vpop.f32.mrb[0].mxu0
      %v1114 = vadd.f32 %v310, %v1113
      %v1115 = vpop.f32.mrb[0].mxu0
      %v1116 = vpop.f32.mrb[0].mxu0
      %v1117 = vadd.f32 %v310, %v1116
      %v1118 = vpop.f32.mrb[0].mxu0
      %1119 = vmatprep.mubr.bf16.mxu0 0
      %1120 = vmatmul.mubr.bf16.gmra.mrb[0].mxu0 %v736
      %v1121 = vpop.f32.mrb[0].mxu0
      %v1122 = vadd.f32 %v310, %v1121
      %v1123 = vpop.f32.mrb[0].mxu0
      %v1124 = vpop.f32.mrb[0].mxu0
      %v1125 = vadd.f32 %v310, %v1124
      %v1126 = vpop.f32.mrb[0].mxu0
      %1127 = vmatprep.mubr.bf16.mxu0 0
      %1128 = vmatmul.mubr.bf16.gmra.mrb[0].mxu0 %v739
      %v1129 = vpop.f32.mrb[0].mxu0
      %v1130 = vadd.f32 %v310, %v1129
      %v1131 = vpop.f32.mrb[0].mxu0
      %v1132 = vpop.f32.mrb[0].mxu0
      %v1133 = vadd.f32 %v310, %v1132
      %v1134 = vpop.f32.mrb[0].mxu0
      %1135 = vmatprep.mubr.bf16.mxu0 0
      %1136 = vmatmul.mubr.bf16.gmra.mrb[0].mxu0 %v742
      %v1137 = vpop.f32.mrb[0].mxu0
      %v1138 = vadd.f32 %v310, %v1137
      %v1139 = vpop.f32.mrb[0].mxu0
      %v1140 = vpop.f32.mrb[0].mxu0
      %v1141 = vadd.f32 %v310, %v1140
      %v1142 = vpop.f32.mrb[0].mxu0
      %1143 = vmatprep.mubr.bf16.mxu0 0
      %1144 = vmatmul.mubr.bf16.gmra.mrb[0].mxu0 %v745
      %v1145 = vpop.f32.mrb[0].mxu0
      %v1146 = vadd.f32 %v310, %v1145
      %v1147 = vpop.f32.mrb[0].mxu0
      %v1148 = vpop.f32.mrb[0].mxu0
      %v1149 = vadd.f32 %v310, %v1148
      %v1150 = vpop.f32.mrb[0].mxu0
      %1151 = vmatprep.mubr.bf16.mxu0 0
      %1152 = vmatmul.mubr.bf16.gmra.mrb[0].mxu0 %v748
      %v1153 = vpop.f32.mrb[0].mxu0
      %v1154 = vadd.f32 %v310, %v1153
      %v1155 = vpop.f32.mrb[0].mxu0
      %v1156 = vpop.f32.mrb[0].mxu0
      %v1157 = vadd.f32 %v310, %v1156
      %v1158 = vpop.f32.mrb[0].mxu0
      %1159 = vmatprep.mubr.bf16.mxu0 0
      %1160 = vmatmul.mubr.bf16.gmra.mrb[0].mxu0 %v751
      %v1161 = vpop.f32.mrb[0].mxu0
      %v1162 = vadd.f32 %v310, %v1161
      %v1163 = vpop.f32.mrb[0].mxu0
      %v1164 = vpop.f32.mrb[0].mxu0
      %v1165 = vadd.f32 %v310, %v1164
      %v1166 = vpop.f32.mrb[0].mxu0
      %1167 = vmatprep.mubr.bf16.mxu0 0
      %1168 = vmatmul.mubr.bf16.gmra.mrb[0].mxu0 %v754
      %v1169 = vpop.f32.mrb[0].mxu0
      %v1170 = vadd.f32 %v310, %v1169
      %v1171 = vpop.f32.mrb[0].mxu0
      %v1172 = vpop.f32.mrb[0].mxu0
      %v1173 = vadd.f32 %v310, %v1172
      %v1174 = vpop.f32.mrb[0].mxu0
      %1175 = vmatprep.mubr.bf16.mxu0 0
      %1176 = vmatmul.mubr.bf16.gmra.mrb[0].mxu0 %v757
      %v1177 = vpop.f32.mrb[0].mxu0
      %v1178 = vadd.f32 %v310, %v1177
      %v1179 = vpop.f32.mrb[0].mxu0
      %v1180 = vpop.f32.mrb[0].mxu0
      %v1181 = vadd.f32 %v310, %v1180
      %v1182 = vpop.f32.mrb[0].mxu0
      %1183 = vmatprep.mubr.bf16.mxu0 0
      %1184 = vmatmul.mubr.bf16.gmra.mrb[0].mxu0 %v760
      %v1185 = vpop.f32.mrb[0].mxu0
      %v1186 = vadd.f32 %v310, %v1185
      %v1187 = vpop.f32.mrb[0].mxu0
      %v1188 = vpop.f32.mrb[0].mxu0
      %v1189 = vadd.f32 %v310, %v1188
      %v1190 = vpop.f32.mrb[0].mxu0
      %1191 = vmatprep.mubr.bf16.mxu0 0
      %1192 = vmatmul.mubr.bf16.gmra.mrb[0].mxu0 %v763
      %v1193 = vpop.f32.mrb[0].mxu0
      %v1194 = vadd.f32 %v310, %v1193
      %v1195 = vpop.f32.mrb[0].mxu0
      %v1196 = vpop.f32.mrb[0].mxu0
      %v1197 = vadd.f32 %v310, %v1196
      %v1198 = vpop.f32.mrb[0].mxu0
      %1199 = vmatprep.mubr.bf16.mxu0 0
      %1200 = vmatmul.mubr.bf16.gmra.mrb[0].mxu0 %v766
      %v1201 = vpop.f32.mrb[0].mxu0
      %v1202 = vadd.f32 %v310, %v1201
      %v1203 = vpop.f32.mrb[0].mxu0
      %v1204 = vpop.f32.mrb[0].mxu0
      %v1205 = vadd.f32 %v310, %v1204
      %v1206 = vpop.f32.mrb[0].mxu0
      %1207 = vmatprep.mubr.bf16.mxu0 0
      %1208 = vmatmul.mubr.bf16.gmra.mrb[0].mxu0 %v769
      %v1209 = vpop.f32.mrb[0].mxu0
      %v1210 = vadd.f32 %v310, %v1209
      %v1211 = vpop.f32.mrb[0].mxu0
      %v1212 = vpop.f32.mrb[0].mxu0
      %v1213 = vadd.f32 %v310, %v1212
      %v1214 = vpop.f32.mrb[0].mxu0
      %1215 = vmatprep.mubr.bf16.mxu0 0
      %1216 = vmatmul.mubr.bf16.gmra.mrb[0].mxu0 %v772
      %v1217 = vpop.f32.mrb[0].mxu0
      %v1218 = vadd.f32 %v310, %v1217
      %v1219 = vpop.f32.mrb[0].mxu0
      %v1220 = vpop.f32.mrb[0].mxu0
      %v1221 = vadd.f32 %v310, %v1220
      %v1222 = vpop.f32.mrb[0].mxu0
      %1223 = vmatprep.mubr.bf16.mxu0 0
      %1224 = vmatmul.mubr.bf16.gmra.mrb[0].mxu0 %v775
      %v1225 = vpop.f32.mrb[0].mxu0
      %v1226 = vadd.f32 %v310, %v1225
      %v1227 = vpop.f32.mrb[0].mxu0
      %v1228 = vpop.f32.mrb[0].mxu0
      %v1229 = vadd.f32 %v310, %v1228
      %v1230 = vpop.f32.mrb[0].mxu0
      %1231 = vmatprep.mubr.bf16.mxu0 0
      %1232 = vmatmul.mubr.bf16.gmra.mrb[0].mxu0 %v778
      %v1233 = vpop.f32.mrb[0].mxu0
      %v1234 = vadd.f32 %v310, %v1233
      %v1235 = vpop.f32.mrb[0].mxu0
      %v1236 = vpop.f32.mrb[0].mxu0
      %v1237 = vadd.f32 %v310, %v1236
      %v1238 = vpop.f32.mrb[0].mxu0
      %1239 = vmatprep.mubr.bf16.mxu0 0
      %1240 = vmatmul.mubr.bf16.gmra.mrb[0].mxu0 %v781
      %v1241 = vpop.f32.mrb[0].mxu0
      %v1242 = vadd.f32 %v310, %v1241
      %v1243 = vpop.f32.mrb[0].mxu0
      %v1244 = vpop.f32.mrb[0].mxu0
      %v1245 = vadd.f32 %v310, %v1244
      %v1246 = vpop.f32.mrb[0].mxu0
      %1247 = vmatprep.mubr.bf16.mxu0 0
      %1248 = vmatmul.mubr.bf16.gmra.mrb[0].mxu0 %v784
      %v1249 = vpop.f32.mrb[0].mxu0
      %v1250 = vadd.f32 %v310, %v1249
      %v1251 = vpop.f32.mrb[0].mxu0
      %v1252 = vpop.f32.mrb[0].mxu0
      %v1253 = vadd.f32 %v310, %v1252
      %v1254 = vpop.f32.mrb[0].mxu0
      %1255 = vmatprep.mubr.bf16.mxu0 0
      %1256 = vmatmul.mubr.bf16.gmra.mrb[0].mxu0 %v787
      %v1257 = vpop.f32.mrb[0].mxu0
      %v1258 = vadd.f32 %v310, %v1257
      %v1259 = vpop.f32.mrb[0].mxu0
      %v1260 = vpop.f32.mrb[0].mxu0
      %v1261 = vadd.f32 %v310, %v1260
      %v1262 = vpop.f32.mrb[0].mxu0
      %1263 = vmatprep.mubr.bf16.mxu0 0
      %1264 = vmatmul.mubr.bf16.gmra.mrb[0].mxu0 %v790
      %v1265 = vpop.f32.mrb[0].mxu0
      %v1266 = vadd.f32 %v310, %v1265
      %v1267 = vpop.f32.mrb[0].mxu0
      %v1268 = vpop.f32.mrb[0].mxu0
      %v1269 = vadd.f32 %v310, %v1268
      %v1270 = vpop.f32.mrb[0].mxu0
      %1271 = vmatprep.mubr.bf16.mxu0 0
      %1272 = vmatmul.mubr.bf16.gmra.mrb[0].mxu0 %v793
      %v1273 = vpop.f32.mrb[0].mxu0
      %v1274 = vadd.f32 %v310, %v1273
      %v1275 = vpop.f32.mrb[0].mxu0
      %v1276 = vpop.f32.mrb[0].mxu0
      %v1277 = vadd.f32 %v310, %v1276
      %v1278 = vpop.f32.mrb[0].mxu0
      %1279 = vmatprep.mubr.bf16.mxu0 0
      %1280 = vmatmul.mubr.bf16.gmra.mrb[0].mxu0 %v796
      %v1281 = vpop.f32.mrb[0].mxu0
      %v1282 = vadd.f32 %v310, %v1281
      %v1283 = vpop.f32.mrb[0].mxu0
      %v1284 = vpop.f32.mrb[0].mxu0
      %v1285 = vadd.f32 %v310, %v1284
      %v1286 = vpop.f32.mrb[0].mxu0
      %1287 = vmatprep.mubr.bf16.mxu0 0
      %1288 = vmatmul.mubr.bf16.gmra.mrb[0].mxu0 %v799
      %v1289 = vpop.f32.mrb[0].mxu0
      %v1290 = vadd.f32 %v310, %v1289
      %v1291 = vpop.f32.mrb[0].mxu0
      %v1292 = vpop.f32.mrb[0].mxu0
      %v1293 = vadd.f32 %v310, %v1292
      %v1294 = vpop.f32.mrb[0].mxu0
      %1295 = vmatprep.mubr.bf16.mxu0 0
      %1296 = vmatmul.mubr.bf16.gmra.mrb[0].mxu0 %v802
      %v1297 = vpop.f32.mrb[0].mxu0
      %v1298 = vadd.f32 %v310, %v1297
      %v1299 = vpop.f32.mrb[0].mxu0
      %v1300 = vpop.f32.mrb[0].mxu0
      %v1301 = vadd.f32 %v310, %v1300
      %v1302 = vpop.f32.mrb[0].mxu0
      %1303 = vmatprep.mubr.bf16.mxu0 0
      %1304 = vmatmul.mubr.bf16.gmra.mrb[0].mxu0 %v805
      %v1305 = vpop.f32.mrb[0].mxu0
      %v1306 = vadd.f32 %v310, %v1305
      %v1307 = vpop.f32.mrb[0].mxu0
      %v1308 = vpop.f32.mrb[0].mxu0
      %v1309 = vadd.f32 %v310, %v1308
      %v1310 = vpop.f32.mrb[0].mxu0
      %1311 = vmatprep.mubr.bf16.mxu0 0
      %1312 = vmatmul.mubr.bf16.gmra.mrb[0].mxu0 %v808
      %v1313 = vpop.f32.mrb[0].mxu0
      %v1314 = vadd.f32 %v310, %v1313
      %v1315 = vpop.f32.mrb[0].mxu0
      %v1316 = vpop.f32.mrb[0].mxu0
      %v1317 = vadd.f32 %v310, %v1316
      %v1318 = vpop.f32.mrb[0].mxu0
      %1319 = vmatprep.mubr.bf16.mxu0 0
      %1320 = vmatmul.mubr.bf16.gmra.mrb[0].mxu0 %v811
      %v1321 = vpop.f32.mrb[0].mxu0
      %v1322 = vadd.f32 %v310, %v1321
      %v1323 = vpop.f32.mrb[0].mxu0
      %v1324 = vpop.f32.mrb[0].mxu0
      %v1325 = vadd.f32 %v310, %v1324
      %v1326 = vpop.f32.mrb[0].mxu0
      %1327 = vmatprep.mubr.bf16.mxu0 0
      %1328 = vmatmul.mubr.bf16.gmra.mrb[0].mxu0 %v814
      %v1329 = vpop.f32.mrb[0].mxu0
      %v1330 = vadd.f32 %v310, %v1329
      %v1331 = vpop.f32.mrb[0].mxu0
      %v1332 = vpop.f32.mrb[0].mxu0
      %v1333 = vadd.f32 %v310, %v1332
      %v1334 = vpop.f32.mrb[0].mxu0
      %1335 = vmatprep.mubr.bf16.mxu0 0
      %1336 = vmatmul.mubr.bf16.gmra.mrb[0].mxu0 %v817
      %v1337 = vpop.f32.mrb[0].mxu0
      %v1338 = vadd.f32 %v310, %v1337
      %v1339 = vpop.f32.mrb[0].mxu0
      %v1340 = vpop.f32.mrb[0].mxu0
      %v1341 = vadd.f32 %v310, %v1340
      %v1342 = vpop.f32.mrb[0].mxu0
      %1343 = vmatprep.mubr.bf16.mxu0 0
      %1344 = vmatmul.mubr.bf16.gmra.mrb[0].mxu0 %v820
      %v1345 = vpop.f32.mrb[0].mxu0
      %v1346 = vadd.f32 %v310, %v1345
      %v1347 = vpop.f32.mrb[0].mxu0
      %v1348 = vpop.f32.mrb[0].mxu0
      %v1349 = vadd.f32 %v310, %v1348
      %v1350 = vpop.f32.mrb[0].mxu0
      %1351 = vmatprep.mubr.bf16.mxu0 0
      %1352 = vmatmul.mubr.bf16.gmra.mrb[0].mxu0 %v823
      %v1353 = vpop.f32.mrb[0].mxu0
      %v1354 = vadd.f32 %v310, %v1353
      %v1355 = vpop.f32.mrb[0].mxu0
      %v1356 = vpop.f32.mrb[0].mxu0
      %v1357 = vadd.f32 %v310, %v1356
      %v1358 = vpop.f32.mrb[0].mxu0
      %1359 = vmatprep.mubr.bf16.mxu0 0
      %1360 = vmatmul.mubr.bf16.gmra.mrb[0].mxu0 %v826
      %v1361 = vpop.f32.mrb[0].mxu0
      %v1362 = vadd.f32 %v310, %v1361
      %v1363 = vpop.f32.mrb[0].mxu0
      %v1364 = vpop.f32.mrb[0].mxu0
      %v1365 = vadd.f32 %v310, %v1364
      %v1366 = vpop.f32.mrb[0].mxu0
      %1367 = vmatprep.mubr.bf16.mxu0 0
      %1368 = vmatmul.mubr.bf16.gmra.mrb[0].mxu0 %v829
      %v1369 = vpop.f32.mrb[0].mxu0
      %v1370 = vadd.f32 %v310, %v1369
      %v1371 = vpop.f32.mrb[0].mxu0
      %v1372 = vpop.f32.mrb[0].mxu0
      %v1373 = vadd.f32 %v310, %v1372
      %v1374 = vpop.f32.mrb[0].mxu0
      %1375 = vdwg.mxu0
      %v1376 = vmax.f32 %v866, 0.0
      %v1377 = vmax.f32 %v869, 0.0
      %v1378 = vmax.f32 %v874, 0.0
      %v1379 = vmax.f32 %v877, 0.0
      %v1380 = vmax.f32 %v882, 0.0
      %v1381 = vmax.f32 %v885, 0.0
      %v1382 = vmax.f32 %v890, 0.0
      %v1383 = vmax.f32 %v893, 0.0
      %v1384 = vmax.f32 %v898, 0.0
      %v1385 = vmax.f32 %v901, 0.0
      %v1386 = vmax.f32 %v906, 0.0
      %v1387 = vmax.f32 %v909, 0.0
      %v1388 = vmax.f32 %v914, 0.0
      %v1389 = vmax.f32 %v917, 0.0
      %v1390 = vmax.f32 %v922, 0.0
      %v1391 = vmax.f32 %v925, 0.0
      %v1392 = vmax.f32 %v930, 0.0
      %v1393 = vmax.f32 %v933, 0.0
      %v1394 = vmax.f32 %v938, 0.0
      %v1395 = vmax.f32 %v941, 0.0
      %v1396 = vmax.f32 %v946, 0.0
      %v1397 = vmax.f32 %v949, 0.0
      %v1398 = vmax.f32 %v954, 0.0
      %v1399 = vmax.f32 %v957, 0.0
      %v1400 = vmax.f32 %v962, 0.0
      %v1401 = vmax.f32 %v965, 0.0
      %v1402 = vmax.f32 %v970, 0.0
      %v1403 = vmax.f32 %v973, 0.0
      %v1404 = vmax.f32 %v978, 0.0
      %v1405 = vmax.f32 %v981, 0.0
      %v1406 = vmax.f32 %v986, 0.0
      %v1407 = vmax.f32 %v989, 0.0
      %v1408 = vmax.f32 %v994, 0.0
      %v1409 = vmax.f32 %v997, 0.0
      %v1410 = vmax.f32 %v1002, 0.0
      %v1411 = vmax.f32 %v1005, 0.0
      %v1412 = vmax.f32 %v1010, 0.0
      %v1413 = vmax.f32 %v1013, 0.0
      %v1414 = vmax.f32 %v1018, 0.0
      %v1415 = vmax.f32 %v1021, 0.0
      %v1416 = vmax.f32 %v1026, 0.0
      %v1417 = vmax.f32 %v1029, 0.0
      %v1418 = vmax.f32 %v1034, 0.0
      %v1419 = vmax.f32 %v1037, 0.0
      %v1420 = vmax.f32 %v1042, 0.0
      %v1421 = vmax.f32 %v1045, 0.0
      %v1422 = vmax.f32 %v1050, 0.0
      %v1423 = vmax.f32 %v1053, 0.0
      %v1424 = vmax.f32 %v1058, 0.0
      %v1425 = vmax.f32 %v1061, 0.0
      %v1426 = vmax.f32 %v1066, 0.0
      %v1427 = vmax.f32 %v1069, 0.0
      %v1428 = vmax.f32 %v1074, 0.0
      %v1429 = vmax.f32 %v1077, 0.0
      %v1430 = vmax.f32 %v1082, 0.0
      %v1431 = vmax.f32 %v1085, 0.0
      %v1432 = vmax.f32 %v1090, 0.0
      %v1433 = vmax.f32 %v1093, 0.0
      %v1434 = vmax.f32 %v1098, 0.0
      %v1435 = vmax.f32 %v1101, 0.0
      %v1436 = vmax.f32 %v1106, 0.0
      %v1437 = vmax.f32 %v1109, 0.0
      %v1438 = vmax.f32 %v1114, 0.0
      %v1439 = vmax.f32 %v1117, 0.0
      %v1440 = vmax.f32 %v1122, 0.0
      %v1441 = vmax.f32 %v1125, 0.0
      %v1442 = vmax.f32 %v1130, 0.0
      %v1443 = vmax.f32 %v1133, 0.0
      %v1444 = vmax.f32 %v1138, 0.0
      %v1445 = vmax.f32 %v1141, 0.0
      %v1446 = vmax.f32 %v1146, 0.0
      %v1447 = vmax.f32 %v1149, 0.0
      %v1448 = vmax.f32 %v1154, 0.0
      %v1449 = vmax.f32 %v1157, 0.0
      %v1450 = vmax.f32 %v1162, 0.0
      %v1451 = vmax.f32 %v1165, 0.0
      %v1452 = vmax.f32 %v1170, 0.0
      %v1453 = vmax.f32 %v1173, 0.0
      %v1454 = vmax.f32 %v1178, 0.0
      %v1455 = vmax.f32 %v1181, 0.0
      %v1456 = vmax.f32 %v1186, 0.0
      %v1457 = vmax.f32 %v1189, 0.0
      %v1458 = vmax.f32 %v1194, 0.0
      %v1459 = vmax.f32 %v1197, 0.0
      %v1460 = vmax.f32 %v1202, 0.0
      %v1461 = vmax.f32 %v1205, 0.0
      %v1462 = vmax.f32 %v1210, 0.0
      %v1463 = vmax.f32 %v1213, 0.0
      %v1464 = vmax.f32 %v1218, 0.0
      %v1465 = vmax.f32 %v1221, 0.0
      %v1466 = vmax.f32 %v1226, 0.0
      %v1467 = vmax.f32 %v1229, 0.0
      %v1468 = vmax.f32 %v1234, 0.0
      %v1469 = vmax.f32 %v1237, 0.0
      %v1470 = vmax.f32 %v1242, 0.0
      %v1471 = vmax.f32 %v1245, 0.0
      %v1472 = vmax.f32 %v1250, 0.0
      %v1473 = vmax.f32 %v1253, 0.0
      %v1474 = vmax.f32 %v1258, 0.0
      %v1475 = vmax.f32 %v1261, 0.0
      %v1476 = vmax.f32 %v1266, 0.0
      %v1477 = vmax.f32 %v1269, 0.0
      %v1478 = vmax.f32 %v1274, 0.0
      %v1479 = vmax.f32 %v1277, 0.0
      %v1480 = vmax.f32 %v1282, 0.0
      %v1481 = vmax.f32 %v1285, 0.0
      %v1482 = vmax.f32 %v1290, 0.0
      %v1483 = vmax.f32 %v1293, 0.0
      %v1484 = vmax.f32 %v1298, 0.0
      %v1485 = vmax.f32 %v1301, 0.0
      %v1486 = vmax.f32 %v1306, 0.0
      %v1487 = vmax.f32 %v1309, 0.0
      %v1488 = vmax.f32 %v1314, 0.0
      %v1489 = vmax.f32 %v1317, 0.0
      %v1490 = vmax.f32 %v1322, 0.0
      %v1491 = vmax.f32 %v1325, 0.0
      %v1492 = vmax.f32 %v1330, 0.0
      %v1493 = vmax.f32 %v1333, 0.0
      %v1494 = vmax.f32 %v1338, 0.0
      %v1495 = vmax.f32 %v1341, 0.0
      %v1496 = vmax.f32 %v1346, 0.0
      %v1497 = vmax.f32 %v1349, 0.0
      %v1498 = vmax.f32 %v1354, 0.0
      %v1499 = vmax.f32 %v1357, 0.0
      %v1500 = vmax.f32 %v1362, 0.0
      %v1501 = vmax.f32 %v1365, 0.0
      %v1502 = vmax.f32 %v1370, 0.0
      %v1503 = vmax.f32 %v1373, 0.0
      %v1504 = vpack.c.bf16 %v1377, %v1376
      %v1505 = vpack.c.bf16 %v1379, %v1378
      %v1506 = vpack.c.bf16 %v1381, %v1380
      %v1507 = vpack.c.bf16 %v1383, %v1382
      %v1508 = vpack.c.bf16 %v1385, %v1384
      %v1509 = vpack.c.bf16 %v1387, %v1386
      %v1510 = vpack.c.bf16 %v1389, %v1388
      %v1511 = vpack.c.bf16 %v1391, %v1390
      %v1512 = vpack.c.bf16 %v1393, %v1392
      %v1513 = vpack.c.bf16 %v1395, %v1394
      %v1514 = vpack.c.bf16 %v1397, %v1396
      %v1515 = vpack.c.bf16 %v1399, %v1398
      %v1516 = vpack.c.bf16 %v1401, %v1400
      %v1517 = vpack.c.bf16 %v1403, %v1402
      %v1518 = vpack.c.bf16 %v1405, %v1404
      %v1519 = vpack.c.bf16 %v1407, %v1406
      %v1520 = vpack.c.bf16 %v1409, %v1408
      %v1521 = vpack.c.bf16 %v1411, %v1410
      %v1522 = vpack.c.bf16 %v1413, %v1412
      %v1523 = vpack.c.bf16 %v1415, %v1414
      %v1524 = vpack.c.bf16 %v1417, %v1416
      %v1525 = vpack.c.bf16 %v1419, %v1418
      %v1526 = vpack.c.bf16 %v1421, %v1420
      %v1527 = vpack.c.bf16 %v1423, %v1422
      %v1528 = vpack.c.bf16 %v1425, %v1424
      %v1529 = vpack.c.bf16 %v1427, %v1426
      %v1530 = vpack.c.bf16 %v1429, %v1428
      %v1531 = vpack.c.bf16 %v1431, %v1430
      %v1532 = vpack.c.bf16 %v1433, %v1432
      %v1533 = vpack.c.bf16 %v1435, %v1434
      %v1534 = vpack.c.bf16 %v1437, %v1436
      %v1535 = vpack.c.bf16 %v1439, %v1438
      %v1536 = vpack.c.bf16 %v1441, %v1440
      %v1537 = vpack.c.bf16 %v1443, %v1442
      %v1538 = vpack.c.bf16 %v1445, %v1444
      %v1539 = vpack.c.bf16 %v1447, %v1446
      %v1540 = vpack.c.bf16 %v1449, %v1448
      %v1541 = vpack.c.bf16 %v1451, %v1450
      %v1542 = vpack.c.bf16 %v1453, %v1452
      %v1543 = vpack.c.bf16 %v1455, %v1454
      %v1544 = vpack.c.bf16 %v1457, %v1456
      %v1545 = vpack.c.bf16 %v1459, %v1458
      %v1546 = vpack.c.bf16 %v1461, %v1460
      %v1547 = vpack.c.bf16 %v1463, %v1462
      %v1548 = vpack.c.bf16 %v1465, %v1464
      %v1549 = vpack.c.bf16 %v1467, %v1466
      %v1550 = vpack.c.bf16 %v1469, %v1468
      %v1551 = vpack.c.bf16 %v1471, %v1470
      %v1552 = vpack.c.bf16 %v1473, %v1472
      %v1553 = vpack.c.bf16 %v1475, %v1474
      %v1554 = vpack.c.bf16 %v1477, %v1476
      %v1555 = vpack.c.bf16 %v1479, %v1478
      %v1556 = vpack.c.bf16 %v1481, %v1480
      %v1557 = vpack.c.bf16 %v1483, %v1482
      %v1558 = vpack.c.bf16 %v1485, %v1484
      %v1559 = vpack.c.bf16 %v1487, %v1486
      %v1560 = vpack.c.bf16 %v1489, %v1488
      %v1561 = vpack.c.bf16 %v1491, %v1490
      %v1562 = vpack.c.bf16 %v1493, %v1492
      %v1563 = vpack.c.bf16 %v1495, %v1494
      %v1564 = vpack.c.bf16 %v1497, %v1496
      %v1565 = vpack.c.bf16 %v1499, %v1498
      %v1566 = vpack.c.bf16 %v1501, %v1500
      %v1567 = vpack.c.bf16 %v1503, %v1502
      %v1632 = vunpack.c.l.b16 %v1504
      %v1633 = vunpack.c.h.b16 %v1504
      %v1634 = vunpack.c.l.b16 %v1505
      %v1635 = vunpack.c.h.b16 %v1505
      %v1636 = vunpack.c.l.b16 %v1506
      %v1637 = vunpack.c.h.b16 %v1506
      %v1638 = vunpack.c.l.b16 %v1507
      %v1639 = vunpack.c.h.b16 %v1507
      %v1640 = vunpack.c.l.b16 %v1508
      %v1641 = vunpack.c.h.b16 %v1508
      %v1642 = vunpack.c.l.b16 %v1509
      %v1643 = vunpack.c.h.b16 %v1509
      %v1644 = vunpack.c.l.b16 %v1510
      %v1645 = vunpack.c.h.b16 %v1510
      %v1646 = vunpack.c.l.b16 %v1511
      %v1647 = vunpack.c.h.b16 %v1511
      %v1648 = vunpack.c.l.b16 %v1512
      %v1649 = vunpack.c.h.b16 %v1512
      %v1650 = vunpack.c.l.b16 %v1513
      %v1651 = vunpack.c.h.b16 %v1513
      %v1652 = vunpack.c.l.b16 %v1514
      %v1653 = vunpack.c.h.b16 %v1514
      %v1654 = vunpack.c.l.b16 %v1515
      %v1655 = vunpack.c.h.b16 %v1515
      %v1656 = vunpack.c.l.b16 %v1516
      %v1657 = vunpack.c.h.b16 %v1516
      %v1658 = vunpack.c.l.b16 %v1517
      %v1659 = vunpack.c.h.b16 %v1517
      %v1660 = vunpack.c.l.b16 %v1518
      %v1661 = vunpack.c.h.b16 %v1518
      %v1662 = vunpack.c.l.b16 %v1519
      %v1663 = vunpack.c.h.b16 %v1519
      %v1664 = vunpack.c.l.b16 %v1520
      %v1665 = vunpack.c.h.b16 %v1520
      %v1666 = vunpack.c.l.b16 %v1521
      %v1667 = vunpack.c.h.b16 %v1521
      %v1668 = vunpack.c.l.b16 %v1522
      %v1669 = vunpack.c.h.b16 %v1522
      %v1670 = vunpack.c.l.b16 %v1523
      %v1671 = vunpack.c.h.b16 %v1523
      %v1672 = vunpack.c.l.b16 %v1524
      %v1673 = vunpack.c.h.b16 %v1524
      %v1674 = vunpack.c.l.b16 %v1525
      %v1675 = vunpack.c.h.b16 %v1525
      %v1676 = vunpack.c.l.b16 %v1526
      %v1677 = vunpack.c.h.b16 %v1526
      %v1678 = vunpack.c.l.b16 %v1527
      %v1679 = vunpack.c.h.b16 %v1527
      %v1680 = vunpack.c.l.b16 %v1528
      %v1681 = vunpack.c.h.b16 %v1528
      %v1682 = vunpack.c.l.b16 %v1529
      %v1683 = vunpack.c.h.b16 %v1529
      %v1684 = vunpack.c.l.b16 %v1530
      %v1685 = vunpack.c.h.b16 %v1530
      %v1686 = vunpack.c.l.b16 %v1531
      %v1687 = vunpack.c.h.b16 %v1531
      %v1688 = vunpack.c.l.b16 %v1532
      %v1689 = vunpack.c.h.b16 %v1532
      %v1690 = vunpack.c.l.b16 %v1533
      %v1691 = vunpack.c.h.b16 %v1533
      %v1692 = vunpack.c.l.b16 %v1534
      %v1693 = vunpack.c.h.b16 %v1534
      %v1694 = vunpack.c.l.b16 %v1535
      %v1695 = vunpack.c.h.b16 %v1535
      %v1696 = vunpack.c.l.b16 %v1536
      %v1697 = vunpack.c.h.b16 %v1536
      %v1698 = vunpack.c.l.b16 %v1537
      %v1699 = vunpack.c.h.b16 %v1537
      %v1700 = vunpack.c.l.b16 %v1538
      %v1701 = vunpack.c.h.b16 %v1538
      %v1702 = vunpack.c.l.b16 %v1539
      %v1703 = vunpack.c.h.b16 %v1539
      %v1704 = vunpack.c.l.b16 %v1540
      %v1705 = vunpack.c.h.b16 %v1540
      %v1706 = vunpack.c.l.b16 %v1541
      %v1707 = vunpack.c.h.b16 %v1541
      %v1708 = vunpack.c.l.b16 %v1542
      %v1709 = vunpack.c.h.b16 %v1542
      %v1710 = vunpack.c.l.b16 %v1543
      %v1711 = vunpack.c.h.b16 %v1543
      %v1712 = vunpack.c.l.b16 %v1544
      %v1713 = vunpack.c.h.b16 %v1544
      %v1714 = vunpack.c.l.b16 %v1545
      %v1715 = vunpack.c.h.b16 %v1545
      %v1716 = vunpack.c.l.b16 %v1546
      %v1717 = vunpack.c.h.b16 %v1546
      %v1718 = vunpack.c.l.b16 %v1547
      %v1719 = vunpack.c.h.b16 %v1547
      %v1720 = vunpack.c.l.b16 %v1548
      %v1721 = vunpack.c.h.b16 %v1548
      %v1722 = vunpack.c.l.b16 %v1549
      %v1723 = vunpack.c.h.b16 %v1549
      %v1724 = vunpack.c.l.b16 %v1550
      %v1725 = vunpack.c.h.b16 %v1550
      %v1726 = vunpack.c.l.b16 %v1551
      %v1727 = vunpack.c.h.b16 %v1551
      %v1728 = vunpack.c.l.b16 %v1552
      %v1729 = vunpack.c.h.b16 %v1552
      %v1730 = vunpack.c.l.b16 %v1553
      %v1731 = vunpack.c.h.b16 %v1553
      %v1732 = vunpack.c.l.b16 %v1554
      %v1733 = vunpack.c.h.b16 %v1554
      %v1734 = vunpack.c.l.b16 %v1555
      %v1735 = vunpack.c.h.b16 %v1555
      %v1736 = vunpack.c.l.b16 %v1556
      %v1737 = vunpack.c.h.b16 %v1556
      %v1738 = vunpack.c.l.b16 %v1557
      %v1739 = vunpack.c.h.b16 %v1557
      %v1740 = vunpack.c.l.b16 %v1558
      %v1741 = vunpack.c.h.b16 %v1558
      %v1742 = vunpack.c.l.b16 %v1559
      %v1743 = vunpack.c.h.b16 %v1559
      %v1744 = vunpack.c.l.b16 %v1560
      %v1745 = vunpack.c.h.b16 %v1560
      %v1746 = vunpack.c.l.b16 %v1561
      %v1747 = vunpack.c.h.b16 %v1561
      %v1748 = vunpack.c.l.b16 %v1562
      %v1749 = vunpack.c.h.b16 %v1562
      %v1750 = vunpack.c.l.b16 %v1563
      %v1751 = vunpack.c.h.b16 %v1563
      %v1752 = vunpack.c.l.b16 %v1564
      %v1753 = vunpack.c.h.b16 %v1564
      %v1754 = vunpack.c.l.b16 %v1565
      %v1755 = vunpack.c.h.b16 %v1565
      %v1756 = vunpack.c.l.b16 %v1566
      %v1757 = vunpack.c.h.b16 %v1566
      %v1758 = vunpack.c.l.b16 %v1567
      %v1759 = vunpack.c.h.b16 %v1567
      %v1760 = vpack.c.b16 %v1632, %v1632
      %v1761 = vpack.c.b16 %v1633, %v1633
      %v1762 = vpack.c.b16 %v1634, %v1634
      %v1763 = vpack.c.b16 %v1635, %v1635
      %v1764 = vpack.c.b16 %v1636, %v1636
      %v1765 = vpack.c.b16 %v1637, %v1637
      %v1766 = vpack.c.b16 %v1638, %v1638
      %v1767 = vpack.c.b16 %v1639, %v1639
      %v1768 = vpack.c.b16 %v1640, %v1640
      %v1769 = vpack.c.b16 %v1641, %v1641
      %v1770 = vpack.c.b16 %v1642, %v1642
      %v1771 = vpack.c.b16 %v1643, %v1643
      %v1772 = vpack.c.b16 %v1644, %v1644
      %v1773 = vpack.c.b16 %v1645, %v1645
      %v1774 = vpack.c.b16 %v1646, %v1646
      %v1775 = vpack.c.b16 %v1647, %v1647
      %v1776 = vpack.c.b16 %v1648, %v1648
      %v1777 = vpack.c.b16 %v1649, %v1649
      %v1778 = vpack.c.b16 %v1650, %v1650
      %v1779 = vpack.c.b16 %v1651, %v1651
      %v1780 = vpack.c.b16 %v1652, %v1652
      %v1781 = vpack.c.b16 %v1653, %v1653
      %v1782 = vpack.c.b16 %v1654, %v1654
      %v1783 = vpack.c.b16 %v1655, %v1655
      %v1784 = vpack.c.b16 %v1656, %v1656
      %v1785 = vpack.c.b16 %v1657, %v1657
      %v1786 = vpack.c.b16 %v1658, %v1658
      %v1787 = vpack.c.b16 %v1659, %v1659
      %v1788 = vpack.c.b16 %v1660, %v1660
      %v1789 = vpack.c.b16 %v1661, %v1661
      %v1790 = vpack.c.b16 %v1662, %v1662
      %v1791 = vpack.c.b16 %v1663, %v1663
      %v1792 = vpack.c.b16 %v1664, %v1664
      %v1793 = vpack.c.b16 %v1665, %v1665
      %v1794 = vpack.c.b16 %v1666, %v1666
      %v1795 = vpack.c.b16 %v1667, %v1667
      %v1796 = vpack.c.b16 %v1668, %v1668
      %v1797 = vpack.c.b16 %v1669, %v1669
      %v1798 = vpack.c.b16 %v1670, %v1670
      %v1799 = vpack.c.b16 %v1671, %v1671
      %v1800 = vpack.c.b16 %v1672, %v1672
      %v1801 = vpack.c.b16 %v1673, %v1673
      %v1802 = vpack.c.b16 %v1674, %v1674
      %v1803 = vpack.c.b16 %v1675, %v1675
      %v1804 = vpack.c.b16 %v1676, %v1676
      %v1805 = vpack.c.b16 %v1677, %v1677
      %v1806 = vpack.c.b16 %v1678, %v1678
      %v1807 = vpack.c.b16 %v1679, %v1679
      %v1808 = vpack.c.b16 %v1680, %v1680
      %v1809 = vpack.c.b16 %v1681, %v1681
      %v1810 = vpack.c.b16 %v1682, %v1682
      %v1811 = vpack.c.b16 %v1683, %v1683
      %v1812 = vpack.c.b16 %v1684, %v1684
      %v1813 = vpack.c.b16 %v1685, %v1685
      %v1814 = vpack.c.b16 %v1686, %v1686
      %v1815 = vpack.c.b16 %v1687, %v1687
      %v1816 = vpack.c.b16 %v1688, %v1688
      %v1817 = vpack.c.b16 %v1689, %v1689
      %v1818 = vpack.c.b16 %v1690, %v1690
      %v1819 = vpack.c.b16 %v1691, %v1691
      %v1820 = vpack.c.b16 %v1692, %v1692
      %v1821 = vpack.c.b16 %v1693, %v1693
      %v1822 = vpack.c.b16 %v1694, %v1694
      %v1823 = vpack.c.b16 %v1695, %v1695
      %v1824 = vpack.c.b16 %v1696, %v1696
      %v1825 = vpack.c.b16 %v1697, %v1697
      %v1826 = vpack.c.b16 %v1698, %v1698
      %v1827 = vpack.c.b16 %v1699, %v1699
      %v1828 = vpack.c.b16 %v1700, %v1700
      %v1829 = vpack.c.b16 %v1701, %v1701
      %v1830 = vpack.c.b16 %v1702, %v1702
      %v1831 = vpack.c.b16 %v1703, %v1703
      %v1832 = vpack.c.b16 %v1704, %v1704
      %v1833 = vpack.c.b16 %v1705, %v1705
      %v1834 = vpack.c.b16 %v1706, %v1706
      %v1835 = vpack.c.b16 %v1707, %v1707
      %v1836 = vpack.c.b16 %v1708, %v1708
      %v1837 = vpack.c.b16 %v1709, %v1709
      %v1838 = vpack.c.b16 %v1710, %v1710
      %v1839 = vpack.c.b16 %v1711, %v1711
      %v1840 = vpack.c.b16 %v1712, %v1712
      %v1841 = vpack.c.b16 %v1713, %v1713
      %v1842 = vpack.c.b16 %v1714, %v1714
      %v1843 = vpack.c.b16 %v1715, %v1715
      %v1844 = vpack.c.b16 %v1716, %v1716
      %v1845 = vpack.c.b16 %v1717, %v1717
      %v1846 = vpack.c.b16 %v1718, %v1718
      %v1847 = vpack.c.b16 %v1719, %v1719
      %v1848 = vpack.c.b16 %v1720, %v1720
      %v1849 = vpack.c.b16 %v1721, %v1721
      %v1850 = vpack.c.b16 %v1722, %v1722
      %v1851 = vpack.c.b16 %v1723, %v1723
      %v1852 = vpack.c.b16 %v1724, %v1724
      %v1853 = vpack.c.b16 %v1725, %v1725
      %v1854 = vpack.c.b16 %v1726, %v1726
      %v1855 = vpack.c.b16 %v1727, %v1727
      %v1856 = vpack.c.b16 %v1728, %v1728
      %v1857 = vpack.c.b16 %v1729, %v1729
      %v1858 = vpack.c.b16 %v1730, %v1730
      %v1859 = vpack.c.b16 %v1731, %v1731
      %v1860 = vpack.c.b16 %v1732, %v1732
      %v1861 = vpack.c.b16 %v1733, %v1733
      %v1862 = vpack.c.b16 %v1734, %v1734
      %v1863 = vpack.c.b16 %v1735, %v1735
      %v1864 = vpack.c.b16 %v1736, %v1736
      %v1865 = vpack.c.b16 %v1737, %v1737
      %v1866 = vpack.c.b16 %v1738, %v1738
      %v1867 = vpack.c.b16 %v1739, %v1739
      %v1868 = vpack.c.b16 %v1740, %v1740
      %v1869 = vpack.c.b16 %v1741, %v1741
      %v1870 = vpack.c.b16 %v1742, %v1742
      %v1871 = vpack.c.b16 %v1743, %v1743
      %v1872 = vpack.c.b16 %v1744, %v1744
      %v1873 = vpack.c.b16 %v1745, %v1745
      %v1874 = vpack.c.b16 %v1746, %v1746
      %v1875 = vpack.c.b16 %v1747, %v1747
      %v1876 = vpack.c.b16 %v1748, %v1748
      %v1877 = vpack.c.b16 %v1749, %v1749
      %v1878 = vpack.c.b16 %v1750, %v1750
      %v1879 = vpack.c.b16 %v1751, %v1751
      %v1880 = vpack.c.b16 %v1752, %v1752
      %v1881 = vpack.c.b16 %v1753, %v1753
      %v1882 = vpack.c.b16 %v1754, %v1754
      %v1883 = vpack.c.b16 %v1755, %v1755
      %v1884 = vpack.c.b16 %v1756, %v1756
      %v1885 = vpack.c.b16 %v1757, %v1757
      %v1886 = vpack.c.b16 %v1758, %v1758
      %v1887 = vpack.c.b16 %v1759, %v1759
      %vm2016 = vcmask 125952
      %2017 = vst.msk [vmem:[%s172] sm:$0xf] %vm2016, %v1760
      %2018 = vst.msk [vmem:[%s172 + $0x4] sm:$0xf] %vm2016, %v1761
      %2019 = vst.msk [vmem:[%s172 + $0x8] sm:$0xf] %vm2016, %v1762
      %2020 = vst.msk [vmem:[%s172 + $0xc] sm:$0xf] %vm2016, %v1763
      %2021 = vst.msk [vmem:[%s172 + $0x10] sm:$0xf] %vm2016, %v1764
      %2022 = vst.msk [vmem:[%s172 + $0x14] sm:$0xf] %vm2016, %v1765
      %2023 = vst.msk [vmem:[%s172 + $0x18] sm:$0xf] %vm2016, %v1766
      %2024 = vst.msk [vmem:[%s172 + $0x1c] sm:$0xf] %vm2016, %v1767
      %2025 = vst.msk [vmem:[%s172 + $0x20] sm:$0xf] %vm2016, %v1768
      %2026 = vst.msk [vmem:[%s172 + $0x24] sm:$0xf] %vm2016, %v1769
      %2027 = vst.msk [vmem:[%s172 + $0x28] sm:$0xf] %vm2016, %v1770
      %2028 = vst.msk [vmem:[%s172 + $0x2c] sm:$0xf] %vm2016, %v1771
      %2029 = vst.msk [vmem:[%s172 + $0x30] sm:$0xf] %vm2016, %v1772
      %2030 = vst.msk [vmem:[%s172 + $0x34] sm:$0xf] %vm2016, %v1773
      %2031 = vst.msk [vmem:[%s172 + $0x38] sm:$0xf] %vm2016, %v1774
      %2032 = vst.msk [vmem:[%s172 + $0x3c] sm:$0xf] %vm2016, %v1775
      %2033 = vst.msk [vmem:[%s172 + $0x40] sm:$0xf] %vm2016, %v1776
      %2034 = vst.msk [vmem:[%s172 + $0x44] sm:$0xf] %vm2016, %v1777
      %2035 = vst.msk [vmem:[%s172 + $0x48] sm:$0xf] %vm2016, %v1778
      %2036 = vst.msk [vmem:[%s172 + $0x4c] sm:$0xf] %vm2016, %v1779
      %2037 = vst.msk [vmem:[%s172 + $0x50] sm:$0xf] %vm2016, %v1780
      %2038 = vst.msk [vmem:[%s172 + $0x54] sm:$0xf] %vm2016, %v1781
      %2039 = vst.msk [vmem:[%s172 + $0x58] sm:$0xf] %vm2016, %v1782
      %2040 = vst.msk [vmem:[%s172 + $0x5c] sm:$0xf] %vm2016, %v1783
      %2041 = vst.msk [vmem:[%s172 + $0x60] sm:$0xf] %vm2016, %v1784
      %2042 = vst.msk [vmem:[%s172 + $0x64] sm:$0xf] %vm2016, %v1785
      %2043 = vst.msk [vmem:[%s172 + $0x68] sm:$0xf] %vm2016, %v1786
      %2044 = vst.msk [vmem:[%s172 + $0x6c] sm:$0xf] %vm2016, %v1787
      %2045 = vst.msk [vmem:[%s172 + $0x70] sm:$0xf] %vm2016, %v1788
      %2046 = vst.msk [vmem:[%s172 + $0x74] sm:$0xf] %vm2016, %v1789
      %2047 = vst.msk [vmem:[%s172 + $0x78] sm:$0xf] %vm2016, %v1790
      %2048 = vst.msk [vmem:[%s172 + $0x7c] sm:$0xf] %vm2016, %v1791
      %2049 = vst.msk [vmem:[%s172 + $0x80] sm:$0xf] %vm2016, %v1792
      %2050 = vst.msk [vmem:[%s172 + $0x84] sm:$0xf] %vm2016, %v1793
      %2051 = vst.msk [vmem:[%s172 + $0x88] sm:$0xf] %vm2016, %v1794
      %2052 = vst.msk [vmem:[%s172 + $0x8c] sm:$0xf] %vm2016, %v1795
      %2053 = vst.msk [vmem:[%s172 + $0x90] sm:$0xf] %vm2016, %v1796
      %2054 = vst.msk [vmem:[%s172 + $0x94] sm:$0xf] %vm2016, %v1797
      %2055 = vst.msk [vmem:[%s172 + $0x98] sm:$0xf] %vm2016, %v1798
      %2056 = vst.msk [vmem:[%s172 + $0x9c] sm:$0xf] %vm2016, %v1799
      %2057 = vst.msk [vmem:[%s172 + $0xa0] sm:$0xf] %vm2016, %v1800
      %2058 = vst.msk [vmem:[%s172 + $0xa4] sm:$0xf] %vm2016, %v1801
      %2059 = vst.msk [vmem:[%s172 + $0xa8] sm:$0xf] %vm2016, %v1802
      %2060 = vst.msk [vmem:[%s172 + $0xac] sm:$0xf] %vm2016, %v1803
      %2061 = vst.msk [vmem:[%s172 + $0xb0] sm:$0xf] %vm2016, %v1804
      %2062 = vst.msk [vmem:[%s172 + $0xb4] sm:$0xf] %vm2016, %v1805
      %2063 = vst.msk [vmem:[%s172 + $0xb8] sm:$0xf] %vm2016, %v1806
      %2064 = vst.msk [vmem:[%s172 + $0xbc] sm:$0xf] %vm2016, %v1807
      %2065 = vst.msk [vmem:[%s172 + $0xc0] sm:$0xf] %vm2016, %v1808
      %2066 = vst.msk [vmem:[%s172 + $0xc4] sm:$0xf] %vm2016, %v1809
      %2067 = vst.msk [vmem:[%s172 + $0xc8] sm:$0xf] %vm2016, %v1810
      %2068 = vst.msk [vmem:[%s172 + $0xcc] sm:$0xf] %vm2016, %v1811
      %2069 = vst.msk [vmem:[%s172 + $0xd0] sm:$0xf] %vm2016, %v1812
      %2070 = vst.msk [vmem:[%s172 + $0xd4] sm:$0xf] %vm2016, %v1813
      %2071 = vst.msk [vmem:[%s172 + $0xd8] sm:$0xf] %vm2016, %v1814
      %2072 = vst.msk [vmem:[%s172 + $0xdc] sm:$0xf] %vm2016, %v1815
      %2073 = vst.msk [vmem:[%s172 + $0xe0] sm:$0xf] %vm2016, %v1816
      %2074 = vst.msk [vmem:[%s172 + $0xe4] sm:$0xf] %vm2016, %v1817
      %2075 = vst.msk [vmem:[%s172 + $0xe8] sm:$0xf] %vm2016, %v1818
      %2076 = vst.msk [vmem:[%s172 + $0xec] sm:$0xf] %vm2016, %v1819
      %2077 = vst.msk [vmem:[%s172 + $0xf0] sm:$0xf] %vm2016, %v1820
      %2078 = vst.msk [vmem:[%s172 + $0xf4] sm:$0xf] %vm2016, %v1821
      %2079 = vst.msk [vmem:[%s172 + $0xf8] sm:$0xf] %vm2016, %v1822
      %2080 = vst.msk [vmem:[%s172 + $0xfc] sm:$0xf] %vm2016, %v1823
      %2081 = vst.msk [vmem:[%s172 + $0x100] sm:$0xf] %vm2016, %v1824
      %2082 = vst.msk [vmem:[%s172 + $0x104] sm:$0xf] %vm2016, %v1825
      %2083 = vst.msk [vmem:[%s172 + $0x108] sm:$0xf] %vm2016, %v1826
      %2084 = vst.msk [vmem:[%s172 + $0x10c] sm:$0xf] %vm2016, %v1827
      %2085 = vst.msk [vmem:[%s172 + $0x110] sm:$0xf] %vm2016, %v1828
      %2086 = vst.msk [vmem:[%s172 + $0x114] sm:$0xf] %vm2016, %v1829
      %2087 = vst.msk [vmem:[%s172 + $0x118] sm:$0xf] %vm2016, %v1830
      %2088 = vst.msk [vmem:[%s172 + $0x11c] sm:$0xf] %vm2016, %v1831
      %2089 = vst.msk [vmem:[%s172 + $0x120] sm:$0xf] %vm2016, %v1832
      %2090 = vst.msk [vmem:[%s172 + $0x124] sm:$0xf] %vm2016, %v1833
      %2091 = vst.msk [vmem:[%s172 + $0x128] sm:$0xf] %vm2016, %v1834
      %2092 = vst.msk [vmem:[%s172 + $0x12c] sm:$0xf] %vm2016, %v1835
      %2093 = vst.msk [vmem:[%s172 + $0x130] sm:$0xf] %vm2016, %v1836
      %2094 = vst.msk [vmem:[%s172 + $0x134] sm:$0xf] %vm2016, %v1837
      %2095 = vst.msk [vmem:[%s172 + $0x138] sm:$0xf] %vm2016, %v1838
      %2096 = vst.msk [vmem:[%s172 + $0x13c] sm:$0xf] %vm2016, %v1839
      %2097 = vst.msk [vmem:[%s172 + $0x140] sm:$0xf] %vm2016, %v1840
      %2098 = vst.msk [vmem:[%s172 + $0x144] sm:$0xf] %vm2016, %v1841
      %2099 = vst.msk [vmem:[%s172 + $0x148] sm:$0xf] %vm2016, %v1842
      %2100 = vst.msk [vmem:[%s172 + $0x14c] sm:$0xf] %vm2016, %v1843
      %2101 = vst.msk [vmem:[%s172 + $0x150] sm:$0xf] %vm2016, %v1844
      %2102 = vst.msk [vmem:[%s172 + $0x154] sm:$0xf] %vm2016, %v1845
      %2103 = vst.msk [vmem:[%s172 + $0x158] sm:$0xf] %vm2016, %v1846
      %2104 = vst.msk [vmem:[%s172 + $0x15c] sm:$0xf] %vm2016, %v1847
      %2105 = vst.msk [vmem:[%s172 + $0x160] sm:$0xf] %vm2016, %v1848
      %2106 = vst.msk [vmem:[%s172 + $0x164] sm:$0xf] %vm2016, %v1849
      %2107 = vst.msk [vmem:[%s172 + $0x168] sm:$0xf] %vm2016, %v1850
      %2108 = vst.msk [vmem:[%s172 + $0x16c] sm:$0xf] %vm2016, %v1851
      %2109 = vst.msk [vmem:[%s172 + $0x170] sm:$0xf] %vm2016, %v1852
      %2110 = vst.msk [vmem:[%s172 + $0x174] sm:$0xf] %vm2016, %v1853
      %2111 = vst.msk [vmem:[%s172 + $0x178] sm:$0xf] %vm2016, %v1854
      %2112 = vst.msk [vmem:[%s172 + $0x17c] sm:$0xf] %vm2016, %v1855
      %2113 = vst.msk [vmem:[%s172 + $0x180] sm:$0xf] %vm2016, %v1856
      %2114 = vst.msk [vmem:[%s172 + $0x184] sm:$0xf] %vm2016, %v1857
      %2115 = vst.msk [vmem:[%s172 + $0x188] sm:$0xf] %vm2016, %v1858
      %2116 = vst.msk [vmem:[%s172 + $0x18c] sm:$0xf] %vm2016, %v1859
      %2117 = vst.msk [vmem:[%s172 + $0x190] sm:$0xf] %vm2016, %v1860
      %2118 = vst.msk [vmem:[%s172 + $0x194] sm:$0xf] %vm2016, %v1861
      %2119 = vst.msk [vmem:[%s172 + $0x198] sm:$0xf] %vm2016, %v1862
      %2120 = vst.msk [vmem:[%s172 + $0x19c] sm:$0xf] %vm2016, %v1863
      %2121 = vst.msk [vmem:[%s172 + $0x1a0] sm:$0xf] %vm2016, %v1864
      %2122 = vst.msk [vmem:[%s172 + $0x1a4] sm:$0xf] %vm2016, %v1865
      %2123 = vst.msk [vmem:[%s172 + $0x1a8] sm:$0xf] %vm2016, %v1866
      %2124 = vst.msk [vmem:[%s172 + $0x1ac] sm:$0xf] %vm2016, %v1867
      %2125 = vst.msk [vmem:[%s172 + $0x1b0] sm:$0xf] %vm2016, %v1868
      %2126 = vst.msk [vmem:[%s172 + $0x1b4] sm:$0xf] %vm2016, %v1869
      %2127 = vst.msk [vmem:[%s172 + $0x1b8] sm:$0xf] %vm2016, %v1870
      %2128 = vst.msk [vmem:[%s172 + $0x1bc] sm:$0xf] %vm2016, %v1871
      %2129 = vst.msk [vmem:[%s172 + $0x1c0] sm:$0xf] %vm2016, %v1872
      %2130 = vst.msk [vmem:[%s172 + $0x1c4] sm:$0xf] %vm2016, %v1873
      %2131 = vst.msk [vmem:[%s172 + $0x1c8] sm:$0xf] %vm2016, %v1874
      %2132 = vst.msk [vmem:[%s172 + $0x1cc] sm:$0xf] %vm2016, %v1875
      %2133 = vst.msk [vmem:[%s172 + $0x1d0] sm:$0xf] %vm2016, %v1876
      %2134 = vst.msk [vmem:[%s172 + $0x1d4] sm:$0xf] %vm2016, %v1877
      %2135 = vst.msk [vmem:[%s172 + $0x1d8] sm:$0xf] %vm2016, %v1878
      %2136 = vst.msk [vmem:[%s172 + $0x1dc] sm:$0xf] %vm2016, %v1879
      %2137 = vst.msk [vmem:[%s172 + $0x1e0] sm:$0xf] %vm2016, %v1880
      %2138 = vst.msk [vmem:[%s172 + $0x1e4] sm:$0xf] %vm2016, %v1881
      %2139 = vst.msk [vmem:[%s172 + $0x1e8] sm:$0xf] %vm2016, %v1882
      %2140 = vst.msk [vmem:[%s172 + $0x1ec] sm:$0xf] %vm2016, %v1883
      %2141 = vst.msk [vmem:[%s172 + $0x1f0] sm:$0xf] %vm2016, %v1884
      %2142 = vst.msk [vmem:[%s172 + $0x1f4] sm:$0xf] %vm2016, %v1885
      %2143 = vst.msk [vmem:[%s172 + $0x1f8] sm:$0xf] %vm2016, %v1886
      %2144 = vst.msk [vmem:[%s172 + $0x1fc] sm:$0xf] %vm2016, %v1887
      %s2145 = smul.u32 128, %s14
      %p2146 = scmp.lt.s32.totalorder %s2145, 639
      %s2147 = scalar_select %p2146, %s2145, 639
      %s2148 = smul.addr %s2147, 4
      %s2149 = scalar_lea.vmem %s3, %s2148
      // Predicated region
      $region33: #{encode_mu.4} parent=31 // pred_check
        %p2150 = pneg %p100
      $region34: #{encode_mu.4} parent=31 // pred_check_branch
        %2152 = sbr.rel (%p2150) target = $region36
      $region35: #{encode_mu.4} parent=31 // pred_region
        %s2153 = smul.u32 128, %s14
      $region36: #{encode_mu.4} parent=31 // pred_fallthru
        _
    $region32: #{encode_mu.4} parent=5 // pred_fallthru
      _
    %p2154 = scmp.le.s32.totalorder 2, %s9
    // Predicated region
    $region37: #{encode_mu.4} parent=5 // pred_check
      %p2155 = pneg %p2154
    $region38: #{encode_mu.4} parent=5 // pred_check_branch
      %2157 = sbr.rel (%p2155) target = $region40
    $region39: #{encode_mu.4} parent=5 // pred_region
      %s2158 = ssub.s32 %s9, 2
      // Predicated region
      $region41: #{encode_mu.4} parent=39 // pred_check
        %p2159 = pneg %p106
      $region42: #{encode_mu.4} parent=39 // pred_check_branch
        %2161 = sbr.rel (%p2159) target = $region44
      $region43: #{encode_mu.4} parent=39 // pred_region
        %s2162 = smul.u32 128, %s15
        %p2163 = scmp.lt.s32.totalorder %s2162, 639
        %s2164 = scalar_select %p2163, %s2162, 639
        %s2165 = smul.addr %s2164, 4
        %s2166 = scalar_lea.vmem %s3, %s2165
      $region44: #{encode_mu.4} parent=39 // pred_fallthru
        _
    $region40: #{encode_mu.4} parent=5 // pred_fallthru
      _
  $region6: #{encode_mu.4} parent=0 // loop_footer
    %s13 = sadd.s32 1, %s9
  $region7: #{encode_mu.4} parent=0 // loop_footer_branch
    %8 = sbr.rel target = $region3
  $region8: #{encode_mu.4} parent=0 // loop_exit
    _

// kernel: encode_mu.5
$region0: #{encode_mu.5}
  #allocation0 [shape = 'u32[]', space=smem, size = 0x4, offset = 0x4, fixed_abs, tag = 'smem constant byte address 0x4 - core index']
  #allocation1 [shape = 'u32[144,128]{1,0:T(1,128)}', space=vmem, size = 0x12000, scoped, tag = 'internal scratch']
  %s0 = inlined_call_operand.vmem [shape: bf16[1280,256], index: 0, kind: input, shape index: {}]
  %s1 = inlined_call_operand.vmem [shape: bf16[256,32], index: 1, kind: input, shape index: {}]
  %s2 = inlined_call_operand.vmem [shape: f32[1,32], index: 2, kind: input, shape index: {}]
  %s3 = inlined_call_operand.vmem [shape: bf16[1280,32], index: 3, kind: output, shape index: {}]
  %s4 = sld [smem:[#allocation0]]
  $region22: #{encode_mu.5} parent=0
    _
  %s6 = ssub.s32 1, %s4
  %s7 = scalar_select 0, %s6, %s4
  // Predicated region
  $region2: #{encode_mu.5} parent=0 // pred_check
    _
  $region3: #{encode_mu.5} parent=0 // pred_check_branch
    %9 = sbr.rel (0) target = $region5
  $region4: #{encode_mu.5} parent=0 // pred_region
    _
  $region5: #{encode_mu.5} parent=0 // pred_fallthru
    _
  // Predicated region
  $region6: #{encode_mu.5} parent=0 // pred_check
    _
  $region7: #{encode_mu.5} parent=0 // pred_check_branch
    %11 = sbr.rel (0) target = $region9
  $region8: #{encode_mu.5} parent=0 // pred_region
    _
  $region9: #{encode_mu.5} parent=0 // pred_fallthru
    _
  // Predicated region
  $region10: #{encode_mu.5} parent=0 // pred_check
    _
  $region11: #{encode_mu.5} parent=0 // pred_check_branch
    %13 = sbr.rel (0) target = $region13
  $region12: #{encode_mu.5} parent=0 // pred_region
    _
  $region13: #{encode_mu.5} parent=0 // pred_fallthru
    _
  %v15 = vld [vmem:[%s0] sm:$0xff]
  %v16 = vld [vmem:[%s0 + $0x8] sm:$0xff]
  %v17 = vld [vmem:[%s0 + $0x10] sm:$0xff]
  %v18 = vld [vmem:[%s0 + $0x18] sm:$0xff]
  %v19 = vld [vmem:[%s0 + $0x20] sm:$0xff]
  %v20 = vld [vmem:[%s0 + $0x28] sm:$0xff]
  %v21 = vld [vmem:[%s0 + $0x30] sm:$0xff]
  %v22 = vld [vmem:[%s0 + $0x38] sm:$0xff]
  %v23 = vld [vmem:[%s0 + $0x40] sm:$0xff]
  %v24 = vld [vmem:[%s0 + $0x48] sm:$0xff]
  %v25 = vld [vmem:[%s0 + $0x50] sm:$0xff]
  %v26 = vld [vmem:[%s0 + $0x58] sm:$0xff]
  %v27 = vld [vmem:[%s0 + $0x60] sm:$0xff]
  %v28 = vld [vmem:[%s0 + $0x68] sm:$0xff]
  %v29 = vld [vmem:[%s0 + $0x70] sm:$0xff]
  %v30 = vld [vmem:[%s0 + $0x78] sm:$0xff]
  %v31 = vld [vmem:[%s0 + $0x80] sm:$0xff]
  %v32 = vld [vmem:[%s0 + $0x88] sm:$0xff]
  %v33 = vld [vmem:[%s0 + $0x90] sm:$0xff]
  %v34 = vld [vmem:[%s0 + $0x98] sm:$0xff]
  %v35 = vld [vmem:[%s0 + $0xa0] sm:$0xff]
  %v36 = vld [vmem:[%s0 + $0xa8] sm:$0xff]
  %v37 = vld [vmem:[%s0 + $0xb0] sm:$0xff]
  %v38 = vld [vmem:[%s0 + $0xb8] sm:$0xff]
  %v39 = vld [vmem:[%s0 + $0xc0] sm:$0xff]
  %v40 = vld [vmem:[%s0 + $0xc8] sm:$0xff]
  %v41 = vld [vmem:[%s0 + $0xd0] sm:$0xff]
  %v42 = vld [vmem:[%s0 + $0xd8] sm:$0xff]
  %v43 = vld [vmem:[%s0 + $0xe0] sm:$0xff]
  %v44 = vld [vmem:[%s0 + $0xe8] sm:$0xff]
  %v45 = vld [vmem:[%s0 + $0xf0] sm:$0xff]
  %v46 = vld [vmem:[%s0 + $0xf8] sm:$0xff]
  %v47 = vld [vmem:[%s0 + $0x100] sm:$0xff]
  %v48 = vld [vmem:[%s0 + $0x108] sm:$0xff]
  %v49 = vld [vmem:[%s0 + $0x110] sm:$0xff]
  %v50 = vld [vmem:[%s0 + $0x118] sm:$0xff]
  %v51 = vld [vmem:[%s0 + $0x120] sm:$0xff]
  %v52 = vld [vmem:[%s0 + $0x128] sm:$0xff]
  %v53 = vld [vmem:[%s0 + $0x130] sm:$0xff]
  %v54 = vld [vmem:[%s0 + $0x138] sm:$0xff]
  %v55 = vld [vmem:[%s0 + $0x140] sm:$0xff]
  %v56 = vld [vmem:[%s0 + $0x148] sm:$0xff]
  %v57 = vld [vmem:[%s0 + $0x150] sm:$0xff]
  %v58 = vld [vmem:[%s0 + $0x158] sm:$0xff]
  %v59 = vld [vmem:[%s0 + $0x160] sm:$0xff]
  %v60 = vld [vmem:[%s0 + $0x168] sm:$0xff]
  %v61 = vld [vmem:[%s0 + $0x170] sm:$0xff]
  %v62 = vld [vmem:[%s0 + $0x178] sm:$0xff]
  %v63 = vld [vmem:[%s0 + $0x180] sm:$0xff]
  %v64 = vld [vmem:[%s0 + $0x188] sm:$0xff]
  %v65 = vld [vmem:[%s0 + $0x190] sm:$0xff]
  %v66 = vld [vmem:[%s0 + $0x198] sm:$0xff]
  %v67 = vld [vmem:[%s0 + $0x1a0] sm:$0xff]
  %v68 = vld [vmem:[%s0 + $0x1a8] sm:$0xff]
  %v69 = vld [vmem:[%s0 + $0x1b0] sm:$0xff]
  %v70 = vld [vmem:[%s0 + $0x1b8] sm:$0xff]
  %v71 = vld [vmem:[%s0 + $0x1c0] sm:$0xff]
  %v72 = vld [vmem:[%s0 + $0x1c8] sm:$0xff]
  %v73 = vld [vmem:[%s0 + $0x1d0] sm:$0xff]
  %v74 = vld [vmem:[%s0 + $0x1d8] sm:$0xff]
  %v75 = vld [vmem:[%s0 + $0x1e0] sm:$0xff]
  %v76 = vld [vmem:[%s0 + $0x1e8] sm:$0xff]
  %v77 = vld [vmem:[%s0 + $0x1f0] sm:$0xff]
  %v78 = vld [vmem:[%s0 + $0x1f8] sm:$0xff]
  %v79 = vld [vmem:[%s0 + $0x200] sm:$0xff]
  %v80 = vld [vmem:[%s0 + $0x208] sm:$0xff]
  %v81 = vld [vmem:[%s0 + $0x210] sm:$0xff]
  %v82 = vld [vmem:[%s0 + $0x218] sm:$0xff]
  %v83 = vld [vmem:[%s0 + $0x220] sm:$0xff]
  %v84 = vld [vmem:[%s0 + $0x228] sm:$0xff]
  %v85 = vld [vmem:[%s0 + $0x230] sm:$0xff]
  %v86 = vld [vmem:[%s0 + $0x238] sm:$0xff]
  %v87 = vld [vmem:[%s0 + $0x240] sm:$0xff]
  %v88 = vld [vmem:[%s0 + $0x248] sm:$0xff]
  %v89 = vld [vmem:[%s0 + $0x250] sm:$0xff]
  %v90 = vld [vmem:[%s0 + $0x258] sm:$0xff]
  %v91 = vld [vmem:[%s0 + $0x260] sm:$0xff]
  %v92 = vld [vmem:[%s0 + $0x268] sm:$0xff]
  %v93 = vld [vmem:[%s0 + $0x270] sm:$0xff]
  %v94 = vld [vmem:[%s0 + $0x278] sm:$0xff]
  %v95 = vld [vmem:[%s0 + $0x280] sm:$0xff]
  %v96 = vld [vmem:[%s0 + $0x288] sm:$0xff]
  %v97 = vld [vmem:[%s0 + $0x290] sm:$0xff]
  %v98 = vld [vmem:[%s0 + $0x298] sm:$0xff]
  %v99 = vld [vmem:[%s0 + $0x2a0] sm:$0xff]
  %v100 = vld [vmem:[%s0 + $0x2a8] sm:$0xff]
  %v101 = vld [vmem:[%s0 + $0x2b0] sm:$0xff]
  %v102 = vld [vmem:[%s0 + $0x2b8] sm:$0xff]
  %v103 = vld [vmem:[%s0 + $0x2c0] sm:$0xff]
  %v104 = vld [vmem:[%s0 + $0x2c8] sm:$0xff]
  %v105 = vld [vmem:[%s0 + $0x2d0] sm:$0xff]
  %v106 = vld [vmem:[%s0 + $0x2d8] sm:$0xff]
  %v107 = vld [vmem:[%s0 + $0x2e0] sm:$0xff]
  %v108 = vld [vmem:[%s0 + $0x2e8] sm:$0xff]
  %v109 = vld [vmem:[%s0 + $0x2f0] sm:$0xff]
  %v110 = vld [vmem:[%s0 + $0x2f8] sm:$0xff]
  %v111 = vld [vmem:[%s0 + $0x300] sm:$0xff]
  %v112 = vld [vmem:[%s0 + $0x308] sm:$0xff]
  %v113 = vld [vmem:[%s0 + $0x310] sm:$0xff]
  %v114 = vld [vmem:[%s0 + $0x318] sm:$0xff]
  %v115 = vld [vmem:[%s0 + $0x320] sm:$0xff]
  %v116 = vld [vmem:[%s0 + $0x328] sm:$0xff]
  %v117 = vld [vmem:[%s0 + $0x330] sm:$0xff]
  %v118 = vld [vmem:[%s0 + $0x338] sm:$0xff]
  %v119 = vld [vmem:[%s0 + $0x340] sm:$0xff]
  %v120 = vld [vmem:[%s0 + $0x348] sm:$0xff]
  %v121 = vld [vmem:[%s0 + $0x350] sm:$0xff]
  %v122 = vld [vmem:[%s0 + $0x358] sm:$0xff]
  %v123 = vld [vmem:[%s0 + $0x360] sm:$0xff]
  %v124 = vld [vmem:[%s0 + $0x368] sm:$0xff]
  %v125 = vld [vmem:[%s0 + $0x370] sm:$0xff]
  %v126 = vld [vmem:[%s0 + $0x378] sm:$0xff]
  %v127 = vld [vmem:[%s0 + $0x380] sm:$0xff]
  %v128 = vld [vmem:[%s0 + $0x388] sm:$0xff]
  %v129 = vld [vmem:[%s0 + $0x390] sm:$0xff]
  %v130 = vld [vmem:[%s0 + $0x398] sm:$0xff]
  %v131 = vld [vmem:[%s0 + $0x3a0] sm:$0xff]
  %v132 = vld [vmem:[%s0 + $0x3a8] sm:$0xff]
  %v133 = vld [vmem:[%s0 + $0x3b0] sm:$0xff]
  %v134 = vld [vmem:[%s0 + $0x3b8] sm:$0xff]
  %v135 = vld [vmem:[%s0 + $0x3c0] sm:$0xff]
  %v136 = vld [vmem:[%s0 + $0x3c8] sm:$0xff]
  %v137 = vld [vmem:[%s0 + $0x3d0] sm:$0xff]
  %v138 = vld [vmem:[%s0 + $0x3d8] sm:$0xff]
  %v139 = vld [vmem:[%s0 + $0x3e0] sm:$0xff]
  %v140 = vld [vmem:[%s0 + $0x3e8] sm:$0xff]
  %v141 = vld [vmem:[%s0 + $0x3f0] sm:$0xff]
  %v142 = vld [vmem:[%s0 + $0x3f8] sm:$0xff]
  %v143 = vld [vmem:[%s0 + $0x400] sm:$0xff]
  %v144 = vld [vmem:[%s0 + $0x408] sm:$0xff]
  %v145 = vld [vmem:[%s0 + $0x410] sm:$0xff]
  %v146 = vld [vmem:[%s0 + $0x418] sm:$0xff]
  %v147 = vld [vmem:[%s0 + $0x420] sm:$0xff]
  %v148 = vld [vmem:[%s0 + $0x428] sm:$0xff]
  %v149 = vld [vmem:[%s0 + $0x430] sm:$0xff]
  %v150 = vld [vmem:[%s0 + $0x438] sm:$0xff]
  %v151 = vld [vmem:[%s0 + $0x440] sm:$0xff]
  %v152 = vld [vmem:[%s0 + $0x448] sm:$0xff]
  %v153 = vld [vmem:[%s0 + $0x450] sm:$0xff]
  %v154 = vld [vmem:[%s0 + $0x458] sm:$0xff]
  %v155 = vld [vmem:[%s0 + $0x460] sm:$0xff]
  %v156 = vld [vmem:[%s0 + $0x468] sm:$0xff]
  %v157 = vld [vmem:[%s0 + $0x470] sm:$0xff]
  %v158 = vld [vmem:[%s0 + $0x478] sm:$0xff]
  %v159 = vld [vmem:[%s0 + $0x480] sm:$0xff]
  %v160 = vld [vmem:[%s0 + $0x488] sm:$0xff]
  %v161 = vld [vmem:[%s0 + $0x490] sm:$0xff]
  %v162 = vld [vmem:[%s0 + $0x498] sm:$0xff]
  %v163 = vld [vmem:[%s0 + $0x4a0] sm:$0xff]
  %v164 = vld [vmem:[%s0 + $0x4a8] sm:$0xff]
  %v165 = vld [vmem:[%s0 + $0x4b0] sm:$0xff]
  %v166 = vld [vmem:[%s0 + $0x4b8] sm:$0xff]
  %v167 = vld [vmem:[%s0 + $0x4c0] sm:$0xff]
  %v168 = vld [vmem:[%s0 + $0x4c8] sm:$0xff]
  %v169 = vld [vmem:[%s0 + $0x4d0] sm:$0xff]
  %v170 = vld [vmem:[%s0 + $0x4d8] sm:$0xff]
  %v171 = vld [vmem:[%s0 + $0x4e0] sm:$0xff]
  %v172 = vld [vmem:[%s0 + $0x4e8] sm:$0xff]
  %v173 = vld [vmem:[%s0 + $0x4f0] sm:$0xff]
  %v174 = vld [vmem:[%s0 + $0x4f8] sm:$0xff]
  %v175 = vld [vmem:[%s1] sm:$0xf]
  %v176 = vld [vmem:[%s1 + $0x4] sm:$0xf]
  %v177 = vld [vmem:[%s1 + $0x8] sm:$0xf]
  %v178 = vld [vmem:[%s1 + $0xc] sm:$0xf]
  %v179 = vld [vmem:[%s1 + $0x10] sm:$0xf]
  %v180 = vld [vmem:[%s1 + $0x14] sm:$0xf]
  %v181 = vld [vmem:[%s1 + $0x18] sm:$0xf]
  %v182 = vld [vmem:[%s1 + $0x1c] sm:$0xf]
  %v183 = vld [vmem:[%s1 + $0x20] sm:$0xf]
  %v184 = vld [vmem:[%s1 + $0x24] sm:$0xf]
  %v185 = vld [vmem:[%s1 + $0x28] sm:$0xf]
  %v186 = vld [vmem:[%s1 + $0x2c] sm:$0xf]
  %v187 = vld [vmem:[%s1 + $0x30] sm:$0xf]
  %v188 = vld [vmem:[%s1 + $0x34] sm:$0xf]
  %v189 = vld [vmem:[%s1 + $0x38] sm:$0xf]
  %v190 = vld [vmem:[%s1 + $0x3c] sm:$0xf]
  %v191 = vld [vmem:[%s1 + $0x40] sm:$0xf]
  %v192 = vld [vmem:[%s1 + $0x44] sm:$0xf]
  %v193 = vld [vmem:[%s1 + $0x48] sm:$0xf]
  %v194 = vld [vmem:[%s1 + $0x4c] sm:$0xf]
  %v195 = vld [vmem:[%s1 + $0x50] sm:$0xf]
  %v196 = vld [vmem:[%s1 + $0x54] sm:$0xf]
  %v197 = vld [vmem:[%s1 + $0x58] sm:$0xf]
  %v198 = vld [vmem:[%s1 + $0x5c] sm:$0xf]
  %v199 = vld [vmem:[%s1 + $0x60] sm:$0xf]
  %v200 = vld [vmem:[%s1 + $0x64] sm:$0xf]
  %v201 = vld [vmem:[%s1 + $0x68] sm:$0xf]
  %v202 = vld [vmem:[%s1 + $0x6c] sm:$0xf]
  %v203 = vld [vmem:[%s1 + $0x70] sm:$0xf]
  %v204 = vld [vmem:[%s1 + $0x74] sm:$0xf]
  %v205 = vld [vmem:[%s1 + $0x78] sm:$0xf]
  %v206 = vld [vmem:[%s1 + $0x7c] sm:$0xf]
  %v207 = vld [vmem:[%s2] sm:$0x1]
  %v209 = vlaneseq
  %v210 = vshrl.u32 %v209, 7
  %v211 = vsub.s32 0, %v210
  %v212 = vrot.slane %v207, %v211
  %v374 = vunpack.c.l.b16 %v15
  %v375 = vunpack.c.h.b16 %v15
  %v376 = vunpack.c.l.b16 %v16
  %v377 = vunpack.c.h.b16 %v16
  %v378 = vunpack.c.l.b16 %v17
  %v379 = vunpack.c.h.b16 %v17
  %v380 = vunpack.c.l.b16 %v18
  %v381 = vunpack.c.h.b16 %v18
  %v382 = vunpack.c.l.b16 %v19
  %v383 = vunpack.c.h.b16 %v19
  %v384 = vunpack.c.l.b16 %v20
  %v385 = vunpack.c.h.b16 %v20
  %v386 = vunpack.c.l.b16 %v21
  %v387 = vunpack.c.h.b16 %v21
  %v388 = vunpack.c.l.b16 %v22
  %v389 = vunpack.c.h.b16 %v22
  %v390 = vunpack.c.l.b16 %v23
  %v391 = vunpack.c.h.b16 %v23
  %v392 = vunpack.c.l.b16 %v24
  %v393 = vunpack.c.h.b16 %v24
  %v394 = vunpack.c.l.b16 %v25
  %v395 = vunpack.c.h.b16 %v25
  %v396 = vunpack.c.l.b16 %v26
  %v397 = vunpack.c.h.b16 %v26
  %v398 = vunpack.c.l.b16 %v27
  %v399 = vunpack.c.h.b16 %v27
  %v400 = vunpack.c.l.b16 %v28
  %v401 = vunpack.c.h.b16 %v28
  %v402 = vunpack.c.l.b16 %v29
  %v403 = vunpack.c.h.b16 %v29
  %v404 = vunpack.c.l.b16 %v30
  %v405 = vunpack.c.h.b16 %v30
  %v406 = vunpack.c.l.b16 %v31
  %v407 = vunpack.c.h.b16 %v31
  %v408 = vunpack.c.l.b16 %v32
  %v409 = vunpack.c.h.b16 %v32
  %v410 = vunpack.c.l.b16 %v33
  %v411 = vunpack.c.h.b16 %v33
  %v412 = vunpack.c.l.b16 %v34
  %v413 = vunpack.c.h.b16 %v34
  %v414 = vunpack.c.l.b16 %v35
  %v415 = vunpack.c.h.b16 %v35
  %v416 = vunpack.c.l.b16 %v36
  %v417 = vunpack.c.h.b16 %v36
  %v418 = vunpack.c.l.b16 %v37
  %v419 = vunpack.c.h.b16 %v37
  %v420 = vunpack.c.l.b16 %v38
  %v421 = vunpack.c.h.b16 %v38
  %v422 = vunpack.c.l.b16 %v39
  %v423 = vunpack.c.h.b16 %v39
  %v424 = vunpack.c.l.b16 %v40
  %v425 = vunpack.c.h.b16 %v40
  %v426 = vunpack.c.l.b16 %v41
  %v427 = vunpack.c.h.b16 %v41
  %v428 = vunpack.c.l.b16 %v42
  %v429 = vunpack.c.h.b16 %v42
  %v430 = vunpack.c.l.b16 %v43
  %v431 = vunpack.c.h.b16 %v43
  %v432 = vunpack.c.l.b16 %v44
  %v433 = vunpack.c.h.b16 %v44
  %v434 = vunpack.c.l.b16 %v45
  %v435 = vunpack.c.h.b16 %v45
  %v436 = vunpack.c.l.b16 %v46
  %v437 = vunpack.c.h.b16 %v46
  %v438 = vunpack.c.l.b16 %v47
  %v439 = vunpack.c.h.b16 %v47
  %v440 = vunpack.c.l.b16 %v48
  %v441 = vunpack.c.h.b16 %v48
  %v442 = vunpack.c.l.b16 %v49
  %v443 = vunpack.c.h.b16 %v49
  %v444 = vunpack.c.l.b16 %v50
  %v445 = vunpack.c.h.b16 %v50
  %v446 = vunpack.c.l.b16 %v51
  %v447 = vunpack.c.h.b16 %v51
  %v448 = vunpack.c.l.b16 %v52
  %v449 = vunpack.c.h.b16 %v52
  %v450 = vunpack.c.l.b16 %v53
  %v451 = vunpack.c.h.b16 %v53
  %v452 = vunpack.c.l.b16 %v54
  %v453 = vunpack.c.h.b16 %v54
  %v454 = vunpack.c.l.b16 %v55
  %v455 = vunpack.c.h.b16 %v55
  %v456 = vunpack.c.l.b16 %v56
  %v457 = vunpack.c.h.b16 %v56
  %v458 = vunpack.c.l.b16 %v57
  %v459 = vunpack.c.h.b16 %v57
  %v460 = vunpack.c.l.b16 %v58
  %v461 = vunpack.c.h.b16 %v58
  %v462 = vunpack.c.l.b16 %v59
  %v463 = vunpack.c.h.b16 %v59
  %v464 = vunpack.c.l.b16 %v60
  %v465 = vunpack.c.h.b16 %v60
  %v466 = vunpack.c.l.b16 %v61
  %v467 = vunpack.c.h.b16 %v61
  %v468 = vunpack.c.l.b16 %v62
  %v469 = vunpack.c.h.b16 %v62
  %v470 = vunpack.c.l.b16 %v63
  %v471 = vunpack.c.h.b16 %v63
  %v472 = vunpack.c.l.b16 %v64
  %v473 = vunpack.c.h.b16 %v64
  %v474 = vunpack.c.l.b16 %v65
  %v475 = vunpack.c.h.b16 %v65
  %v476 = vunpack.c.l.b16 %v66
  %v477 = vunpack.c.h.b16 %v66
  %v478 = vunpack.c.l.b16 %v67
  %v479 = vunpack.c.h.b16 %v67
  %v480 = vunpack.c.l.b16 %v68
  %v481 = vunpack.c.h.b16 %v68
  %v482 = vunpack.c.l.b16 %v69
  %v483 = vunpack.c.h.b16 %v69
  %v484 = vunpack.c.l.b16 %v70
  %v485 = vunpack.c.h.b16 %v70
  %v486 = vunpack.c.l.b16 %v71
  %v487 = vunpack.c.h.b16 %v71
  %v488 = vunpack.c.l.b16 %v72
  %v489 = vunpack.c.h.b16 %v72
  %v490 = vunpack.c.l.b16 %v73
  %v491 = vunpack.c.h.b16 %v73
  %v492 = vunpack.c.l.b16 %v74
  %v493 = vunpack.c.h.b16 %v74
  %v494 = vunpack.c.l.b16 %v75
  %v495 = vunpack.c.h.b16 %v75
  %v496 = vunpack.c.l.b16 %v76
  %v497 = vunpack.c.h.b16 %v76
  %v498 = vunpack.c.l.b16 %v77
  %v499 = vunpack.c.h.b16 %v77
  %v500 = vunpack.c.l.b16 %v78
  %v501 = vunpack.c.h.b16 %v78
  %v502 = vunpack.c.l.b16 %v79
  %v503 = vunpack.c.h.b16 %v79
  %v504 = vunpack.c.l.b16 %v80
  %v505 = vunpack.c.h.b16 %v80
  %v506 = vunpack.c.l.b16 %v81
  %v507 = vunpack.c.h.b16 %v81
  %v508 = vunpack.c.l.b16 %v82
  %v509 = vunpack.c.h.b16 %v82
  %v510 = vunpack.c.l.b16 %v83
  %v511 = vunpack.c.h.b16 %v83
  %v512 = vunpack.c.l.b16 %v84
  %v513 = vunpack.c.h.b16 %v84
  %v514 = vunpack.c.l.b16 %v85
  %v515 = vunpack.c.h.b16 %v85
  %v516 = vunpack.c.l.b16 %v86
  %v517 = vunpack.c.h.b16 %v86
  %v518 = vunpack.c.l.b16 %v87
  %v519 = vunpack.c.h.b16 %v87
  %v520 = vunpack.c.l.b16 %v88
  %v521 = vunpack.c.h.b16 %v88
  %v522 = vunpack.c.l.b16 %v89
  %v523 = vunpack.c.h.b16 %v89
  %v524 = vunpack.c.l.b16 %v90
  %v525 = vunpack.c.h.b16 %v90
  %v526 = vunpack.c.l.b16 %v91
  %v527 = vunpack.c.h.b16 %v91
  %v528 = vunpack.c.l.b16 %v92
  %v529 = vunpack.c.h.b16 %v92
  %v530 = vunpack.c.l.b16 %v93
  %v531 = vunpack.c.h.b16 %v93
  %v532 = vunpack.c.l.b16 %v94
  %v533 = vunpack.c.h.b16 %v94
  %v534 = vunpack.c.l.b16 %v95
  %v535 = vunpack.c.h.b16 %v95
  %v536 = vunpack.c.l.b16 %v96
  %v537 = vunpack.c.h.b16 %v96
  %v538 = vunpack.c.l.b16 %v97
  %v539 = vunpack.c.h.b16 %v97
  %v540 = vunpack.c.l.b16 %v98
  %v541 = vunpack.c.h.b16 %v98
  %v542 = vunpack.c.l.b16 %v99
  %v543 = vunpack.c.h.b16 %v99
  %v544 = vunpack.c.l.b16 %v100
  %v545 = vunpack.c.h.b16 %v100
  %v546 = vunpack.c.l.b16 %v101
  %v547 = vunpack.c.h.b16 %v101
  %v548 = vunpack.c.l.b16 %v102
  %v549 = vunpack.c.h.b16 %v102
  %v550 = vunpack.c.l.b16 %v103
  %v551 = vunpack.c.h.b16 %v103
  %v552 = vunpack.c.l.b16 %v104
  %v553 = vunpack.c.h.b16 %v104
  %v554 = vunpack.c.l.b16 %v105
  %v555 = vunpack.c.h.b16 %v105
  %v556 = vunpack.c.l.b16 %v106
  %v557 = vunpack.c.h.b16 %v106
  %v558 = vunpack.c.l.b16 %v107
  %v559 = vunpack.c.h.b16 %v107
  %v560 = vunpack.c.l.b16 %v108
  %v561 = vunpack.c.h.b16 %v108
  %v562 = vunpack.c.l.b16 %v109
  %v563 = vunpack.c.h.b16 %v109
  %v564 = vunpack.c.l.b16 %v110
  %v565 = vunpack.c.h.b16 %v110
  %v566 = vunpack.c.l.b16 %v111
  %v567 = vunpack.c.h.b16 %v111
  %v568 = vunpack.c.l.b16 %v112
  %v569 = vunpack.c.h.b16 %v112
  %v570 = vunpack.c.l.b16 %v113
  %v571 = vunpack.c.h.b16 %v113
  %v572 = vunpack.c.l.b16 %v114
  %v573 = vunpack.c.h.b16 %v114
  %v574 = vunpack.c.l.b16 %v115
  %v575 = vunpack.c.h.b16 %v115
  %v576 = vunpack.c.l.b16 %v116
  %v577 = vunpack.c.h.b16 %v116
  %v578 = vunpack.c.l.b16 %v117
  %v579 = vunpack.c.h.b16 %v117
  %v580 = vunpack.c.l.b16 %v118
  %v581 = vunpack.c.h.b16 %v118
  %v582 = vunpack.c.l.b16 %v119
  %v583 = vunpack.c.h.b16 %v119
  %v584 = vunpack.c.l.b16 %v120
  %v585 = vunpack.c.h.b16 %v120
  %v586 = vunpack.c.l.b16 %v121
  %v587 = vunpack.c.h.b16 %v121
  %v588 = vunpack.c.l.b16 %v122
  %v589 = vunpack.c.h.b16 %v122
  %v590 = vunpack.c.l.b16 %v123
  %v591 = vunpack.c.h.b16 %v123
  %v592 = vunpack.c.l.b16 %v124
  %v593 = vunpack.c.h.b16 %v124
  %v594 = vunpack.c.l.b16 %v125
  %v595 = vunpack.c.h.b16 %v125
  %v596 = vunpack.c.l.b16 %v126
  %v597 = vunpack.c.h.b16 %v126
  %v598 = vunpack.c.l.b16 %v127
  %v599 = vunpack.c.h.b16 %v127
  %v600 = vunpack.c.l.b16 %v128
  %v601 = vunpack.c.h.b16 %v128
  %v602 = vunpack.c.l.b16 %v129
  %v603 = vunpack.c.h.b16 %v129
  %v604 = vunpack.c.l.b16 %v130
  %v605 = vunpack.c.h.b16 %v130
  %v606 = vunpack.c.l.b16 %v131
  %v607 = vunpack.c.h.b16 %v131
  %v608 = vunpack.c.l.b16 %v132
  %v609 = vunpack.c.h.b16 %v132
  %v610 = vunpack.c.l.b16 %v133
  %v611 = vunpack.c.h.b16 %v133
  %v612 = vunpack.c.l.b16 %v134
  %v613 = vunpack.c.h.b16 %v134
  %v614 = vunpack.c.l.b16 %v135
  %v615 = vunpack.c.h.b16 %v135
  %v616 = vunpack.c.l.b16 %v136
  %v617 = vunpack.c.h.b16 %v136
  %v618 = vunpack.c.l.b16 %v137
  %v619 = vunpack.c.h.b16 %v137
  %v620 = vunpack.c.l.b16 %v138
  %v621 = vunpack.c.h.b16 %v138
  %v622 = vunpack.c.l.b16 %v139
  %v623 = vunpack.c.h.b16 %v139
  %v624 = vunpack.c.l.b16 %v140
  %v625 = vunpack.c.h.b16 %v140
  %v626 = vunpack.c.l.b16 %v141
  %v627 = vunpack.c.h.b16 %v141
  %v628 = vunpack.c.l.b16 %v142
  %v629 = vunpack.c.h.b16 %v142
  %v630 = vunpack.c.l.b16 %v143
  %v631 = vunpack.c.h.b16 %v143
  %v632 = vunpack.c.l.b16 %v144
  %v633 = vunpack.c.h.b16 %v144
  %v634 = vunpack.c.l.b16 %v145
  %v635 = vunpack.c.h.b16 %v145
  %v636 = vunpack.c.l.b16 %v146
  %v637 = vunpack.c.h.b16 %v146
  %v638 = vunpack.c.l.b16 %v147
  %v639 = vunpack.c.h.b16 %v147
  %v640 = vunpack.c.l.b16 %v148
  %v641 = vunpack.c.h.b16 %v148
  %v642 = vunpack.c.l.b16 %v149
  %v643 = vunpack.c.h.b16 %v149
  %v644 = vunpack.c.l.b16 %v150
  %v645 = vunpack.c.h.b16 %v150
  %v646 = vunpack.c.l.b16 %v151
  %v647 = vunpack.c.h.b16 %v151
  %v648 = vunpack.c.l.b16 %v152
  %v649 = vunpack.c.h.b16 %v152
  %v650 = vunpack.c.l.b16 %v153
  %v651 = vunpack.c.h.b16 %v153
  %v652 = vunpack.c.l.b16 %v154
  %v653 = vunpack.c.h.b16 %v154
  %v654 = vunpack.c.l.b16 %v155
  %v655 = vunpack.c.h.b16 %v155
  %v656 = vunpack.c.l.b16 %v156
  %v657 = vunpack.c.h.b16 %v156
  %v658 = vunpack.c.l.b16 %v157
  %v659 = vunpack.c.h.b16 %v157
  %v660 = vunpack.c.l.b16 %v158
  %v661 = vunpack.c.h.b16 %v158
  %v662 = vunpack.c.l.b16 %v159
  %v663 = vunpack.c.h.b16 %v159
  %v664 = vunpack.c.l.b16 %v160
  %v665 = vunpack.c.h.b16 %v160
  %v666 = vunpack.c.l.b16 %v161
  %v667 = vunpack.c.h.b16 %v161
  %v668 = vunpack.c.l.b16 %v162
  %v669 = vunpack.c.h.b16 %v162
  %v670 = vunpack.c.l.b16 %v163
  %v671 = vunpack.c.h.b16 %v163
  %v672 = vunpack.c.l.b16 %v164
  %v673 = vunpack.c.h.b16 %v164
  %v674 = vunpack.c.l.b16 %v165
  %v675 = vunpack.c.h.b16 %v165
  %v676 = vunpack.c.l.b16 %v166
  %v677 = vunpack.c.h.b16 %v166
  %v678 = vunpack.c.l.b16 %v167
  %v679 = vunpack.c.h.b16 %v167
  %v680 = vunpack.c.l.b16 %v168
  %v681 = vunpack.c.h.b16 %v168
  %v682 = vunpack.c.l.b16 %v169
  %v683 = vunpack.c.h.b16 %v169
  %v684 = vunpack.c.l.b16 %v170
  %v685 = vunpack.c.h.b16 %v170
  %v686 = vunpack.c.l.b16 %v171
  %v687 = vunpack.c.h.b16 %v171
  %v688 = vunpack.c.l.b16 %v172
  %v689 = vunpack.c.h.b16 %v172
  %v690 = vunpack.c.l.b16 %v173
  %v691 = vunpack.c.h.b16 %v173
  %v692 = vunpack.c.l.b16 %v174
  %v693 = vunpack.c.h.b16 %v174
  %v694 = vpack.c.b16 %v376, %v374
  %v695 = vpack.c.b16 %v377, %v375
  %v696 = vpack.c.b16 %v380, %v378
  %v697 = vpack.c.b16 %v381, %v379
  %v698 = vpack.c.b16 %v384, %v382
  %v699 = vpack.c.b16 %v385, %v383
  %v700 = vpack.c.b16 %v388, %v386
  %v701 = vpack.c.b16 %v389, %v387
  %v702 = vpack.c.b16 %v392, %v390
  %v703 = vpack.c.b16 %v393, %v391
  %v704 = vpack.c.b16 %v396, %v394
  %v705 = vpack.c.b16 %v397, %v395
  %v706 = vpack.c.b16 %v400, %v398
  %v707 = vpack.c.b16 %v401, %v399
  %v708 = vpack.c.b16 %v404, %v402
  %v709 = vpack.c.b16 %v405, %v403
  %v710 = vpack.c.b16 %v408, %v406
  %v711 = vpack.c.b16 %v409, %v407
  %v712 = vpack.c.b16 %v412, %v410
  %v713 = vpack.c.b16 %v413, %v411
  %v714 = vpack.c.b16 %v416, %v414
  %v715 = vpack.c.b16 %v417, %v415
  %v716 = vpack.c.b16 %v420, %v418
  %v717 = vpack.c.b16 %v421, %v419
  %v718 = vpack.c.b16 %v424, %v422
  %v719 = vpack.c.b16 %v425, %v423
  %v720 = vpack.c.b16 %v428, %v426
  %v721 = vpack.c.b16 %v429, %v427
  %v722 = vpack.c.b16 %v432, %v430
  %v723 = vpack.c.b16 %v433, %v431
  %v724 = vpack.c.b16 %v436, %v434
  %v725 = vpack.c.b16 %v437, %v435
  %v726 = vpack.c.b16 %v440, %v438
  %v727 = vpack.c.b16 %v441, %v439
  %v728 = vpack.c.b16 %v444, %v442
  %v729 = vpack.c.b16 %v445, %v443
  %v730 = vpack.c.b16 %v448, %v446
  %v731 = vpack.c.b16 %v449, %v447
  %v732 = vpack.c.b16 %v452, %v450
  %v733 = vpack.c.b16 %v453, %v451
  %v734 = vpack.c.b16 %v456, %v454
  %v735 = vpack.c.b16 %v457, %v455
  %v736 = vpack.c.b16 %v460, %v458
  %v737 = vpack.c.b16 %v461, %v459
  %v738 = vpack.c.b16 %v464, %v462
  %v739 = vpack.c.b16 %v465, %v463
  %v740 = vpack.c.b16 %v468, %v466
  %v741 = vpack.c.b16 %v469, %v467
  %v742 = vpack.c.b16 %v472, %v470
  %v743 = vpack.c.b16 %v473, %v471
  %v744 = vpack.c.b16 %v476, %v474
  %v745 = vpack.c.b16 %v477, %v475
  %v746 = vpack.c.b16 %v480, %v478
  %v747 = vpack.c.b16 %v481, %v479
  %v748 = vpack.c.b16 %v484, %v482
  %v749 = vpack.c.b16 %v485, %v483
  %v750 = vpack.c.b16 %v488, %v486
  %v751 = vpack.c.b16 %v489, %v487
  %v752 = vpack.c.b16 %v492, %v490
  %v753 = vpack.c.b16 %v493, %v491
  %v754 = vpack.c.b16 %v496, %v494
  %v755 = vpack.c.b16 %v497, %v495
  %v756 = vpack.c.b16 %v500, %v498
  %v757 = vpack.c.b16 %v501, %v499
  %v758 = vpack.c.b16 %v504, %v502
  %v759 = vpack.c.b16 %v505, %v503
  %v760 = vpack.c.b16 %v508, %v506
  %v761 = vpack.c.b16 %v509, %v507
  %v762 = vpack.c.b16 %v512, %v510
  %v763 = vpack.c.b16 %v513, %v511
  %v764 = vpack.c.b16 %v516, %v514
  %v765 = vpack.c.b16 %v517, %v515
  %v766 = vpack.c.b16 %v520, %v518
  %v767 = vpack.c.b16 %v521, %v519
  %v768 = vpack.c.b16 %v524, %v522
  %v769 = vpack.c.b16 %v525, %v523
  %v770 = vpack.c.b16 %v528, %v526
  %v771 = vpack.c.b16 %v529, %v527
  %v772 = vpack.c.b16 %v532, %v530
  %v773 = vpack.c.b16 %v533, %v531
  %v774 = vpack.c.b16 %v536, %v534
  %v775 = vpack.c.b16 %v537, %v535
  %v776 = vpack.c.b16 %v540, %v538
  %v777 = vpack.c.b16 %v541, %v539
  %v778 = vpack.c.b16 %v544, %v542
  %v779 = vpack.c.b16 %v545, %v543
  %v780 = vpack.c.b16 %v548, %v546
  %v781 = vpack.c.b16 %v549, %v547
  %v782 = vpack.c.b16 %v552, %v550
  %v783 = vpack.c.b16 %v553, %v551
  %v784 = vpack.c.b16 %v556, %v554
  %v785 = vpack.c.b16 %v557, %v555
  %v786 = vpack.c.b16 %v560, %v558
  %v787 = vpack.c.b16 %v561, %v559
  %v788 = vpack.c.b16 %v564, %v562
  %v789 = vpack.c.b16 %v565, %v563
  %v790 = vpack.c.b16 %v568, %v566
  %v791 = vpack.c.b16 %v569, %v567
  %v792 = vpack.c.b16 %v572, %v570
  %v793 = vpack.c.b16 %v573, %v571
  %v794 = vpack.c.b16 %v576, %v574
  %v795 = vpack.c.b16 %v577, %v575
  %v796 = vpack.c.b16 %v580, %v578
  %v797 = vpack.c.b16 %v581, %v579
  %v798 = vpack.c.b16 %v584, %v582
  %v799 = vpack.c.b16 %v585, %v583
  %v800 = vpack.c.b16 %v588, %v586
  %v801 = vpack.c.b16 %v589, %v587
  %v802 = vpack.c.b16 %v592, %v590
  %v803 = vpack.c.b16 %v593, %v591
  %v804 = vpack.c.b16 %v596, %v594
  %v805 = vpack.c.b16 %v597, %v595
  %v806 = vpack.c.b16 %v600, %v598
  %v807 = vpack.c.b16 %v601, %v599
  %v808 = vpack.c.b16 %v604, %v602
  %v809 = vpack.c.b16 %v605, %v603
  %v810 = vpack.c.b16 %v608, %v606
  %v811 = vpack.c.b16 %v609, %v607
  %v812 = vpack.c.b16 %v612, %v610
  %v813 = vpack.c.b16 %v613, %v611
  %v814 = vpack.c.b16 %v616, %v614
  %v815 = vpack.c.b16 %v617, %v615
  %v816 = vpack.c.b16 %v620, %v618
  %v817 = vpack.c.b16 %v621, %v619
  %v818 = vpack.c.b16 %v624, %v622
  %v819 = vpack.c.b16 %v625, %v623
  %v820 = vpack.c.b16 %v628, %v626
  %v821 = vpack.c.b16 %v629, %v627
  %v822 = vpack.c.b16 %v632, %v630
  %v823 = vpack.c.b16 %v633, %v631
  %v824 = vpack.c.b16 %v636, %v634
  %v825 = vpack.c.b16 %v637, %v635
  %v826 = vpack.c.b16 %v640, %v638
  %v827 = vpack.c.b16 %v641, %v639
  %v828 = vpack.c.b16 %v644, %v642
  %v829 = vpack.c.b16 %v645, %v643
  %v830 = vpack.c.b16 %v648, %v646
  %v831 = vpack.c.b16 %v649, %v647
  %v832 = vpack.c.b16 %v652, %v650
  %v833 = vpack.c.b16 %v653, %v651
  %v834 = vpack.c.b16 %v656, %v654
  %v835 = vpack.c.b16 %v657, %v655
  %v836 = vpack.c.b16 %v660, %v658
  %v837 = vpack.c.b16 %v661, %v659
  %v838 = vpack.c.b16 %v664, %v662
  %v839 = vpack.c.b16 %v665, %v663
  %v840 = vpack.c.b16 %v668, %v666
  %v841 = vpack.c.b16 %v669, %v667
  %v842 = vpack.c.b16 %v672, %v670
  %v843 = vpack.c.b16 %v673, %v671
  %v844 = vpack.c.b16 %v676, %v674
  %v845 = vpack.c.b16 %v677, %v675
  %v846 = vpack.c.b16 %v680, %v678
  %v847 = vpack.c.b16 %v681, %v679
  %v848 = vpack.c.b16 %v684, %v682
  %v849 = vpack.c.b16 %v685, %v683
  %v850 = vpack.c.b16 %v688, %v686
  %v851 = vpack.c.b16 %v689, %v687
  %v852 = vpack.c.b16 %v692, %v690
  %v853 = vpack.c.b16 %v693, %v691
  %v1046 = vunpack.c.l.b16 %v175
  %v1047 = vunpack.c.l.b16 %v176
  %v1048 = vunpack.c.l.b16 %v177
  %v1049 = vunpack.c.l.b16 %v178
  %v1050 = vunpack.c.l.b16 %v179
  %v1051 = vunpack.c.l.b16 %v180
  %v1052 = vunpack.c.l.b16 %v181
  %v1053 = vunpack.c.l.b16 %v182
  %v1054 = vunpack.c.l.b16 %v183
  %v1055 = vunpack.c.l.b16 %v184
  %v1056 = vunpack.c.l.b16 %v185
  %v1057 = vunpack.c.l.b16 %v186
  %v1058 = vunpack.c.l.b16 %v187
  %v1059 = vunpack.c.l.b16 %v188
  %v1060 = vunpack.c.l.b16 %v189
  %v1061 = vunpack.c.l.b16 %v190
  %v1062 = vunpack.c.l.b16 %v191
  %v1063 = vunpack.c.l.b16 %v192
  %v1064 = vunpack.c.l.b16 %v193
  %v1065 = vunpack.c.l.b16 %v194
  %v1066 = vunpack.c.l.b16 %v195
  %v1067 = vunpack.c.l.b16 %v196
  %v1068 = vunpack.c.l.b16 %v197
  %v1069 = vunpack.c.l.b16 %v198
  %v1070 = vunpack.c.l.b16 %v199
  %v1071 = vunpack.c.l.b16 %v200
  %v1072 = vunpack.c.l.b16 %v201
  %v1073 = vunpack.c.l.b16 %v202
  %v1074 = vunpack.c.l.b16 %v203
  %v1075 = vunpack.c.l.b16 %v204
  %v1076 = vunpack.c.l.b16 %v205
  %v1077 = vunpack.c.l.b16 %v206
  %v1078 = vpack.c.b16 %v1047, %v1046
  %v1079 = vpack.c.b16 %v1049, %v1048
  %v1080 = vpack.c.b16 %v1051, %v1050
  %v1081 = vpack.c.b16 %v1053, %v1052
  %v1082 = vpack.c.b16 %v1055, %v1054
  %v1083 = vpack.c.b16 %v1057, %v1056
  %v1084 = vpack.c.b16 %v1059, %v1058
  %v1085 = vpack.c.b16 %v1061, %v1060
  %v1086 = vpack.c.b16 %v1063, %v1062
  %v1087 = vpack.c.b16 %v1065, %v1064
  %v1088 = vpack.c.b16 %v1067, %v1066
  %v1089 = vpack.c.b16 %v1069, %v1068
  %v1090 = vpack.c.b16 %v1071, %v1070
  %v1091 = vpack.c.b16 %v1073, %v1072
  %v1092 = vpack.c.b16 %v1075, %v1074
  %v1093 = vpack.c.b16 %v1077, %v1076
  %1110 = vmatprep.subr.bf16.mxu0 0
  %1111 = vmatpush1.bf16.msra.mxu0 %v1078
  %1112 = vmatprep.subr.bf16.mxu0 0
  %1113 = vmatpush1.bf16.msra.mxu0 %v1079
  %1114 = vmatprep.subr.bf16.mxu0 0
  %1115 = vmatpush1.bf16.msra.mxu0 %v1080
  %1116 = vmatprep.subr.bf16.mxu0 0
  %1117 = vmatpush1.bf16.msra.mxu0 %v1081
  %1118 = vmatprep.subr.bf16.mxu0 0
  %1119 = vmatpush1.bf16.msra.mxu0 %v1082
  %1120 = vmatprep.subr.bf16.mxu0 0
  %1121 = vmatpush1.bf16.msra.mxu0 %v1083
  %1122 = vmatprep.subr.bf16.mxu0 0
  %1123 = vmatpush1.bf16.msra.mxu0 %v1084
  %1124 = vmatprep.subr.bf16.mxu0 0
  %1125 = vmatpush1.bf16.msra.mxu0 %v1085
  %1126 = vmatprep.subr.bf16.mxu0 0
  %1127 = vmatpush1.bf16.msra.mxu0 %v1086
  %1128 = vmatprep.subr.bf16.mxu0 0
  %1129 = vmatpush1.bf16.msra.mxu0 %v1087
  %1130 = vmatprep.subr.bf16.mxu0 0
  %1131 = vmatpush1.bf16.msra.mxu0 %v1088
  %1132 = vmatprep.subr.bf16.mxu0 0
  %1133 = vmatpush1.bf16.msra.mxu0 %v1089
  %1134 = vmatprep.subr.bf16.mxu0 0
  %1135 = vmatpush1.bf16.msra.mxu0 %v1090
  %1136 = vmatprep.subr.bf16.mxu0 0
  %1137 = vmatpush1.bf16.msra.mxu0 %v1091
  %1138 = vmatprep.subr.bf16.mxu0 0
  %1139 = vmatpush1.bf16.msra.mxu0 %v1092
  %1140 = vmatprep.subr.bf16.mxu0 0
  %1141 = vmatpush1.bf16.msra.mxu0 %v1093
  %1142 = vmatprep.mubr.bf16.mxu0 %v695
  %1143 = vmatmul.mubr.bf16.gmra.mrb[0].mxu0 %v694
  %v1144 = vpop.f32.mrb[0].mxu0
  %v1145 = vadd.f32 %v212, %v1144
  %v1146 = vpop.f32.mrb[0].mxu0
  %v1147 = vpop.f32.mrb[0].mxu0
  %v1148 = vadd.f32 %v212, %v1147
  %v1149 = vpop.f32.mrb[0].mxu0
  %1150 = vmatprep.mubr.bf16.mxu0 %v697
  %1151 = vmatmul.mubr.bf16.gmra.mrb[0].mxu0 %v696
  %v1152 = vpop.f32.mrb[0].mxu0
  %v1153 = vadd.f32 %v212, %v1152
  %v1154 = vpop.f32.mrb[0].mxu0
  %v1155 = vpop.f32.mrb[0].mxu0
  %v1156 = vadd.f32 %v212, %v1155
  %v1157 = vpop.f32.mrb[0].mxu0
  %1158 = vmatprep.mubr.bf16.mxu0 %v699
  %1159 = vmatmul.mubr.bf16.gmra.mrb[0].mxu0 %v698
  %v1160 = vpop.f32.mrb[0].mxu0
  %v1161 = vadd.f32 %v212, %v1160
  %v1162 = vpop.f32.mrb[0].mxu0
  %v1163 = vpop.f32.mrb[0].mxu0
  %v1164 = vadd.f32 %v212, %v1163
  %v1165 = vpop.f32.mrb[0].mxu0
  %1166 = vmatprep.mubr.bf16.mxu0 %v701
  %1167 = vmatmul.mubr.bf16.gmra.mrb[0].mxu0 %v700
  %v1168 = vpop.f32.mrb[0].mxu0
  %v1169 = vadd.f32 %v212, %v1168
  %v1170 = vpop.f32.mrb[0].mxu0
  %v1171 = vpop.f32.mrb[0].mxu0
  %v1172 = vadd.f32 %v212, %v1171
  %v1173 = vpop.f32.mrb[0].mxu0
  %1174 = vmatprep.mubr.bf16.mxu0 %v703
  %1175 = vmatmul.mubr.bf16.gmra.mrb[0].mxu0 %v702
  %v1176 = vpop.f32.mrb[0].mxu0
  %v1177 = vadd.f32 %v212, %v1176
  %v1178 = vpop.f32.mrb[0].mxu0
  %v1179 = vpop.f32.mrb[0].mxu0
  %v1180 = vadd.f32 %v212, %v1179
  %v1181 = vpop.f32.mrb[0].mxu0
  %1182 = vmatprep.mubr.bf16.mxu0 %v705
  %1183 = vmatmul.mubr.bf16.gmra.mrb[0].mxu0 %v704
  %v1184 = vpop.f32.mrb[0].mxu0
  %v1185 = vadd.f32 %v212, %v1184
  %v1186 = vpop.f32.mrb[0].mxu0
  %v1187 = vpop.f32.mrb[0].mxu0
  %v1188 = vadd.f32 %v212, %v1187
  %v1189 = vpop.f32.mrb[0].mxu0
  %1190 = vmatprep.mubr.bf16.mxu0 %v707
  %1191 = vmatmul.mubr.bf16.gmra.mrb[0].mxu0 %v706
  %v1192 = vpop.f32.mrb[0].mxu0
  %v1193 = vadd.f32 %v212, %v1192
  %v1194 = vpop.f32.mrb[0].mxu0
  %v1195 = vpop.f32.mrb[0].mxu0
  %v1196 = vadd.f32 %v212, %v1195
  %v1197 = vpop.f32.mrb[0].mxu0
  %1198 = vmatprep.mubr.bf16.mxu0 %v709
  %1199 = vmatmul.mubr.bf16.gmra.mrb[0].mxu0 %v708
  %v1200 = vpop.f32.mrb[0].mxu0
  %v1201 = vadd.f32 %v212, %v1200
  %v1202 = vpop.f32.mrb[0].mxu0
  %v1203 = vpop.f32.mrb[0].mxu0
  %v1204 = vadd.f32 %v212, %v1203
  %v1205 = vpop.f32.mrb[0].mxu0
  %1206 = vmatprep.mubr.bf16.mxu0 %v711
  %1207 = vmatmul.mubr.bf16.gmra.mrb[0].mxu0 %v710
  %v1208 = vpop.f32.mrb[0].mxu0
  %v1209 = vadd.f32 %v212, %v1208
  %v1210 = vpop.f32.mrb[0].mxu0
  %v1211 = vpop.f32.mrb[0].mxu0
  %v1212 = vadd.f32 %v212, %v1211
  %v1213 = vpop.f32.mrb[0].mxu0
  %1214 = vmatprep.mubr.bf16.mxu0 %v713
  %1215 = vmatmul.mubr.bf16.gmra.mrb[0].mxu0 %v712
  %v1216 = vpop.f32.mrb[0].mxu0
  %v1217 = vadd.f32 %v212, %v1216
  %v1218 = vpop.f32.mrb[0].mxu0
  %v1219 = vpop.f32.mrb[0].mxu0
  %v1220 = vadd.f32 %v212, %v1219
  %v1221 = vpop.f32.mrb[0].mxu0
  %1222 = vmatprep.mubr.bf16.mxu0 %v715
  %1223 = vmatmul.mubr.bf16.gmra.mrb[0].mxu0 %v714
  %v1224 = vpop.f32.mrb[0].mxu0
  %v1225 = vadd.f32 %v212, %v1224
  %v1226 = vpop.f32.mrb[0].mxu0
  %v1227 = vpop.f32.mrb[0].mxu0
  %v1228 = vadd.f32 %v212, %v1227
  %v1229 = vpop.f32.mrb[0].mxu0
  %1230 = vmatprep.mubr.bf16.mxu0 %v717
  %1231 = vmatmul.mubr.bf16.gmra.mrb[0].mxu0 %v716
  %v1232 = vpop.f32.mrb[0].mxu0
  %v1233 = vadd.f32 %v212, %v1232
  %v1234 = vpop.f32.mrb[0].mxu0
  %v1235 = vpop.f32.mrb[0].mxu0
  %v1236 = vadd.f32 %v212, %v1235
  %v1237 = vpop.f32.mrb[0].mxu0
  %1238 = vmatprep.mubr.bf16.mxu0 %v719
  %1239 = vmatmul.mubr.bf16.gmra.mrb[0].mxu0 %v718
  %v1240 = vpop.f32.mrb[0].mxu0
  %v1241 = vadd.f32 %v212, %v1240
  %v1242 = vpop.f32.mrb[0].mxu0
  %v1243 = vpop.f32.mrb[0].mxu0
  %v1244 = vadd.f32 %v212, %v1243
  %v1245 = vpop.f32.mrb[0].mxu0
  %1246 = vmatprep.mubr.bf16.mxu0 %v721
  %1247 = vmatmul.mubr.bf16.gmra.mrb[0].mxu0 %v720
  %v1248 = vpop.f32.mrb[0].mxu0
  %v1249 = vadd.f32 %v212, %v1248
  %v1250 = vpop.f32.mrb[0].mxu0
  %v1251 = vpop.f32.mrb[0].mxu0
  %v1252 = vadd.f32 %v212, %v1251
  %v1253 = vpop.f32.mrb[0].mxu0
  %1254 = vmatprep.mubr.bf16.mxu0 %v723
  %1255 = vmatmul.mubr.bf16.gmra.mrb[0].mxu0 %v722
  %v1256 = vpop.f32.mrb[0].mxu0
  %v1257 = vadd.f32 %v212, %v1256
  %v1258 = vpop.f32.mrb[0].mxu0
  %v1259 = vpop.f32.mrb[0].mxu0
  %v1260 = vadd.f32 %v212, %v1259
  %v1261 = vpop.f32.mrb[0].mxu0
  %1262 = vmatprep.mubr.bf16.mxu0 %v725
  %1263 = vmatmul.mubr.bf16.gmra.mrb[0].mxu0 %v724
  %v1264 = vpop.f32.mrb[0].mxu0
  %v1265 = vadd.f32 %v212, %v1264
  %v1266 = vpop.f32.mrb[0].mxu0
  %v1267 = vpop.f32.mrb[0].mxu0
  %v1268 = vadd.f32 %v212, %v1267
  %v1269 = vpop.f32.mrb[0].mxu0
  %1270 = vmatprep.mubr.bf16.mxu0 %v727
  %1271 = vmatmul.mubr.bf16.gmra.mrb[0].mxu0 %v726
  %v1272 = vpop.f32.mrb[0].mxu0
  %v1273 = vadd.f32 %v212, %v1272
  %v1274 = vpop.f32.mrb[0].mxu0
  %v1275 = vpop.f32.mrb[0].mxu0
  %v1276 = vadd.f32 %v212, %v1275
  %v1277 = vpop.f32.mrb[0].mxu0
  %1278 = vmatprep.mubr.bf16.mxu0 %v729
  %1279 = vmatmul.mubr.bf16.gmra.mrb[0].mxu0 %v728
  %v1280 = vpop.f32.mrb[0].mxu0
  %v1281 = vadd.f32 %v212, %v1280
  %v1282 = vpop.f32.mrb[0].mxu0
  %v1283 = vpop.f32.mrb[0].mxu0
  %v1284 = vadd.f32 %v212, %v1283
  %v1285 = vpop.f32.mrb[0].mxu0
  %1286 = vmatprep.mubr.bf16.mxu0 %v731
  %1287 = vmatmul.mubr.bf16.gmra.mrb[0].mxu0 %v730
  %v1288 = vpop.f32.mrb[0].mxu0
  %v1289 = vadd.f32 %v212, %v1288
  %v1290 = vpop.f32.mrb[0].mxu0
  %v1291 = vpop.f32.mrb[0].mxu0
  %v1292 = vadd.f32 %v212, %v1291
  %v1293 = vpop.f32.mrb[0].mxu0
  %1294 = vmatprep.mubr.bf16.mxu0 %v733
  %1295 = vmatmul.mubr.bf16.gmra.mrb[0].mxu0 %v732
  %v1296 = vpop.f32.mrb[0].mxu0
  %v1297 = vadd.f32 %v212, %v1296
  %v1298 = vpop.f32.mrb[0].mxu0
  %v1299 = vpop.f32.mrb[0].mxu0
  %v1300 = vadd.f32 %v212, %v1299
  %v1301 = vpop.f32.mrb[0].mxu0
  %1302 = vmatprep.mubr.bf16.mxu0 %v735
  %1303 = vmatmul.mubr.bf16.gmra.mrb[0].mxu0 %v734
  %v1304 = vpop.f32.mrb[0].mxu0
  %v1305 = vadd.f32 %v212, %v1304
  %v1306 = vpop.f32.mrb[0].mxu0
  %v1307 = vpop.f32.mrb[0].mxu0
  %v1308 = vadd.f32 %v212, %v1307
  %v1309 = vpop.f32.mrb[0].mxu0
  %1310 = vmatprep.mubr.bf16.mxu0 %v737
  %1311 = vmatmul.mubr.bf16.gmra.mrb[0].mxu0 %v736
  %v1312 = vpop.f32.mrb[0].mxu0
  %v1313 = vadd.f32 %v212, %v1312
  %v1314 = vpop.f32.mrb[0].mxu0
  %v1315 = vpop.f32.mrb[0].mxu0
  %v1316 = vadd.f32 %v212, %v1315
  %v1317 = vpop.f32.mrb[0].mxu0
  %1318 = vmatprep.mubr.bf16.mxu0 %v739
  %1319 = vmatmul.mubr.bf16.gmra.mrb[0].mxu0 %v738
  %v1320 = vpop.f32.mrb[0].mxu0
  %v1321 = vadd.f32 %v212, %v1320
  %v1322 = vpop.f32.mrb[0].mxu0
  %v1323 = vpop.f32.mrb[0].mxu0
  %v1324 = vadd.f32 %v212, %v1323
  %v1325 = vpop.f32.mrb[0].mxu0
  %1326 = vmatprep.mubr.bf16.mxu0 %v741
  %1327 = vmatmul.mubr.bf16.gmra.mrb[0].mxu0 %v740
  %v1328 = vpop.f32.mrb[0].mxu0
  %v1329 = vadd.f32 %v212, %v1328
  %v1330 = vpop.f32.mrb[0].mxu0
  %v1331 = vpop.f32.mrb[0].mxu0
  %v1332 = vadd.f32 %v212, %v1331
  %v1333 = vpop.f32.mrb[0].mxu0
  %1334 = vmatprep.mubr.bf16.mxu0 %v743
  %1335 = vmatmul.mubr.bf16.gmra.mrb[0].mxu0 %v742
  %v1336 = vpop.f32.mrb[0].mxu0
  %v1337 = vadd.f32 %v212, %v1336
  %v1338 = vpop.f32.mrb[0].mxu0
  %v1339 = vpop.f32.mrb[0].mxu0
  %v1340 = vadd.f32 %v212, %v1339
  %v1341 = vpop.f32.mrb[0].mxu0
  %1342 = vmatprep.mubr.bf16.mxu0 %v745
  %1343 = vmatmul.mubr.bf16.gmra.mrb[0].mxu0 %v744
  %v1344 = vpop.f32.mrb[0].mxu0
  %v1345 = vadd.f32 %v212, %v1344
  %v1346 = vpop.f32.mrb[0].mxu0
  %v1347 = vpop.f32.mrb[0].mxu0
  %v1348 = vadd.f32 %v212, %v1347
  %v1349 = vpop.f32.mrb[0].mxu0
  %1350 = vmatprep.mubr.bf16.mxu0 %v747
  %1351 = vmatmul.mubr.bf16.gmra.mrb[0].mxu0 %v746
  %v1352 = vpop.f32.mrb[0].mxu0
  %v1353 = vadd.f32 %v212, %v1352
  %v1354 = vpop.f32.mrb[0].mxu0
  %v1355 = vpop.f32.mrb[0].mxu0
  %v1356 = vadd.f32 %v212, %v1355
  %v1357 = vpop.f32.mrb[0].mxu0
  %1358 = vmatprep.mubr.bf16.mxu0 %v749
  %1359 = vmatmul.mubr.bf16.gmra.mrb[0].mxu0 %v748
  %v1360 = vpop.f32.mrb[0].mxu0
  %v1361 = vadd.f32 %v212, %v1360
  %v1362 = vpop.f32.mrb[0].mxu0
  %v1363 = vpop.f32.mrb[0].mxu0
  %v1364 = vadd.f32 %v212, %v1363
  %v1365 = vpop.f32.mrb[0].mxu0
  %1366 = vmatprep.mubr.bf16.mxu0 %v751
  %1367 = vmatmul.mubr.bf16.gmra.mrb[0].mxu0 %v750
  %v1368 = vpop.f32.mrb[0].mxu0
  %v1369 = vadd.f32 %v212, %v1368
  %v1370 = vpop.f32.mrb[0].mxu0
  %v1371 = vpop.f32.mrb[0].mxu0
  %v1372 = vadd.f32 %v212, %v1371
  %v1373 = vpop.f32.mrb[0].mxu0
  %1374 = vmatprep.mubr.bf16.mxu0 %v753
  %1375 = vmatmul.mubr.bf16.gmra.mrb[0].mxu0 %v752
  %v1376 = vpop.f32.mrb[0].mxu0
  %v1377 = vadd.f32 %v212, %v1376
  %v1378 = vpop.f32.mrb[0].mxu0
  %v1379 = vpop.f32.mrb[0].mxu0
  %v1380 = vadd.f32 %v212, %v1379
  %v1381 = vpop.f32.mrb[0].mxu0
  %1382 = vmatprep.mubr.bf16.mxu0 %v755
  %1383 = vmatmul.mubr.bf16.gmra.mrb[0].mxu0 %v754
  %v1384 = vpop.f32.mrb[0].mxu0
  %v1385 = vadd.f32 %v212, %v1384
  %v1386 = vpop.f32.mrb[0].mxu0
  %v1387 = vpop.f32.mrb[0].mxu0
  %v1388 = vadd.f32 %v212, %v1387
  %v1389 = vpop.f32.mrb[0].mxu0
  %1390 = vmatprep.mubr.bf16.mxu0 %v757
  %1391 = vmatmul.mubr.bf16.gmra.mrb[0].mxu0 %v756
  %v1392 = vpop.f32.mrb[0].mxu0
  %v1393 = vadd.f32 %v212, %v1392
  %v1394 = vpop.f32.mrb[0].mxu0
  %v1395 = vpop.f32.mrb[0].mxu0
  %v1396 = vadd.f32 %v212, %v1395
  %v1397 = vpop.f32.mrb[0].mxu0
  %1398 = vmatprep.mubr.bf16.mxu0 %v759
  %1399 = vmatmul.mubr.bf16.gmra.mrb[0].mxu0 %v758
  %v1400 = vpop.f32.mrb[0].mxu0
  %v1401 = vadd.f32 %v212, %v1400
  %v1402 = vpop.f32.mrb[0].mxu0
  %v1403 = vpop.f32.mrb[0].mxu0
  %v1404 = vadd.f32 %v212, %v1403
  %v1405 = vpop.f32.mrb[0].mxu0
  %1406 = vmatprep.mubr.bf16.mxu0 %v761
  %1407 = vmatmul.mubr.bf16.gmra.mrb[0].mxu0 %v760
  %v1408 = vpop.f32.mrb[0].mxu0
  %v1409 = vadd.f32 %v212, %v1408
  %v1410 = vpop.f32.mrb[0].mxu0
  %v1411 = vpop.f32.mrb[0].mxu0
  %v1412 = vadd.f32 %v212, %v1411
  %v1413 = vpop.f32.mrb[0].mxu0
  %1414 = vmatprep.mubr.bf16.mxu0 %v763
  %1415 = vmatmul.mubr.bf16.gmra.mrb[0].mxu0 %v762
  %v1416 = vpop.f32.mrb[0].mxu0
  %v1417 = vadd.f32 %v212, %v1416
  %v1418 = vpop.f32.mrb[0].mxu0
  %v1419 = vpop.f32.mrb[0].mxu0
  %v1420 = vadd.f32 %v212, %v1419
  %v1421 = vpop.f32.mrb[0].mxu0
  %1422 = vmatprep.mubr.bf16.mxu0 %v765
  %1423 = vmatmul.mubr.bf16.gmra.mrb[0].mxu0 %v764
  %v1424 = vpop.f32.mrb[0].mxu0
  %v1425 = vadd.f32 %v212, %v1424
  %v1426 = vpop.f32.mrb[0].mxu0
  %v1427 = vpop.f32.mrb[0].mxu0
  %v1428 = vadd.f32 %v212, %v1427
  %v1429 = vpop.f32.mrb[0].mxu0
  %1430 = vmatprep.mubr.bf16.mxu0 %v767
  %1431 = vmatmul.mubr.bf16.gmra.mrb[0].mxu0 %v766
  %v1432 = vpop.f32.mrb[0].mxu0
  %v1433 = vadd.f32 %v212, %v1432
  %v1434 = vpop.f32.mrb[0].mxu0
  %v1435 = vpop.f32.mrb[0].mxu0
  %v1436 = vadd.f32 %v212, %v1435
  %v1437 = vpop.f32.mrb[0].mxu0
  %1438 = vmatprep.mubr.bf16.mxu0 %v769
  %1439 = vmatmul.mubr.bf16.gmra.mrb[0].mxu0 %v768
  %v1440 = vpop.f32.mrb[0].mxu0
  %v1441 = vadd.f32 %v212, %v1440
  %v1442 = vpop.f32.mrb[0].mxu0
  %v1443 = vpop.f32.mrb[0].mxu0
  %v1444 = vadd.f32 %v212, %v1443
  %v1445 = vpop.f32.mrb[0].mxu0
  %1446 = vmatprep.mubr.bf16.mxu0 %v771
  %1447 = vmatmul.mubr.bf16.gmra.mrb[0].mxu0 %v770
  %v1448 = vpop.f32.mrb[0].mxu0
  %v1449 = vadd.f32 %v212, %v1448
  %v1450 = vpop.f32.mrb[0].mxu0
  %v1451 = vpop.f32.mrb[0].mxu0
  %v1452 = vadd.f32 %v212, %v1451
  %v1453 = vpop.f32.mrb[0].mxu0
  %1454 = vmatprep.mubr.bf16.mxu0 %v773
  %1455 = vmatmul.mubr.bf16.gmra.mrb[0].mxu0 %v772
  %v1456 = vpop.f32.mrb[0].mxu0
  %v1457 = vadd.f32 %v212, %v1456
  %v1458 = vpop.f32.mrb[0].mxu0
  %v1459 = vpop.f32.mrb[0].mxu0
  %v1460 = vadd.f32 %v212, %v1459
  %v1461 = vpop.f32.mrb[0].mxu0
  %1462 = vmatprep.mubr.bf16.mxu0 %v775
  %1463 = vmatmul.mubr.bf16.gmra.mrb[0].mxu0 %v774
  %v1464 = vpop.f32.mrb[0].mxu0
  %v1465 = vadd.f32 %v212, %v1464
  %v1466 = vpop.f32.mrb[0].mxu0
  %v1467 = vpop.f32.mrb[0].mxu0
  %v1468 = vadd.f32 %v212, %v1467
  %v1469 = vpop.f32.mrb[0].mxu0
  %1470 = vmatprep.mubr.bf16.mxu0 %v777
  %1471 = vmatmul.mubr.bf16.gmra.mrb[0].mxu0 %v776
  %v1472 = vpop.f32.mrb[0].mxu0
  %v1473 = vadd.f32 %v212, %v1472
  %v1474 = vpop.f32.mrb[0].mxu0
  %v1475 = vpop.f32.mrb[0].mxu0
  %v1476 = vadd.f32 %v212, %v1475
  %v1477 = vpop.f32.mrb[0].mxu0
  %1478 = vmatprep.mubr.bf16.mxu0 %v779
  %1479 = vmatmul.mubr.bf16.gmra.mrb[0].mxu0 %v778
  %v1480 = vpop.f32.mrb[0].mxu0
  %v1481 = vadd.f32 %v212, %v1480
  %v1482 = vpop.f32.mrb[0].mxu0
  %v1483 = vpop.f32.mrb[0].mxu0
  %v1484 = vadd.f32 %v212, %v1483
  %v1485 = vpop.f32.mrb[0].mxu0
  %1486 = vmatprep.mubr.bf16.mxu0 %v781
  %1487 = vmatmul.mubr.bf16.gmra.mrb[0].mxu0 %v780
  %v1488 = vpop.f32.mrb[0].mxu0
  %v1489 = vadd.f32 %v212, %v1488
  %v1490 = vpop.f32.mrb[0].mxu0
  %v1491 = vpop.f32.mrb[0].mxu0
  %v1492 = vadd.f32 %v212, %v1491
  %v1493 = vpop.f32.mrb[0].mxu0
  %1494 = vmatprep.mubr.bf16.mxu0 %v783
  %1495 = vmatmul.mubr.bf16.gmra.mrb[0].mxu0 %v782
  %v1496 = vpop.f32.mrb[0].mxu0
  %v1497 = vadd.f32 %v212, %v1496
  %v1498 = vpop.f32.mrb[0].mxu0
  %v1499 = vpop.f32.mrb[0].mxu0
  %v1500 = vadd.f32 %v212, %v1499
  %v1501 = vpop.f32.mrb[0].mxu0
  %1502 = vmatprep.mubr.bf16.mxu0 %v785
  %1503 = vmatmul.mubr.bf16.gmra.mrb[0].mxu0 %v784
  %v1504 = vpop.f32.mrb[0].mxu0
  %v1505 = vadd.f32 %v212, %v1504
  %v1506 = vpop.f32.mrb[0].mxu0
  %v1507 = vpop.f32.mrb[0].mxu0
  %v1508 = vadd.f32 %v212, %v1507
  %v1509 = vpop.f32.mrb[0].mxu0
  %1510 = vmatprep.mubr.bf16.mxu0 %v787
  %1511 = vmatmul.mubr.bf16.gmra.mrb[0].mxu0 %v786
  %v1512 = vpop.f32.mrb[0].mxu0
  %v1513 = vadd.f32 %v212, %v1512
  %v1514 = vpop.f32.mrb[0].mxu0
  %v1515 = vpop.f32.mrb[0].mxu0
  %v1516 = vadd.f32 %v212, %v1515
  %v1517 = vpop.f32.mrb[0].mxu0
  %1518 = vmatprep.mubr.bf16.mxu0 %v789
  %1519 = vmatmul.mubr.bf16.gmra.mrb[0].mxu0 %v788
  %v1520 = vpop.f32.mrb[0].mxu0
  %v1521 = vadd.f32 %v212, %v1520
  %v1522 = vpop.f32.mrb[0].mxu0
  %v1523 = vpop.f32.mrb[0].mxu0
  %v1524 = vadd.f32 %v212, %v1523
  %v1525 = vpop.f32.mrb[0].mxu0
  %1526 = vmatprep.mubr.bf16.mxu0 %v791
  %1527 = vmatmul.mubr.bf16.gmra.mrb[0].mxu0 %v790
  %v1528 = vpop.f32.mrb[0].mxu0
  %v1529 = vadd.f32 %v212, %v1528
  %v1530 = vpop.f32.mrb[0].mxu0
  %v1531 = vpop.f32.mrb[0].mxu0
  %v1532 = vadd.f32 %v212, %v1531
  %v1533 = vpop.f32.mrb[0].mxu0
  %1534 = vmatprep.mubr.bf16.mxu0 %v793
  %1535 = vmatmul.mubr.bf16.gmra.mrb[0].mxu0 %v792
  %v1536 = vpop.f32.mrb[0].mxu0
  %v1537 = vadd.f32 %v212, %v1536
  %v1538 = vpop.f32.mrb[0].mxu0
  %v1539 = vpop.f32.mrb[0].mxu0
  %v1540 = vadd.f32 %v212, %v1539
  %v1541 = vpop.f32.mrb[0].mxu0
  %1542 = vmatprep.mubr.bf16.mxu0 %v795
  %1543 = vmatmul.mubr.bf16.gmra.mrb[0].mxu0 %v794
  %v1544 = vpop.f32.mrb[0].mxu0
  %v1545 = vadd.f32 %v212, %v1544
  %v1546 = vpop.f32.mrb[0].mxu0
  %v1547 = vpop.f32.mrb[0].mxu0
  %v1548 = vadd.f32 %v212, %v1547
  %v1549 = vpop.f32.mrb[0].mxu0
  %1550 = vmatprep.mubr.bf16.mxu0 %v797
  %1551 = vmatmul.mubr.bf16.gmra.mrb[0].mxu0 %v796
  %v1552 = vpop.f32.mrb[0].mxu0
  %v1553 = vadd.f32 %v212, %v1552
  %v1554 = vpop.f32.mrb[0].mxu0
  %v1555 = vpop.f32.mrb[0].mxu0
  %v1556 = vadd.f32 %v212, %v1555
  %v1557 = vpop.f32.mrb[0].mxu0
  %1558 = vmatprep.mubr.bf16.mxu0 %v799
  %1559 = vmatmul.mubr.bf16.gmra.mrb[0].mxu0 %v798
  %v1560 = vpop.f32.mrb[0].mxu0
  %v1561 = vadd.f32 %v212, %v1560
  %v1562 = vpop.f32.mrb[0].mxu0
  %v1563 = vpop.f32.mrb[0].mxu0
  %v1564 = vadd.f32 %v212, %v1563
  %v1565 = vpop.f32.mrb[0].mxu0
  %1566 = vmatprep.mubr.bf16.mxu0 %v801
  %1567 = vmatmul.mubr.bf16.gmra.mrb[0].mxu0 %v800
  %v1568 = vpop.f32.mrb[0].mxu0
  %v1569 = vadd.f32 %v212, %v1568
  %v1570 = vpop.f32.mrb[0].mxu0
  %v1571 = vpop.f32.mrb[0].mxu0
  %v1572 = vadd.f32 %v212, %v1571
  %v1573 = vpop.f32.mrb[0].mxu0
  %1574 = vmatprep.mubr.bf16.mxu0 %v803
  %1575 = vmatmul.mubr.bf16.gmra.mrb[0].mxu0 %v802
  %v1576 = vpop.f32.mrb[0].mxu0
  %v1577 = vadd.f32 %v212, %v1576
  %v1578 = vpop.f32.mrb[0].mxu0
  %v1579 = vpop.f32.mrb[0].mxu0
  %v1580 = vadd.f32 %v212, %v1579
  %v1581 = vpop.f32.mrb[0].mxu0
  %1582 = vmatprep.mubr.bf16.mxu0 %v805
  %1583 = vmatmul.mubr.bf16.gmra.mrb[0].mxu0 %v804
  %v1584 = vpop.f32.mrb[0].mxu0
  %v1585 = vadd.f32 %v212, %v1584
  %v1586 = vpop.f32.mrb[0].mxu0
  %v1587 = vpop.f32.mrb[0].mxu0
  %v1588 = vadd.f32 %v212, %v1587
  %v1589 = vpop.f32.mrb[0].mxu0
  %1590 = vmatprep.mubr.bf16.mxu0 %v807
  %1591 = vmatmul.mubr.bf16.gmra.mrb[0].mxu0 %v806
  %v1592 = vpop.f32.mrb[0].mxu0
  %v1593 = vadd.f32 %v212, %v1592
  %v1594 = vpop.f32.mrb[0].mxu0
  %v1595 = vpop.f32.mrb[0].mxu0
  %v1596 = vadd.f32 %v212, %v1595
  %v1597 = vpop.f32.mrb[0].mxu0
  %1598 = vmatprep.mubr.bf16.mxu0 %v809
  %1599 = vmatmul.mubr.bf16.gmra.mrb[0].mxu0 %v808
  %v1600 = vpop.f32.mrb[0].mxu0
  %v1601 = vadd.f32 %v212, %v1600
  %v1602 = vpop.f32.mrb[0].mxu0
  %v1603 = vpop.f32.mrb[0].mxu0
  %v1604 = vadd.f32 %v212, %v1603
  %v1605 = vpop.f32.mrb[0].mxu0
  %1606 = vmatprep.mubr.bf16.mxu0 %v811
  %1607 = vmatmul.mubr.bf16.gmra.mrb[0].mxu0 %v810
  %v1608 = vpop.f32.mrb[0].mxu0
  %v1609 = vadd.f32 %v212, %v1608
  %v1610 = vpop.f32.mrb[0].mxu0
  %v1611 = vpop.f32.mrb[0].mxu0
  %v1612 = vadd.f32 %v212, %v1611
  %v1613 = vpop.f32.mrb[0].mxu0
  %1614 = vmatprep.mubr.bf16.mxu0 %v813
  %1615 = vmatmul.mubr.bf16.gmra.mrb[0].mxu0 %v812
  %v1616 = vpop.f32.mrb[0].mxu0
  %v1617 = vadd.f32 %v212, %v1616
  %v1618 = vpop.f32.mrb[0].mxu0
  %v1619 = vpop.f32.mrb[0].mxu0
  %v1620 = vadd.f32 %v212, %v1619
  %v1621 = vpop.f32.mrb[0].mxu0
  %1622 = vmatprep.mubr.bf16.mxu0 %v815
  %1623 = vmatmul.mubr.bf16.gmra.mrb[0].mxu0 %v814
  %v1624 = vpop.f32.mrb[0].mxu0
  %v1625 = vadd.f32 %v212, %v1624
  %v1626 = vpop.f32.mrb[0].mxu0
  %v1627 = vpop.f32.mrb[0].mxu0
  %v1628 = vadd.f32 %v212, %v1627
  %v1629 = vpop.f32.mrb[0].mxu0
  %1630 = vmatprep.mubr.bf16.mxu0 %v817
  %1631 = vmatmul.mubr.bf16.gmra.mrb[0].mxu0 %v816
  %v1632 = vpop.f32.mrb[0].mxu0
  %v1633 = vadd.f32 %v212, %v1632
  %v1634 = vpop.f32.mrb[0].mxu0
  %v1635 = vpop.f32.mrb[0].mxu0
  %v1636 = vadd.f32 %v212, %v1635
  %v1637 = vpop.f32.mrb[0].mxu0
  %1638 = vmatprep.mubr.bf16.mxu0 %v819
  %1639 = vmatmul.mubr.bf16.gmra.mrb[0].mxu0 %v818
  %v1640 = vpop.f32.mrb[0].mxu0
  %v1641 = vadd.f32 %v212, %v1640
  %v1642 = vpop.f32.mrb[0].mxu0
  %v1643 = vpop.f32.mrb[0].mxu0
  %v1644 = vadd.f32 %v212, %v1643
  %v1645 = vpop.f32.mrb[0].mxu0
  %1646 = vmatprep.mubr.bf16.mxu0 %v821
  %1647 = vmatmul.mubr.bf16.gmra.mrb[0].mxu0 %v820
  %v1648 = vpop.f32.mrb[0].mxu0
  %v1649 = vadd.f32 %v212, %v1648
  %v1650 = vpop.f32.mrb[0].mxu0
  %v1651 = vpop.f32.mrb[0].mxu0
  %v1652 = vadd.f32 %v212, %v1651
  %v1653 = vpop.f32.mrb[0].mxu0
  %1654 = vmatprep.mubr.bf16.mxu0 %v823
  %1655 = vmatmul.mubr.bf16.gmra.mrb[0].mxu0 %v822
  %v1656 = vpop.f32.mrb[0].mxu0
  %v1657 = vadd.f32 %v212, %v1656
  %v1658 = vpop.f32.mrb[0].mxu0
  %v1659 = vpop.f32.mrb[0].mxu0
  %v1660 = vadd.f32 %v212, %v1659
  %v1661 = vpop.f32.mrb[0].mxu0
  %1662 = vmatprep.mubr.bf16.mxu0 %v825
  %1663 = vmatmul.mubr.bf16.gmra.mrb[0].mxu0 %v824
  %v1664 = vpop.f32.mrb[0].mxu0
  %v1665 = vadd.f32 %v212, %v1664
  %v1666 = vpop.f32.mrb[0].mxu0
  %v1667 = vpop.f32.mrb[0].mxu0
  %v1668 = vadd.f32 %v212, %v1667
  %v1669 = vpop.f32.mrb[0].mxu0
  %1670 = vmatprep.mubr.bf16.mxu0 %v827
  %1671 = vmatmul.mubr.bf16.gmra.mrb[0].mxu0 %v826
  %v1672 = vpop.f32.mrb[0].mxu0
  %v1673 = vadd.f32 %v212, %v1672
  %v1674 = vpop.f32.mrb[0].mxu0
  %v1675 = vpop.f32.mrb[0].mxu0
  %v1676 = vadd.f32 %v212, %v1675
  %v1677 = vpop.f32.mrb[0].mxu0
  %1678 = vmatprep.mubr.bf16.mxu0 %v829
  %1679 = vmatmul.mubr.bf16.gmra.mrb[0].mxu0 %v828
  %v1680 = vpop.f32.mrb[0].mxu0
  %v1681 = vadd.f32 %v212, %v1680
  %v1682 = vpop.f32.mrb[0].mxu0
  %v1683 = vpop.f32.mrb[0].mxu0
  %v1684 = vadd.f32 %v212, %v1683
  %v1685 = vpop.f32.mrb[0].mxu0
  %1686 = vmatprep.mubr.bf16.mxu0 %v831
  %1687 = vmatmul.mubr.bf16.gmra.mrb[0].mxu0 %v830
  %v1688 = vpop.f32.mrb[0].mxu0
  %v1689 = vadd.f32 %v212, %v1688
  %v1690 = vpop.f32.mrb[0].mxu0
  %v1691 = vpop.f32.mrb[0].mxu0
  %v1692 = vadd.f32 %v212, %v1691
  %v1693 = vpop.f32.mrb[0].mxu0
  %1694 = vmatprep.mubr.bf16.mxu0 %v833
  %1695 = vmatmul.mubr.bf16.gmra.mrb[0].mxu0 %v832
  %v1696 = vpop.f32.mrb[0].mxu0
  %v1697 = vadd.f32 %v212, %v1696
  %v1698 = vpop.f32.mrb[0].mxu0
  %v1699 = vpop.f32.mrb[0].mxu0
  %v1700 = vadd.f32 %v212, %v1699
  %v1701 = vpop.f32.mrb[0].mxu0
  %1702 = vmatprep.mubr.bf16.mxu0 %v835
  %1703 = vmatmul.mubr.bf16.gmra.mrb[0].mxu0 %v834
  %v1704 = vpop.f32.mrb[0].mxu0
  %v1705 = vadd.f32 %v212, %v1704
  %v1706 = vpop.f32.mrb[0].mxu0
  %v1707 = vpop.f32.mrb[0].mxu0
  %v1708 = vadd.f32 %v212, %v1707
  %v1709 = vpop.f32.mrb[0].mxu0
  %1710 = vmatprep.mubr.bf16.mxu0 %v837
  %1711 = vmatmul.mubr.bf16.gmra.mrb[0].mxu0 %v836
  %v1712 = vpop.f32.mrb[0].mxu0
  %v1713 = vadd.f32 %v212, %v1712
  %v1714 = vpop.f32.mrb[0].mxu0
  %v1715 = vpop.f32.mrb[0].mxu0
  %v1716 = vadd.f32 %v212, %v1715
  %v1717 = vpop.f32.mrb[0].mxu0
  %1718 = vmatprep.mubr.bf16.mxu0 %v839
  %1719 = vmatmul.mubr.bf16.gmra.mrb[0].mxu0 %v838
  %v1720 = vpop.f32.mrb[0].mxu0
  %v1721 = vadd.f32 %v212, %v1720
  %v1722 = vpop.f32.mrb[0].mxu0
  %v1723 = vpop.f32.mrb[0].mxu0
  %v1724 = vadd.f32 %v212, %v1723
  %v1725 = vpop.f32.mrb[0].mxu0
  %1726 = vmatprep.mubr.bf16.mxu0 %v841
  %1727 = vmatmul.mubr.bf16.gmra.mrb[0].mxu0 %v840
  %v1728 = vpop.f32.mrb[0].mxu0
  %v1729 = vadd.f32 %v212, %v1728
  %v1730 = vpop.f32.mrb[0].mxu0
  %v1731 = vpop.f32.mrb[0].mxu0
  %v1732 = vadd.f32 %v212, %v1731
  %v1733 = vpop.f32.mrb[0].mxu0
  %1734 = vmatprep.mubr.bf16.mxu0 %v843
  %1735 = vmatmul.mubr.bf16.gmra.mrb[0].mxu0 %v842
  %v1736 = vpop.f32.mrb[0].mxu0
  %v1737 = vadd.f32 %v212, %v1736
  %v1738 = vpop.f32.mrb[0].mxu0
  %v1739 = vpop.f32.mrb[0].mxu0
  %v1740 = vadd.f32 %v212, %v1739
  %v1741 = vpop.f32.mrb[0].mxu0
  %1742 = vmatprep.mubr.bf16.mxu0 %v845
  %1743 = vmatmul.mubr.bf16.gmra.mrb[0].mxu0 %v844
  %v1744 = vpop.f32.mrb[0].mxu0
  %v1745 = vadd.f32 %v212, %v1744
  %v1746 = vpop.f32.mrb[0].mxu0
  %v1747 = vpop.f32.mrb[0].mxu0
  %v1748 = vadd.f32 %v212, %v1747
  %v1749 = vpop.f32.mrb[0].mxu0
  %1750 = vmatprep.mubr.bf16.mxu0 %v847
  %1751 = vmatmul.mubr.bf16.gmra.mrb[0].mxu0 %v846
  %v1752 = vpop.f32.mrb[0].mxu0
  %v1753 = vadd.f32 %v212, %v1752
  %v1754 = vpop.f32.mrb[0].mxu0
  %v1755 = vpop.f32.mrb[0].mxu0
  %v1756 = vadd.f32 %v212, %v1755
  %v1757 = vpop.f32.mrb[0].mxu0
  %1758 = vmatprep.mubr.bf16.mxu0 %v849
  %1759 = vmatmul.mubr.bf16.gmra.mrb[0].mxu0 %v848
  %v1760 = vpop.f32.mrb[0].mxu0
  %v1761 = vadd.f32 %v212, %v1760
  %v1762 = vpop.f32.mrb[0].mxu0
  %v1763 = vpop.f32.mrb[0].mxu0
  %v1764 = vadd.f32 %v212, %v1763
  %v1765 = vpop.f32.mrb[0].mxu0
  %1766 = vmatprep.mubr.bf16.mxu0 %v851
  %1767 = vmatmul.mubr.bf16.gmra.mrb[0].mxu0 %v850
  %v1768 = vpop.f32.mrb[0].mxu0
  %v1769 = vadd.f32 %v212, %v1768
  %v1770 = vpop.f32.mrb[0].mxu0
  %v1771 = vpop.f32.mrb[0].mxu0
  %v1772 = vadd.f32 %v212, %v1771
  %v1773 = vpop.f32.mrb[0].mxu0
  %1774 = vmatprep.mubr.bf16.mxu0 %v853
  %1775 = vmatmul.mubr.bf16.gmra.mrb[0].mxu0 %v852
  %v1776 = vpop.f32.mrb[0].mxu0
  %v1777 = vadd.f32 %v212, %v1776
  %v1778 = vpop.f32.mrb[0].mxu0
  %v1779 = vpop.f32.mrb[0].mxu0
  %v1780 = vadd.f32 %v212, %v1779
  %v1781 = vpop.f32.mrb[0].mxu0
  %1782 = vdwg.mxu0
  %v1783 = vmax.f32 %v1145, 0.0
  %v1784 = vmax.f32 %v1148, 0.0
  %v1785 = vmax.f32 %v1153, 0.0
  %v1786 = vmax.f32 %v1156, 0.0
  %v1787 = vmax.f32 %v1161, 0.0
  %v1788 = vmax.f32 %v1164, 0.0
  %v1789 = vmax.f32 %v1169, 0.0
  %v1790 = vmax.f32 %v1172, 0.0
  %v1791 = vmax.f32 %v1177, 0.0
  %v1792 = vmax.f32 %v1180, 0.0
  %v1793 = vmax.f32 %v1185, 0.0
  %v1794 = vmax.f32 %v1188, 0.0
  %v1795 = vmax.f32 %v1193, 0.0
  %v1796 = vmax.f32 %v1196, 0.0
  %v1797 = vmax.f32 %v1201, 0.0
  %v1798 = vmax.f32 %v1204, 0.0
  %v1799 = vmax.f32 %v1209, 0.0
  %v1800 = vmax.f32 %v1212, 0.0
  %v1801 = vmax.f32 %v1217, 0.0
  %v1802 = vmax.f32 %v1220, 0.0
  %v1803 = vmax.f32 %v1225, 0.0
  %v1804 = vmax.f32 %v1228, 0.0
  %v1805 = vmax.f32 %v1233, 0.0
  %v1806 = vmax.f32 %v1236, 0.0
  %v1807 = vmax.f32 %v1241, 0.0
  %v1808 = vmax.f32 %v1244, 0.0
  %v1809 = vmax.f32 %v1249, 0.0
  %v1810 = vmax.f32 %v1252, 0.0
  %v1811 = vmax.f32 %v1257, 0.0
  %v1812 = vmax.f32 %v1260, 0.0
  %v1813 = vmax.f32 %v1265, 0.0
  %v1814 = vmax.f32 %v1268, 0.0
  %v1815 = vmax.f32 %v1273, 0.0
  %v1816 = vmax.f32 %v1276, 0.0
  %v1817 = vmax.f32 %v1281, 0.0
  %v1818 = vmax.f32 %v1284, 0.0
  %v1819 = vmax.f32 %v1289, 0.0
  %v1820 = vmax.f32 %v1292, 0.0
  %v1821 = vmax.f32 %v1297, 0.0
  %v1822 = vmax.f32 %v1300, 0.0
  %v1823 = vmax.f32 %v1305, 0.0
  %v1824 = vmax.f32 %v1308, 0.0
  %v1825 = vmax.f32 %v1313, 0.0
  %v1826 = vmax.f32 %v1316, 0.0
  %v1827 = vmax.f32 %v1321, 0.0
  %v1828 = vmax.f32 %v1324, 0.0
  %v1829 = vmax.f32 %v1329, 0.0
  %v1830 = vmax.f32 %v1332, 0.0
  %v1831 = vmax.f32 %v1337, 0.0
  %v1832 = vmax.f32 %v1340, 0.0
  %v1833 = vmax.f32 %v1345, 0.0
  %v1834 = vmax.f32 %v1348, 0.0
  %v1835 = vmax.f32 %v1353, 0.0
  %v1836 = vmax.f32 %v1356, 0.0
  %v1837 = vmax.f32 %v1361, 0.0
  %v1838 = vmax.f32 %v1364, 0.0
  %v1839 = vmax.f32 %v1369, 0.0
  %v1840 = vmax.f32 %v1372, 0.0
  %v1841 = vmax.f32 %v1377, 0.0
  %v1842 = vmax.f32 %v1380, 0.0
  %v1843 = vmax.f32 %v1385, 0.0
  %v1844 = vmax.f32 %v1388, 0.0
  %v1845 = vmax.f32 %v1393, 0.0
  %v1846 = vmax.f32 %v1396, 0.0
  %v1847 = vmax.f32 %v1401, 0.0
  %v1848 = vmax.f32 %v1404, 0.0
  %v1849 = vmax.f32 %v1409, 0.0
  %v1850 = vmax.f32 %v1412, 0.0
  %v1851 = vmax.f32 %v1417, 0.0
  %v1852 = vmax.f32 %v1420, 0.0
  %v1853 = vmax.f32 %v1425, 0.0
  %v1854 = vmax.f32 %v1428, 0.0
  %v1855 = vmax.f32 %v1433, 0.0
  %v1856 = vmax.f32 %v1436, 0.0
  %v1857 = vmax.f32 %v1441, 0.0
  %v1858 = vmax.f32 %v1444, 0.0
  %v1859 = vmax.f32 %v1449, 0.0
  %v1860 = vmax.f32 %v1452, 0.0
  %v1861 = vmax.f32 %v1457, 0.0
  %v1862 = vmax.f32 %v1460, 0.0
  %v1863 = vmax.f32 %v1465, 0.0
  %v1864 = vmax.f32 %v1468, 0.0
  %v1865 = vmax.f32 %v1473, 0.0
  %v1866 = vmax.f32 %v1476, 0.0
  %v1867 = vmax.f32 %v1481, 0.0
  %v1868 = vmax.f32 %v1484, 0.0
  %v1869 = vmax.f32 %v1489, 0.0
  %v1870 = vmax.f32 %v1492, 0.0
  %v1871 = vmax.f32 %v1497, 0.0
  %v1872 = vmax.f32 %v1500, 0.0
  %v1873 = vmax.f32 %v1505, 0.0
  %v1874 = vmax.f32 %v1508, 0.0
  %v1875 = vmax.f32 %v1513, 0.0
  %v1876 = vmax.f32 %v1516, 0.0
  %v1877 = vmax.f32 %v1521, 0.0
  %v1878 = vmax.f32 %v1524, 0.0
  %v1879 = vmax.f32 %v1529, 0.0
  %v1880 = vmax.f32 %v1532, 0.0
  %v1881 = vmax.f32 %v1537, 0.0
  %v1882 = vmax.f32 %v1540, 0.0
  %v1883 = vmax.f32 %v1545, 0.0
  %v1884 = vmax.f32 %v1548, 0.0
  %v1885 = vmax.f32 %v1553, 0.0
  %v1886 = vmax.f32 %v1556, 0.0
  %v1887 = vmax.f32 %v1561, 0.0
  %v1888 = vmax.f32 %v1564, 0.0
  %v1889 = vmax.f32 %v1569, 0.0
  %v1890 = vmax.f32 %v1572, 0.0
  %v1891 = vmax.f32 %v1577, 0.0
  %v1892 = vmax.f32 %v1580, 0.0
  %v1893 = vmax.f32 %v1585, 0.0
  %v1894 = vmax.f32 %v1588, 0.0
  %v1895 = vmax.f32 %v1593, 0.0
  %v1896 = vmax.f32 %v1596, 0.0
  %v1897 = vmax.f32 %v1601, 0.0
  %v1898 = vmax.f32 %v1604, 0.0
  %v1899 = vmax.f32 %v1609, 0.0
  %v1900 = vmax.f32 %v1612, 0.0
  %v1901 = vmax.f32 %v1617, 0.0
  %v1902 = vmax.f32 %v1620, 0.0
  %v1903 = vmax.f32 %v1625, 0.0
  %v1904 = vmax.f32 %v1628, 0.0
  %v1905 = vmax.f32 %v1633, 0.0
  %v1906 = vmax.f32 %v1636, 0.0
  %v1907 = vmax.f32 %v1641, 0.0
  %v1908 = vmax.f32 %v1644, 0.0
  %v1909 = vmax.f32 %v1649, 0.0
  %v1910 = vmax.f32 %v1652, 0.0
  %v1911 = vmax.f32 %v1657, 0.0
  %v1912 = vmax.f32 %v1660, 0.0
  %v1913 = vmax.f32 %v1665, 0.0
  %v1914 = vmax.f32 %v1668, 0.0
  %v1915 = vmax.f32 %v1673, 0.0
  %v1916 = vmax.f32 %v1676, 0.0
  %v1917 = vmax.f32 %v1681, 0.0
  %v1918 = vmax.f32 %v1684, 0.0
  %v1919 = vmax.f32 %v1689, 0.0
  %v1920 = vmax.f32 %v1692, 0.0
  %v1921 = vmax.f32 %v1697, 0.0
  %v1922 = vmax.f32 %v1700, 0.0
  %v1923 = vmax.f32 %v1705, 0.0
  %v1924 = vmax.f32 %v1708, 0.0
  %v1925 = vmax.f32 %v1713, 0.0
  %v1926 = vmax.f32 %v1716, 0.0
  %v1927 = vmax.f32 %v1721, 0.0
  %v1928 = vmax.f32 %v1724, 0.0
  %v1929 = vmax.f32 %v1729, 0.0
  %v1930 = vmax.f32 %v1732, 0.0
  %v1931 = vmax.f32 %v1737, 0.0
  %v1932 = vmax.f32 %v1740, 0.0
  %v1933 = vmax.f32 %v1745, 0.0
  %v1934 = vmax.f32 %v1748, 0.0
  %v1935 = vmax.f32 %v1753, 0.0
  %v1936 = vmax.f32 %v1756, 0.0
  %v1937 = vmax.f32 %v1761, 0.0
  %v1938 = vmax.f32 %v1764, 0.0
  %v1939 = vmax.f32 %v1769, 0.0
  %v1940 = vmax.f32 %v1772, 0.0
  %v1941 = vmax.f32 %v1777, 0.0
  %v1942 = vmax.f32 %v1780, 0.0
  %v1943 = vpack.c.bf16 %v1784, %v1783
  %v1944 = vpack.c.bf16 %v1786, %v1785
  %v1945 = vpack.c.bf16 %v1788, %v1787
  %v1946 = vpack.c.bf16 %v1790, %v1789
  %v1947 = vpack.c.bf16 %v1792, %v1791
  %v1948 = vpack.c.bf16 %v1794, %v1793
  %v1949 = vpack.c.bf16 %v1796, %v1795
  %v1950 = vpack.c.bf16 %v1798, %v1797
  %v1951 = vpack.c.bf16 %v1800, %v1799
  %v1952 = vpack.c.bf16 %v1802, %v1801
  %v1953 = vpack.c.bf16 %v1804, %v1803
  %v1954 = vpack.c.bf16 %v1806, %v1805
  %v1955 = vpack.c.bf16 %v1808, %v1807
  %v1956 = vpack.c.bf16 %v1810, %v1809
  %v1957 = vpack.c.bf16 %v1812, %v1811
  %v1958 = vpack.c.bf16 %v1814, %v1813
  %v1959 = vpack.c.bf16 %v1816, %v1815
  %v1960 = vpack.c.bf16 %v1818, %v1817
  %v1961 = vpack.c.bf16 %v1820, %v1819
  %v1962 = vpack.c.bf16 %v1822, %v1821
  %v1963 = vpack.c.bf16 %v1824, %v1823
  %v1964 = vpack.c.bf16 %v1826, %v1825
  %v1965 = vpack.c.bf16 %v1828, %v1827
  %v1966 = vpack.c.bf16 %v1830, %v1829
  %v1967 = vpack.c.bf16 %v1832, %v1831
  %v1968 = vpack.c.bf16 %v1834, %v1833
  %v1969 = vpack.c.bf16 %v1836, %v1835
  %v1970 = vpack.c.bf16 %v1838, %v1837
  %v1971 = vpack.c.bf16 %v1840, %v1839
  %v1972 = vpack.c.bf16 %v1842, %v1841
  %v1973 = vpack.c.bf16 %v1844, %v1843
  %v1974 = vpack.c.bf16 %v1846, %v1845
  %v1975 = vpack.c.bf16 %v1848, %v1847
  %v1976 = vpack.c.bf16 %v1850, %v1849
  %v1977 = vpack.c.bf16 %v1852, %v1851
  %v1978 = vpack.c.bf16 %v1854, %v1853
  %v1979 = vpack.c.bf16 %v1856, %v1855
  %v1980 = vpack.c.bf16 %v1858, %v1857
  %v1981 = vpack.c.bf16 %v1860, %v1859
  %v1982 = vpack.c.bf16 %v1862, %v1861
  %v1983 = vpack.c.bf16 %v1864, %v1863
  %v1984 = vpack.c.bf16 %v1866, %v1865
  %v1985 = vpack.c.bf16 %v1868, %v1867
  %v1986 = vpack.c.bf16 %v1870, %v1869
  %v1987 = vpack.c.bf16 %v1872, %v1871
  %v1988 = vpack.c.bf16 %v1874, %v1873
  %v1989 = vpack.c.bf16 %v1876, %v1875
  %v1990 = vpack.c.bf16 %v1878, %v1877
  %v1991 = vpack.c.bf16 %v1880, %v1879
  %v1992 = vpack.c.bf16 %v1882, %v1881
  %v1993 = vpack.c.bf16 %v1884, %v1883
  %v1994 = vpack.c.bf16 %v1886, %v1885
  %v1995 = vpack.c.bf16 %v1888, %v1887
  %v1996 = vpack.c.bf16 %v1890, %v1889
  %v1997 = vpack.c.bf16 %v1892, %v1891
  %v1998 = vpack.c.bf16 %v1894, %v1893
  %v1999 = vpack.c.bf16 %v1896, %v1895
  %v2000 = vpack.c.bf16 %v1898, %v1897
  %v2001 = vpack.c.bf16 %v1900, %v1899
  %v2002 = vpack.c.bf16 %v1902, %v1901
  %v2003 = vpack.c.bf16 %v1904, %v1903
  %v2004 = vpack.c.bf16 %v1906, %v1905
  %v2005 = vpack.c.bf16 %v1908, %v1907
  %v2006 = vpack.c.bf16 %v1910, %v1909
  %v2007 = vpack.c.bf16 %v1912, %v1911
  %v2008 = vpack.c.bf16 %v1914, %v1913
  %v2009 = vpack.c.bf16 %v1916, %v1915
  %v2010 = vpack.c.bf16 %v1918, %v1917
  %v2011 = vpack.c.bf16 %v1920, %v1919
  %v2012 = vpack.c.bf16 %v1922, %v1921
  %v2013 = vpack.c.bf16 %v1924, %v1923
  %v2014 = vpack.c.bf16 %v1926, %v1925
  %v2015 = vpack.c.bf16 %v1928, %v1927
  %v2016 = vpack.c.bf16 %v1930, %v1929
  %v2017 = vpack.c.bf16 %v1932, %v1931
  %v2018 = vpack.c.bf16 %v1934, %v1933
  %v2019 = vpack.c.bf16 %v1936, %v1935
  %v2020 = vpack.c.bf16 %v1938, %v1937
  %v2021 = vpack.c.bf16 %v1940, %v1939
  %v2022 = vpack.c.bf16 %v1942, %v1941
  %v2103 = vunpack.c.l.b16 %v1943
  %v2104 = vunpack.c.h.b16 %v1943
  %v2105 = vunpack.c.l.b16 %v1944
  %v2106 = vunpack.c.h.b16 %v1944
  %v2107 = vunpack.c.l.b16 %v1945
  %v2108 = vunpack.c.h.b16 %v1945
  %v2109 = vunpack.c.l.b16 %v1946
  %v2110 = vunpack.c.h.b16 %v1946
  %v2111 = vunpack.c.l.b16 %v1947
  %v2112 = vunpack.c.h.b16 %v1947
  %v2113 = vunpack.c.l.b16 %v1948
  %v2114 = vunpack.c.h.b16 %v1948
  %v2115 = vunpack.c.l.b16 %v1949
  %v2116 = vunpack.c.h.b16 %v1949
  %v2117 = vunpack.c.l.b16 %v1950
  %v2118 = vunpack.c.h.b16 %v1950
  %v2119 = vunpack.c.l.b16 %v1951
  %v2120 = vunpack.c.h.b16 %v1951
  %v2121 = vunpack.c.l.b16 %v1952
  %v2122 = vunpack.c.h.b16 %v1952
  %v2123 = vunpack.c.l.b16 %v1953
  %v2124 = vunpack.c.h.b16 %v1953
  %v2125 = vunpack.c.l.b16 %v1954
  %v2126 = vunpack.c.h.b16 %v1954
  %v2127 = vunpack.c.l.b16 %v1955
  %v2128 = vunpack.c.h.b16 %v1955
  %v2129 = vunpack.c.l.b16 %v1956
  %v2130 = vunpack.c.h.b16 %v1956
  %v2131 = vunpack.c.l.b16 %v1957
  %v2132 = vunpack.c.h.b16 %v1957
  %v2133 = vunpack.c.l.b16 %v1958
  %v2134 = vunpack.c.h.b16 %v1958
  %v2135 = vunpack.c.l.b16 %v1959
  %v2136 = vunpack.c.h.b16 %v1959
  %v2137 = vunpack.c.l.b16 %v1960
  %v2138 = vunpack.c.h.b16 %v1960
  %v2139 = vunpack.c.l.b16 %v1961
  %v2140 = vunpack.c.h.b16 %v1961
  %v2141 = vunpack.c.l.b16 %v1962
  %v2142 = vunpack.c.h.b16 %v1962
  %v2143 = vunpack.c.l.b16 %v1963
  %v2144 = vunpack.c.h.b16 %v1963
  %v2145 = vunpack.c.l.b16 %v1964
  %v2146 = vunpack.c.h.b16 %v1964
  %v2147 = vunpack.c.l.b16 %v1965
  %v2148 = vunpack.c.h.b16 %v1965
  %v2149 = vunpack.c.l.b16 %v1966
  %v2150 = vunpack.c.h.b16 %v1966
  %v2151 = vunpack.c.l.b16 %v1967
  %v2152 = vunpack.c.h.b16 %v1967
  %v2153 = vunpack.c.l.b16 %v1968
  %v2154 = vunpack.c.h.b16 %v1968
  %v2155 = vunpack.c.l.b16 %v1969
  %v2156 = vunpack.c.h.b16 %v1969
  %v2157 = vunpack.c.l.b16 %v1970
  %v2158 = vunpack.c.h.b16 %v1970
  %v2159 = vunpack.c.l.b16 %v1971
  %v2160 = vunpack.c.h.b16 %v1971
  %v2161 = vunpack.c.l.b16 %v1972
  %v2162 = vunpack.c.h.b16 %v1972
  %v2163 = vunpack.c.l.b16 %v1973
  %v2164 = vunpack.c.h.b16 %v1973
  %v2165 = vunpack.c.l.b16 %v1974
  %v2166 = vunpack.c.h.b16 %v1974
  %v2167 = vunpack.c.l.b16 %v1975
  %v2168 = vunpack.c.h.b16 %v1975
  %v2169 = vunpack.c.l.b16 %v1976
  %v2170 = vunpack.c.h.b16 %v1976
  %v2171 = vunpack.c.l.b16 %v1977
  %v2172 = vunpack.c.h.b16 %v1977
  %v2173 = vunpack.c.l.b16 %v1978
  %v2174 = vunpack.c.h.b16 %v1978
  %v2175 = vunpack.c.l.b16 %v1979
  %v2176 = vunpack.c.h.b16 %v1979
  %v2177 = vunpack.c.l.b16 %v1980
  %v2178 = vunpack.c.h.b16 %v1980
  %v2179 = vunpack.c.l.b16 %v1981
  %v2180 = vunpack.c.h.b16 %v1981
  %v2181 = vunpack.c.l.b16 %v1982
  %v2182 = vunpack.c.h.b16 %v1982
  %v2183 = vunpack.c.l.b16 %v1983
  %v2184 = vunpack.c.h.b16 %v1983
  %v2185 = vunpack.c.l.b16 %v1984
  %v2186 = vunpack.c.h.b16 %v1984
  %v2187 = vunpack.c.l.b16 %v1985
  %v2188 = vunpack.c.h.b16 %v1985
  %v2189 = vunpack.c.l.b16 %v1986
  %v2190 = vunpack.c.h.b16 %v1986
  %v2191 = vunpack.c.l.b16 %v1987
  %v2192 = vunpack.c.h.b16 %v1987
  %v2193 = vunpack.c.l.b16 %v1988
  %v2194 = vunpack.c.h.b16 %v1988
  %v2195 = vunpack.c.l.b16 %v1989
  %v2196 = vunpack.c.h.b16 %v1989
  %v2197 = vunpack.c.l.b16 %v1990
  %v2198 = vunpack.c.h.b16 %v1990
  %v2199 = vunpack.c.l.b16 %v1991
  %v2200 = vunpack.c.h.b16 %v1991
  %v2201 = vunpack.c.l.b16 %v1992
  %v2202 = vunpack.c.h.b16 %v1992
  %v2203 = vunpack.c.l.b16 %v1993
  %v2204 = vunpack.c.h.b16 %v1993
  %v2205 = vunpack.c.l.b16 %v1994
  %v2206 = vunpack.c.h.b16 %v1994
  %v2207 = vunpack.c.l.b16 %v1995
  %v2208 = vunpack.c.h.b16 %v1995
  %v2209 = vunpack.c.l.b16 %v1996
  %v2210 = vunpack.c.h.b16 %v1996
  %v2211 = vunpack.c.l.b16 %v1997
  %v2212 = vunpack.c.h.b16 %v1997
  %v2213 = vunpack.c.l.b16 %v1998
  %v2214 = vunpack.c.h.b16 %v1998
  %v2215 = vunpack.c.l.b16 %v1999
  %v2216 = vunpack.c.h.b16 %v1999
  %v2217 = vunpack.c.l.b16 %v2000
  %v2218 = vunpack.c.h.b16 %v2000
  %v2219 = vunpack.c.l.b16 %v2001
  %v2220 = vunpack.c.h.b16 %v2001
  %v2221 = vunpack.c.l.b16 %v2002
  %v2222 = vunpack.c.h.b16 %v2002
  %v2223 = vunpack.c.l.b16 %v2003
  %v2224 = vunpack.c.h.b16 %v2003
  %v2225 = vunpack.c.l.b16 %v2004
  %v2226 = vunpack.c.h.b16 %v2004
  %v2227 = vunpack.c.l.b16 %v2005
  %v2228 = vunpack.c.h.b16 %v2005
  %v2229 = vunpack.c.l.b16 %v2006
  %v2230 = vunpack.c.h.b16 %v2006
  %v2231 = vunpack.c.l.b16 %v2007
  %v2232 = vunpack.c.h.b16 %v2007
  %v2233 = vunpack.c.l.b16 %v2008
  %v2234 = vunpack.c.h.b16 %v2008
  %v2235 = vunpack.c.l.b16 %v2009
  %v2236 = vunpack.c.h.b16 %v2009
  %v2237 = vunpack.c.l.b16 %v2010
  %v2238 = vunpack.c.h.b16 %v2010
  %v2239 = vunpack.c.l.b16 %v2011
  %v2240 = vunpack.c.h.b16 %v2011
  %v2241 = vunpack.c.l.b16 %v2012
  %v2242 = vunpack.c.h.b16 %v2012
  %v2243 = vunpack.c.l.b16 %v2013
  %v2244 = vunpack.c.h.b16 %v2013
  %v2245 = vunpack.c.l.b16 %v2014
  %v2246 = vunpack.c.h.b16 %v2014
  %v2247 = vunpack.c.l.b16 %v2015
  %v2248 = vunpack.c.h.b16 %v2015
  %v2249 = vunpack.c.l.b16 %v2016
  %v2250 = vunpack.c.h.b16 %v2016
  %v2251 = vunpack.c.l.b16 %v2017
  %v2252 = vunpack.c.h.b16 %v2017
  %v2253 = vunpack.c.l.b16 %v2018
  %v2254 = vunpack.c.h.b16 %v2018
  %v2255 = vunpack.c.l.b16 %v2019
  %v2256 = vunpack.c.h.b16 %v2019
  %v2257 = vunpack.c.l.b16 %v2020
  %v2258 = vunpack.c.h.b16 %v2020
  %v2259 = vunpack.c.l.b16 %v2021
  %v2260 = vunpack.c.h.b16 %v2021
  %v2261 = vunpack.c.l.b16 %v2022
  %v2262 = vunpack.c.h.b16 %v2022
  %v2263 = vpack.c.b16 %v2103, %v2103
  %v2264 = vpack.c.b16 %v2104, %v2104
  %v2265 = vpack.c.b16 %v2105, %v2105
  %v2266 = vpack.c.b16 %v2106, %v2106
  %v2267 = vpack.c.b16 %v2107, %v2107
  %v2268 = vpack.c.b16 %v2108, %v2108
  %v2269 = vpack.c.b16 %v2109, %v2109
  %v2270 = vpack.c.b16 %v2110, %v2110
  %v2271 = vpack.c.b16 %v2111, %v2111
  %v2272 = vpack.c.b16 %v2112, %v2112
  %v2273 = vpack.c.b16 %v2113, %v2113
  %v2274 = vpack.c.b16 %v2114, %v2114
  %v2275 = vpack.c.b16 %v2115, %v2115
  %v2276 = vpack.c.b16 %v2116, %v2116
  %v2277 = vpack.c.b16 %v2117, %v2117
  %v2278 = vpack.c.b16 %v2118, %v2118
  %v2279 = vpack.c.b16 %v2119, %v2119
  %v2280 = vpack.c.b16 %v2120, %v2120
  %v2281 = vpack.c.b16 %v2121, %v2121
  %v2282 = vpack.c.b16 %v2122, %v2122
  %v2283 = vpack.c.b16 %v2123, %v2123
  %v2284 = vpack.c.b16 %v2124, %v2124
  %v2285 = vpack.c.b16 %v2125, %v2125
  %v2286 = vpack.c.b16 %v2126, %v2126
  %v2287 = vpack.c.b16 %v2127, %v2127
  %v2288 = vpack.c.b16 %v2128, %v2128
  %v2289 = vpack.c.b16 %v2129, %v2129
  %v2290 = vpack.c.b16 %v2130, %v2130
  %v2291 = vpack.c.b16 %v2131, %v2131
  %v2292 = vpack.c.b16 %v2132, %v2132
  %v2293 = vpack.c.b16 %v2133, %v2133
  %v2294 = vpack.c.b16 %v2134, %v2134
  %v2295 = vpack.c.b16 %v2135, %v2135
  %v2296 = vpack.c.b16 %v2136, %v2136
  %v2297 = vpack.c.b16 %v2137, %v2137
  %v2298 = vpack.c.b16 %v2138, %v2138
  %v2299 = vpack.c.b16 %v2139, %v2139
  %v2300 = vpack.c.b16 %v2140, %v2140
  %v2301 = vpack.c.b16 %v2141, %v2141
  %v2302 = vpack.c.b16 %v2142, %v2142
  %v2303 = vpack.c.b16 %v2143, %v2143
  %v2304 = vpack.c.b16 %v2144, %v2144
  %v2305 = vpack.c.b16 %v2145, %v2145
  %v2306 = vpack.c.b16 %v2146, %v2146
  %v2307 = vpack.c.b16 %v2147, %v2147
  %v2308 = vpack.c.b16 %v2148, %v2148
  %v2309 = vpack.c.b16 %v2149, %v2149
  %v2310 = vpack.c.b16 %v2150, %v2150
  %v2311 = vpack.c.b16 %v2151, %v2151
  %v2312 = vpack.c.b16 %v2152, %v2152
  %v2313 = vpack.c.b16 %v2153, %v2153
  %v2314 = vpack.c.b16 %v2154, %v2154
  %v2315 = vpack.c.b16 %v2155, %v2155
  %v2316 = vpack.c.b16 %v2156, %v2156
  %v2317 = vpack.c.b16 %v2157, %v2157
  %v2318 = vpack.c.b16 %v2158, %v2158
  %v2319 = vpack.c.b16 %v2159, %v2159
  %v2320 = vpack.c.b16 %v2160, %v2160
  %v2321 = vpack.c.b16 %v2161, %v2161
  %v2322 = vpack.c.b16 %v2162, %v2162
  %v2323 = vpack.c.b16 %v2163, %v2163
  %v2324 = vpack.c.b16 %v2164, %v2164
  %v2325 = vpack.c.b16 %v2165, %v2165
  %v2326 = vpack.c.b16 %v2166, %v2166
  %v2327 = vpack.c.b16 %v2167, %v2167
  %v2328 = vpack.c.b16 %v2168, %v2168
  %v2329 = vpack.c.b16 %v2169, %v2169
  %v2330 = vpack.c.b16 %v2170, %v2170
  %v2331 = vpack.c.b16 %v2171, %v2171
  %v2332 = vpack.c.b16 %v2172, %v2172
  %v2333 = vpack.c.b16 %v2173, %v2173
  %v2334 = vpack.c.b16 %v2174, %v2174
  %v2335 = vpack.c.b16 %v2175, %v2175
  %v2336 = vpack.c.b16 %v2176, %v2176
  %v2337 = vpack.c.b16 %v2177, %v2177
  %v2338 = vpack.c.b16 %v2178, %v2178
  %v2339 = vpack.c.b16 %v2179, %v2179
  %v2340 = vpack.c.b16 %v2180, %v2180
  %v2341 = vpack.c.b16 %v2181, %v2181
  %v2342 = vpack.c.b16 %v2182, %v2182
  %v2343 = vpack.c.b16 %v2183, %v2183
  %v2344 = vpack.c.b16 %v2184, %v2184
  %v2345 = vpack.c.b16 %v2185, %v2185
  %v2346 = vpack.c.b16 %v2186, %v2186
  %v2347 = vpack.c.b16 %v2187, %v2187
  %v2348 = vpack.c.b16 %v2188, %v2188
  %v2349 = vpack.c.b16 %v2189, %v2189
  %v2350 = vpack.c.b16 %v2190, %v2190
  %v2351 = vpack.c.b16 %v2191, %v2191
  %v2352 = vpack.c.b16 %v2192, %v2192
  %v2353 = vpack.c.b16 %v2193, %v2193
  %v2354 = vpack.c.b16 %v2194, %v2194
  %v2355 = vpack.c.b16 %v2195, %v2195
  %v2356 = vpack.c.b16 %v2196, %v2196
  %v2357 = vpack.c.b16 %v2197, %v2197
  %v2358 = vpack.c.b16 %v2198, %v2198
  %v2359 = vpack.c.b16 %v2199, %v2199
  %v2360 = vpack.c.b16 %v2200, %v2200
  %v2361 = vpack.c.b16 %v2201, %v2201
  %v2362 = vpack.c.b16 %v2202, %v2202
  %v2363 = vpack.c.b16 %v2203, %v2203
  %v2364 = vpack.c.b16 %v2204, %v2204
  %v2365 = vpack.c.b16 %v2205, %v2205
  %v2366 = vpack.c.b16 %v2206, %v2206
  %v2367 = vpack.c.b16 %v2207, %v2207
  %v2368 = vpack.c.b16 %v2208, %v2208
  %v2369 = vpack.c.b16 %v2209, %v2209
  %v2370 = vpack.c.b16 %v2210, %v2210
  %v2371 = vpack.c.b16 %v2211, %v2211
  %v2372 = vpack.c.b16 %v2212, %v2212
  %v2373 = vpack.c.b16 %v2213, %v2213
  %v2374 = vpack.c.b16 %v2214, %v2214
  %v2375 = vpack.c.b16 %v2215, %v2215
  %v2376 = vpack.c.b16 %v2216, %v2216
  %v2377 = vpack.c.b16 %v2217, %v2217
  %v2378 = vpack.c.b16 %v2218, %v2218
  %v2379 = vpack.c.b16 %v2219, %v2219
  %v2380 = vpack.c.b16 %v2220, %v2220
  %v2381 = vpack.c.b16 %v2221, %v2221
  %v2382 = vpack.c.b16 %v2222, %v2222
  %v2383 = vpack.c.b16 %v2223, %v2223
  %v2384 = vpack.c.b16 %v2224, %v2224
  %v2385 = vpack.c.b16 %v2225, %v2225
  %v2386 = vpack.c.b16 %v2226, %v2226
  %v2387 = vpack.c.b16 %v2227, %v2227
  %v2388 = vpack.c.b16 %v2228, %v2228
  %v2389 = vpack.c.b16 %v2229, %v2229
  %v2390 = vpack.c.b16 %v2230, %v2230
  %v2391 = vpack.c.b16 %v2231, %v2231
  %v2392 = vpack.c.b16 %v2232, %v2232
  %v2393 = vpack.c.b16 %v2233, %v2233
  %v2394 = vpack.c.b16 %v2234, %v2234
  %v2395 = vpack.c.b16 %v2235, %v2235
  %v2396 = vpack.c.b16 %v2236, %v2236
  %v2397 = vpack.c.b16 %v2237, %v2237
  %v2398 = vpack.c.b16 %v2238, %v2238
  %v2399 = vpack.c.b16 %v2239, %v2239
  %v2400 = vpack.c.b16 %v2240, %v2240
  %v2401 = vpack.c.b16 %v2241, %v2241
  %v2402 = vpack.c.b16 %v2242, %v2242
  %v2403 = vpack.c.b16 %v2243, %v2243
  %v2404 = vpack.c.b16 %v2244, %v2244
  %v2405 = vpack.c.b16 %v2245, %v2245
  %v2406 = vpack.c.b16 %v2246, %v2246
  %v2407 = vpack.c.b16 %v2247, %v2247
  %v2408 = vpack.c.b16 %v2248, %v2248
  %v2409 = vpack.c.b16 %v2249, %v2249
  %v2410 = vpack.c.b16 %v2250, %v2250
  %v2411 = vpack.c.b16 %v2251, %v2251
  %v2412 = vpack.c.b16 %v2252, %v2252
  %v2413 = vpack.c.b16 %v2253, %v2253
  %v2414 = vpack.c.b16 %v2254, %v2254
  %v2415 = vpack.c.b16 %v2255, %v2255
  %v2416 = vpack.c.b16 %v2256, %v2256
  %v2417 = vpack.c.b16 %v2257, %v2257
  %v2418 = vpack.c.b16 %v2258, %v2258
  %v2419 = vpack.c.b16 %v2259, %v2259
  %v2420 = vpack.c.b16 %v2260, %v2260
  %v2421 = vpack.c.b16 %v2261, %v2261
  %v2422 = vpack.c.b16 %v2262, %v2262
  %vm2583 = vcmask 257024
  %2584 = vst.msk [vmem:[%s3] sm:$0xf] %vm2583, %v2263
  %2585 = vst.msk [vmem:[%s3 + $0x4] sm:$0xf] %vm2583, %v2264
  %2586 = vst.msk [vmem:[%s3 + $0x8] sm:$0xf] %vm2583, %v2265
  %2587 = vst.msk [vmem:[%s3 + $0xc] sm:$0xf] %vm2583, %v2266
  %2588 = vst.msk [vmem:[%s3 + $0x10] sm:$0xf] %vm2583, %v2267
  %2589 = vst.msk [vmem:[%s3 + $0x14] sm:$0xf] %vm2583, %v2268
  %2590 = vst.msk [vmem:[%s3 + $0x18] sm:$0xf] %vm2583, %v2269
  %2591 = vst.msk [vmem:[%s3 + $0x1c] sm:$0xf] %vm2583, %v2270
  %2592 = vst.msk [vmem:[%s3 + $0x20] sm:$0xf] %vm2583, %v2271
  %2593 = vst.msk [vmem:[%s3 + $0x24] sm:$0xf] %vm2583, %v2272
  %2594 = vst.msk [vmem:[%s3 + $0x28] sm:$0xf] %vm2583, %v2273
  %2595 = vst.msk [vmem:[%s3 + $0x2c] sm:$0xf] %vm2583, %v2274
  %2596 = vst.msk [vmem:[%s3 + $0x30] sm:$0xf] %vm2583, %v2275
  %2597 = vst.msk [vmem:[%s3 + $0x34] sm:$0xf] %vm2583, %v2276
  %2598 = vst.msk [vmem:[%s3 + $0x38] sm:$0xf] %vm2583, %v2277
  %2599 = vst.msk [vmem:[%s3 + $0x3c] sm:$0xf] %vm2583, %v2278
  %2600 = vst.msk [vmem:[%s3 + $0x40] sm:$0xf] %vm2583, %v2279
  %2601 = vst.msk [vmem:[%s3 + $0x44] sm:$0xf] %vm2583, %v2280
  %2602 = vst.msk [vmem:[%s3 + $0x48] sm:$0xf] %vm2583, %v2281
  %2603 = vst.msk [vmem:[%s3 + $0x4c] sm:$0xf] %vm2583, %v2282
  %2604 = vst.msk [vmem:[%s3 + $0x50] sm:$0xf] %vm2583, %v2283
  %2605 = vst.msk [vmem:[%s3 + $0x54] sm:$0xf] %vm2583, %v2284
  %2606 = vst.msk [vmem:[%s3 + $0x58] sm:$0xf] %vm2583, %v2285
  %2607 = vst.msk [vmem:[%s3 + $0x5c] sm:$0xf] %vm2583, %v2286
  %2608 = vst.msk [vmem:[%s3 + $0x60] sm:$0xf] %vm2583, %v2287
  %2609 = vst.msk [vmem:[%s3 + $0x64] sm:$0xf] %vm2583, %v2288
  %2610 = vst.msk [vmem:[%s3 + $0x68] sm:$0xf] %vm2583, %v2289
  %2611 = vst.msk [vmem:[%s3 + $0x6c] sm:$0xf] %vm2583, %v2290
  %2612 = vst.msk [vmem:[%s3 + $0x70] sm:$0xf] %vm2583, %v2291
  %2613 = vst.msk [vmem:[%s3 + $0x74] sm:$0xf] %vm2583, %v2292
  %2614 = vst.msk [vmem:[%s3 + $0x78] sm:$0xf] %vm2583, %v2293
  %2615 = vst.msk [vmem:[%s3 + $0x7c] sm:$0xf] %vm2583, %v2294
  %2616 = vst.msk [vmem:[%s3 + $0x80] sm:$0xf] %vm2583, %v2295
  %2617 = vst.msk [vmem:[%s3 + $0x84] sm:$0xf] %vm2583, %v2296
  %2618 = vst.msk [vmem:[%s3 + $0x88] sm:$0xf] %vm2583, %v2297
  %2619 = vst.msk [vmem:[%s3 + $0x8c] sm:$0xf] %vm2583, %v2298
  %2620 = vst.msk [vmem:[%s3 + $0x90] sm:$0xf] %vm2583, %v2299
  %2621 = vst.msk [vmem:[%s3 + $0x94] sm:$0xf] %vm2583, %v2300
  %2622 = vst.msk [vmem:[%s3 + $0x98] sm:$0xf] %vm2583, %v2301
  %2623 = vst.msk [vmem:[%s3 + $0x9c] sm:$0xf] %vm2583, %v2302
  %2624 = vst.msk [vmem:[%s3 + $0xa0] sm:$0xf] %vm2583, %v2303
  %2625 = vst.msk [vmem:[%s3 + $0xa4] sm:$0xf] %vm2583, %v2304
  %2626 = vst.msk [vmem:[%s3 + $0xa8] sm:$0xf] %vm2583, %v2305
  %2627 = vst.msk [vmem:[%s3 + $0xac] sm:$0xf] %vm2583, %v2306
  %2628 = vst.msk [vmem:[%s3 + $0xb0] sm:$0xf] %vm2583, %v2307
  %2629 = vst.msk [vmem:[%s3 + $0xb4] sm:$0xf] %vm2583, %v2308
  %2630 = vst.msk [vmem:[%s3 + $0xb8] sm:$0xf] %vm2583, %v2309
  %2631 = vst.msk [vmem:[%s3 + $0xbc] sm:$0xf] %vm2583, %v2310
  %2632 = vst.msk [vmem:[%s3 + $0xc0] sm:$0xf] %vm2583, %v2311
  %2633 = vst.msk [vmem:[%s3 + $0xc4] sm:$0xf] %vm2583, %v2312
  %2634 = vst.msk [vmem:[%s3 + $0xc8] sm:$0xf] %vm2583, %v2313
  %2635 = vst.msk [vmem:[%s3 + $0xcc] sm:$0xf] %vm2583, %v2314
  %2636 = vst.msk [vmem:[%s3 + $0xd0] sm:$0xf] %vm2583, %v2315
  %2637 = vst.msk [vmem:[%s3 + $0xd4] sm:$0xf] %vm2583, %v2316
  %2638 = vst.msk [vmem:[%s3 + $0xd8] sm:$0xf] %vm2583, %v2317
  %2639 = vst.msk [vmem:[%s3 + $0xdc] sm:$0xf] %vm2583, %v2318
  %2640 = vst.msk [vmem:[%s3 + $0xe0] sm:$0xf] %vm2583, %v2319
  %2641 = vst.msk [vmem:[%s3 + $0xe4] sm:$0xf] %vm2583, %v2320
  %2642 = vst.msk [vmem:[%s3 + $0xe8] sm:$0xf] %vm2583, %v2321
  %2643 = vst.msk [vmem:[%s3 + $0xec] sm:$0xf] %vm2583, %v2322
  %2644 = vst.msk [vmem:[%s3 + $0xf0] sm:$0xf] %vm2583, %v2323
  %2645 = vst.msk [vmem:[%s3 + $0xf4] sm:$0xf] %vm2583, %v2324
  %2646 = vst.msk [vmem:[%s3 + $0xf8] sm:$0xf] %vm2583, %v2325
  %2647 = vst.msk [vmem:[%s3 + $0xfc] sm:$0xf] %vm2583, %v2326
  %2648 = vst.msk [vmem:[%s3 + $0x100] sm:$0xf] %vm2583, %v2327
  %2649 = vst.msk [vmem:[%s3 + $0x104] sm:$0xf] %vm2583, %v2328
  %2650 = vst.msk [vmem:[%s3 + $0x108] sm:$0xf] %vm2583, %v2329
  %2651 = vst.msk [vmem:[%s3 + $0x10c] sm:$0xf] %vm2583, %v2330
  %2652 = vst.msk [vmem:[%s3 + $0x110] sm:$0xf] %vm2583, %v2331
  %2653 = vst.msk [vmem:[%s3 + $0x114] sm:$0xf] %vm2583, %v2332
  %2654 = vst.msk [vmem:[%s3 + $0x118] sm:$0xf] %vm2583, %v2333
  %2655 = vst.msk [vmem:[%s3 + $0x11c] sm:$0xf] %vm2583, %v2334
  %2656 = vst.msk [vmem:[%s3 + $0x120] sm:$0xf] %vm2583, %v2335
  %2657 = vst.msk [vmem:[%s3 + $0x124] sm:$0xf] %vm2583, %v2336
  %2658 = vst.msk [vmem:[%s3 + $0x128] sm:$0xf] %vm2583, %v2337
  %2659 = vst.msk [vmem:[%s3 + $0x12c] sm:$0xf] %vm2583, %v2338
  %2660 = vst.msk [vmem:[%s3 + $0x130] sm:$0xf] %vm2583, %v2339
  %2661 = vst.msk [vmem:[%s3 + $0x134] sm:$0xf] %vm2583, %v2340
  %2662 = vst.msk [vmem:[%s3 + $0x138] sm:$0xf] %vm2583, %v2341
  %2663 = vst.msk [vmem:[%s3 + $0x13c] sm:$0xf] %vm2583, %v2342
  %2664 = vst.msk [vmem:[%s3 + $0x140] sm:$0xf] %vm2583, %v2343
  %2665 = vst.msk [vmem:[%s3 + $0x144] sm:$0xf] %vm2583, %v2344
  %2666 = vst.msk [vmem:[%s3 + $0x148] sm:$0xf] %vm2583, %v2345
  %2667 = vst.msk [vmem:[%s3 + $0x14c] sm:$0xf] %vm2583, %v2346
  %2668 = vst.msk [vmem:[%s3 + $0x150] sm:$0xf] %vm2583, %v2347
  %2669 = vst.msk [vmem:[%s3 + $0x154] sm:$0xf] %vm2583, %v2348
  %2670 = vst.msk [vmem:[%s3 + $0x158] sm:$0xf] %vm2583, %v2349
  %2671 = vst.msk [vmem:[%s3 + $0x15c] sm:$0xf] %vm2583, %v2350
  %2672 = vst.msk [vmem:[%s3 + $0x160] sm:$0xf] %vm2583, %v2351
  %2673 = vst.msk [vmem:[%s3 + $0x164] sm:$0xf] %vm2583, %v2352
  %2674 = vst.msk [vmem:[%s3 + $0x168] sm:$0xf] %vm2583, %v2353
  %2675 = vst.msk [vmem:[%s3 + $0x16c] sm:$0xf] %vm2583, %v2354
  %2676 = vst.msk [vmem:[%s3 + $0x170] sm:$0xf] %vm2583, %v2355
  %2677 = vst.msk [vmem:[%s3 + $0x174] sm:$0xf] %vm2583, %v2356
  %2678 = vst.msk [vmem:[%s3 + $0x178] sm:$0xf] %vm2583, %v2357
  %2679 = vst.msk [vmem:[%s3 + $0x17c] sm:$0xf] %vm2583, %v2358
  %2680 = vst.msk [vmem:[%s3 + $0x180] sm:$0xf] %vm2583, %v2359
  %2681 = vst.msk [vmem:[%s3 + $0x184] sm:$0xf] %vm2583, %v2360
  %2682 = vst.msk [vmem:[%s3 + $0x188] sm:$0xf] %vm2583, %v2361
  %2683 = vst.msk [vmem:[%s3 + $0x18c] sm:$0xf] %vm2583, %v2362
  %2684 = vst.msk [vmem:[%s3 + $0x190] sm:$0xf] %vm2583, %v2363
  %2685 = vst.msk [vmem:[%s3 + $0x194] sm:$0xf] %vm2583, %v2364
  %2686 = vst.msk [vmem:[%s3 + $0x198] sm:$0xf] %vm2583, %v2365
  %2687 = vst.msk [vmem:[%s3 + $0x19c] sm:$0xf] %vm2583, %v2366
  %2688 = vst.msk [vmem:[%s3 + $0x1a0] sm:$0xf] %vm2583, %v2367
  %2689 = vst.msk [vmem:[%s3 + $0x1a4] sm:$0xf] %vm2583, %v2368
  %2690 = vst.msk [vmem:[%s3 + $0x1a8] sm:$0xf] %vm2583, %v2369
  %2691 = vst.msk [vmem:[%s3 + $0x1ac] sm:$0xf] %vm2583, %v2370
  %2692 = vst.msk [vmem:[%s3 + $0x1b0] sm:$0xf] %vm2583, %v2371
  %2693 = vst.msk [vmem:[%s3 + $0x1b4] sm:$0xf] %vm2583, %v2372
  %2694 = vst.msk [vmem:[%s3 + $0x1b8] sm:$0xf] %vm2583, %v2373
  %2695 = vst.msk [vmem:[%s3 + $0x1bc] sm:$0xf] %vm2583, %v2374
  %2696 = vst.msk [vmem:[%s3 + $0x1c0] sm:$0xf] %vm2583, %v2375
  %2697 = vst.msk [vmem:[%s3 + $0x1c4] sm:$0xf] %vm2583, %v2376
  %2698 = vst.msk [vmem:[%s3 + $0x1c8] sm:$0xf] %vm2583, %v2377
  %2699 = vst.msk [vmem:[%s3 + $0x1cc] sm:$0xf] %vm2583, %v2378
  %2700 = vst.msk [vmem:[%s3 + $0x1d0] sm:$0xf] %vm2583, %v2379
  %2701 = vst.msk [vmem:[%s3 + $0x1d4] sm:$0xf] %vm2583, %v2380
  %2702 = vst.msk [vmem:[%s3 + $0x1d8] sm:$0xf] %vm2583, %v2381
  %2703 = vst.msk [vmem:[%s3 + $0x1dc] sm:$0xf] %vm2583, %v2382
  %2704 = vst.msk [vmem:[%s3 + $0x1e0] sm:$0xf] %vm2583, %v2383
  %2705 = vst.msk [vmem:[%s3 + $0x1e4] sm:$0xf] %vm2583, %v2384
  %2706 = vst.msk [vmem:[%s3 + $0x1e8] sm:$0xf] %vm2583, %v2385
  %2707 = vst.msk [vmem:[%s3 + $0x1ec] sm:$0xf] %vm2583, %v2386
  %2708 = vst.msk [vmem:[%s3 + $0x1f0] sm:$0xf] %vm2583, %v2387
  %2709 = vst.msk [vmem:[%s3 + $0x1f4] sm:$0xf] %vm2583, %v2388
  %2710 = vst.msk [vmem:[%s3 + $0x1f8] sm:$0xf] %vm2583, %v2389
  %2711 = vst.msk [vmem:[%s3 + $0x1fc] sm:$0xf] %vm2583, %v2390
  %2712 = vst.msk [vmem:[%s3 + $0x200] sm:$0xf] %vm2583, %v2391
  %2713 = vst.msk [vmem:[%s3 + $0x204] sm:$0xf] %vm2583, %v2392
  %2714 = vst.msk [vmem:[%s3 + $0x208] sm:$0xf] %vm2583, %v2393
  %2715 = vst.msk [vmem:[%s3 + $0x20c] sm:$0xf] %vm2583, %v2394
  %2716 = vst.msk [vmem:[%s3 + $0x210] sm:$0xf] %vm2583, %v2395
  %2717 = vst.msk [vmem:[%s3 + $0x214] sm:$0xf] %vm2583, %v2396
  %2718 = vst.msk [vmem:[%s3 + $0x218] sm:$0xf] %vm2583, %v2397
  %2719 = vst.msk [vmem:[%s3 + $0x21c] sm:$0xf] %vm2583, %v2398
  %2720 = vst.msk [vmem:[%s3 + $0x220] sm:$0xf] %vm2583, %v2399
  %2721 = vst.msk [vmem:[%s3 + $0x224] sm:$0xf] %vm2583, %v2400
  %2722 = vst.msk [vmem:[%s3 + $0x228] sm:$0xf] %vm2583, %v2401
  %2723 = vst.msk [vmem:[%s3 + $0x22c] sm:$0xf] %vm2583, %v2402
  %2724 = vst.msk [vmem:[%s3 + $0x230] sm:$0xf] %vm2583, %v2403
  %2725 = vst.msk [vmem:[%s3 + $0x234] sm:$0xf] %vm2583, %v2404
  %2726 = vst.msk [vmem:[%s3 + $0x238] sm:$0xf] %vm2583, %v2405
  %2727 = vst.msk [vmem:[%s3 + $0x23c] sm:$0xf] %vm2583, %v2406
  %2728 = vst.msk [vmem:[%s3 + $0x240] sm:$0xf] %vm2583, %v2407
  %2729 = vst.msk [vmem:[%s3 + $0x244] sm:$0xf] %vm2583, %v2408
  %2730 = vst.msk [vmem:[%s3 + $0x248] sm:$0xf] %vm2583, %v2409
  %2731 = vst.msk [vmem:[%s3 + $0x24c] sm:$0xf] %vm2583, %v2410
  %2732 = vst.msk [vmem:[%s3 + $0x250] sm:$0xf] %vm2583, %v2411
  %2733 = vst.msk [vmem:[%s3 + $0x254] sm:$0xf] %vm2583, %v2412
  %2734 = vst.msk [vmem:[%s3 + $0x258] sm:$0xf] %vm2583, %v2413
  %2735 = vst.msk [vmem:[%s3 + $0x25c] sm:$0xf] %vm2583, %v2414
  %2736 = vst.msk [vmem:[%s3 + $0x260] sm:$0xf] %vm2583, %v2415
  %2737 = vst.msk [vmem:[%s3 + $0x264] sm:$0xf] %vm2583, %v2416
  %2738 = vst.msk [vmem:[%s3 + $0x268] sm:$0xf] %vm2583, %v2417
  %2739 = vst.msk [vmem:[%s3 + $0x26c] sm:$0xf] %vm2583, %v2418
  %2740 = vst.msk [vmem:[%s3 + $0x270] sm:$0xf] %vm2583, %v2419
  %2741 = vst.msk [vmem:[%s3 + $0x274] sm:$0xf] %vm2583, %v2420
  %2742 = vst.msk [vmem:[%s3 + $0x278] sm:$0xf] %vm2583, %v2421
  %2743 = vst.msk [vmem:[%s3 + $0x27c] sm:$0xf] %vm2583, %v2422
  // Predicated region
  $region14: #{encode_mu.5} parent=0 // pred_check
    _
  $region15: #{encode_mu.5} parent=0 // pred_check_branch
    %2745 = sbr.rel (0) target = $region17
  $region16: #{encode_mu.5} parent=0 // pred_region
    _
  $region17: #{encode_mu.5} parent=0 // pred_fallthru
    _
  // Predicated region
  $region18: #{encode_mu.5} parent=0 // pred_check
    _
  $region19: #{encode_mu.5} parent=0 // pred_check_branch
    %2747 = sbr.rel (0) target = $region21
  $region20: #{encode_mu.5} parent=0 // pred_region
    _
  $region21: #{encode_mu.5} parent=0 // pred_fallthru
    _

// kernel: encode_mu.6
$region0: #{encode_mu.6}
  #allocation0 [shape = 'u32[]', space=smem, size = 0x4, offset = 0x4, fixed_abs, tag = 'smem constant byte address 0x4 - core index']
  #allocation1 [shape = 'u32[144,128]{1,0:T(1,128)}', space=vmem, size = 0x12000, scoped, tag = 'internal scratch']
  %s0 = inlined_call_operand.vmem [shape: bf16[320,512], index: 0, kind: input, shape index: {}]
  %s1 = inlined_call_operand.vmem [shape: bf16[512,64], index: 1, kind: input, shape index: {}]
  %s2 = inlined_call_operand.vmem [shape: f32[1,64], index: 2, kind: input, shape index: {}]
  %s3 = inlined_call_operand.vmem [shape: bf16[320,64], index: 3, kind: output, shape index: {}]
  %s4 = sld [smem:[#allocation0]]
  $region22: #{encode_mu.6} parent=0
    _
  %s6 = ssub.s32 1, %s4
  %s7 = scalar_select 0, %s6, %s4
  // Predicated region
  $region2: #{encode_mu.6} parent=0 // pred_check
    _
  $region3: #{encode_mu.6} parent=0 // pred_check_branch
    %9 = sbr.rel (0) target = $region5
  $region4: #{encode_mu.6} parent=0 // pred_region
    _
  $region5: #{encode_mu.6} parent=0 // pred_fallthru
    _
  // Predicated region
  $region6: #{encode_mu.6} parent=0 // pred_check
    _
  $region7: #{encode_mu.6} parent=0 // pred_check_branch
    %11 = sbr.rel (0) target = $region9
  $region8: #{encode_mu.6} parent=0 // pred_region
    _
  $region9: #{encode_mu.6} parent=0 // pred_fallthru
    _
  // Predicated region
  $region10: #{encode_mu.6} parent=0 // pred_check
    _
  $region11: #{encode_mu.6} parent=0 // pred_check_branch
    %13 = sbr.rel (0) target = $region13
  $region12: #{encode_mu.6} parent=0 // pred_region
    _
  $region13: #{encode_mu.6} parent=0 // pred_fallthru
    _
  %v15 = vld [vmem:[%s0] sm:$0xff]
  %v16 = vld [vmem:[%s0 + $0x8] sm:$0xff]
  %v17 = vld [vmem:[%s0 + $0x10] sm:$0xff]
  %v18 = vld [vmem:[%s0 + $0x18] sm:$0xff]
  %v19 = vld [vmem:[%s0 + $0x20] sm:$0xff]
  %v20 = vld [vmem:[%s0 + $0x28] sm:$0xff]
  %v21 = vld [vmem:[%s0 + $0x30] sm:$0xff]
  %v22 = vld [vmem:[%s0 + $0x38] sm:$0xff]
  %v23 = vld [vmem:[%s0 + $0x40] sm:$0xff]
  %v24 = vld [vmem:[%s0 + $0x48] sm:$0xff]
  %v25 = vld [vmem:[%s0 + $0x50] sm:$0xff]
  %v26 = vld [vmem:[%s0 + $0x58] sm:$0xff]
  %v27 = vld [vmem:[%s0 + $0x60] sm:$0xff]
  %v28 = vld [vmem:[%s0 + $0x68] sm:$0xff]
  %v29 = vld [vmem:[%s0 + $0x70] sm:$0xff]
  %v30 = vld [vmem:[%s0 + $0x78] sm:$0xff]
  %v31 = vld [vmem:[%s0 + $0x80] sm:$0xff]
  %v32 = vld [vmem:[%s0 + $0x88] sm:$0xff]
  %v33 = vld [vmem:[%s0 + $0x90] sm:$0xff]
  %v34 = vld [vmem:[%s0 + $0x98] sm:$0xff]
  %v35 = vld [vmem:[%s0 + $0xa0] sm:$0xff]
  %v36 = vld [vmem:[%s0 + $0xa8] sm:$0xff]
  %v37 = vld [vmem:[%s0 + $0xb0] sm:$0xff]
  %v38 = vld [vmem:[%s0 + $0xb8] sm:$0xff]
  %v39 = vld [vmem:[%s0 + $0xc0] sm:$0xff]
  %v40 = vld [vmem:[%s0 + $0xc8] sm:$0xff]
  %v41 = vld [vmem:[%s0 + $0xd0] sm:$0xff]
  %v42 = vld [vmem:[%s0 + $0xd8] sm:$0xff]
  %v43 = vld [vmem:[%s0 + $0xe0] sm:$0xff]
  %v44 = vld [vmem:[%s0 + $0xe8] sm:$0xff]
  %v45 = vld [vmem:[%s0 + $0xf0] sm:$0xff]
  %v46 = vld [vmem:[%s0 + $0xf8] sm:$0xff]
  %v47 = vld [vmem:[%s0 + $0x100] sm:$0xff]
  %v48 = vld [vmem:[%s0 + $0x108] sm:$0xff]
  %v49 = vld [vmem:[%s0 + $0x110] sm:$0xff]
  %v50 = vld [vmem:[%s0 + $0x118] sm:$0xff]
  %v51 = vld [vmem:[%s0 + $0x120] sm:$0xff]
  %v52 = vld [vmem:[%s0 + $0x128] sm:$0xff]
  %v53 = vld [vmem:[%s0 + $0x130] sm:$0xff]
  %v54 = vld [vmem:[%s0 + $0x138] sm:$0xff]
  %v55 = vld [vmem:[%s0 + $0x140] sm:$0xff]
  %v56 = vld [vmem:[%s0 + $0x148] sm:$0xff]
  %v57 = vld [vmem:[%s0 + $0x150] sm:$0xff]
  %v58 = vld [vmem:[%s0 + $0x158] sm:$0xff]
  %v59 = vld [vmem:[%s0 + $0x160] sm:$0xff]
  %v60 = vld [vmem:[%s0 + $0x168] sm:$0xff]
  %v61 = vld [vmem:[%s0 + $0x170] sm:$0xff]
  %v62 = vld [vmem:[%s0 + $0x178] sm:$0xff]
  %v63 = vld [vmem:[%s0 + $0x180] sm:$0xff]
  %v64 = vld [vmem:[%s0 + $0x188] sm:$0xff]
  %v65 = vld [vmem:[%s0 + $0x190] sm:$0xff]
  %v66 = vld [vmem:[%s0 + $0x198] sm:$0xff]
  %v67 = vld [vmem:[%s0 + $0x1a0] sm:$0xff]
  %v68 = vld [vmem:[%s0 + $0x1a8] sm:$0xff]
  %v69 = vld [vmem:[%s0 + $0x1b0] sm:$0xff]
  %v70 = vld [vmem:[%s0 + $0x1b8] sm:$0xff]
  %v71 = vld [vmem:[%s0 + $0x1c0] sm:$0xff]
  %v72 = vld [vmem:[%s0 + $0x1c8] sm:$0xff]
  %v73 = vld [vmem:[%s0 + $0x1d0] sm:$0xff]
  %v74 = vld [vmem:[%s0 + $0x1d8] sm:$0xff]
  %v75 = vld [vmem:[%s0 + $0x1e0] sm:$0xff]
  %v76 = vld [vmem:[%s0 + $0x1e8] sm:$0xff]
  %v77 = vld [vmem:[%s0 + $0x1f0] sm:$0xff]
  %v78 = vld [vmem:[%s0 + $0x1f8] sm:$0xff]
  %v79 = vld [vmem:[%s0 + $0x200] sm:$0xff]
  %v80 = vld [vmem:[%s0 + $0x208] sm:$0xff]
  %v81 = vld [vmem:[%s0 + $0x210] sm:$0xff]
  %v82 = vld [vmem:[%s0 + $0x218] sm:$0xff]
  %v83 = vld [vmem:[%s0 + $0x220] sm:$0xff]
  %v84 = vld [vmem:[%s0 + $0x228] sm:$0xff]
  %v85 = vld [vmem:[%s0 + $0x230] sm:$0xff]
  %v86 = vld [vmem:[%s0 + $0x238] sm:$0xff]
  %v87 = vld [vmem:[%s0 + $0x240] sm:$0xff]
  %v88 = vld [vmem:[%s0 + $0x248] sm:$0xff]
  %v89 = vld [vmem:[%s0 + $0x250] sm:$0xff]
  %v90 = vld [vmem:[%s0 + $0x258] sm:$0xff]
  %v91 = vld [vmem:[%s0 + $0x260] sm:$0xff]
  %v92 = vld [vmem:[%s0 + $0x268] sm:$0xff]
  %v93 = vld [vmem:[%s0 + $0x270] sm:$0xff]
  %v94 = vld [vmem:[%s0 + $0x278] sm:$0xff]
  %v95 = vld [vmem:[%s1] sm:$0xf]
  %v96 = vld [vmem:[%s1 + $0x4] sm:$0xf]
  %v97 = vld [vmem:[%s1 + $0x8] sm:$0xf]
  %v98 = vld [vmem:[%s1 + $0xc] sm:$0xf]
  %v99 = vld [vmem:[%s1 + $0x10] sm:$0xf]
  %v100 = vld [vmem:[%s1 + $0x14] sm:$0xf]
  %v101 = vld [vmem:[%s1 + $0x18] sm:$0xf]
  %v102 = vld [vmem:[%s1 + $0x1c] sm:$0xf]
  %v103 = vld [vmem:[%s1 + $0x20] sm:$0xf]
  %v104 = vld [vmem:[%s1 + $0x24] sm:$0xf]
  %v105 = vld [vmem:[%s1 + $0x28] sm:$0xf]
  %v106 = vld [vmem:[%s1 + $0x2c] sm:$0xf]
  %v107 = vld [vmem:[%s1 + $0x30] sm:$0xf]
  %v108 = vld [vmem:[%s1 + $0x34] sm:$0xf]
  %v109 = vld [vmem:[%s1 + $0x38] sm:$0xf]
  %v110 = vld [vmem:[%s1 + $0x3c] sm:$0xf]
  %v111 = vld [vmem:[%s1 + $0x40] sm:$0xf]
  %v112 = vld [vmem:[%s1 + $0x44] sm:$0xf]
  %v113 = vld [vmem:[%s1 + $0x48] sm:$0xf]
  %v114 = vld [vmem:[%s1 + $0x4c] sm:$0xf]
  %v115 = vld [vmem:[%s1 + $0x50] sm:$0xf]
  %v116 = vld [vmem:[%s1 + $0x54] sm:$0xf]
  %v117 = vld [vmem:[%s1 + $0x58] sm:$0xf]
  %v118 = vld [vmem:[%s1 + $0x5c] sm:$0xf]
  %v119 = vld [vmem:[%s1 + $0x60] sm:$0xf]
  %v120 = vld [vmem:[%s1 + $0x64] sm:$0xf]
  %v121 = vld [vmem:[%s1 + $0x68] sm:$0xf]
  %v122 = vld [vmem:[%s1 + $0x6c] sm:$0xf]
  %v123 = vld [vmem:[%s1 + $0x70] sm:$0xf]
  %v124 = vld [vmem:[%s1 + $0x74] sm:$0xf]
  %v125 = vld [vmem:[%s1 + $0x78] sm:$0xf]
  %v126 = vld [vmem:[%s1 + $0x7c] sm:$0xf]
  %v127 = vld [vmem:[%s1 + $0x80] sm:$0xf]
  %v128 = vld [vmem:[%s1 + $0x84] sm:$0xf]
  %v129 = vld [vmem:[%s1 + $0x88] sm:$0xf]
  %v130 = vld [vmem:[%s1 + $0x8c] sm:$0xf]
  %v131 = vld [vmem:[%s1 + $0x90] sm:$0xf]
  %v132 = vld [vmem:[%s1 + $0x94] sm:$0xf]
  %v133 = vld [vmem:[%s1 + $0x98] sm:$0xf]
  %v134 = vld [vmem:[%s1 + $0x9c] sm:$0xf]
  %v135 = vld [vmem:[%s1 + $0xa0] sm:$0xf]
  %v136 = vld [vmem:[%s1 + $0xa4] sm:$0xf]
  %v137 = vld [vmem:[%s1 + $0xa8] sm:$0xf]
  %v138 = vld [vmem:[%s1 + $0xac] sm:$0xf]
  %v139 = vld [vmem:[%s1 + $0xb0] sm:$0xf]
  %v140 = vld [vmem:[%s1 + $0xb4] sm:$0xf]
  %v141 = vld [vmem:[%s1 + $0xb8] sm:$0xf]
  %v142 = vld [vmem:[%s1 + $0xbc] sm:$0xf]
  %v143 = vld [vmem:[%s1 + $0xc0] sm:$0xf]
  %v144 = vld [vmem:[%s1 + $0xc4] sm:$0xf]
  %v145 = vld [vmem:[%s1 + $0xc8] sm:$0xf]
  %v146 = vld [vmem:[%s1 + $0xcc] sm:$0xf]
  %v147 = vld [vmem:[%s1 + $0xd0] sm:$0xf]
  %v148 = vld [vmem:[%s1 + $0xd4] sm:$0xf]
  %v149 = vld [vmem:[%s1 + $0xd8] sm:$0xf]
  %v150 = vld [vmem:[%s1 + $0xdc] sm:$0xf]
  %v151 = vld [vmem:[%s1 + $0xe0] sm:$0xf]
  %v152 = vld [vmem:[%s1 + $0xe4] sm:$0xf]
  %v153 = vld [vmem:[%s1 + $0xe8] sm:$0xf]
  %v154 = vld [vmem:[%s1 + $0xec] sm:$0xf]
  %v155 = vld [vmem:[%s1 + $0xf0] sm:$0xf]
  %v156 = vld [vmem:[%s1 + $0xf4] sm:$0xf]
  %v157 = vld [vmem:[%s1 + $0xf8] sm:$0xf]
  %v158 = vld [vmem:[%s1 + $0xfc] sm:$0xf]
  %v159 = vld [vmem:[%s2] sm:$0x1]
  %v161 = vlaneseq
  %v162 = vshrl.u32 %v161, 7
  %v163 = vsub.s32 0, %v162
  %v164 = vrot.slane %v159, %v163
  %v246 = vunpack.c.l.b16 %v15
  %v247 = vunpack.c.h.b16 %v15
  %v248 = vunpack.c.l.b16 %v16
  %v249 = vunpack.c.h.b16 %v16
  %v250 = vunpack.c.l.b16 %v17
  %v251 = vunpack.c.h.b16 %v17
  %v252 = vunpack.c.l.b16 %v18
  %v253 = vunpack.c.h.b16 %v18
  %v254 = vunpack.c.l.b16 %v19
  %v255 = vunpack.c.h.b16 %v19
  %v256 = vunpack.c.l.b16 %v20
  %v257 = vunpack.c.h.b16 %v20
  %v258 = vunpack.c.l.b16 %v21
  %v259 = vunpack.c.h.b16 %v21
  %v260 = vunpack.c.l.b16 %v22
  %v261 = vunpack.c.h.b16 %v22
  %v262 = vunpack.c.l.b16 %v23
  %v263 = vunpack.c.h.b16 %v23
  %v264 = vunpack.c.l.b16 %v24
  %v265 = vunpack.c.h.b16 %v24
  %v266 = vunpack.c.l.b16 %v25
  %v267 = vunpack.c.h.b16 %v25
  %v268 = vunpack.c.l.b16 %v26
  %v269 = vunpack.c.h.b16 %v26
  %v270 = vunpack.c.l.b16 %v27
  %v271 = vunpack.c.h.b16 %v27
  %v272 = vunpack.c.l.b16 %v28
  %v273 = vunpack.c.h.b16 %v28
  %v274 = vunpack.c.l.b16 %v29
  %v275 = vunpack.c.h.b16 %v29
  %v276 = vunpack.c.l.b16 %v30
  %v277 = vunpack.c.h.b16 %v30
  %v278 = vunpack.c.l.b16 %v31
  %v279 = vunpack.c.h.b16 %v31
  %v280 = vunpack.c.l.b16 %v32
  %v281 = vunpack.c.h.b16 %v32
  %v282 = vunpack.c.l.b16 %v33
  %v283 = vunpack.c.h.b16 %v33
  %v284 = vunpack.c.l.b16 %v34
  %v285 = vunpack.c.h.b16 %v34
  %v286 = vunpack.c.l.b16 %v35
  %v287 = vunpack.c.h.b16 %v35
  %v288 = vunpack.c.l.b16 %v36
  %v289 = vunpack.c.h.b16 %v36
  %v290 = vunpack.c.l.b16 %v37
  %v291 = vunpack.c.h.b16 %v37
  %v292 = vunpack.c.l.b16 %v38
  %v293 = vunpack.c.h.b16 %v38
  %v294 = vunpack.c.l.b16 %v39
  %v295 = vunpack.c.h.b16 %v39
  %v296 = vunpack.c.l.b16 %v40
  %v297 = vunpack.c.h.b16 %v40
  %v298 = vunpack.c.l.b16 %v41
  %v299 = vunpack.c.h.b16 %v41
  %v300 = vunpack.c.l.b16 %v42
  %v301 = vunpack.c.h.b16 %v42
  %v302 = vunpack.c.l.b16 %v43
  %v303 = vunpack.c.h.b16 %v43
  %v304 = vunpack.c.l.b16 %v44
  %v305 = vunpack.c.h.b16 %v44
  %v306 = vunpack.c.l.b16 %v45
  %v307 = vunpack.c.h.b16 %v45
  %v308 = vunpack.c.l.b16 %v46
  %v309 = vunpack.c.h.b16 %v46
  %v310 = vunpack.c.l.b16 %v47
  %v311 = vunpack.c.h.b16 %v47
  %v312 = vunpack.c.l.b16 %v48
  %v313 = vunpack.c.h.b16 %v48
  %v314 = vunpack.c.l.b16 %v49
  %v315 = vunpack.c.h.b16 %v49
  %v316 = vunpack.c.l.b16 %v50
  %v317 = vunpack.c.h.b16 %v50
  %v318 = vunpack.c.l.b16 %v51
  %v319 = vunpack.c.h.b16 %v51
  %v320 = vunpack.c.l.b16 %v52
  %v321 = vunpack.c.h.b16 %v52
  %v322 = vunpack.c.l.b16 %v53
  %v323 = vunpack.c.h.b16 %v53
  %v324 = vunpack.c.l.b16 %v54
  %v325 = vunpack.c.h.b16 %v54
  %v326 = vunpack.c.l.b16 %v55
  %v327 = vunpack.c.h.b16 %v55
  %v328 = vunpack.c.l.b16 %v56
  %v329 = vunpack.c.h.b16 %v56
  %v330 = vunpack.c.l.b16 %v57
  %v331 = vunpack.c.h.b16 %v57
  %v332 = vunpack.c.l.b16 %v58
  %v333 = vunpack.c.h.b16 %v58
  %v334 = vunpack.c.l.b16 %v59
  %v335 = vunpack.c.h.b16 %v59
  %v336 = vunpack.c.l.b16 %v60
  %v337 = vunpack.c.h.b16 %v60
  %v338 = vunpack.c.l.b16 %v61
  %v339 = vunpack.c.h.b16 %v61
  %v340 = vunpack.c.l.b16 %v62
  %v341 = vunpack.c.h.b16 %v62
  %v342 = vunpack.c.l.b16 %v63
  %v343 = vunpack.c.h.b16 %v63
  %v344 = vunpack.c.l.b16 %v64
  %v345 = vunpack.c.h.b16 %v64
  %v346 = vunpack.c.l.b16 %v65
  %v347 = vunpack.c.h.b16 %v65
  %v348 = vunpack.c.l.b16 %v66
  %v349 = vunpack.c.h.b16 %v66
  %v350 = vunpack.c.l.b16 %v67
  %v351 = vunpack.c.h.b16 %v67
  %v352 = vunpack.c.l.b16 %v68
  %v353 = vunpack.c.h.b16 %v68
  %v354 = vunpack.c.l.b16 %v69
  %v355 = vunpack.c.h.b16 %v69
  %v356 = vunpack.c.l.b16 %v70
  %v357 = vunpack.c.h.b16 %v70
  %v358 = vunpack.c.l.b16 %v71
  %v359 = vunpack.c.h.b16 %v71
  %v360 = vunpack.c.l.b16 %v72
  %v361 = vunpack.c.h.b16 %v72
  %v362 = vunpack.c.l.b16 %v73
  %v363 = vunpack.c.h.b16 %v73
  %v364 = vunpack.c.l.b16 %v74
  %v365 = vunpack.c.h.b16 %v74
  %v366 = vunpack.c.l.b16 %v75
  %v367 = vunpack.c.h.b16 %v75
  %v368 = vunpack.c.l.b16 %v76
  %v369 = vunpack.c.h.b16 %v76
  %v370 = vunpack.c.l.b16 %v77
  %v371 = vunpack.c.h.b16 %v77
  %v372 = vunpack.c.l.b16 %v78
  %v373 = vunpack.c.h.b16 %v78
  %v374 = vunpack.c.l.b16 %v79
  %v375 = vunpack.c.h.b16 %v79
  %v376 = vunpack.c.l.b16 %v80
  %v377 = vunpack.c.h.b16 %v80
  %v378 = vunpack.c.l.b16 %v81
  %v379 = vunpack.c.h.b16 %v81
  %v380 = vunpack.c.l.b16 %v82
  %v381 = vunpack.c.h.b16 %v82
  %v382 = vunpack.c.l.b16 %v83
  %v383 = vunpack.c.h.b16 %v83
  %v384 = vunpack.c.l.b16 %v84
  %v385 = vunpack.c.h.b16 %v84
  %v386 = vunpack.c.l.b16 %v85
  %v387 = vunpack.c.h.b16 %v85
  %v388 = vunpack.c.l.b16 %v86
  %v389 = vunpack.c.h.b16 %v86
  %v390 = vunpack.c.l.b16 %v87
  %v391 = vunpack.c.h.b16 %v87
  %v392 = vunpack.c.l.b16 %v88
  %v393 = vunpack.c.h.b16 %v88
  %v394 = vunpack.c.l.b16 %v89
  %v395 = vunpack.c.h.b16 %v89
  %v396 = vunpack.c.l.b16 %v90
  %v397 = vunpack.c.h.b16 %v90
  %v398 = vunpack.c.l.b16 %v91
  %v399 = vunpack.c.h.b16 %v91
  %v400 = vunpack.c.l.b16 %v92
  %v401 = vunpack.c.h.b16 %v92
  %v402 = vunpack.c.l.b16 %v93
  %v403 = vunpack.c.h.b16 %v93
  %v404 = vunpack.c.l.b16 %v94
  %v405 = vunpack.c.h.b16 %v94
  %v406 = vpack.c.b16 %v250, %v246
  %v407 = vpack.c.b16 %v251, %v247
  %v408 = vpack.c.b16 %v252, %v248
  %v409 = vpack.c.b16 %v253, %v249
  %v410 = vpack.c.b16 %v258, %v254
  %v411 = vpack.c.b16 %v259, %v255
  %v412 = vpack.c.b16 %v260, %v256
  %v413 = vpack.c.b16 %v261, %v257
  %v414 = vpack.c.b16 %v266, %v262
  %v415 = vpack.c.b16 %v267, %v263
  %v416 = vpack.c.b16 %v268, %v264
  %v417 = vpack.c.b16 %v269, %v265
  %v418 = vpack.c.b16 %v274, %v270
  %v419 = vpack.c.b16 %v275, %v271
  %v420 = vpack.c.b16 %v276, %v272
  %v421 = vpack.c.b16 %v277, %v273
  %v422 = vpack.c.b16 %v282, %v278
  %v423 = vpack.c.b16 %v283, %v279
  %v424 = vpack.c.b16 %v284, %v280
  %v425 = vpack.c.b16 %v285, %v281
  %v426 = vpack.c.b16 %v290, %v286
  %v427 = vpack.c.b16 %v291, %v287
  %v428 = vpack.c.b16 %v292, %v288
  %v429 = vpack.c.b16 %v293, %v289
  %v430 = vpack.c.b16 %v298, %v294
  %v431 = vpack.c.b16 %v299, %v295
  %v432 = vpack.c.b16 %v300, %v296
  %v433 = vpack.c.b16 %v301, %v297
  %v434 = vpack.c.b16 %v306, %v302
  %v435 = vpack.c.b16 %v307, %v303
  %v436 = vpack.c.b16 %v308, %v304
  %v437 = vpack.c.b16 %v309, %v305
  %v438 = vpack.c.b16 %v314, %v310
  %v439 = vpack.c.b16 %v315, %v311
  %v440 = vpack.c.b16 %v316, %v312
  %v441 = vpack.c.b16 %v317, %v313
  %v442 = vpack.c.b16 %v322, %v318
  %v443 = vpack.c.b16 %v323, %v319
  %v444 = vpack.c.b16 %v324, %v320
  %v445 = vpack.c.b16 %v325, %v321
  %v446 = vpack.c.b16 %v330, %v326
  %v447 = vpack.c.b16 %v331, %v327
  %v448 = vpack.c.b16 %v332, %v328
  %v449 = vpack.c.b16 %v333, %v329
  %v450 = vpack.c.b16 %v338, %v334
  %v451 = vpack.c.b16 %v339, %v335
  %v452 = vpack.c.b16 %v340, %v336
  %v453 = vpack.c.b16 %v341, %v337
  %v454 = vpack.c.b16 %v346, %v342
  %v455 = vpack.c.b16 %v347, %v343
  %v456 = vpack.c.b16 %v348, %v344
  %v457 = vpack.c.b16 %v349, %v345
  %v458 = vpack.c.b16 %v354, %v350
  %v459 = vpack.c.b16 %v355, %v351
  %v460 = vpack.c.b16 %v356, %v352
  %v461 = vpack.c.b16 %v357, %v353
  %v462 = vpack.c.b16 %v362, %v358
  %v463 = vpack.c.b16 %v363, %v359
  %v464 = vpack.c.b16 %v364, %v360
  %v465 = vpack.c.b16 %v365, %v361
  %v466 = vpack.c.b16 %v370, %v366
  %v467 = vpack.c.b16 %v371, %v367
  %v468 = vpack.c.b16 %v372, %v368
  %v469 = vpack.c.b16 %v373, %v369
  %v470 = vpack.c.b16 %v378, %v374
  %v471 = vpack.c.b16 %v379, %v375
  %v472 = vpack.c.b16 %v380, %v376
  %v473 = vpack.c.b16 %v381, %v377
  %v474 = vpack.c.b16 %v386, %v382
  %v475 = vpack.c.b16 %v387, %v383
  %v476 = vpack.c.b16 %v388, %v384
  %v477 = vpack.c.b16 %v389, %v385
  %v478 = vpack.c.b16 %v394, %v390
  %v479 = vpack.c.b16 %v395, %v391
  %v480 = vpack.c.b16 %v396, %v392
  %v481 = vpack.c.b16 %v397, %v393
  %v482 = vpack.c.b16 %v402, %v398
  %v483 = vpack.c.b16 %v403, %v399
  %v484 = vpack.c.b16 %v404, %v400
  %v485 = vpack.c.b16 %v405, %v401
  %v630 = vunpack.c.l.b16 %v95
  %v631 = vunpack.c.l.b16 %v96
  %v632 = vunpack.c.l.b16 %v97
  %v633 = vunpack.c.l.b16 %v98
  %v634 = vunpack.c.l.b16 %v99
  %v635 = vunpack.c.l.b16 %v100
  %v636 = vunpack.c.l.b16 %v101
  %v637 = vunpack.c.l.b16 %v102
  %v638 = vunpack.c.l.b16 %v103
  %v639 = vunpack.c.l.b16 %v104
  %v640 = vunpack.c.l.b16 %v105
  %v641 = vunpack.c.l.b16 %v106
  %v642 = vunpack.c.l.b16 %v107
  %v643 = vunpack.c.l.b16 %v108
  %v644 = vunpack.c.l.b16 %v109
  %v645 = vunpack.c.l.b16 %v110
  %v646 = vunpack.c.l.b16 %v111
  %v647 = vunpack.c.l.b16 %v112
  %v648 = vunpack.c.l.b16 %v113
  %v649 = vunpack.c.l.b16 %v114
  %v650 = vunpack.c.l.b16 %v115
  %v651 = vunpack.c.l.b16 %v116
  %v652 = vunpack.c.l.b16 %v117
  %v653 = vunpack.c.l.b16 %v118
  %v654 = vunpack.c.l.b16 %v119
  %v655 = vunpack.c.l.b16 %v120
  %v656 = vunpack.c.l.b16 %v121
  %v657 = vunpack.c.l.b16 %v122
  %v658 = vunpack.c.l.b16 %v123
  %v659 = vunpack.c.l.b16 %v124
  %v660 = vunpack.c.l.b16 %v125
  %v661 = vunpack.c.l.b16 %v126
  %v662 = vunpack.c.l.b16 %v127
  %v663 = vunpack.c.l.b16 %v128
  %v664 = vunpack.c.l.b16 %v129
  %v665 = vunpack.c.l.b16 %v130
  %v666 = vunpack.c.l.b16 %v131
  %v667 = vunpack.c.l.b16 %v132
  %v668 = vunpack.c.l.b16 %v133
  %v669 = vunpack.c.l.b16 %v134
  %v670 = vunpack.c.l.b16 %v135
  %v671 = vunpack.c.l.b16 %v136
  %v672 = vunpack.c.l.b16 %v137
  %v673 = vunpack.c.l.b16 %v138
  %v674 = vunpack.c.l.b16 %v139
  %v675 = vunpack.c.l.b16 %v140
  %v676 = vunpack.c.l.b16 %v141
  %v677 = vunpack.c.l.b16 %v142
  %v678 = vunpack.c.l.b16 %v143
  %v679 = vunpack.c.l.b16 %v144
  %v680 = vunpack.c.l.b16 %v145
  %v681 = vunpack.c.l.b16 %v146
  %v682 = vunpack.c.l.b16 %v147
  %v683 = vunpack.c.l.b16 %v148
  %v684 = vunpack.c.l.b16 %v149
  %v685 = vunpack.c.l.b16 %v150
  %v686 = vunpack.c.l.b16 %v151
  %v687 = vunpack.c.l.b16 %v152
  %v688 = vunpack.c.l.b16 %v153
  %v689 = vunpack.c.l.b16 %v154
  %v690 = vunpack.c.l.b16 %v155
  %v691 = vunpack.c.l.b16 %v156
  %v692 = vunpack.c.l.b16 %v157
  %v693 = vunpack.c.l.b16 %v158
  %v694 = vpack.c.b16 %v631, %v630
  %v695 = vpack.c.b16 %v633, %v632
  %v696 = vpack.c.b16 %v635, %v634
  %v697 = vpack.c.b16 %v637, %v636
  %v698 = vpack.c.b16 %v639, %v638
  %v699 = vpack.c.b16 %v641, %v640
  %v700 = vpack.c.b16 %v643, %v642
  %v701 = vpack.c.b16 %v645, %v644
  %v702 = vpack.c.b16 %v647, %v646
  %v703 = vpack.c.b16 %v649, %v648
  %v704 = vpack.c.b16 %v651, %v650
  %v705 = vpack.c.b16 %v653, %v652
  %v706 = vpack.c.b16 %v655, %v654
  %v707 = vpack.c.b16 %v657, %v656
  %v708 = vpack.c.b16 %v659, %v658
  %v709 = vpack.c.b16 %v661, %v660
  %v710 = vpack.c.b16 %v663, %v662
  %v711 = vpack.c.b16 %v665, %v664
  %v712 = vpack.c.b16 %v667, %v666
  %v713 = vpack.c.b16 %v669, %v668
  %v714 = vpack.c.b16 %v671, %v670
  %v715 = vpack.c.b16 %v673, %v672
  %v716 = vpack.c.b16 %v675, %v674
  %v717 = vpack.c.b16 %v677, %v676
  %v718 = vpack.c.b16 %v679, %v678
  %v719 = vpack.c.b16 %v681, %v680
  %v720 = vpack.c.b16 %v683, %v682
  %v721 = vpack.c.b16 %v685, %v684
  %v722 = vpack.c.b16 %v687, %v686
  %v723 = vpack.c.b16 %v689, %v688
  %v724 = vpack.c.b16 %v691, %v690
  %v725 = vpack.c.b16 %v693, %v692
  %758 = vmatprep.subr.bf16.mxu0 0
  %759 = vmatpush1.bf16.msra.mxu0 %v694
  %760 = vmatprep.subr.bf16.mxu0 0
  %761 = vmatpush1.bf16.msra.mxu0 %v695
  %762 = vmatprep.subr.bf16.mxu0 0
  %763 = vmatpush1.bf16.msra.mxu0 %v696
  %764 = vmatprep.subr.bf16.mxu0 0
  %765 = vmatpush1.bf16.msra.mxu0 %v697
  %766 = vmatprep.subr.bf16.mxu0 0
  %767 = vmatpush1.bf16.msra.mxu0 %v698
  %768 = vmatprep.subr.bf16.mxu0 0
  %769 = vmatpush1.bf16.msra.mxu0 %v699
  %770 = vmatprep.subr.bf16.mxu0 0
  %771 = vmatpush1.bf16.msra.mxu0 %v700
  %772 = vmatprep.subr.bf16.mxu0 0
  %773 = vmatpush1.bf16.msra.mxu0 %v701
  %774 = vmatprep.subr.bf16.mxu0 0
  %775 = vmatpush1.bf16.msra.mxu0 %v702
  %776 = vmatprep.subr.bf16.mxu0 0
  %777 = vmatpush1.bf16.msra.mxu0 %v703
  %778 = vmatprep.subr.bf16.mxu0 0
  %779 = vmatpush1.bf16.msra.mxu0 %v704
  %780 = vmatprep.subr.bf16.mxu0 0
  %781 = vmatpush1.bf16.msra.mxu0 %v705
  %782 = vmatprep.subr.bf16.mxu0 0
  %783 = vmatpush1.bf16.msra.mxu0 %v706
  %784 = vmatprep.subr.bf16.mxu0 0
  %785 = vmatpush1.bf16.msra.mxu0 %v707
  %786 = vmatprep.subr.bf16.mxu0 0
  %787 = vmatpush1.bf16.msra.mxu0 %v708
  %788 = vmatprep.subr.bf16.mxu0 0
  %789 = vmatpush1.bf16.msra.mxu0 %v709
  %790 = vmatprep.mubr.bf16.mxu0 %v407
  %791 = vmatmul.mubr.bf16.gmra.mrb[0].mxu0 %v406
  %v792 = vpop.f32.mrb[0].mxu0
  %v793 = vadd.f32 %v164, %v792
  %v794 = vpop.f32.mrb[0].mxu0
  %v795 = vpop.f32.mrb[0].mxu0
  %v796 = vadd.f32 %v164, %v795
  %v797 = vpop.f32.mrb[0].mxu0
  %798 = vmatprep.mubr.bf16.mxu0 %v411
  %799 = vmatmul.mubr.bf16.gmra.mrb[0].mxu0 %v410
  %v800 = vpop.f32.mrb[0].mxu0
  %v801 = vadd.f32 %v164, %v800
  %v802 = vpop.f32.mrb[0].mxu0
  %v803 = vpop.f32.mrb[0].mxu0
  %v804 = vadd.f32 %v164, %v803
  %v805 = vpop.f32.mrb[0].mxu0
  %806 = vmatprep.mubr.bf16.mxu0 %v415
  %807 = vmatmul.mubr.bf16.gmra.mrb[0].mxu0 %v414
  %v808 = vpop.f32.mrb[0].mxu0
  %v809 = vadd.f32 %v164, %v808
  %v810 = vpop.f32.mrb[0].mxu0
  %v811 = vpop.f32.mrb[0].mxu0
  %v812 = vadd.f32 %v164, %v811
  %v813 = vpop.f32.mrb[0].mxu0
  %814 = vmatprep.mubr.bf16.mxu0 %v419
  %815 = vmatmul.mubr.bf16.gmra.mrb[0].mxu0 %v418
  %v816 = vpop.f32.mrb[0].mxu0
  %v817 = vadd.f32 %v164, %v816
  %v818 = vpop.f32.mrb[0].mxu0
  %v819 = vpop.f32.mrb[0].mxu0
  %v820 = vadd.f32 %v164, %v819
  %v821 = vpop.f32.mrb[0].mxu0
  %822 = vmatprep.mubr.bf16.mxu0 %v423
  %823 = vmatmul.mubr.bf16.gmra.mrb[0].mxu0 %v422
  %v824 = vpop.f32.mrb[0].mxu0
  %v825 = vadd.f32 %v164, %v824
  %v826 = vpop.f32.mrb[0].mxu0
  %v827 = vpop.f32.mrb[0].mxu0
  %v828 = vadd.f32 %v164, %v827
  %v829 = vpop.f32.mrb[0].mxu0
  %830 = vmatprep.mubr.bf16.mxu0 %v427
  %831 = vmatmul.mubr.bf16.gmra.mrb[0].mxu0 %v426
  %v832 = vpop.f32.mrb[0].mxu0
  %v833 = vadd.f32 %v164, %v832
  %v834 = vpop.f32.mrb[0].mxu0
  %v835 = vpop.f32.mrb[0].mxu0
  %v836 = vadd.f32 %v164, %v835
  %v837 = vpop.f32.mrb[0].mxu0
  %838 = vmatprep.mubr.bf16.mxu0 %v431
  %839 = vmatmul.mubr.bf16.gmra.mrb[0].mxu0 %v430
  %v840 = vpop.f32.mrb[0].mxu0
  %v841 = vadd.f32 %v164, %v840
  %v842 = vpop.f32.mrb[0].mxu0
  %v843 = vpop.f32.mrb[0].mxu0
  %v844 = vadd.f32 %v164, %v843
  %v845 = vpop.f32.mrb[0].mxu0
  %846 = vmatprep.mubr.bf16.mxu0 %v435
  %847 = vmatmul.mubr.bf16.gmra.mrb[0].mxu0 %v434
  %v848 = vpop.f32.mrb[0].mxu0
  %v849 = vadd.f32 %v164, %v848
  %v850 = vpop.f32.mrb[0].mxu0
  %v851 = vpop.f32.mrb[0].mxu0
  %v852 = vadd.f32 %v164, %v851
  %v853 = vpop.f32.mrb[0].mxu0
  %854 = vmatprep.mubr.bf16.mxu0 %v439
  %855 = vmatmul.mubr.bf16.gmra.mrb[0].mxu0 %v438
  %v856 = vpop.f32.mrb[0].mxu0
  %v857 = vadd.f32 %v164, %v856
  %v858 = vpop.f32.mrb[0].mxu0
  %v859 = vpop.f32.mrb[0].mxu0
  %v860 = vadd.f32 %v164, %v859
  %v861 = vpop.f32.mrb[0].mxu0
  %862 = vmatprep.mubr.bf16.mxu0 %v443
  %863 = vmatmul.mubr.bf16.gmra.mrb[0].mxu0 %v442
  %v864 = vpop.f32.mrb[0].mxu0
  %v865 = vadd.f32 %v164, %v864
  %v866 = vpop.f32.mrb[0].mxu0
  %v867 = vpop.f32.mrb[0].mxu0
  %v868 = vadd.f32 %v164, %v867
  %v869 = vpop.f32.mrb[0].mxu0
  %870 = vmatprep.mubr.bf16.mxu0 %v447
  %871 = vmatmul.mubr.bf16.gmra.mrb[0].mxu0 %v446
  %v872 = vpop.f32.mrb[0].mxu0
  %v873 = vadd.f32 %v164, %v872
  %v874 = vpop.f32.mrb[0].mxu0
  %v875 = vpop.f32.mrb[0].mxu0
  %v876 = vadd.f32 %v164, %v875
  %v877 = vpop.f32.mrb[0].mxu0
  %878 = vmatprep.mubr.bf16.mxu0 %v451
  %879 = vmatmul.mubr.bf16.gmra.mrb[0].mxu0 %v450
  %v880 = vpop.f32.mrb[0].mxu0
  %v881 = vadd.f32 %v164, %v880
  %v882 = vpop.f32.mrb[0].mxu0
  %v883 = vpop.f32.mrb[0].mxu0
  %v884 = vadd.f32 %v164, %v883
  %v885 = vpop.f32.mrb[0].mxu0
  %886 = vmatprep.mubr.bf16.mxu0 %v455
  %887 = vmatmul.mubr.bf16.gmra.mrb[0].mxu0 %v454
  %v888 = vpop.f32.mrb[0].mxu0
  %v889 = vadd.f32 %v164, %v888
  %v890 = vpop.f32.mrb[0].mxu0
  %v891 = vpop.f32.mrb[0].mxu0
  %v892 = vadd.f32 %v164, %v891
  %v893 = vpop.f32.mrb[0].mxu0
  %894 = vmatprep.mubr.bf16.mxu0 %v459
  %895 = vmatmul.mubr.bf16.gmra.mrb[0].mxu0 %v458
  %v896 = vpop.f32.mrb[0].mxu0
  %v897 = vadd.f32 %v164, %v896
  %v898 = vpop.f32.mrb[0].mxu0
  %v899 = vpop.f32.mrb[0].mxu0
  %v900 = vadd.f32 %v164, %v899
  %v901 = vpop.f32.mrb[0].mxu0
  %902 = vmatprep.mubr.bf16.mxu0 %v463
  %903 = vmatmul.mubr.bf16.gmra.mrb[0].mxu0 %v462
  %v904 = vpop.f32.mrb[0].mxu0
  %v905 = vadd.f32 %v164, %v904
  %v906 = vpop.f32.mrb[0].mxu0
  %v907 = vpop.f32.mrb[0].mxu0
  %v908 = vadd.f32 %v164, %v907
  %v909 = vpop.f32.mrb[0].mxu0
  %910 = vmatprep.mubr.bf16.mxu0 %v467
  %911 = vmatmul.mubr.bf16.gmra.mrb[0].mxu0 %v466
  %v912 = vpop.f32.mrb[0].mxu0
  %v913 = vadd.f32 %v164, %v912
  %v914 = vpop.f32.mrb[0].mxu0
  %v915 = vpop.f32.mrb[0].mxu0
  %v916 = vadd.f32 %v164, %v915
  %v917 = vpop.f32.mrb[0].mxu0
  %918 = vmatprep.mubr.bf16.mxu0 %v471
  %919 = vmatmul.mubr.bf16.gmra.mrb[0].mxu0 %v470
  %v920 = vpop.f32.mrb[0].mxu0
  %v921 = vadd.f32 %v164, %v920
  %v922 = vpop.f32.mrb[0].mxu0
  %v923 = vpop.f32.mrb[0].mxu0
  %v924 = vadd.f32 %v164, %v923
  %v925 = vpop.f32.mrb[0].mxu0
  %926 = vmatprep.mubr.bf16.mxu0 %v475
  %927 = vmatmul.mubr.bf16.gmra.mrb[0].mxu0 %v474
  %v928 = vpop.f32.mrb[0].mxu0
  %v929 = vadd.f32 %v164, %v928
  %v930 = vpop.f32.mrb[0].mxu0
  %v931 = vpop.f32.mrb[0].mxu0
  %v932 = vadd.f32 %v164, %v931
  %v933 = vpop.f32.mrb[0].mxu0
  %934 = vmatprep.mubr.bf16.mxu0 %v479
  %935 = vmatmul.mubr.bf16.gmra.mrb[0].mxu0 %v478
  %v936 = vpop.f32.mrb[0].mxu0
  %v937 = vadd.f32 %v164, %v936
  %v938 = vpop.f32.mrb[0].mxu0
  %v939 = vpop.f32.mrb[0].mxu0
  %v940 = vadd.f32 %v164, %v939
  %v941 = vpop.f32.mrb[0].mxu0
  %942 = vmatprep.mubr.bf16.mxu0 %v483
  %943 = vmatmul.mubr.bf16.gmra.mrb[0].mxu0 %v482
  %v944 = vpop.f32.mrb[0].mxu0
  %v945 = vadd.f32 %v164, %v944
  %v946 = vpop.f32.mrb[0].mxu0
  %v947 = vpop.f32.mrb[0].mxu0
  %v948 = vadd.f32 %v164, %v947
  %v949 = vpop.f32.mrb[0].mxu0
  %950 = vdwg.mxu0
  %951 = vmatprep.subr.bf16.mxu0 0
  %952 = vmatpush1.bf16.msra.mxu0 %v710
  %953 = vmatprep.subr.bf16.mxu0 0
  %954 = vmatpush1.bf16.msra.mxu0 %v711
  %955 = vmatprep.subr.bf16.mxu0 0
  %956 = vmatpush1.bf16.msra.mxu0 %v712
  %957 = vmatprep.subr.bf16.mxu0 0
  %958 = vmatpush1.bf16.msra.mxu0 %v713
  %959 = vmatprep.subr.bf16.mxu0 0
  %960 = vmatpush1.bf16.msra.mxu0 %v714
  %961 = vmatprep.subr.bf16.mxu0 0
  %962 = vmatpush1.bf16.msra.mxu0 %v715
  %963 = vmatprep.subr.bf16.mxu0 0
  %964 = vmatpush1.bf16.msra.mxu0 %v716
  %965 = vmatprep.subr.bf16.mxu0 0
  %966 = vmatpush1.bf16.msra.mxu0 %v717
  %967 = vmatprep.subr.bf16.mxu0 0
  %968 = vmatpush1.bf16.msra.mxu0 %v718
  %969 = vmatprep.subr.bf16.mxu0 0
  %970 = vmatpush1.bf16.msra.mxu0 %v719
  %971 = vmatprep.subr.bf16.mxu0 0
  %972 = vmatpush1.bf16.msra.mxu0 %v720
  %973 = vmatprep.subr.bf16.mxu0 0
  %974 = vmatpush1.bf16.msra.mxu0 %v721
  %975 = vmatprep.subr.bf16.mxu0 0
  %976 = vmatpush1.bf16.msra.mxu0 %v722
  %977 = vmatprep.subr.bf16.mxu0 0
  %978 = vmatpush1.bf16.msra.mxu0 %v723
  %979 = vmatprep.subr.bf16.mxu0 0
  %980 = vmatpush1.bf16.msra.mxu0 %v724
  %981 = vmatprep.subr.bf16.mxu0 0
  %982 = vmatpush1.bf16.msra.mxu0 %v725
  %983 = vmatprep.mubr.bf16.mxu0 %v409
  %984 = vmatmul.mubr.bf16.gmra.mrb[0].mxu0 %v408
  %v985 = vpop.f32.mrb[0].mxu0
  %v986 = vadd.f32 %v793, %v985
  %v987 = vpop.f32.mrb[0].mxu0
  %v988 = vpop.f32.mrb[0].mxu0
  %v989 = vadd.f32 %v796, %v988
  %v990 = vpop.f32.mrb[0].mxu0
  %991 = vmatprep.mubr.bf16.mxu0 %v413
  %992 = vmatmul.mubr.bf16.gmra.mrb[0].mxu0 %v412
  %v993 = vpop.f32.mrb[0].mxu0
  %v994 = vadd.f32 %v801, %v993
  %v995 = vpop.f32.mrb[0].mxu0
  %v996 = vpop.f32.mrb[0].mxu0
  %v997 = vadd.f32 %v804, %v996
  %v998 = vpop.f32.mrb[0].mxu0
  %999 = vmatprep.mubr.bf16.mxu0 %v417
  %1000 = vmatmul.mubr.bf16.gmra.mrb[0].mxu0 %v416
  %v1001 = vpop.f32.mrb[0].mxu0
  %v1002 = vadd.f32 %v809, %v1001
  %v1003 = vpop.f32.mrb[0].mxu0
  %v1004 = vpop.f32.mrb[0].mxu0
  %v1005 = vadd.f32 %v812, %v1004
  %v1006 = vpop.f32.mrb[0].mxu0
  %1007 = vmatprep.mubr.bf16.mxu0 %v421
  %1008 = vmatmul.mubr.bf16.gmra.mrb[0].mxu0 %v420
  %v1009 = vpop.f32.mrb[0].mxu0
  %v1010 = vadd.f32 %v817, %v1009
  %v1011 = vpop.f32.mrb[0].mxu0
  %v1012 = vpop.f32.mrb[0].mxu0
  %v1013 = vadd.f32 %v820, %v1012
  %v1014 = vpop.f32.mrb[0].mxu0
  %1015 = vmatprep.mubr.bf16.mxu0 %v425
  %1016 = vmatmul.mubr.bf16.gmra.mrb[0].mxu0 %v424
  %v1017 = vpop.f32.mrb[0].mxu0
  %v1018 = vadd.f32 %v825, %v1017
  %v1019 = vpop.f32.mrb[0].mxu0
  %v1020 = vpop.f32.mrb[0].mxu0
  %v1021 = vadd.f32 %v828, %v1020
  %v1022 = vpop.f32.mrb[0].mxu0
  %1023 = vmatprep.mubr.bf16.mxu0 %v429
  %1024 = vmatmul.mubr.bf16.gmra.mrb[0].mxu0 %v428
  %v1025 = vpop.f32.mrb[0].mxu0
  %v1026 = vadd.f32 %v833, %v1025
  %v1027 = vpop.f32.mrb[0].mxu0
  %v1028 = vpop.f32.mrb[0].mxu0
  %v1029 = vadd.f32 %v836, %v1028
  %v1030 = vpop.f32.mrb[0].mxu0
  %1031 = vmatprep.mubr.bf16.mxu0 %v433
  %1032 = vmatmul.mubr.bf16.gmra.mrb[0].mxu0 %v432
  %v1033 = vpop.f32.mrb[0].mxu0
  %v1034 = vadd.f32 %v841, %v1033
  %v1035 = vpop.f32.mrb[0].mxu0
  %v1036 = vpop.f32.mrb[0].mxu0
  %v1037 = vadd.f32 %v844, %v1036
  %v1038 = vpop.f32.mrb[0].mxu0
  %1039 = vmatprep.mubr.bf16.mxu0 %v437
  %1040 = vmatmul.mubr.bf16.gmra.mrb[0].mxu0 %v436
  %v1041 = vpop.f32.mrb[0].mxu0
  %v1042 = vadd.f32 %v849, %v1041
  %v1043 = vpop.f32.mrb[0].mxu0
  %v1044 = vpop.f32.mrb[0].mxu0
  %v1045 = vadd.f32 %v852, %v1044
  %v1046 = vpop.f32.mrb[0].mxu0
  %1047 = vmatprep.mubr.bf16.mxu0 %v441
  %1048 = vmatmul.mubr.bf16.gmra.mrb[0].mxu0 %v440
  %v1049 = vpop.f32.mrb[0].mxu0
  %v1050 = vadd.f32 %v857, %v1049
  %v1051 = vpop.f32.mrb[0].mxu0
  %v1052 = vpop.f32.mrb[0].mxu0
  %v1053 = vadd.f32 %v860, %v1052
  %v1054 = vpop.f32.mrb[0].mxu0
  %1055 = vmatprep.mubr.bf16.mxu0 %v445
  %1056 = vmatmul.mubr.bf16.gmra.mrb[0].mxu0 %v444
  %v1057 = vpop.f32.mrb[0].mxu0
  %v1058 = vadd.f32 %v865, %v1057
  %v1059 = vpop.f32.mrb[0].mxu0
  %v1060 = vpop.f32.mrb[0].mxu0
  %v1061 = vadd.f32 %v868, %v1060
  %v1062 = vpop.f32.mrb[0].mxu0
  %1063 = vmatprep.mubr.bf16.mxu0 %v449
  %1064 = vmatmul.mubr.bf16.gmra.mrb[0].mxu0 %v448
  %v1065 = vpop.f32.mrb[0].mxu0
  %v1066 = vadd.f32 %v873, %v1065
  %v1067 = vpop.f32.mrb[0].mxu0
  %v1068 = vpop.f32.mrb[0].mxu0
  %v1069 = vadd.f32 %v876, %v1068
  %v1070 = vpop.f32.mrb[0].mxu0
  %1071 = vmatprep.mubr.bf16.mxu0 %v453
  %1072 = vmatmul.mubr.bf16.gmra.mrb[0].mxu0 %v452
  %v1073 = vpop.f32.mrb[0].mxu0
  %v1074 = vadd.f32 %v881, %v1073
  %v1075 = vpop.f32.mrb[0].mxu0
  %v1076 = vpop.f32.mrb[0].mxu0
  %v1077 = vadd.f32 %v884, %v1076
  %v1078 = vpop.f32.mrb[0].mxu0
  %1079 = vmatprep.mubr.bf16.mxu0 %v457
  %1080 = vmatmul.mubr.bf16.gmra.mrb[0].mxu0 %v456
  %v1081 = vpop.f32.mrb[0].mxu0
  %v1082 = vadd.f32 %v889, %v1081
  %v1083 = vpop.f32.mrb[0].mxu0
  %v1084 = vpop.f32.mrb[0].mxu0
  %v1085 = vadd.f32 %v892, %v1084
  %v1086 = vpop.f32.mrb[0].mxu0
  %1087 = vmatprep.mubr.bf16.mxu0 %v461
  %1088 = vmatmul.mubr.bf16.gmra.mrb[0].mxu0 %v460
  %v1089 = vpop.f32.mrb[0].mxu0
  %v1090 = vadd.f32 %v897, %v1089
  %v1091 = vpop.f32.mrb[0].mxu0
  %v1092 = vpop.f32.mrb[0].mxu0
  %v1093 = vadd.f32 %v900, %v1092
  %v1094 = vpop.f32.mrb[0].mxu0
  %1095 = vmatprep.mubr.bf16.mxu0 %v465
  %1096 = vmatmul.mubr.bf16.gmra.mrb[0].mxu0 %v464
  %v1097 = vpop.f32.mrb[0].mxu0
  %v1098 = vadd.f32 %v905, %v1097
  %v1099 = vpop.f32.mrb[0].mxu0
  %v1100 = vpop.f32.mrb[0].mxu0
  %v1101 = vadd.f32 %v908, %v1100
  %v1102 = vpop.f32.mrb[0].mxu0
  %1103 = vmatprep.mubr.bf16.mxu0 %v469
  %1104 = vmatmul.mubr.bf16.gmra.mrb[0].mxu0 %v468
  %v1105 = vpop.f32.mrb[0].mxu0
  %v1106 = vadd.f32 %v913, %v1105
  %v1107 = vpop.f32.mrb[0].mxu0
  %v1108 = vpop.f32.mrb[0].mxu0
  %v1109 = vadd.f32 %v916, %v1108
  %v1110 = vpop.f32.mrb[0].mxu0
  %1111 = vmatprep.mubr.bf16.mxu0 %v473
  %1112 = vmatmul.mubr.bf16.gmra.mrb[0].mxu0 %v472
  %v1113 = vpop.f32.mrb[0].mxu0
  %v1114 = vadd.f32 %v921, %v1113
  %v1115 = vpop.f32.mrb[0].mxu0
  %v1116 = vpop.f32.mrb[0].mxu0
  %v1117 = vadd.f32 %v924, %v1116
  %v1118 = vpop.f32.mrb[0].mxu0
  %1119 = vmatprep.mubr.bf16.mxu0 %v477
  %1120 = vmatmul.mubr.bf16.gmra.mrb[0].mxu0 %v476
  %v1121 = vpop.f32.mrb[0].mxu0
  %v1122 = vadd.f32 %v929, %v1121
  %v1123 = vpop.f32.mrb[0].mxu0
  %v1124 = vpop.f32.mrb[0].mxu0
  %v1125 = vadd.f32 %v932, %v1124
  %v1126 = vpop.f32.mrb[0].mxu0
  %1127 = vmatprep.mubr.bf16.mxu0 %v481
  %1128 = vmatmul.mubr.bf16.gmra.mrb[0].mxu0 %v480
  %v1129 = vpop.f32.mrb[0].mxu0
  %v1130 = vadd.f32 %v937, %v1129
  %v1131 = vpop.f32.mrb[0].mxu0
  %v1132 = vpop.f32.mrb[0].mxu0
  %v1133 = vadd.f32 %v940, %v1132
  %v1134 = vpop.f32.mrb[0].mxu0
  %1135 = vmatprep.mubr.bf16.mxu0 %v485
  %1136 = vmatmul.mubr.bf16.gmra.mrb[0].mxu0 %v484
  %v1137 = vpop.f32.mrb[0].mxu0
  %v1138 = vadd.f32 %v945, %v1137
  %v1139 = vpop.f32.mrb[0].mxu0
  %v1140 = vpop.f32.mrb[0].mxu0
  %v1141 = vadd.f32 %v948, %v1140
  %v1142 = vpop.f32.mrb[0].mxu0
  %1143 = vdwg.mxu0
  %v1144 = vmax.f32 %v986, 0.0
  %v1145 = vmax.f32 %v989, 0.0
  %v1146 = vmax.f32 %v994, 0.0
  %v1147 = vmax.f32 %v997, 0.0
  %v1148 = vmax.f32 %v1002, 0.0
  %v1149 = vmax.f32 %v1005, 0.0
  %v1150 = vmax.f32 %v1010, 0.0
  %v1151 = vmax.f32 %v1013, 0.0
  %v1152 = vmax.f32 %v1018, 0.0
  %v1153 = vmax.f32 %v1021, 0.0
  %v1154 = vmax.f32 %v1026, 0.0
  %v1155 = vmax.f32 %v1029, 0.0
  %v1156 = vmax.f32 %v1034, 0.0
  %v1157 = vmax.f32 %v1037, 0.0
  %v1158 = vmax.f32 %v1042, 0.0
  %v1159 = vmax.f32 %v1045, 0.0
  %v1160 = vmax.f32 %v1050, 0.0
  %v1161 = vmax.f32 %v1053, 0.0
  %v1162 = vmax.f32 %v1058, 0.0
  %v1163 = vmax.f32 %v1061, 0.0
  %v1164 = vmax.f32 %v1066, 0.0
  %v1165 = vmax.f32 %v1069, 0.0
  %v1166 = vmax.f32 %v1074, 0.0
  %v1167 = vmax.f32 %v1077, 0.0
  %v1168 = vmax.f32 %v1082, 0.0
  %v1169 = vmax.f32 %v1085, 0.0
  %v1170 = vmax.f32 %v1090, 0.0
  %v1171 = vmax.f32 %v1093, 0.0
  %v1172 = vmax.f32 %v1098, 0.0
  %v1173 = vmax.f32 %v1101, 0.0
  %v1174 = vmax.f32 %v1106, 0.0
  %v1175 = vmax.f32 %v1109, 0.0
  %v1176 = vmax.f32 %v1114, 0.0
  %v1177 = vmax.f32 %v1117, 0.0
  %v1178 = vmax.f32 %v1122, 0.0
  %v1179 = vmax.f32 %v1125, 0.0
  %v1180 = vmax.f32 %v1130, 0.0
  %v1181 = vmax.f32 %v1133, 0.0
  %v1182 = vmax.f32 %v1138, 0.0
  %v1183 = vmax.f32 %v1141, 0.0
  %v1184 = vpack.c.bf16 %v1145, %v1144
  %v1185 = vpack.c.bf16 %v1147, %v1146
  %v1186 = vpack.c.bf16 %v1149, %v1148
  %v1187 = vpack.c.bf16 %v1151, %v1150
  %v1188 = vpack.c.bf16 %v1153, %v1152
  %v1189 = vpack.c.bf16 %v1155, %v1154
  %v1190 = vpack.c.bf16 %v1157, %v1156
  %v1191 = vpack.c.bf16 %v1159, %v1158
  %v1192 = vpack.c.bf16 %v1161, %v1160
  %v1193 = vpack.c.bf16 %v1163, %v1162
  %v1194 = vpack.c.bf16 %v1165, %v1164
  %v1195 = vpack.c.bf16 %v1167, %v1166
  %v1196 = vpack.c.bf16 %v1169, %v1168
  %v1197 = vpack.c.bf16 %v1171, %v1170
  %v1198 = vpack.c.bf16 %v1173, %v1172
  %v1199 = vpack.c.bf16 %v1175, %v1174
  %v1200 = vpack.c.bf16 %v1177, %v1176
  %v1201 = vpack.c.bf16 %v1179, %v1178
  %v1202 = vpack.c.bf16 %v1181, %v1180
  %v1203 = vpack.c.bf16 %v1183, %v1182
  %v1224 = vunpack.c.l.b16 %v1184
  %v1225 = vunpack.c.h.b16 %v1184
  %v1226 = vunpack.c.l.b16 %v1185
  %v1227 = vunpack.c.h.b16 %v1185
  %v1228 = vunpack.c.l.b16 %v1186
  %v1229 = vunpack.c.h.b16 %v1186
  %v1230 = vunpack.c.l.b16 %v1187
  %v1231 = vunpack.c.h.b16 %v1187
  %v1232 = vunpack.c.l.b16 %v1188
  %v1233 = vunpack.c.h.b16 %v1188
  %v1234 = vunpack.c.l.b16 %v1189
  %v1235 = vunpack.c.h.b16 %v1189
  %v1236 = vunpack.c.l.b16 %v1190
  %v1237 = vunpack.c.h.b16 %v1190
  %v1238 = vunpack.c.l.b16 %v1191
  %v1239 = vunpack.c.h.b16 %v1191
  %v1240 = vunpack.c.l.b16 %v1192
  %v1241 = vunpack.c.h.b16 %v1192
  %v1242 = vunpack.c.l.b16 %v1193
  %v1243 = vunpack.c.h.b16 %v1193
  %v1244 = vunpack.c.l.b16 %v1194
  %v1245 = vunpack.c.h.b16 %v1194
  %v1246 = vunpack.c.l.b16 %v1195
  %v1247 = vunpack.c.h.b16 %v1195
  %v1248 = vunpack.c.l.b16 %v1196
  %v1249 = vunpack.c.h.b16 %v1196
  %v1250 = vunpack.c.l.b16 %v1197
  %v1251 = vunpack.c.h.b16 %v1197
  %v1252 = vunpack.c.l.b16 %v1198
  %v1253 = vunpack.c.h.b16 %v1198
  %v1254 = vunpack.c.l.b16 %v1199
  %v1255 = vunpack.c.h.b16 %v1199
  %v1256 = vunpack.c.l.b16 %v1200
  %v1257 = vunpack.c.h.b16 %v1200
  %v1258 = vunpack.c.l.b16 %v1201
  %v1259 = vunpack.c.h.b16 %v1201
  %v1260 = vunpack.c.l.b16 %v1202
  %v1261 = vunpack.c.h.b16 %v1202
  %v1262 = vunpack.c.l.b16 %v1203
  %v1263 = vunpack.c.h.b16 %v1203
  %v1264 = vpack.c.b16 %v1224, %v1224
  %v1265 = vpack.c.b16 %v1225, %v1225
  %v1266 = vpack.c.b16 %v1226, %v1226
  %v1267 = vpack.c.b16 %v1227, %v1227
  %v1268 = vpack.c.b16 %v1228, %v1228
  %v1269 = vpack.c.b16 %v1229, %v1229
  %v1270 = vpack.c.b16 %v1230, %v1230
  %v1271 = vpack.c.b16 %v1231, %v1231
  %v1272 = vpack.c.b16 %v1232, %v1232
  %v1273 = vpack.c.b16 %v1233, %v1233
  %v1274 = vpack.c.b16 %v1234, %v1234
  %v1275 = vpack.c.b16 %v1235, %v1235
  %v1276 = vpack.c.b16 %v1236, %v1236
  %v1277 = vpack.c.b16 %v1237, %v1237
  %v1278 = vpack.c.b16 %v1238, %v1238
  %v1279 = vpack.c.b16 %v1239, %v1239
  %v1280 = vpack.c.b16 %v1240, %v1240
  %v1281 = vpack.c.b16 %v1241, %v1241
  %v1282 = vpack.c.b16 %v1242, %v1242
  %v1283 = vpack.c.b16 %v1243, %v1243
  %v1284 = vpack.c.b16 %v1244, %v1244
  %v1285 = vpack.c.b16 %v1245, %v1245
  %v1286 = vpack.c.b16 %v1246, %v1246
  %v1287 = vpack.c.b16 %v1247, %v1247
  %v1288 = vpack.c.b16 %v1248, %v1248
  %v1289 = vpack.c.b16 %v1249, %v1249
  %v1290 = vpack.c.b16 %v1250, %v1250
  %v1291 = vpack.c.b16 %v1251, %v1251
  %v1292 = vpack.c.b16 %v1252, %v1252
  %v1293 = vpack.c.b16 %v1253, %v1253
  %v1294 = vpack.c.b16 %v1254, %v1254
  %v1295 = vpack.c.b16 %v1255, %v1255
  %v1296 = vpack.c.b16 %v1256, %v1256
  %v1297 = vpack.c.b16 %v1257, %v1257
  %v1298 = vpack.c.b16 %v1258, %v1258
  %v1299 = vpack.c.b16 %v1259, %v1259
  %v1300 = vpack.c.b16 %v1260, %v1260
  %v1301 = vpack.c.b16 %v1261, %v1261
  %v1302 = vpack.c.b16 %v1262, %v1262
  %v1303 = vpack.c.b16 %v1263, %v1263
  %vm1344 = vcmask 519168
  %1345 = vst.msk [vmem:[%s3] sm:$0xf] %vm1344, %v1264
  %1346 = vst.msk [vmem:[%s3 + $0x4] sm:$0xf] %vm1344, %v1265
  %1347 = vst.msk [vmem:[%s3 + $0x8] sm:$0xf] %vm1344, %v1266
  %1348 = vst.msk [vmem:[%s3 + $0xc] sm:$0xf] %vm1344, %v1267
  %1349 = vst.msk [vmem:[%s3 + $0x10] sm:$0xf] %vm1344, %v1268
  %1350 = vst.msk [vmem:[%s3 + $0x14] sm:$0xf] %vm1344, %v1269
  %1351 = vst.msk [vmem:[%s3 + $0x18] sm:$0xf] %vm1344, %v1270
  %1352 = vst.msk [vmem:[%s3 + $0x1c] sm:$0xf] %vm1344, %v1271
  %1353 = vst.msk [vmem:[%s3 + $0x20] sm:$0xf] %vm1344, %v1272
  %1354 = vst.msk [vmem:[%s3 + $0x24] sm:$0xf] %vm1344, %v1273
  %1355 = vst.msk [vmem:[%s3 + $0x28] sm:$0xf] %vm1344, %v1274
  %1356 = vst.msk [vmem:[%s3 + $0x2c] sm:$0xf] %vm1344, %v1275
  %1357 = vst.msk [vmem:[%s3 + $0x30] sm:$0xf] %vm1344, %v1276
  %1358 = vst.msk [vmem:[%s3 + $0x34] sm:$0xf] %vm1344, %v1277
  %1359 = vst.msk [vmem:[%s3 + $0x38] sm:$0xf] %vm1344, %v1278
  %1360 = vst.msk [vmem:[%s3 + $0x3c] sm:$0xf] %vm1344, %v1279
  %1361 = vst.msk [vmem:[%s3 + $0x40] sm:$0xf] %vm1344, %v1280
  %1362 = vst.msk [vmem:[%s3 + $0x44] sm:$0xf] %vm1344, %v1281
  %1363 = vst.msk [vmem:[%s3 + $0x48] sm:$0xf] %vm1344, %v1282
  %1364 = vst.msk [vmem:[%s3 + $0x4c] sm:$0xf] %vm1344, %v1283
  %1365 = vst.msk [vmem:[%s3 + $0x50] sm:$0xf] %vm1344, %v1284
  %1366 = vst.msk [vmem:[%s3 + $0x54] sm:$0xf] %vm1344, %v1285
  %1367 = vst.msk [vmem:[%s3 + $0x58] sm:$0xf] %vm1344, %v1286
  %1368 = vst.msk [vmem:[%s3 + $0x5c] sm:$0xf] %vm1344, %v1287
  %1369 = vst.msk [vmem:[%s3 + $0x60] sm:$0xf] %vm1344, %v1288
  %1370 = vst.msk [vmem:[%s3 + $0x64] sm:$0xf] %vm1344, %v1289
  %1371 = vst.msk [vmem:[%s3 + $0x68] sm:$0xf] %vm1344, %v1290
  %1372 = vst.msk [vmem:[%s3 + $0x6c] sm:$0xf] %vm1344, %v1291
  %1373 = vst.msk [vmem:[%s3 + $0x70] sm:$0xf] %vm1344, %v1292
  %1374 = vst.msk [vmem:[%s3 + $0x74] sm:$0xf] %vm1344, %v1293
  %1375 = vst.msk [vmem:[%s3 + $0x78] sm:$0xf] %vm1344, %v1294
  %1376 = vst.msk [vmem:[%s3 + $0x7c] sm:$0xf] %vm1344, %v1295
  %1377 = vst.msk [vmem:[%s3 + $0x80] sm:$0xf] %vm1344, %v1296
  %1378 = vst.msk [vmem:[%s3 + $0x84] sm:$0xf] %vm1344, %v1297
  %1379 = vst.msk [vmem:[%s3 + $0x88] sm:$0xf] %vm1344, %v1298
  %1380 = vst.msk [vmem:[%s3 + $0x8c] sm:$0xf] %vm1344, %v1299
  %1381 = vst.msk [vmem:[%s3 + $0x90] sm:$0xf] %vm1344, %v1300
  %1382 = vst.msk [vmem:[%s3 + $0x94] sm:$0xf] %vm1344, %v1301
  %1383 = vst.msk [vmem:[%s3 + $0x98] sm:$0xf] %vm1344, %v1302
  %1384 = vst.msk [vmem:[%s3 + $0x9c] sm:$0xf] %vm1344, %v1303
  // Predicated region
  $region14: #{encode_mu.6} parent=0 // pred_check
    _
  $region15: #{encode_mu.6} parent=0 // pred_check_branch
    %1386 = sbr.rel (0) target = $region17
  $region16: #{encode_mu.6} parent=0 // pred_region
    _
  $region17: #{encode_mu.6} parent=0 // pred_fallthru
    _
  // Predicated region
  $region18: #{encode_mu.6} parent=0 // pred_check
    _
  $region19: #{encode_mu.6} parent=0 // pred_check_branch
    %1388 = sbr.rel (0) target = $region21
  $region20: #{encode_mu.6} parent=0 // pred_region
    _
  $region21: #{encode_mu.6} parent=0 // pred_fallthru
    _

// kernel: encode_mu.7
$region0: #{encode_mu.7}
  #allocation0 [shape = 'u32[]', space=smem, size = 0x4, offset = 0x4, fixed_abs, tag = 'smem constant byte address 0x4 - core index']
  #allocation1 [shape = 'u32[144,128]{1,0:T(1,128)}', space=vmem, size = 0x12000, scoped, tag = 'internal scratch']
  #allocation2 [shape = 'f32[80,128]{1,0:T(8,128)}', space=vmem, size = 0xa000, scoped, tag = 'scratch operand']
  %s0 = inlined_call_operand.vmem [shape: bf16[80,1024], index: 0, kind: input, shape index: {}]
  %s1 = inlined_call_operand.vmem [shape: bf16[1024,128], index: 1, kind: input, shape index: {}]
  %s2 = inlined_call_operand.vmem [shape: f32[1,128], index: 2, kind: input, shape index: {}]
  %s3 = inlined_call_operand.vmem [shape: f32[16,128,32], index: 3, kind: input, shape index: {}]
  %s4 = inlined_call_operand.vmem [shape: f32[1,32], index: 4, kind: input, shape index: {}]
  %s5 = inlined_call_operand.hbm [shape: f32[5,32], index: 5, kind: output, shape index: {}]
  %s6 = sld [smem:[#allocation0]]
  $region30: #{encode_mu.7} parent=0
    _
  %s8 = ssub.s32 1, %s6
  %s9 = scalar_select 0, %s8, %s6
  $region1: #{encode_mu.7} parent=0
    #allocation3 [shape = 'u8[4096]{0}', space=vmem, size = 0x1000, scoped, tag = 'output window, operand 0, single buffered']
    #allocation4 [shape = 's32[1]{0}', space=sflag, size = 0x4, scoped, tag = 'scoped memory for encode_mu.7']
    %10 = vsyncpa [#allocation4], 0
    // Predicated region
    $region2: #{encode_mu.7} parent=1 // pred_check
      _
    $region3: #{encode_mu.7} parent=1 // pred_check_branch
      %12 = sbr.rel (0) target = $region5
    $region4: #{encode_mu.7} parent=1 // pred_region
      _
    $region5: #{encode_mu.7} parent=1 // pred_fallthru
      _
    // Predicated region
    $region6: #{encode_mu.7} parent=1 // pred_check
      _
    $region7: #{encode_mu.7} parent=1 // pred_check_branch
      %14 = sbr.rel (0) target = $region9
    $region8: #{encode_mu.7} parent=1 // pred_region
      _
    $region9: #{encode_mu.7} parent=1 // pred_fallthru
      _
    // Predicated region
    $region10: #{encode_mu.7} parent=1 // pred_check
      _
    $region11: #{encode_mu.7} parent=1 // pred_check_branch
      %16 = sbr.rel (0) target = $region13
    $region12: #{encode_mu.7} parent=1 // pred_region
      _
    $region13: #{encode_mu.7} parent=1 // pred_fallthru
      _
    // Predicated region
    $region14: #{encode_mu.7} parent=1 // pred_check
      _
    $region15: #{encode_mu.7} parent=1 // pred_check_branch
      %18 = sbr.rel (0) target = $region17
    $region16: #{encode_mu.7} parent=1 // pred_region
      _
    $region17: #{encode_mu.7} parent=1 // pred_fallthru
      _
    // Predicated region
    $region18: #{encode_mu.7} parent=1 // pred_check
      _
    $region19: #{encode_mu.7} parent=1 // pred_check_branch
      %20 = sbr.rel (0) target = $region21
    $region20: #{encode_mu.7} parent=1 // pred_region
      _
    $region21: #{encode_mu.7} parent=1 // pred_fallthru
      _
    %v22 = vld [vmem:[%s0] sm:$0xff]
    %v23 = vld [vmem:[%s0 + $0x8] sm:$0xff]
    %v24 = vld [vmem:[%s0 + $0x10] sm:$0xff]
    %v25 = vld [vmem:[%s0 + $0x18] sm:$0xff]
    %v26 = vld [vmem:[%s0 + $0x20] sm:$0xff]
    %v27 = vld [vmem:[%s0 + $0x28] sm:$0xff]
    %v28 = vld [vmem:[%s0 + $0x30] sm:$0xff]
    %v29 = vld [vmem:[%s0 + $0x38] sm:$0xff]
    %v30 = vld [vmem:[%s0 + $0x40] sm:$0xff]
    %v31 = vld [vmem:[%s0 + $0x48] sm:$0xff]
    %v32 = vld [vmem:[%s0 + $0x50] sm:$0xff]
    %v33 = vld [vmem:[%s0 + $0x58] sm:$0xff]
    %v34 = vld [vmem:[%s0 + $0x60] sm:$0xff]
    %v35 = vld [vmem:[%s0 + $0x68] sm:$0xff]
    %v36 = vld [vmem:[%s0 + $0x70] sm:$0xff]
    %v37 = vld [vmem:[%s0 + $0x78] sm:$0xff]
    %v38 = vld [vmem:[%s0 + $0x80] sm:$0xff]
    %v39 = vld [vmem:[%s0 + $0x88] sm:$0xff]
    %v40 = vld [vmem:[%s0 + $0x90] sm:$0xff]
    %v41 = vld [vmem:[%s0 + $0x98] sm:$0xff]
    %v42 = vld [vmem:[%s0 + $0xa0] sm:$0xff]
    %v43 = vld [vmem:[%s0 + $0xa8] sm:$0xff]
    %v44 = vld [vmem:[%s0 + $0xb0] sm:$0xff]
    %v45 = vld [vmem:[%s0 + $0xb8] sm:$0xff]
    %v46 = vld [vmem:[%s0 + $0xc0] sm:$0xff]
    %v47 = vld [vmem:[%s0 + $0xc8] sm:$0xff]
    %v48 = vld [vmem:[%s0 + $0xd0] sm:$0xff]
    %v49 = vld [vmem:[%s0 + $0xd8] sm:$0xff]
    %v50 = vld [vmem:[%s0 + $0xe0] sm:$0xff]
    %v51 = vld [vmem:[%s0 + $0xe8] sm:$0xff]
    %v52 = vld [vmem:[%s0 + $0xf0] sm:$0xff]
    %v53 = vld [vmem:[%s0 + $0xf8] sm:$0xff]
    %v54 = vld [vmem:[%s0 + $0x100] sm:$0xff]
    %v55 = vld [vmem:[%s0 + $0x108] sm:$0xff]
    %v56 = vld [vmem:[%s0 + $0x110] sm:$0xff]
    %v57 = vld [vmem:[%s0 + $0x118] sm:$0xff]
    %v58 = vld [vmem:[%s0 + $0x120] sm:$0xff]
    %v59 = vld [vmem:[%s0 + $0x128] sm:$0xff]
    %v60 = vld [vmem:[%s0 + $0x130] sm:$0xff]
    %v61 = vld [vmem:[%s0 + $0x138] sm:$0xff]
    %v62 = vld [vmem:[%s1] sm:$0xf]
    %v63 = vld [vmem:[%s1 + $0x4] sm:$0xf]
    %v64 = vld [vmem:[%s1 + $0x8] sm:$0xf]
    %v65 = vld [vmem:[%s1 + $0xc] sm:$0xf]
    %v66 = vld [vmem:[%s1 + $0x10] sm:$0xf]
    %v67 = vld [vmem:[%s1 + $0x14] sm:$0xf]
    %v68 = vld [vmem:[%s1 + $0x18] sm:$0xf]
    %v69 = vld [vmem:[%s1 + $0x1c] sm:$0xf]
    %v70 = vld [vmem:[%s1 + $0x20] sm:$0xf]
    %v71 = vld [vmem:[%s1 + $0x24] sm:$0xf]
    %v72 = vld [vmem:[%s1 + $0x28] sm:$0xf]
    %v73 = vld [vmem:[%s1 + $0x2c] sm:$0xf]
    %v74 = vld [vmem:[%s1 + $0x30] sm:$0xf]
    %v75 = vld [vmem:[%s1 + $0x34] sm:$0xf]
    %v76 = vld [vmem:[%s1 + $0x38] sm:$0xf]
    %v77 = vld [vmem:[%s1 + $0x3c] sm:$0xf]
    %v78 = vld [vmem:[%s1 + $0x40] sm:$0xf]
    %v79 = vld [vmem:[%s1 + $0x44] sm:$0xf]
    %v80 = vld [vmem:[%s1 + $0x48] sm:$0xf]
    %v81 = vld [vmem:[%s1 + $0x4c] sm:$0xf]
    %v82 = vld [vmem:[%s1 + $0x50] sm:$0xf]
    %v83 = vld [vmem:[%s1 + $0x54] sm:$0xf]
    %v84 = vld [vmem:[%s1 + $0x58] sm:$0xf]
    %v85 = vld [vmem:[%s1 + $0x5c] sm:$0xf]
    %v86 = vld [vmem:[%s1 + $0x60] sm:$0xf]
    %v87 = vld [vmem:[%s1 + $0x64] sm:$0xf]
    %v88 = vld [vmem:[%s1 + $0x68] sm:$0xf]
    %v89 = vld [vmem:[%s1 + $0x6c] sm:$0xf]
    %v90 = vld [vmem:[%s1 + $0x70] sm:$0xf]
    %v91 = vld [vmem:[%s1 + $0x74] sm:$0xf]
    %v92 = vld [vmem:[%s1 + $0x78] sm:$0xf]
    %v93 = vld [vmem:[%s1 + $0x7c] sm:$0xf]
    %v94 = vld [vmem:[%s1 + $0x80] sm:$0xf]
    %v95 = vld [vmem:[%s1 + $0x84] sm:$0xf]
    %v96 = vld [vmem:[%s1 + $0x88] sm:$0xf]
    %v97 = vld [vmem:[%s1 + $0x8c] sm:$0xf]
    %v98 = vld [vmem:[%s1 + $0x90] sm:$0xf]
    %v99 = vld [vmem:[%s1 + $0x94] sm:$0xf]
    %v100 = vld [vmem:[%s1 + $0x98] sm:$0xf]
    %v101 = vld [vmem:[%s1 + $0x9c] sm:$0xf]
    %v102 = vld [vmem:[%s1 + $0xa0] sm:$0xf]
    %v103 = vld [vmem:[%s1 + $0xa4] sm:$0xf]
    %v104 = vld [vmem:[%s1 + $0xa8] sm:$0xf]
    %v105 = vld [vmem:[%s1 + $0xac] sm:$0xf]
    %v106 = vld [vmem:[%s1 + $0xb0] sm:$0xf]
    %v107 = vld [vmem:[%s1 + $0xb4] sm:$0xf]
    %v108 = vld [vmem:[%s1 + $0xb8] sm:$0xf]
    %v109 = vld [vmem:[%s1 + $0xbc] sm:$0xf]
    %v110 = vld [vmem:[%s1 + $0xc0] sm:$0xf]
    %v111 = vld [vmem:[%s1 + $0xc4] sm:$0xf]
    %v112 = vld [vmem:[%s1 + $0xc8] sm:$0xf]
    %v113 = vld [vmem:[%s1 + $0xcc] sm:$0xf]
    %v114 = vld [vmem:[%s1 + $0xd0] sm:$0xf]
    %v115 = vld [vmem:[%s1 + $0xd4] sm:$0xf]
    %v116 = vld [vmem:[%s1 + $0xd8] sm:$0xf]
    %v117 = vld [vmem:[%s1 + $0xdc] sm:$0xf]
    %v118 = vld [vmem:[%s1 + $0xe0] sm:$0xf]
    %v119 = vld [vmem:[%s1 + $0xe4] sm:$0xf]
    %v120 = vld [vmem:[%s1 + $0xe8] sm:$0xf]
    %v121 = vld [vmem:[%s1 + $0xec] sm:$0xf]
    %v122 = vld [vmem:[%s1 + $0xf0] sm:$0xf]
    %v123 = vld [vmem:[%s1 + $0xf4] sm:$0xf]
    %v124 = vld [vmem:[%s1 + $0xf8] sm:$0xf]
    %v125 = vld [vmem:[%s1 + $0xfc] sm:$0xf]
    %v126 = vld [vmem:[%s1 + $0x100] sm:$0xf]
    %v127 = vld [vmem:[%s1 + $0x104] sm:$0xf]
    %v128 = vld [vmem:[%s1 + $0x108] sm:$0xf]
    %v129 = vld [vmem:[%s1 + $0x10c] sm:$0xf]
    %v130 = vld [vmem:[%s1 + $0x110] sm:$0xf]
    %v131 = vld [vmem:[%s1 + $0x114] sm:$0xf]
    %v132 = vld [vmem:[%s1 + $0x118] sm:$0xf]
    %v133 = vld [vmem:[%s1 + $0x11c] sm:$0xf]
    %v134 = vld [vmem:[%s1 + $0x120] sm:$0xf]
    %v135 = vld [vmem:[%s1 + $0x124] sm:$0xf]
    %v136 = vld [vmem:[%s1 + $0x128] sm:$0xf]
    %v137 = vld [vmem:[%s1 + $0x12c] sm:$0xf]
    %v138 = vld [vmem:[%s1 + $0x130] sm:$0xf]
    %v139 = vld [vmem:[%s1 + $0x134] sm:$0xf]
    %v140 = vld [vmem:[%s1 + $0x138] sm:$0xf]
    %v141 = vld [vmem:[%s1 + $0x13c] sm:$0xf]
    %v142 = vld [vmem:[%s1 + $0x140] sm:$0xf]
    %v143 = vld [vmem:[%s1 + $0x144] sm:$0xf]
    %v144 = vld [vmem:[%s1 + $0x148] sm:$0xf]
    %v145 = vld [vmem:[%s1 + $0x14c] sm:$0xf]
    %v146 = vld [vmem:[%s1 + $0x150] sm:$0xf]
    %v147 = vld [vmem:[%s1 + $0x154] sm:$0xf]
    %v148 = vld [vmem:[%s1 + $0x158] sm:$0xf]
    %v149 = vld [vmem:[%s1 + $0x15c] sm:$0xf]
    %v150 = vld [vmem:[%s1 + $0x160] sm:$0xf]
    %v151 = vld [vmem:[%s1 + $0x164] sm:$0xf]
    %v152 = vld [vmem:[%s1 + $0x168] sm:$0xf]
    %v153 = vld [vmem:[%s1 + $0x16c] sm:$0xf]
    %v154 = vld [vmem:[%s1 + $0x170] sm:$0xf]
    %v155 = vld [vmem:[%s1 + $0x174] sm:$0xf]
    %v156 = vld [vmem:[%s1 + $0x178] sm:$0xf]
    %v157 = vld [vmem:[%s1 + $0x17c] sm:$0xf]
    %v158 = vld [vmem:[%s1 + $0x180] sm:$0xf]
    %v159 = vld [vmem:[%s1 + $0x184] sm:$0xf]
    %v160 = vld [vmem:[%s1 + $0x188] sm:$0xf]
    %v161 = vld [vmem:[%s1 + $0x18c] sm:$0xf]
    %v162 = vld [vmem:[%s1 + $0x190] sm:$0xf]
    %v163 = vld [vmem:[%s1 + $0x194] sm:$0xf]
    %v164 = vld [vmem:[%s1 + $0x198] sm:$0xf]
    %v165 = vld [vmem:[%s1 + $0x19c] sm:$0xf]
    %v166 = vld [vmem:[%s1 + $0x1a0] sm:$0xf]
    %v167 = vld [vmem:[%s1 + $0x1a4] sm:$0xf]
    %v168 = vld [vmem:[%s1 + $0x1a8] sm:$0xf]
    %v169 = vld [vmem:[%s1 + $0x1ac] sm:$0xf]
    %v170 = vld [vmem:[%s1 + $0x1b0] sm:$0xf]
    %v171 = vld [vmem:[%s1 + $0x1b4] sm:$0xf]
    %v172 = vld [vmem:[%s1 + $0x1b8] sm:$0xf]
    %v173 = vld [vmem:[%s1 + $0x1bc] sm:$0xf]
    %v174 = vld [vmem:[%s1 + $0x1c0] sm:$0xf]
    %v175 = vld [vmem:[%s1 + $0x1c4] sm:$0xf]
    %v176 = vld [vmem:[%s1 + $0x1c8] sm:$0xf]
    %v177 = vld [vmem:[%s1 + $0x1cc] sm:$0xf]
    %v178 = vld [vmem:[%s1 + $0x1d0] sm:$0xf]
    %v179 = vld [vmem:[%s1 + $0x1d4] sm:$0xf]
    %v180 = vld [vmem:[%s1 + $0x1d8] sm:$0xf]
    %v181 = vld [vmem:[%s1 + $0x1dc] sm:$0xf]
    %v182 = vld [vmem:[%s1 + $0x1e0] sm:$0xf]
    %v183 = vld [vmem:[%s1 + $0x1e4] sm:$0xf]
    %v184 = vld [vmem:[%s1 + $0x1e8] sm:$0xf]
    %v185 = vld [vmem:[%s1 + $0x1ec] sm:$0xf]
    %v186 = vld [vmem:[%s1 + $0x1f0] sm:$0xf]
    %v187 = vld [vmem:[%s1 + $0x1f4] sm:$0xf]
    %v188 = vld [vmem:[%s1 + $0x1f8] sm:$0xf]
    %v189 = vld [vmem:[%s1 + $0x1fc] sm:$0xf]
    %v190 = vld [vmem:[%s2] sm:$0x1]
    %v192 = vlaneseq
    %v193 = vshrl.u32 %v192, 7
    %v194 = vsub.s32 0, %v193
    %v195 = vrot.slane %v190, %v194
    %v237 = vunpack.c.l.b16 %v22
    %v238 = vunpack.c.h.b16 %v22
    %v239 = vunpack.c.l.b16 %v23
    %v240 = vunpack.c.h.b16 %v23
    %v241 = vunpack.c.l.b16 %v24
    %v242 = vunpack.c.h.b16 %v24
    %v243 = vunpack.c.l.b16 %v25
    %v244 = vunpack.c.h.b16 %v25
    %v245 = vunpack.c.l.b16 %v26
    %v246 = vunpack.c.h.b16 %v26
    %v247 = vunpack.c.l.b16 %v27
    %v248 = vunpack.c.h.b16 %v27
    %v249 = vunpack.c.l.b16 %v28
    %v250 = vunpack.c.h.b16 %v28
    %v251 = vunpack.c.l.b16 %v29
    %v252 = vunpack.c.h.b16 %v29
    %v253 = vunpack.c.l.b16 %v30
    %v254 = vunpack.c.h.b16 %v30
    %v255 = vunpack.c.l.b16 %v31
    %v256 = vunpack.c.h.b16 %v31
    %v257 = vunpack.c.l.b16 %v32
    %v258 = vunpack.c.h.b16 %v32
    %v259 = vunpack.c.l.b16 %v33
    %v260 = vunpack.c.h.b16 %v33
    %v261 = vunpack.c.l.b16 %v34
    %v262 = vunpack.c.h.b16 %v34
    %v263 = vunpack.c.l.b16 %v35
    %v264 = vunpack.c.h.b16 %v35
    %v265 = vunpack.c.l.b16 %v36
    %v266 = vunpack.c.h.b16 %v36
    %v267 = vunpack.c.l.b16 %v37
    %v268 = vunpack.c.h.b16 %v37
    %v269 = vunpack.c.l.b16 %v38
    %v270 = vunpack.c.h.b16 %v38
    %v271 = vunpack.c.l.b16 %v39
    %v272 = vunpack.c.h.b16 %v39
    %v273 = vunpack.c.l.b16 %v40
    %v274 = vunpack.c.h.b16 %v40
    %v275 = vunpack.c.l.b16 %v41
    %v276 = vunpack.c.h.b16 %v41
    %v277 = vunpack.c.l.b16 %v42
    %v278 = vunpack.c.h.b16 %v42
    %v279 = vunpack.c.l.b16 %v43
    %v280 = vunpack.c.h.b16 %v43
    %v281 = vunpack.c.l.b16 %v44
    %v282 = vunpack.c.h.b16 %v44
    %v283 = vunpack.c.l.b16 %v45
    %v284 = vunpack.c.h.b16 %v45
    %v285 = vunpack.c.l.b16 %v46
    %v286 = vunpack.c.h.b16 %v46
    %v287 = vunpack.c.l.b16 %v47
    %v288 = vunpack.c.h.b16 %v47
    %v289 = vunpack.c.l.b16 %v48
    %v290 = vunpack.c.h.b16 %v48
    %v291 = vunpack.c.l.b16 %v49
    %v292 = vunpack.c.h.b16 %v49
    %v293 = vunpack.c.l.b16 %v50
    %v294 = vunpack.c.h.b16 %v50
    %v295 = vunpack.c.l.b16 %v51
    %v296 = vunpack.c.h.b16 %v51
    %v297 = vunpack.c.l.b16 %v52
    %v298 = vunpack.c.h.b16 %v52
    %v299 = vunpack.c.l.b16 %v53
    %v300 = vunpack.c.h.b16 %v53
    %v301 = vunpack.c.l.b16 %v54
    %v302 = vunpack.c.h.b16 %v54
    %v303 = vunpack.c.l.b16 %v55
    %v304 = vunpack.c.h.b16 %v55
    %v305 = vunpack.c.l.b16 %v56
    %v306 = vunpack.c.h.b16 %v56
    %v307 = vunpack.c.l.b16 %v57
    %v308 = vunpack.c.h.b16 %v57
    %v309 = vunpack.c.l.b16 %v58
    %v310 = vunpack.c.h.b16 %v58
    %v311 = vunpack.c.l.b16 %v59
    %v312 = vunpack.c.h.b16 %v59
    %v313 = vunpack.c.l.b16 %v60
    %v314 = vunpack.c.h.b16 %v60
    %v315 = vunpack.c.l.b16 %v61
    %v316 = vunpack.c.h.b16 %v61
    %v317 = vpack.c.b16 %v245, %v237
    %v318 = vpack.c.b16 %v246, %v238
    %v319 = vpack.c.b16 %v247, %v239
    %v320 = vpack.c.b16 %v248, %v240
    %v321 = vpack.c.b16 %v249, %v241
    %v322 = vpack.c.b16 %v250, %v242
    %v323 = vpack.c.b16 %v251, %v243
    %v324 = vpack.c.b16 %v252, %v244
    %v325 = vpack.c.b16 %v261, %v253
    %v326 = vpack.c.b16 %v262, %v254
    %v327 = vpack.c.b16 %v263, %v255
    %v328 = vpack.c.b16 %v264, %v256
    %v329 = vpack.c.b16 %v265, %v257
    %v330 = vpack.c.b16 %v266, %v258
    %v331 = vpack.c.b16 %v267, %v259
    %v332 = vpack.c.b16 %v268, %v260
    %v333 = vpack.c.b16 %v277, %v269
    %v334 = vpack.c.b16 %v278, %v270
    %v335 = vpack.c.b16 %v279, %v271
    %v336 = vpack.c.b16 %v280, %v272
    %v337 = vpack.c.b16 %v281, %v273
    %v338 = vpack.c.b16 %v282, %v274
    %v339 = vpack.c.b16 %v283, %v275
    %v340 = vpack.c.b16 %v284, %v276
    %v341 = vpack.c.b16 %v293, %v285
    %v342 = vpack.c.b16 %v294, %v286
    %v343 = vpack.c.b16 %v295, %v287
    %v344 = vpack.c.b16 %v296, %v288
    %v345 = vpack.c.b16 %v297, %v289
    %v346 = vpack.c.b16 %v298, %v290
    %v347 = vpack.c.b16 %v299, %v291
    %v348 = vpack.c.b16 %v300, %v292
    %v349 = vpack.c.b16 %v309, %v301
    %v350 = vpack.c.b16 %v310, %v302
    %v351 = vpack.c.b16 %v311, %v303
    %v352 = vpack.c.b16 %v312, %v304
    %v353 = vpack.c.b16 %v313, %v305
    %v354 = vpack.c.b16 %v314, %v306
    %v355 = vpack.c.b16 %v315, %v307
    %v356 = vpack.c.b16 %v316, %v308
    %v525 = vunpack.c.l.b16 %v62
    %v526 = vunpack.c.l.b16 %v63
    %v527 = vunpack.c.l.b16 %v64
    %v528 = vunpack.c.l.b16 %v65
    %v529 = vunpack.c.l.b16 %v66
    %v530 = vunpack.c.l.b16 %v67
    %v531 = vunpack.c.l.b16 %v68
    %v532 = vunpack.c.l.b16 %v69
    %v533 = vunpack.c.l.b16 %v70
    %v534 = vunpack.c.l.b16 %v71
    %v535 = vunpack.c.l.b16 %v72
    %v536 = vunpack.c.l.b16 %v73
    %v537 = vunpack.c.l.b16 %v74
    %v538 = vunpack.c.l.b16 %v75
    %v539 = vunpack.c.l.b16 %v76
    %v540 = vunpack.c.l.b16 %v77
    %v541 = vunpack.c.l.b16 %v78
    %v542 = vunpack.c.l.b16 %v79
    %v543 = vunpack.c.l.b16 %v80
    %v544 = vunpack.c.l.b16 %v81
    %v545 = vunpack.c.l.b16 %v82
    %v546 = vunpack.c.l.b16 %v83
    %v547 = vunpack.c.l.b16 %v84
    %v548 = vunpack.c.l.b16 %v85
    %v549 = vunpack.c.l.b16 %v86
    %v550 = vunpack.c.l.b16 %v87
    %v551 = vunpack.c.l.b16 %v88
    %v552 = vunpack.c.l.b16 %v89
    %v553 = vunpack.c.l.b16 %v90
    %v554 = vunpack.c.l.b16 %v91
    %v555 = vunpack.c.l.b16 %v92
    %v556 = vunpack.c.l.b16 %v93
    %v557 = vunpack.c.l.b16 %v94
    %v558 = vunpack.c.l.b16 %v95
    %v559 = vunpack.c.l.b16 %v96
    %v560 = vunpack.c.l.b16 %v97
    %v561 = vunpack.c.l.b16 %v98
    %v562 = vunpack.c.l.b16 %v99
    %v563 = vunpack.c.l.b16 %v100
    %v564 = vunpack.c.l.b16 %v101
    %v565 = vunpack.c.l.b16 %v102
    %v566 = vunpack.c.l.b16 %v103
    %v567 = vunpack.c.l.b16 %v104
    %v568 = vunpack.c.l.b16 %v105
    %v569 = vunpack.c.l.b16 %v106
    %v570 = vunpack.c.l.b16 %v107
    %v571 = vunpack.c.l.b16 %v108
    %v572 = vunpack.c.l.b16 %v109
    %v573 = vunpack.c.l.b16 %v110
    %v574 = vunpack.c.l.b16 %v111
    %v575 = vunpack.c.l.b16 %v112
    %v576 = vunpack.c.l.b16 %v113
    %v577 = vunpack.c.l.b16 %v114
    %v578 = vunpack.c.l.b16 %v115
    %v579 = vunpack.c.l.b16 %v116
    %v580 = vunpack.c.l.b16 %v117
    %v581 = vunpack.c.l.b16 %v118
    %v582 = vunpack.c.l.b16 %v119
    %v583 = vunpack.c.l.b16 %v120
    %v584 = vunpack.c.l.b16 %v121
    %v585 = vunpack.c.l.b16 %v122
    %v586 = vunpack.c.l.b16 %v123
    %v587 = vunpack.c.l.b16 %v124
    %v588 = vunpack.c.l.b16 %v125
    %v589 = vunpack.c.l.b16 %v126
    %v590 = vunpack.c.l.b16 %v127
    %v591 = vunpack.c.l.b16 %v128
    %v592 = vunpack.c.l.b16 %v129
    %v593 = vunpack.c.l.b16 %v130
    %v594 = vunpack.c.l.b16 %v131
    %v595 = vunpack.c.l.b16 %v132
    %v596 = vunpack.c.l.b16 %v133
    %v597 = vunpack.c.l.b16 %v134
    %v598 = vunpack.c.l.b16 %v135
    %v599 = vunpack.c.l.b16 %v136
    %v600 = vunpack.c.l.b16 %v137
    %v601 = vunpack.c.l.b16 %v138
    %v602 = vunpack.c.l.b16 %v139
    %v603 = vunpack.c.l.b16 %v140
    %v604 = vunpack.c.l.b16 %v141
    %v605 = vunpack.c.l.b16 %v142
    %v606 = vunpack.c.l.b16 %v143
    %v607 = vunpack.c.l.b16 %v144
    %v608 = vunpack.c.l.b16 %v145
    %v609 = vunpack.c.l.b16 %v146
    %v610 = vunpack.c.l.b16 %v147
    %v611 = vunpack.c.l.b16 %v148
    %v612 = vunpack.c.l.b16 %v149
    %v613 = vunpack.c.l.b16 %v150
    %v614 = vunpack.c.l.b16 %v151
    %v615 = vunpack.c.l.b16 %v152
    %v616 = vunpack.c.l.b16 %v153
    %v617 = vunpack.c.l.b16 %v154
    %v618 = vunpack.c.l.b16 %v155
    %v619 = vunpack.c.l.b16 %v156
    %v620 = vunpack.c.l.b16 %v157
    %v621 = vunpack.c.l.b16 %v158
    %v622 = vunpack.c.l.b16 %v159
    %v623 = vunpack.c.l.b16 %v160
    %v624 = vunpack.c.l.b16 %v161
    %v625 = vunpack.c.l.b16 %v162
    %v626 = vunpack.c.l.b16 %v163
    %v627 = vunpack.c.l.b16 %v164
    %v628 = vunpack.c.l.b16 %v165
    %v629 = vunpack.c.l.b16 %v166
    %v630 = vunpack.c.l.b16 %v167
    %v631 = vunpack.c.l.b16 %v168
    %v632 = vunpack.c.l.b16 %v169
    %v633 = vunpack.c.l.b16 %v170
    %v634 = vunpack.c.l.b16 %v171
    %v635 = vunpack.c.l.b16 %v172
    %v636 = vunpack.c.l.b16 %v173
    %v637 = vunpack.c.l.b16 %v174
    %v638 = vunpack.c.l.b16 %v175
    %v639 = vunpack.c.l.b16 %v176
    %v640 = vunpack.c.l.b16 %v177
    %v641 = vunpack.c.l.b16 %v178
    %v642 = vunpack.c.l.b16 %v179
    %v643 = vunpack.c.l.b16 %v180
    %v644 = vunpack.c.l.b16 %v181
    %v645 = vunpack.c.l.b16 %v182
    %v646 = vunpack.c.l.b16 %v183
    %v647 = vunpack.c.l.b16 %v184
    %v648 = vunpack.c.l.b16 %v185
    %v649 = vunpack.c.l.b16 %v186
    %v650 = vunpack.c.l.b16 %v187
    %v651 = vunpack.c.l.b16 %v188
    %v652 = vunpack.c.l.b16 %v189
    %v653 = vpack.c.b16 %v526, %v525
    %v654 = vpack.c.b16 %v528, %v527
    %v655 = vpack.c.b16 %v530, %v529
    %v656 = vpack.c.b16 %v532, %v531
    %v657 = vpack.c.b16 %v534, %v533
    %v658 = vpack.c.b16 %v536, %v535
    %v659 = vpack.c.b16 %v538, %v537
    %v660 = vpack.c.b16 %v540, %v539
    %v661 = vpack.c.b16 %v542, %v541
    %v662 = vpack.c.b16 %v544, %v543
    %v663 = vpack.c.b16 %v546, %v545
    %v664 = vpack.c.b16 %v548, %v547
    %v665 = vpack.c.b16 %v550, %v549
    %v666 = vpack.c.b16 %v552, %v551
    %v667 = vpack.c.b16 %v554, %v553
    %v668 = vpack.c.b16 %v556, %v555
    %v669 = vpack.c.b16 %v558, %v557
    %v670 = vpack.c.b16 %v560, %v559
    %v671 = vpack.c.b16 %v562, %v561
    %v672 = vpack.c.b16 %v564, %v563
    %v673 = vpack.c.b16 %v566, %v565
    %v674 = vpack.c.b16 %v568, %v567
    %v675 = vpack.c.b16 %v570, %v569
    %v676 = vpack.c.b16 %v572, %v571
    %v677 = vpack.c.b16 %v574, %v573
    %v678 = vpack.c.b16 %v576, %v575
    %v679 = vpack.c.b16 %v578, %v577
    %v680 = vpack.c.b16 %v580, %v579
    %v681 = vpack.c.b16 %v582, %v581
    %v682 = vpack.c.b16 %v584, %v583
    %v683 = vpack.c.b16 %v586, %v585
    %v684 = vpack.c.b16 %v588, %v587
    %v685 = vpack.c.b16 %v590, %v589
    %v686 = vpack.c.b16 %v592, %v591
    %v687 = vpack.c.b16 %v594, %v593
    %v688 = vpack.c.b16 %v596, %v595
    %v689 = vpack.c.b16 %v598, %v597
    %v690 = vpack.c.b16 %v600, %v599
    %v691 = vpack.c.b16 %v602, %v601
    %v692 = vpack.c.b16 %v604, %v603
    %v693 = vpack.c.b16 %v606, %v605
    %v694 = vpack.c.b16 %v608, %v607
    %v695 = vpack.c.b16 %v610, %v609
    %v696 = vpack.c.b16 %v612, %v611
    %v697 = vpack.c.b16 %v614, %v613
    %v698 = vpack.c.b16 %v616, %v615
    %v699 = vpack.c.b16 %v618, %v617
    %v700 = vpack.c.b16 %v620, %v619
    %v701 = vpack.c.b16 %v622, %v621
    %v702 = vpack.c.b16 %v624, %v623
    %v703 = vpack.c.b16 %v626, %v625
    %v704 = vpack.c.b16 %v628, %v627
    %v705 = vpack.c.b16 %v630, %v629
    %v706 = vpack.c.b16 %v632, %v631
    %v707 = vpack.c.b16 %v634, %v633
    %v708 = vpack.c.b16 %v636, %v635
    %v709 = vpack.c.b16 %v638, %v637
    %v710 = vpack.c.b16 %v640, %v639
    %v711 = vpack.c.b16 %v642, %v641
    %v712 = vpack.c.b16 %v644, %v643
    %v713 = vpack.c.b16 %v646, %v645
    %v714 = vpack.c.b16 %v648, %v647
    %v715 = vpack.c.b16 %v650, %v649
    %v716 = vpack.c.b16 %v652, %v651
    %781 = vmatprep.subr.bf16.mxu0 0
    %782 = vmatpush1.bf16.msra.mxu0 %v653
    %783 = vmatprep.subr.bf16.mxu0 0
    %784 = vmatpush1.bf16.msra.mxu0 %v654
    %785 = vmatprep.subr.bf16.mxu0 0
    %786 = vmatpush1.bf16.msra.mxu0 %v655
    %787 = vmatprep.subr.bf16.mxu0 0
    %788 = vmatpush1.bf16.msra.mxu0 %v656
    %789 = vmatprep.subr.bf16.mxu0 0
    %790 = vmatpush1.bf16.msra.mxu0 %v657
    %791 = vmatprep.subr.bf16.mxu0 0
    %792 = vmatpush1.bf16.msra.mxu0 %v658
    %793 = vmatprep.subr.bf16.mxu0 0
    %794 = vmatpush1.bf16.msra.mxu0 %v659
    %795 = vmatprep.subr.bf16.mxu0 0
    %796 = vmatpush1.bf16.msra.mxu0 %v660
    %797 = vmatprep.subr.bf16.mxu0 0
    %798 = vmatpush1.bf16.msra.mxu0 %v661
    %799 = vmatprep.subr.bf16.mxu0 0
    %800 = vmatpush1.bf16.msra.mxu0 %v662
    %801 = vmatprep.subr.bf16.mxu0 0
    %802 = vmatpush1.bf16.msra.mxu0 %v663
    %803 = vmatprep.subr.bf16.mxu0 0
    %804 = vmatpush1.bf16.msra.mxu0 %v664
    %805 = vmatprep.subr.bf16.mxu0 0
    %806 = vmatpush1.bf16.msra.mxu0 %v665
    %807 = vmatprep.subr.bf16.mxu0 0
    %808 = vmatpush1.bf16.msra.mxu0 %v666
    %809 = vmatprep.subr.bf16.mxu0 0
    %810 = vmatpush1.bf16.msra.mxu0 %v667
    %811 = vmatprep.subr.bf16.mxu0 0
    %812 = vmatpush1.bf16.msra.mxu0 %v668
    %813 = vmatprep.mubr.bf16.mxu0 %v318
    %814 = vmatmul.mubr.bf16.gmra.mrb[0].mxu0 %v317
    %v815 = vpop.f32.mrb[0].mxu0
    %v816 = vadd.f32 %v195, %v815
    %v817 = vpop.f32.mrb[0].mxu0
    %v818 = vpop.f32.mrb[0].mxu0
    %v819 = vadd.f32 %v195, %v818
    %v820 = vpop.f32.mrb[0].mxu0
    %821 = vmatprep.mubr.bf16.mxu0 %v326
    %822 = vmatmul.mubr.bf16.gmra.mrb[0].mxu0 %v325
    %v823 = vpop.f32.mrb[0].mxu0
    %v824 = vadd.f32 %v195, %v823
    %v825 = vpop.f32.mrb[0].mxu0
    %v826 = vpop.f32.mrb[0].mxu0
    %v827 = vadd.f32 %v195, %v826
    %v828 = vpop.f32.mrb[0].mxu0
    %829 = vmatprep.mubr.bf16.mxu0 %v334
    %830 = vmatmul.mubr.bf16.gmra.mrb[0].mxu0 %v333
    %v831 = vpop.f32.mrb[0].mxu0
    %v832 = vadd.f32 %v195, %v831
    %v833 = vpop.f32.mrb[0].mxu0
    %v834 = vpop.f32.mrb[0].mxu0
    %v835 = vadd.f32 %v195, %v834
    %v836 = vpop.f32.mrb[0].mxu0
    %837 = vmatprep.mubr.bf16.mxu0 %v342
    %838 = vmatmul.mubr.bf16.gmra.mrb[0].mxu0 %v341
    %v839 = vpop.f32.mrb[0].mxu0
    %v840 = vadd.f32 %v195, %v839
    %v841 = vpop.f32.mrb[0].mxu0
    %v842 = vpop.f32.mrb[0].mxu0
    %v843 = vadd.f32 %v195, %v842
    %v844 = vpop.f32.mrb[0].mxu0
    %845 = vmatprep.mubr.bf16.mxu0 %v350
    %846 = vmatmul.mubr.bf16.gmra.mrb[0].mxu0 %v349
    %v847 = vpop.f32.mrb[0].mxu0
    %v848 = vadd.f32 %v195, %v847
    %v849 = vpop.f32.mrb[0].mxu0
    %v850 = vpop.f32.mrb[0].mxu0
    %v851 = vadd.f32 %v195, %v850
    %v852 = vpop.f32.mrb[0].mxu0
    %853 = vdwg.mxu0
    %854 = vmatprep.subr.bf16.mxu0 0
    %855 = vmatpush1.bf16.msra.mxu0 %v669
    %856 = vmatprep.subr.bf16.mxu0 0
    %857 = vmatpush1.bf16.msra.mxu0 %v670
    %858 = vmatprep.subr.bf16.mxu0 0
    %859 = vmatpush1.bf16.msra.mxu0 %v671
    %860 = vmatprep.subr.bf16.mxu0 0
    %861 = vmatpush1.bf16.msra.mxu0 %v672
    %862 = vmatprep.subr.bf16.mxu0 0
    %863 = vmatpush1.bf16.msra.mxu0 %v673
    %864 = vmatprep.subr.bf16.mxu0 0
    %865 = vmatpush1.bf16.msra.mxu0 %v674
    %866 = vmatprep.subr.bf16.mxu0 0
    %867 = vmatpush1.bf16.msra.mxu0 %v675
    %868 = vmatprep.subr.bf16.mxu0 0
    %869 = vmatpush1.bf16.msra.mxu0 %v676
    %870 = vmatprep.subr.bf16.mxu0 0
    %871 = vmatpush1.bf16.msra.mxu0 %v677
    %872 = vmatprep.subr.bf16.mxu0 0
    %873 = vmatpush1.bf16.msra.mxu0 %v678
    %874 = vmatprep.subr.bf16.mxu0 0
    %875 = vmatpush1.bf16.msra.mxu0 %v679
    %876 = vmatprep.subr.bf16.mxu0 0
    %877 = vmatpush1.bf16.msra.mxu0 %v680
    %878 = vmatprep.subr.bf16.mxu0 0
    %879 = vmatpush1.bf16.msra.mxu0 %v681
    %880 = vmatprep.subr.bf16.mxu0 0
    %881 = vmatpush1.bf16.msra.mxu0 %v682
    %882 = vmatprep.subr.bf16.mxu0 0
    %883 = vmatpush1.bf16.msra.mxu0 %v683
    %884 = vmatprep.subr.bf16.mxu0 0
    %885 = vmatpush1.bf16.msra.mxu0 %v684
    %886 = vmatprep.mubr.bf16.mxu0 %v320
    %887 = vmatmul.mubr.bf16.gmra.mrb[0].mxu0 %v319
    %v888 = vpop.f32.mrb[0].mxu0
    %v889 = vadd.f32 %v816, %v888
    %v890 = vpop.f32.mrb[0].mxu0
    %v891 = vpop.f32.mrb[0].mxu0
    %v892 = vadd.f32 %v819, %v891
    %v893 = vpop.f32.mrb[0].mxu0
    %894 = vmatprep.mubr.bf16.mxu0 %v328
    %895 = vmatmul.mubr.bf16.gmra.mrb[0].mxu0 %v327
    %v896 = vpop.f32.mrb[0].mxu0
    %v897 = vadd.f32 %v824, %v896
    %v898 = vpop.f32.mrb[0].mxu0
    %v899 = vpop.f32.mrb[0].mxu0
    %v900 = vadd.f32 %v827, %v899
    %v901 = vpop.f32.mrb[0].mxu0
    %902 = vmatprep.mubr.bf16.mxu0 %v336
    %903 = vmatmul.mubr.bf16.gmra.mrb[0].mxu0 %v335
    %v904 = vpop.f32.mrb[0].mxu0
    %v905 = vadd.f32 %v832, %v904
    %v906 = vpop.f32.mrb[0].mxu0
    %v907 = vpop.f32.mrb[0].mxu0
    %v908 = vadd.f32 %v835, %v907
    %v909 = vpop.f32.mrb[0].mxu0
    %910 = vmatprep.mubr.bf16.mxu0 %v344
    %911 = vmatmul.mubr.bf16.gmra.mrb[0].mxu0 %v343
    %v912 = vpop.f32.mrb[0].mxu0
    %v913 = vadd.f32 %v840, %v912
    %v914 = vpop.f32.mrb[0].mxu0
    %v915 = vpop.f32.mrb[0].mxu0
    %v916 = vadd.f32 %v843, %v915
    %v917 = vpop.f32.mrb[0].mxu0
    %918 = vmatprep.mubr.bf16.mxu0 %v352
    %919 = vmatmul.mubr.bf16.gmra.mrb[0].mxu0 %v351
    %v920 = vpop.f32.mrb[0].mxu0
    %v921 = vadd.f32 %v848, %v920
    %v922 = vpop.f32.mrb[0].mxu0
    %v923 = vpop.f32.mrb[0].mxu0
    %v924 = vadd.f32 %v851, %v923
    %v925 = vpop.f32.mrb[0].mxu0
    %926 = vdwg.mxu0
    %927 = vmatprep.subr.bf16.mxu0 0
    %928 = vmatpush1.bf16.msra.mxu0 %v685
    %929 = vmatprep.subr.bf16.mxu0 0
    %930 = vmatpush1.bf16.msra.mxu0 %v686
    %931 = vmatprep.subr.bf16.mxu0 0
    %932 = vmatpush1.bf16.msra.mxu0 %v687
    %933 = vmatprep.subr.bf16.mxu0 0
    %934 = vmatpush1.bf16.msra.mxu0 %v688
    %935 = vmatprep.subr.bf16.mxu0 0
    %936 = vmatpush1.bf16.msra.mxu0 %v689
    %937 = vmatprep.subr.bf16.mxu0 0
    %938 = vmatpush1.bf16.msra.mxu0 %v690
    %939 = vmatprep.subr.bf16.mxu0 0
    %940 = vmatpush1.bf16.msra.mxu0 %v691
    %941 = vmatprep.subr.bf16.mxu0 0
    %942 = vmatpush1.bf16.msra.mxu0 %v692
    %943 = vmatprep.subr.bf16.mxu0 0
    %944 = vmatpush1.bf16.msra.mxu0 %v693
    %945 = vmatprep.subr.bf16.mxu0 0
    %946 = vmatpush1.bf16.msra.mxu0 %v694
    %947 = vmatprep.subr.bf16.mxu0 0
    %948 = vmatpush1.bf16.msra.mxu0 %v695
    %949 = vmatprep.subr.bf16.mxu0 0
    %950 = vmatpush1.bf16.msra.mxu0 %v696
    %951 = vmatprep.subr.bf16.mxu0 0
    %952 = vmatpush1.bf16.msra.mxu0 %v697
    %953 = vmatprep.subr.bf16.mxu0 0
    %954 = vmatpush1.bf16.msra.mxu0 %v698
    %955 = vmatprep.subr.bf16.mxu0 0
    %956 = vmatpush1.bf16.msra.mxu0 %v699
    %957 = vmatprep.subr.bf16.mxu0 0
    %958 = vmatpush1.bf16.msra.mxu0 %v700
    %959 = vmatprep.mubr.bf16.mxu0 %v322
    %960 = vmatmul.mubr.bf16.gmra.mrb[0].mxu0 %v321
    %v961 = vpop.f32.mrb[0].mxu0
    %v962 = vadd.f32 %v889, %v961
    %v963 = vpop.f32.mrb[0].mxu0
    %v964 = vpop.f32.mrb[0].mxu0
    %v965 = vadd.f32 %v892, %v964
    %v966 = vpop.f32.mrb[0].mxu0
    %967 = vmatprep.mubr.bf16.mxu0 %v330
    %968 = vmatmul.mubr.bf16.gmra.mrb[0].mxu0 %v329
    %v969 = vpop.f32.mrb[0].mxu0
    %v970 = vadd.f32 %v897, %v969
    %v971 = vpop.f32.mrb[0].mxu0
    %v972 = vpop.f32.mrb[0].mxu0
    %v973 = vadd.f32 %v900, %v972
    %v974 = vpop.f32.mrb[0].mxu0
    %975 = vmatprep.mubr.bf16.mxu0 %v338
    %976 = vmatmul.mubr.bf16.gmra.mrb[0].mxu0 %v337
    %v977 = vpop.f32.mrb[0].mxu0
    %v978 = vadd.f32 %v905, %v977
    %v979 = vpop.f32.mrb[0].mxu0
    %v980 = vpop.f32.mrb[0].mxu0
    %v981 = vadd.f32 %v908, %v980
    %v982 = vpop.f32.mrb[0].mxu0
    %983 = vmatprep.mubr.bf16.mxu0 %v346
    %984 = vmatmul.mubr.bf16.gmra.mrb[0].mxu0 %v345
    %v985 = vpop.f32.mrb[0].mxu0
    %v986 = vadd.f32 %v913, %v985
    %v987 = vpop.f32.mrb[0].mxu0
    %v988 = vpop.f32.mrb[0].mxu0
    %v989 = vadd.f32 %v916, %v988
    %v990 = vpop.f32.mrb[0].mxu0
    %991 = vmatprep.mubr.bf16.mxu0 %v354
    %992 = vmatmul.mubr.bf16.gmra.mrb[0].mxu0 %v353
    %v993 = vpop.f32.mrb[0].mxu0
    %v994 = vadd.f32 %v921, %v993
    %v995 = vpop.f32.mrb[0].mxu0
    %v996 = vpop.f32.mrb[0].mxu0
    %v997 = vadd.f32 %v924, %v996
    %v998 = vpop.f32.mrb[0].mxu0
    %999 = vdwg.mxu0
    %1000 = vmatprep.subr.bf16.mxu0 0
    %1001 = vmatpush1.bf16.msra.mxu0 %v701
    %1002 = vmatprep.subr.bf16.mxu0 0
    %1003 = vmatpush1.bf16.msra.mxu0 %v702
    %1004 = vmatprep.subr.bf16.mxu0 0
    %1005 = vmatpush1.bf16.msra.mxu0 %v703
    %1006 = vmatprep.subr.bf16.mxu0 0
    %1007 = vmatpush1.bf16.msra.mxu0 %v704
    %1008 = vmatprep.subr.bf16.mxu0 0
    %1009 = vmatpush1.bf16.msra.mxu0 %v705
    %1010 = vmatprep.subr.bf16.mxu0 0
    %1011 = vmatpush1.bf16.msra.mxu0 %v706
    %1012 = vmatprep.subr.bf16.mxu0 0
    %1013 = vmatpush1.bf16.msra.mxu0 %v707
    %1014 = vmatprep.subr.bf16.mxu0 0
    %1015 = vmatpush1.bf16.msra.mxu0 %v708
    %1016 = vmatprep.subr.bf16.mxu0 0
    %1017 = vmatpush1.bf16.msra.mxu0 %v709
    %1018 = vmatprep.subr.bf16.mxu0 0
    %1019 = vmatpush1.bf16.msra.mxu0 %v710
    %1020 = vmatprep.subr.bf16.mxu0 0
    %1021 = vmatpush1.bf16.msra.mxu0 %v711
    %1022 = vmatprep.subr.bf16.mxu0 0
    %1023 = vmatpush1.bf16.msra.mxu0 %v712
    %1024 = vmatprep.subr.bf16.mxu0 0
    %1025 = vmatpush1.bf16.msra.mxu0 %v713
    %1026 = vmatprep.subr.bf16.mxu0 0
    %1027 = vmatpush1.bf16.msra.mxu0 %v714
    %1028 = vmatprep.subr.bf16.mxu0 0
    %1029 = vmatpush1.bf16.msra.mxu0 %v715
    %1030 = vmatprep.subr.bf16.mxu0 0
    %1031 = vmatpush1.bf16.msra.mxu0 %v716
    %1032 = vmatprep.mubr.bf16.mxu0 %v324
    %1033 = vmatmul.mubr.bf16.gmra.mrb[0].mxu0 %v323
    %v1034 = vpop.f32.mrb[0].mxu0
    %v1035 = vadd.f32 %v962, %v1034
    %v1036 = vpop.f32.mrb[0].mxu0
    %v1037 = vpop.f32.mrb[0].mxu0
    %v1038 = vadd.f32 %v965, %v1037
    %v1039 = vpop.f32.mrb[0].mxu0
    %1040 = vmatprep.mubr.bf16.mxu0 %v332
    %1041 = vmatmul.mubr.bf16.gmra.mrb[0].mxu0 %v331
    %v1042 = vpop.f32.mrb[0].mxu0
    %v1043 = vadd.f32 %v970, %v1042
    %v1044 = vpop.f32.mrb[0].mxu0
    %v1045 = vpop.f32.mrb[0].mxu0
    %v1046 = vadd.f32 %v973, %v1045
    %v1047 = vpop.f32.mrb[0].mxu0
    %1048 = vmatprep.mubr.bf16.mxu0 %v340
    %1049 = vmatmul.mubr.bf16.gmra.mrb[0].mxu0 %v339
    %v1050 = vpop.f32.mrb[0].mxu0
    %v1051 = vadd.f32 %v978, %v1050
    %v1052 = vpop.f32.mrb[0].mxu0
    %v1053 = vpop.f32.mrb[0].mxu0
    %v1054 = vadd.f32 %v981, %v1053
    %v1055 = vpop.f32.mrb[0].mxu0
    %1056 = vmatprep.mubr.bf16.mxu0 %v348
    %1057 = vmatmul.mubr.bf16.gmra.mrb[0].mxu0 %v347
    %v1058 = vpop.f32.mrb[0].mxu0
    %v1059 = vadd.f32 %v986, %v1058
    %v1060 = vpop.f32.mrb[0].mxu0
    %v1061 = vpop.f32.mrb[0].mxu0
    %v1062 = vadd.f32 %v989, %v1061
    %v1063 = vpop.f32.mrb[0].mxu0
    %1064 = vmatprep.mubr.bf16.mxu0 %v356
    %1065 = vmatmul.mubr.bf16.gmra.mrb[0].mxu0 %v355
    %v1066 = vpop.f32.mrb[0].mxu0
    %v1067 = vadd.f32 %v994, %v1066
    %v1068 = vpop.f32.mrb[0].mxu0
    %v1069 = vpop.f32.mrb[0].mxu0
    %v1070 = vadd.f32 %v997, %v1069
    %v1071 = vpop.f32.mrb[0].mxu0
    %1072 = vdwg.mxu0
    %v1073 = vmax.f32 %v1035, 0.0
    %v1074 = vmax.f32 %v1038, 0.0
    %v1075 = vmax.f32 %v1043, 0.0
    %v1076 = vmax.f32 %v1046, 0.0
    %v1077 = vmax.f32 %v1051, 0.0
    %v1078 = vmax.f32 %v1054, 0.0
    %v1079 = vmax.f32 %v1059, 0.0
    %v1080 = vmax.f32 %v1062, 0.0
    %v1081 = vmax.f32 %v1067, 0.0
    %v1082 = vmax.f32 %v1070, 0.0
    %1083 = vst [vmem:[#allocation2] sm:$0xff] %v1073
    %1084 = vst [vmem:[#allocation2 + $0x8] sm:$0xff] %v1074
    %1085 = vst [vmem:[#allocation2 + $0x10] sm:$0xff] %v1075
    %1086 = vst [vmem:[#allocation2 + $0x18] sm:$0xff] %v1076
    %1087 = vst [vmem:[#allocation2 + $0x20] sm:$0xff] %v1077
    %1088 = vst [vmem:[#allocation2 + $0x28] sm:$0xff] %v1078
    %1089 = vst [vmem:[#allocation2 + $0x30] sm:$0xff] %v1079
    %1090 = vst [vmem:[#allocation2 + $0x38] sm:$0xff] %v1080
    %1091 = vst [vmem:[#allocation2 + $0x40] sm:$0xff] %v1081
    %1092 = vst [vmem:[#allocation2 + $0x48] sm:$0xff] %v1082
    %v1093 = vld [vmem:[#allocation2] sm:$0x1f]
    %v1094 = vld [vmem:[%s3] sm:$0xff]
    %v1095 = vld [vmem:[%s3 + $0x8] sm:$0xff]
    %v1096 = vld [vmem:[%s3 + $0x10] sm:$0xff]
    %v1097 = vld [vmem:[%s3 + $0x18] sm:$0xff]
    %v1098 = vld [vmem:[%s3 + $0x20] sm:$0xff]
    %v1099 = vld [vmem:[%s3 + $0x28] sm:$0xff]
    %v1100 = vld [vmem:[%s3 + $0x30] sm:$0xff]
    %v1101 = vld [vmem:[%s3 + $0x38] sm:$0xff]
    %v1102 = vld [vmem:[%s3 + $0x40] sm:$0xff]
    %v1103 = vld [vmem:[%s3 + $0x48] sm:$0xff]
    %v1104 = vld [vmem:[%s3 + $0x50] sm:$0xff]
    %v1105 = vld [vmem:[%s3 + $0x58] sm:$0xff]
    %v1106 = vld [vmem:[%s3 + $0x60] sm:$0xff]
    %v1107 = vld [vmem:[%s3 + $0x68] sm:$0xff]
    %v1108 = vld [vmem:[%s3 + $0x70] sm:$0xff]
    %v1109 = vld [vmem:[%s3 + $0x78] sm:$0xff]
    %v1110 = vld [vmem:[#allocation2 + $0x5] sm:$0x1f]
    %s1111 = scalar_lea.vmem %s3, 128
    %v1112 = vld [vmem:[%s1111] sm:$0xff]
    %v1113 = vld [vmem:[%s1111 + $0x8] sm:$0xff]
    %v1114 = vld [vmem:[%s1111 + $0x10] sm:$0xff]
    %v1115 = vld [vmem:[%s1111 + $0x18] sm:$0xff]
    %v1116 = vld [vmem:[%s1111 + $0x20] sm:$0xff]
    %v1117 = vld [vmem:[%s1111 + $0x28] sm:$0xff]
    %v1118 = vld [vmem:[%s1111 + $0x30] sm:$0xff]
    %v1119 = vld [vmem:[%s1111 + $0x38] sm:$0xff]
    %v1120 = vld [vmem:[%s1111 + $0x40] sm:$0xff]
    %v1121 = vld [vmem:[%s1111 + $0x48] sm:$0xff]
    %v1122 = vld [vmem:[%s1111 + $0x50] sm:$0xff]
    %v1123 = vld [vmem:[%s1111 + $0x58] sm:$0xff]
    %v1124 = vld [vmem:[%s1111 + $0x60] sm:$0xff]
    %v1125 = vld [vmem:[%s1111 + $0x68] sm:$0xff]
    %v1126 = vld [vmem:[%s1111 + $0x70] sm:$0xff]
    %v1127 = vld [vmem:[%s1111 + $0x78] sm:$0xff]
    %1128 = vmatprep.subr.mxu0 0.0
    %1129 = vmatpush1.msra.mxu0 %v1112
    %1130 = vmatprep.subr.mxu0 0.0
    %1131 = vmatpush1.msra.mxu0 %v1113
    %1132 = vmatprep.subr.mxu0 0.0
    %1133 = vmatpush1.msra.mxu0 %v1114
    %1134 = vmatprep.subr.mxu0 0.0
    %1135 = vmatpush1.msra.mxu0 %v1115
    %1136 = vmatprep.subr.mxu0 0.0
    %1137 = vmatpush1.msra.mxu0 %v1116
    %1138 = vmatprep.subr.mxu0 0.0
    %1139 = vmatpush1.msra.mxu0 %v1117
    %1140 = vmatprep.subr.mxu0 0.0
    %1141 = vmatpush1.msra.mxu0 %v1118
    %1142 = vmatprep.subr.mxu0 0.0
    %1143 = vmatpush1.msra.mxu0 %v1119
    %1144 = vmatprep.subr.mxu0 0.0
    %1145 = vmatpush1.msra.mxu0 %v1120
    %1146 = vmatprep.subr.mxu0 0.0
    %1147 = vmatpush1.msra.mxu0 %v1121
    %1148 = vmatprep.subr.mxu0 0.0
    %1149 = vmatpush1.msra.mxu0 %v1122
    %1150 = vmatprep.subr.mxu0 0.0
    %1151 = vmatpush1.msra.mxu0 %v1123
    %1152 = vmatprep.subr.mxu0 0.0
    %1153 = vmatpush1.msra.mxu0 %v1124
    %1154 = vmatprep.subr.mxu0 0.0
    %1155 = vmatpush1.msra.mxu0 %v1125
    %1156 = vmatprep.subr.mxu0 0.0
    %1157 = vmatpush1.msra.mxu0 %v1126
    %1158 = vmatprep.subr.mxu0 0.0
    %1159 = vmatpush1.msra.mxu0 %v1127
    %1160 = vmatprep.subr.mxu0 0.0
    %1161 = vmatpush1.msra.mxu0 0.0
    %1162 = vmatprep.subr.mxu0 0.0
    %1163 = vmatpush1.msra.mxu0 0.0
    %1164 = vmatprep.subr.mxu0 0.0
    %1165 = vmatpush1.msra.mxu0 0.0
    %1166 = vmatprep.subr.mxu0 0.0
    %1167 = vmatpush1.msra.mxu0 0.0
    %1168 = vmatprep.subr.mxu0 0.0
    %1169 = vmatpush1.msra.mxu0 0.0
    %1170 = vmatprep.subr.mxu0 0.0
    %1171 = vmatpush1.msra.mxu0 0.0
    %1172 = vmatprep.subr.mxu0 0.0
    %1173 = vmatpush1.msra.mxu0 0.0
    %1174 = vmatprep.subr.mxu0 0.0
    %1175 = vmatpush1.msra.mxu0 0.0
    %1176 = vmatprep.subr.mxu0 0.0
    %1177 = vmatpush1.msra.mxu0 0.0
    %1178 = vmatprep.subr.mxu0 0.0
    %1179 = vmatpush1.msra.mxu0 0.0
    %1180 = vmatprep.subr.mxu0 0.0
    %1181 = vmatpush1.msra.mxu0 0.0
    %1182 = vmatprep.subr.mxu0 0.0
    %1183 = vmatpush1.msra.mxu0 0.0
    %1184 = vmatprep.subr.mxu0 0.0
    %1185 = vmatpush1.msra.mxu0 0.0
    %1186 = vmatprep.subr.mxu0 0.0
    %1187 = vmatpush1.msra.mxu0 0.0
    %1188 = vmatprep.subr.mxu0 0.0
    %1189 = vmatpush1.msra.mxu0 0.0
    %1190 = vmatprep.subr.mxu0 0.0
    %1191 = vmatpush1.msra.mxu0 0.0
    %1192 = vmatprep.mubr.f32.mxu0 0.0
    %1193 = vmatmul.mubr.f32.gmra.mrb[0].mxu0 %v1110
    %v1194 = vpop.f32.mrb[0].mxu0
    %v1195 = vadd.f32 0.0, %v1194
    %v1196 = vpop.f32.mrb[0].mxu0
    %1197 = vdwg.mxu0
    %1198 = vmatprep.subr.mxu0 0.0
    %1199 = vmatpush1.msra.mxu0 %v1094
    %1200 = vmatprep.subr.mxu0 0.0
    %1201 = vmatpush1.msra.mxu0 %v1095
    %1202 = vmatprep.subr.mxu0 0.0
    %1203 = vmatpush1.msra.mxu0 %v1096
    %1204 = vmatprep.subr.mxu0 0.0
    %1205 = vmatpush1.msra.mxu0 %v1097
    %1206 = vmatprep.subr.mxu0 0.0
    %1207 = vmatpush1.msra.mxu0 %v1098
    %1208 = vmatprep.subr.mxu0 0.0
    %1209 = vmatpush1.msra.mxu0 %v1099
    %1210 = vmatprep.subr.mxu0 0.0
    %1211 = vmatpush1.msra.mxu0 %v1100
    %1212 = vmatprep.subr.mxu0 0.0
    %1213 = vmatpush1.msra.mxu0 %v1101
    %1214 = vmatprep.subr.mxu0 0.0
    %1215 = vmatpush1.msra.mxu0 %v1102
    %1216 = vmatprep.subr.mxu0 0.0
    %1217 = vmatpush1.msra.mxu0 %v1103
    %1218 = vmatprep.subr.mxu0 0.0
    %1219 = vmatpush1.msra.mxu0 %v1104
    %1220 = vmatprep.subr.mxu0 0.0
    %1221 = vmatpush1.msra.mxu0 %v1105
    %1222 = vmatprep.subr.mxu0 0.0
    %1223 = vmatpush1.msra.mxu0 %v1106
    %1224 = vmatprep.subr.mxu0 0.0
    %1225 = vmatpush1.msra.mxu0 %v1107
    %1226 = vmatprep.subr.mxu0 0.0
    %1227 = vmatpush1.msra.mxu0 %v1108
    %1228 = vmatprep.subr.mxu0 0.0
    %1229 = vmatpush1.msra.mxu0 %v1109
    %1230 = vmatprep.subr.mxu0 0.0
    %1231 = vmatpush1.msra.mxu0 0.0
    %1232 = vmatprep.subr.mxu0 0.0
    %1233 = vmatpush1.msra.mxu0 0.0
    %1234 = vmatprep.subr.mxu0 0.0
    %1235 = vmatpush1.msra.mxu0 0.0
    %1236 = vmatprep.subr.mxu0 0.0
    %1237 = vmatpush1.msra.mxu0 0.0
    %1238 = vmatprep.subr.mxu0 0.0
    %1239 = vmatpush1.msra.mxu0 0.0
    %1240 = vmatprep.subr.mxu0 0.0
    %1241 = vmatpush1.msra.mxu0 0.0
    %1242 = vmatprep.subr.mxu0 0.0
    %1243 = vmatpush1.msra.mxu0 0.0
    %1244 = vmatprep.subr.mxu0 0.0
    %1245 = vmatpush1.msra.mxu0 0.0
    %1246 = vmatprep.subr.mxu0 0.0
    %1247 = vmatpush1.msra.mxu0 0.0
    %1248 = vmatprep.subr.mxu0 0.0
    %1249 = vmatpush1.msra.mxu0 0.0
    %1250 = vmatprep.subr.mxu0 0.0
    %1251 = vmatpush1.msra.mxu0 0.0
    %1252 = vmatprep.subr.mxu0 0.0
    %1253 = vmatpush1.msra.mxu0 0.0
    %1254 = vmatprep.subr.mxu0 0.0
    %1255 = vmatpush1.msra.mxu0 0.0
    %1256 = vmatprep.subr.mxu0 0.0
    %1257 = vmatpush1.msra.mxu0 0.0
    %1258 = vmatprep.subr.mxu0 0.0
    %1259 = vmatpush1.msra.mxu0 0.0
    %1260 = vmatprep.subr.mxu0 0.0
    %1261 = vmatpush1.msra.mxu0 0.0
    %1262 = vmatprep.mubr.f32.mxu0 0.0
    %1263 = vmatmul.mubr.f32.gmra.mrb[0].mxu0 %v1093
    %v1264 = vpop.f32.mrb[0].mxu0
    %v1265 = vadd.f32 %v1195, %v1264
    %v1266 = vpop.f32.mrb[0].mxu0
    %1267 = vdwg.mxu0
    %v1268 = vld [vmem:[#allocation2 + $0xa] sm:$0x1f]
    %s1269 = scalar_lea.vmem %s3, 256
    %v1270 = vld [vmem:[%s1269] sm:$0xff]
    %v1271 = vld [vmem:[%s1269 + $0x8] sm:$0xff]
    %v1272 = vld [vmem:[%s1269 + $0x10] sm:$0xff]
    %v1273 = vld [vmem:[%s1269 + $0x18] sm:$0xff]
    %v1274 = vld [vmem:[%s1269 + $0x20] sm:$0xff]
    %v1275 = vld [vmem:[%s1269 + $0x28] sm:$0xff]
    %v1276 = vld [vmem:[%s1269 + $0x30] sm:$0xff]
    %v1277 = vld [vmem:[%s1269 + $0x38] sm:$0xff]
    %v1278 = vld [vmem:[%s1269 + $0x40] sm:$0xff]
    %v1279 = vld [vmem:[%s1269 + $0x48] sm:$0xff]
    %v1280 = vld [vmem:[%s1269 + $0x50] sm:$0xff]
    %v1281 = vld [vmem:[%s1269 + $0x58] sm:$0xff]
    %v1282 = vld [vmem:[%s1269 + $0x60] sm:$0xff]
    %v1283 = vld [vmem:[%s1269 + $0x68] sm:$0xff]
    %v1284 = vld [vmem:[%s1269 + $0x70] sm:$0xff]
    %v1285 = vld [vmem:[%s1269 + $0x78] sm:$0xff]
    %1286 = vmatprep.subr.mxu0 0.0
    %1287 = vmatpush1.msra.mxu0 %v1270
    %1288 = vmatprep.subr.mxu0 0.0
    %1289 = vmatpush1.msra.mxu0 %v1271
    %1290 = vmatprep.subr.mxu0 0.0
    %1291 = vmatpush1.msra.mxu0 %v1272
    %1292 = vmatprep.subr.mxu0 0.0
    %1293 = vmatpush1.msra.mxu0 %v1273
    %1294 = vmatprep.subr.mxu0 0.0
    %1295 = vmatpush1.msra.mxu0 %v1274
    %1296 = vmatprep.subr.mxu0 0.0
    %1297 = vmatpush1.msra.mxu0 %v1275
    %1298 = vmatprep.subr.mxu0 0.0
    %1299 = vmatpush1.msra.mxu0 %v1276
    %1300 = vmatprep.subr.mxu0 0.0
    %1301 = vmatpush1.msra.mxu0 %v1277
    %1302 = vmatprep.subr.mxu0 0.0
    %1303 = vmatpush1.msra.mxu0 %v1278
    %1304 = vmatprep.subr.mxu0 0.0
    %1305 = vmatpush1.msra.mxu0 %v1279
    %1306 = vmatprep.subr.mxu0 0.0
    %1307 = vmatpush1.msra.mxu0 %v1280
    %1308 = vmatprep.subr.mxu0 0.0
    %1309 = vmatpush1.msra.mxu0 %v1281
    %1310 = vmatprep.subr.mxu0 0.0
    %1311 = vmatpush1.msra.mxu0 %v1282
    %1312 = vmatprep.subr.mxu0 0.0
    %1313 = vmatpush1.msra.mxu0 %v1283
    %1314 = vmatprep.subr.mxu0 0.0
    %1315 = vmatpush1.msra.mxu0 %v1284
    %1316 = vmatprep.subr.mxu0 0.0
    %1317 = vmatpush1.msra.mxu0 %v1285
    %1318 = vmatprep.subr.mxu0 0.0
    %1319 = vmatpush1.msra.mxu0 0.0
    %1320 = vmatprep.subr.mxu0 0.0
    %1321 = vmatpush1.msra.mxu0 0.0
    %1322 = vmatprep.subr.mxu0 0.0
    %1323 = vmatpush1.msra.mxu0 0.0
    %1324 = vmatprep.subr.mxu0 0.0
    %1325 = vmatpush1.msra.mxu0 0.0
    %1326 = vmatprep.subr.mxu0 0.0
    %1327 = vmatpush1.msra.mxu0 0.0
    %1328 = vmatprep.subr.mxu0 0.0
    %1329 = vmatpush1.msra.mxu0 0.0
    %1330 = vmatprep.subr.mxu0 0.0
    %1331 = vmatpush1.msra.mxu0 0.0
    %1332 = vmatprep.subr.mxu0 0.0
    %1333 = vmatpush1.msra.mxu0 0.0
    %1334 = vmatprep.subr.mxu0 0.0
    %1335 = vmatpush1.msra.mxu0 0.0
    %1336 = vmatprep.subr.mxu0 0.0
    %1337 = vmatpush1.msra.mxu0 0.0
    %1338 = vmatprep.subr.mxu0 0.0
    %1339 = vmatpush1.msra.mxu0 0.0
    %1340 = vmatprep.subr.mxu0 0.0
    %1341 = vmatpush1.msra.mxu0 0.0
    %1342 = vmatprep.subr.mxu0 0.0
    %1343 = vmatpush1.msra.mxu0 0.0
    %1344 = vmatprep.subr.mxu0 0.0
    %1345 = vmatpush1.msra.mxu0 0.0
    %1346 = vmatprep.subr.mxu0 0.0
    %1347 = vmatpush1.msra.mxu0 0.0
    %1348 = vmatprep.subr.mxu0 0.0
    %1349 = vmatpush1.msra.mxu0 0.0
    %1350 = vmatprep.mubr.f32.mxu0 0.0
    %1351 = vmatmul.mubr.f32.gmra.mrb[0].mxu0 %v1268
    %v1352 = vpop.f32.mrb[0].mxu0
    %v1353 = vadd.f32 0.0, %v1352
    %v1354 = vpop.f32.mrb[0].mxu0
    %1355 = vdwg.mxu0
    %v1356 = vadd.f32 %v1265, %v1353
    %v1357 = vld [vmem:[#allocation2 + $0xf] sm:$0x1f]
    %s1358 = scalar_lea.vmem %s3, 384
    %v1359 = vld [vmem:[%s1358] sm:$0xff]
    %v1360 = vld [vmem:[%s1358 + $0x8] sm:$0xff]
    %v1361 = vld [vmem:[%s1358 + $0x10] sm:$0xff]
    %v1362 = vld [vmem:[%s1358 + $0x18] sm:$0xff]
    %v1363 = vld [vmem:[%s1358 + $0x20] sm:$0xff]
    %v1364 = vld [vmem:[%s1358 + $0x28] sm:$0xff]
    %v1365 = vld [vmem:[%s1358 + $0x30] sm:$0xff]
    %v1366 = vld [vmem:[%s1358 + $0x38] sm:$0xff]
    %v1367 = vld [vmem:[%s1358 + $0x40] sm:$0xff]
    %v1368 = vld [vmem:[%s1358 + $0x48] sm:$0xff]
    %v1369 = vld [vmem:[%s1358 + $0x50] sm:$0xff]
    %v1370 = vld [vmem:[%s1358 + $0x58] sm:$0xff]
    %v1371 = vld [vmem:[%s1358 + $0x60] sm:$0xff]
    %v1372 = vld [vmem:[%s1358 + $0x68] sm:$0xff]
    %v1373 = vld [vmem:[%s1358 + $0x70] sm:$0xff]
    %v1374 = vld [vmem:[%s1358 + $0x78] sm:$0xff]
    %1375 = vmatprep.subr.mxu0 0.0
    %1376 = vmatpush1.msra.mxu0 %v1359
    %1377 = vmatprep.subr.mxu0 0.0
    %1378 = vmatpush1.msra.mxu0 %v1360
    %1379 = vmatprep.subr.mxu0 0.0
    %1380 = vmatpush1.msra.mxu0 %v1361
    %1381 = vmatprep.subr.mxu0 0.0
    %1382 = vmatpush1.msra.mxu0 %v1362
    %1383 = vmatprep.subr.mxu0 0.0
    %1384 = vmatpush1.msra.mxu0 %v1363
    %1385 = vmatprep.subr.mxu0 0.0
    %1386 = vmatpush1.msra.mxu0 %v1364
    %1387 = vmatprep.subr.mxu0 0.0
    %1388 = vmatpush1.msra.mxu0 %v1365
    %1389 = vmatprep.subr.mxu0 0.0
    %1390 = vmatpush1.msra.mxu0 %v1366
    %1391 = vmatprep.subr.mxu0 0.0
    %1392 = vmatpush1.msra.mxu0 %v1367
    %1393 = vmatprep.subr.mxu0 0.0
    %1394 = vmatpush1.msra.mxu0 %v1368
    %1395 = vmatprep.subr.mxu0 0.0
    %1396 = vmatpush1.msra.mxu0 %v1369
    %1397 = vmatprep.subr.mxu0 0.0
    %1398 = vmatpush1.msra.mxu0 %v1370
    %1399 = vmatprep.subr.mxu0 0.0
    %1400 = vmatpush1.msra.mxu0 %v1371
    %1401 = vmatprep.subr.mxu0 0.0
    %1402 = vmatpush1.msra.mxu0 %v1372
    %1403 = vmatprep.subr.mxu0 0.0
    %1404 = vmatpush1.msra.mxu0 %v1373
    %1405 = vmatprep.subr.mxu0 0.0
    %1406 = vmatpush1.msra.mxu0 %v1374
    %1407 = vmatprep.subr.mxu0 0.0
    %1408 = vmatpush1.msra.mxu0 0.0
    %1409 = vmatprep.subr.mxu0 0.0
    %1410 = vmatpush1.msra.mxu0 0.0
    %1411 = vmatprep.subr.mxu0 0.0
    %1412 = vmatpush1.msra.mxu0 0.0
    %1413 = vmatprep.subr.mxu0 0.0
    %1414 = vmatpush1.msra.mxu0 0.0
    %1415 = vmatprep.subr.mxu0 0.0
    %1416 = vmatpush1.msra.mxu0 0.0
    %1417 = vmatprep.subr.mxu0 0.0
    %1418 = vmatpush1.msra.mxu0 0.0
    %1419 = vmatprep.subr.mxu0 0.0
    %1420 = vmatpush1.msra.mxu0 0.0
    %1421 = vmatprep.subr.mxu0 0.0
    %1422 = vmatpush1.msra.mxu0 0.0
    %1423 = vmatprep.subr.mxu0 0.0
    %1424 = vmatpush1.msra.mxu0 0.0
    %1425 = vmatprep.subr.mxu0 0.0
    %1426 = vmatpush1.msra.mxu0 0.0
    %1427 = vmatprep.subr.mxu0 0.0
    %1428 = vmatpush1.msra.mxu0 0.0
    %1429 = vmatprep.subr.mxu0 0.0
    %1430 = vmatpush1.msra.mxu0 0.0
    %1431 = vmatprep.subr.mxu0 0.0
    %1432 = vmatpush1.msra.mxu0 0.0
    %1433 = vmatprep.subr.mxu0 0.0
    %1434 = vmatpush1.msra.mxu0 0.0
    %1435 = vmatprep.subr.mxu0 0.0
    %1436 = vmatpush1.msra.mxu0 0.0
    %1437 = vmatprep.subr.mxu0 0.0
    %1438 = vmatpush1.msra.mxu0 0.0
    %1439 = vmatprep.mubr.f32.mxu0 0.0
    %1440 = vmatmul.mubr.f32.gmra.mrb[0].mxu0 %v1357
    %v1441 = vpop.f32.mrb[0].mxu0
    %v1442 = vadd.f32 0.0, %v1441
    %v1443 = vpop.f32.mrb[0].mxu0
    %1444 = vdwg.mxu0
    %v1445 = vadd.f32 %v1356, %v1442
    %v1446 = vld [vmem:[#allocation2 + $0x14] sm:$0x1f]
    %s1447 = scalar_lea.vmem %s3, 512
    %v1448 = vld [vmem:[%s1447] sm:$0xff]
    %v1449 = vld [vmem:[%s1447 + $0x8] sm:$0xff]
    %v1450 = vld [vmem:[%s1447 + $0x10] sm:$0xff]
    %v1451 = vld [vmem:[%s1447 + $0x18] sm:$0xff]
    %v1452 = vld [vmem:[%s1447 + $0x20] sm:$0xff]
    %v1453 = vld [vmem:[%s1447 + $0x28] sm:$0xff]
    %v1454 = vld [vmem:[%s1447 + $0x30] sm:$0xff]
    %v1455 = vld [vmem:[%s1447 + $0x38] sm:$0xff]
    %v1456 = vld [vmem:[%s1447 + $0x40] sm:$0xff]
    %v1457 = vld [vmem:[%s1447 + $0x48] sm:$0xff]
    %v1458 = vld [vmem:[%s1447 + $0x50] sm:$0xff]
    %v1459 = vld [vmem:[%s1447 + $0x58] sm:$0xff]
    %v1460 = vld [vmem:[%s1447 + $0x60] sm:$0xff]
    %v1461 = vld [vmem:[%s1447 + $0x68] sm:$0xff]
    %v1462 = vld [vmem:[%s1447 + $0x70] sm:$0xff]
    %v1463 = vld [vmem:[%s1447 + $0x78] sm:$0xff]
    %1464 = vmatprep.subr.mxu0 0.0
    %1465 = vmatpush1.msra.mxu0 %v1448
    %1466 = vmatprep.subr.mxu0 0.0
    %1467 = vmatpush1.msra.mxu0 %v1449
    %1468 = vmatprep.subr.mxu0 0.0
    %1469 = vmatpush1.msra.mxu0 %v1450
    %1470 = vmatprep.subr.mxu0 0.0
    %1471 = vmatpush1.msra.mxu0 %v1451
    %1472 = vmatprep.subr.mxu0 0.0
    %1473 = vmatpush1.msra.mxu0 %v1452
    %1474 = vmatprep.subr.mxu0 0.0
    %1475 = vmatpush1.msra.mxu0 %v1453
    %1476 = vmatprep.subr.mxu0 0.0
    %1477 = vmatpush1.msra.mxu0 %v1454
    %1478 = vmatprep.subr.mxu0 0.0
    %1479 = vmatpush1.msra.mxu0 %v1455
    %1480 = vmatprep.subr.mxu0 0.0
    %1481 = vmatpush1.msra.mxu0 %v1456
    %1482 = vmatprep.subr.mxu0 0.0
    %1483 = vmatpush1.msra.mxu0 %v1457
    %1484 = vmatprep.subr.mxu0 0.0
    %1485 = vmatpush1.msra.mxu0 %v1458
    %1486 = vmatprep.subr.mxu0 0.0
    %1487 = vmatpush1.msra.mxu0 %v1459
    %1488 = vmatprep.subr.mxu0 0.0
    %1489 = vmatpush1.msra.mxu0 %v1460
    %1490 = vmatprep.subr.mxu0 0.0
    %1491 = vmatpush1.msra.mxu0 %v1461
    %1492 = vmatprep.subr.mxu0 0.0
    %1493 = vmatpush1.msra.mxu0 %v1462
    %1494 = vmatprep.subr.mxu0 0.0
    %1495 = vmatpush1.msra.mxu0 %v1463
    %1496 = vmatprep.subr.mxu0 0.0
    %1497 = vmatpush1.msra.mxu0 0.0
    %1498 = vmatprep.subr.mxu0 0.0
    %1499 = vmatpush1.msra.mxu0 0.0
    %1500 = vmatprep.subr.mxu0 0.0
    %1501 = vmatpush1.msra.mxu0 0.0
    %1502 = vmatprep.subr.mxu0 0.0
    %1503 = vmatpush1.msra.mxu0 0.0
    %1504 = vmatprep.subr.mxu0 0.0
    %1505 = vmatpush1.msra.mxu0 0.0
    %1506 = vmatprep.subr.mxu0 0.0
    %1507 = vmatpush1.msra.mxu0 0.0
    %1508 = vmatprep.subr.mxu0 0.0
    %1509 = vmatpush1.msra.mxu0 0.0
    %1510 = vmatprep.subr.mxu0 0.0
    %1511 = vmatpush1.msra.mxu0 0.0
    %1512 = vmatprep.subr.mxu0 0.0
    %1513 = vmatpush1.msra.mxu0 0.0
    %1514 = vmatprep.subr.mxu0 0.0
    %1515 = vmatpush1.msra.mxu0 0.0
    %1516 = vmatprep.subr.mxu0 0.0
    %1517 = vmatpush1.msra.mxu0 0.0
    %1518 = vmatprep.subr.mxu0 0.0
    %1519 = vmatpush1.msra.mxu0 0.0
    %1520 = vmatprep.subr.mxu0 0.0
    %1521 = vmatpush1.msra.mxu0 0.0
    %1522 = vmatprep.subr.mxu0 0.0
    %1523 = vmatpush1.msra.mxu0 0.0
    %1524 = vmatprep.subr.mxu0 0.0
    %1525 = vmatpush1.msra.mxu0 0.0
    %1526 = vmatprep.subr.mxu0 0.0
    %1527 = vmatpush1.msra.mxu0 0.0
    %1528 = vmatprep.mubr.f32.mxu0 0.0
    %1529 = vmatmul.mubr.f32.gmra.mrb[0].mxu0 %v1446
    %v1530 = vpop.f32.mrb[0].mxu0
    %v1531 = vadd.f32 0.0, %v1530
    %v1532 = vpop.f32.mrb[0].mxu0
    %1533 = vdwg.mxu0
    %v1534 = vadd.f32 %v1445, %v1531
    %v1535 = vld [vmem:[#allocation2 + $0x19] sm:$0x1f]
    %s1536 = scalar_lea.vmem %s3, 640
    %v1537 = vld [vmem:[%s1536] sm:$0xff]
    %v1538 = vld [vmem:[%s1536 + $0x8] sm:$0xff]
    %v1539 = vld [vmem:[%s1536 + $0x10] sm:$0xff]
    %v1540 = vld [vmem:[%s1536 + $0x18] sm:$0xff]
    %v1541 = vld [vmem:[%s1536 + $0x20] sm:$0xff]
    %v1542 = vld [vmem:[%s1536 + $0x28] sm:$0xff]
    %v1543 = vld [vmem:[%s1536 + $0x30] sm:$0xff]
    %v1544 = vld [vmem:[%s1536 + $0x38] sm:$0xff]
    %v1545 = vld [vmem:[%s1536 + $0x40] sm:$0xff]
    %v1546 = vld [vmem:[%s1536 + $0x48] sm:$0xff]
    %v1547 = vld [vmem:[%s1536 + $0x50] sm:$0xff]
    %v1548 = vld [vmem:[%s1536 + $0x58] sm:$0xff]
    %v1549 = vld [vmem:[%s1536 + $0x60] sm:$0xff]
    %v1550 = vld [vmem:[%s1536 + $0x68] sm:$0xff]
    %v1551 = vld [vmem:[%s1536 + $0x70] sm:$0xff]
    %v1552 = vld [vmem:[%s1536 + $0x78] sm:$0xff]
    %1553 = vmatprep.subr.mxu0 0.0
    %1554 = vmatpush1.msra.mxu0 %v1537
    %1555 = vmatprep.subr.mxu0 0.0
    %1556 = vmatpush1.msra.mxu0 %v1538
    %1557 = vmatprep.subr.mxu0 0.0
    %1558 = vmatpush1.msra.mxu0 %v1539
    %1559 = vmatprep.subr.mxu0 0.0
    %1560 = vmatpush1.msra.mxu0 %v1540
    %1561 = vmatprep.subr.mxu0 0.0
    %1562 = vmatpush1.msra.mxu0 %v1541
    %1563 = vmatprep.subr.mxu0 0.0
    %1564 = vmatpush1.msra.mxu0 %v1542
    %1565 = vmatprep.subr.mxu0 0.0
    %1566 = vmatpush1.msra.mxu0 %v1543
    %1567 = vmatprep.subr.mxu0 0.0
    %1568 = vmatpush1.msra.mxu0 %v1544
    %1569 = vmatprep.subr.mxu0 0.0
    %1570 = vmatpush1.msra.mxu0 %v1545
    %1571 = vmatprep.subr.mxu0 0.0
    %1572 = vmatpush1.msra.mxu0 %v1546
    %1573 = vmatprep.subr.mxu0 0.0
    %1574 = vmatpush1.msra.mxu0 %v1547
    %1575 = vmatprep.subr.mxu0 0.0
    %1576 = vmatpush1.msra.mxu0 %v1548
    %1577 = vmatprep.subr.mxu0 0.0
    %1578 = vmatpush1.msra.mxu0 %v1549
    %1579 = vmatprep.subr.mxu0 0.0
    %1580 = vmatpush1.msra.mxu0 %v1550
    %1581 = vmatprep.subr.mxu0 0.0
    %1582 = vmatpush1.msra.mxu0 %v1551
    %1583 = vmatprep.subr.mxu0 0.0
    %1584 = vmatpush1.msra.mxu0 %v1552
    %1585 = vmatprep.subr.mxu0 0.0
    %1586 = vmatpush1.msra.mxu0 0.0
    %1587 = vmatprep.subr.mxu0 0.0
    %1588 = vmatpush1.msra.mxu0 0.0
    %1589 = vmatprep.subr.mxu0 0.0
    %1590 = vmatpush1.msra.mxu0 0.0
    %1591 = vmatprep.subr.mxu0 0.0
    %1592 = vmatpush1.msra.mxu0 0.0
    %1593 = vmatprep.subr.mxu0 0.0
    %1594 = vmatpush1.msra.mxu0 0.0
    %1595 = vmatprep.subr.mxu0 0.0
    %1596 = vmatpush1.msra.mxu0 0.0
    %1597 = vmatprep.subr.mxu0 0.0
    %1598 = vmatpush1.msra.mxu0 0.0
    %1599 = vmatprep.subr.mxu0 0.0
    %1600 = vmatpush1.msra.mxu0 0.0
    %1601 = vmatprep.subr.mxu0 0.0
    %1602 = vmatpush1.msra.mxu0 0.0
    %1603 = vmatprep.subr.mxu0 0.0
    %1604 = vmatpush1.msra.mxu0 0.0
    %1605 = vmatprep.subr.mxu0 0.0
    %1606 = vmatpush1.msra.mxu0 0.0
    %1607 = vmatprep.subr.mxu0 0.0
    %1608 = vmatpush1.msra.mxu0 0.0
    %1609 = vmatprep.subr.mxu0 0.0
    %1610 = vmatpush1.msra.mxu0 0.0
    %1611 = vmatprep.subr.mxu0 0.0
    %1612 = vmatpush1.msra.mxu0 0.0
    %1613 = vmatprep.subr.mxu0 0.0
    %1614 = vmatpush1.msra.mxu0 0.0
    %1615 = vmatprep.subr.mxu0 0.0
    %1616 = vmatpush1.msra.mxu0 0.0
    %1617 = vmatprep.mubr.f32.mxu0 0.0
    %1618 = vmatmul.mubr.f32.gmra.mrb[0].mxu0 %v1535
    %v1619 = vpop.f32.mrb[0].mxu0
    %v1620 = vadd.f32 0.0, %v1619
    %v1621 = vpop.f32.mrb[0].mxu0
    %1622 = vdwg.mxu0
    %v1623 = vadd.f32 %v1534, %v1620
    %v1624 = vld [vmem:[#allocation2 + $0x1e] sm:$0x1f]
    %s1625 = scalar_lea.vmem %s3, 768
    %v1626 = vld [vmem:[%s1625] sm:$0xff]
    %v1627 = vld [vmem:[%s1625 + $0x8] sm:$0xff]
    %v1628 = vld [vmem:[%s1625 + $0x10] sm:$0xff]
    %v1629 = vld [vmem:[%s1625 + $0x18] sm:$0xff]
    %v1630 = vld [vmem:[%s1625 + $0x20] sm:$0xff]
    %v1631 = vld [vmem:[%s1625 + $0x28] sm:$0xff]
    %v1632 = vld [vmem:[%s1625 + $0x30] sm:$0xff]
    %v1633 = vld [vmem:[%s1625 + $0x38] sm:$0xff]
    %v1634 = vld [vmem:[%s1625 + $0x40] sm:$0xff]
    %v1635 = vld [vmem:[%s1625 + $0x48] sm:$0xff]
    %v1636 = vld [vmem:[%s1625 + $0x50] sm:$0xff]
    %v1637 = vld [vmem:[%s1625 + $0x58] sm:$0xff]
    %v1638 = vld [vmem:[%s1625 + $0x60] sm:$0xff]
    %v1639 = vld [vmem:[%s1625 + $0x68] sm:$0xff]
    %v1640 = vld [vmem:[%s1625 + $0x70] sm:$0xff]
    %v1641 = vld [vmem:[%s1625 + $0x78] sm:$0xff]
    %1642 = vmatprep.subr.mxu0 0.0
    %1643 = vmatpush1.msra.mxu0 %v1626
    %1644 = vmatprep.subr.mxu0 0.0
    %1645 = vmatpush1.msra.mxu0 %v1627
    %1646 = vmatprep.subr.mxu0 0.0
    %1647 = vmatpush1.msra.mxu0 %v1628
    %1648 = vmatprep.subr.mxu0 0.0
    %1649 = vmatpush1.msra.mxu0 %v1629
    %1650 = vmatprep.subr.mxu0 0.0
    %1651 = vmatpush1.msra.mxu0 %v1630
    %1652 = vmatprep.subr.mxu0 0.0
    %1653 = vmatpush1.msra.mxu0 %v1631
    %1654 = vmatprep.subr.mxu0 0.0
    %1655 = vmatpush1.msra.mxu0 %v1632
    %1656 = vmatprep.subr.mxu0 0.0
    %1657 = vmatpush1.msra.mxu0 %v1633
    %1658 = vmatprep.subr.mxu0 0.0
    %1659 = vmatpush1.msra.mxu0 %v1634
    %1660 = vmatprep.subr.mxu0 0.0
    %1661 = vmatpush1.msra.mxu0 %v1635
    %1662 = vmatprep.subr.mxu0 0.0
    %1663 = vmatpush1.msra.mxu0 %v1636
    %1664 = vmatprep.subr.mxu0 0.0
    %1665 = vmatpush1.msra.mxu0 %v1637
    %1666 = vmatprep.subr.mxu0 0.0
    %1667 = vmatpush1.msra.mxu0 %v1638
    %1668 = vmatprep.subr.mxu0 0.0
    %1669 = vmatpush1.msra.mxu0 %v1639
    %1670 = vmatprep.subr.mxu0 0.0
    %1671 = vmatpush1.msra.mxu0 %v1640
    %1672 = vmatprep.subr.mxu0 0.0
    %1673 = vmatpush1.msra.mxu0 %v1641
    %1674 = vmatprep.subr.mxu0 0.0
    %1675 = vmatpush1.msra.mxu0 0.0
    %1676 = vmatprep.subr.mxu0 0.0
    %1677 = vmatpush1.msra.mxu0 0.0
    %1678 = vmatprep.subr.mxu0 0.0
    %1679 = vmatpush1.msra.mxu0 0.0
    %1680 = vmatprep.subr.mxu0 0.0
    %1681 = vmatpush1.msra.mxu0 0.0
    %1682 = vmatprep.subr.mxu0 0.0
    %1683 = vmatpush1.msra.mxu0 0.0
    %1684 = vmatprep.subr.mxu0 0.0
    %1685 = vmatpush1.msra.mxu0 0.0
    %1686 = vmatprep.subr.mxu0 0.0
    %1687 = vmatpush1.msra.mxu0 0.0
    %1688 = vmatprep.subr.mxu0 0.0
    %1689 = vmatpush1.msra.mxu0 0.0
    %1690 = vmatprep.subr.mxu0 0.0
    %1691 = vmatpush1.msra.mxu0 0.0
    %1692 = vmatprep.subr.mxu0 0.0
    %1693 = vmatpush1.msra.mxu0 0.0
    %1694 = vmatprep.subr.mxu0 0.0
    %1695 = vmatpush1.msra.mxu0 0.0
    %1696 = vmatprep.subr.mxu0 0.0
    %1697 = vmatpush1.msra.mxu0 0.0
    %1698 = vmatprep.subr.mxu0 0.0
    %1699 = vmatpush1.msra.mxu0 0.0
    %1700 = vmatprep.subr.mxu0 0.0
    %1701 = vmatpush1.msra.mxu0 0.0
    %1702 = vmatprep.subr.mxu0 0.0
    %1703 = vmatpush1.msra.mxu0 0.0
    %1704 = vmatprep.subr.mxu0 0.0
    %1705 = vmatpush1.msra.mxu0 0.0
    %1706 = vmatprep.mubr.f32.mxu0 0.0
    %1707 = vmatmul.mubr.f32.gmra.mrb[0].mxu0 %v1624
    %v1708 = vpop.f32.mrb[0].mxu0
    %v1709 = vadd.f32 0.0, %v1708
    %v1710 = vpop.f32.mrb[0].mxu0
    %1711 = vdwg.mxu0
    %v1712 = vadd.f32 %v1623, %v1709
    %v1713 = vld [vmem:[#allocation2 + $0x23] sm:$0x1f]
    %s1714 = scalar_lea.vmem %s3, 896
    %v1715 = vld [vmem:[%s1714] sm:$0xff]
    %v1716 = vld [vmem:[%s1714 + $0x8] sm:$0xff]
    %v1717 = vld [vmem:[%s1714 + $0x10] sm:$0xff]
    %v1718 = vld [vmem:[%s1714 + $0x18] sm:$0xff]
    %v1719 = vld [vmem:[%s1714 + $0x20] sm:$0xff]
    %v1720 = vld [vmem:[%s1714 + $0x28] sm:$0xff]
    %v1721 = vld [vmem:[%s1714 + $0x30] sm:$0xff]
    %v1722 = vld [vmem:[%s1714 + $0x38] sm:$0xff]
    %v1723 = vld [vmem:[%s1714 + $0x40] sm:$0xff]
    %v1724 = vld [vmem:[%s1714 + $0x48] sm:$0xff]
    %v1725 = vld [vmem:[%s1714 + $0x50] sm:$0xff]
    %v1726 = vld [vmem:[%s1714 + $0x58] sm:$0xff]
    %v1727 = vld [vmem:[%s1714 + $0x60] sm:$0xff]
    %v1728 = vld [vmem:[%s1714 + $0x68] sm:$0xff]
    %v1729 = vld [vmem:[%s1714 + $0x70] sm:$0xff]
    %v1730 = vld [vmem:[%s1714 + $0x78] sm:$0xff]
    %1731 = vmatprep.subr.mxu0 0.0
    %1732 = vmatpush1.msra.mxu0 %v1715
    %1733 = vmatprep.subr.mxu0 0.0
    %1734 = vmatpush1.msra.mxu0 %v1716
    %1735 = vmatprep.subr.mxu0 0.0
    %1736 = vmatpush1.msra.mxu0 %v1717
    %1737 = vmatprep.subr.mxu0 0.0
    %1738 = vmatpush1.msra.mxu0 %v1718
    %1739 = vmatprep.subr.mxu0 0.0
    %1740 = vmatpush1.msra.mxu0 %v1719
    %1741 = vmatprep.subr.mxu0 0.0
    %1742 = vmatpush1.msra.mxu0 %v1720
    %1743 = vmatprep.subr.mxu0 0.0
    %1744 = vmatpush1.msra.mxu0 %v1721
    %1745 = vmatprep.subr.mxu0 0.0
    %1746 = vmatpush1.msra.mxu0 %v1722
    %1747 = vmatprep.subr.mxu0 0.0
    %1748 = vmatpush1.msra.mxu0 %v1723
    %1749 = vmatprep.subr.mxu0 0.0
    %1750 = vmatpush1.msra.mxu0 %v1724
    %1751 = vmatprep.subr.mxu0 0.0
    %1752 = vmatpush1.msra.mxu0 %v1725
    %1753 = vmatprep.subr.mxu0 0.0
    %1754 = vmatpush1.msra.mxu0 %v1726
    %1755 = vmatprep.subr.mxu0 0.0
    %1756 = vmatpush1.msra.mxu0 %v1727
    %1757 = vmatprep.subr.mxu0 0.0
    %1758 = vmatpush1.msra.mxu0 %v1728
    %1759 = vmatprep.subr.mxu0 0.0
    %1760 = vmatpush1.msra.mxu0 %v1729
    %1761 = vmatprep.subr.mxu0 0.0
    %1762 = vmatpush1.msra.mxu0 %v1730
    %1763 = vmatprep.subr.mxu0 0.0
    %1764 = vmatpush1.msra.mxu0 0.0
    %1765 = vmatprep.subr.mxu0 0.0
    %1766 = vmatpush1.msra.mxu0 0.0
    %1767 = vmatprep.subr.mxu0 0.0
    %1768 = vmatpush1.msra.mxu0 0.0
    %1769 = vmatprep.subr.mxu0 0.0
    %1770 = vmatpush1.msra.mxu0 0.0
    %1771 = vmatprep.subr.mxu0 0.0
    %1772 = vmatpush1.msra.mxu0 0.0
    %1773 = vmatprep.subr.mxu0 0.0
    %1774 = vmatpush1.msra.mxu0 0.0
    %1775 = vmatprep.subr.mxu0 0.0
    %1776 = vmatpush1.msra.mxu0 0.0
    %1777 = vmatprep.subr.mxu0 0.0
    %1778 = vmatpush1.msra.mxu0 0.0
    %1779 = vmatprep.subr.mxu0 0.0
    %1780 = vmatpush1.msra.mxu0 0.0
    %1781 = vmatprep.subr.mxu0 0.0
    %1782 = vmatpush1.msra.mxu0 0.0
    %1783 = vmatprep.subr.mxu0 0.0
    %1784 = vmatpush1.msra.mxu0 0.0
    %1785 = vmatprep.subr.mxu0 0.0
    %1786 = vmatpush1.msra.mxu0 0.0
    %1787 = vmatprep.subr.mxu0 0.0
    %1788 = vmatpush1.msra.mxu0 0.0
    %1789 = vmatprep.subr.mxu0 0.0
    %1790 = vmatpush1.msra.mxu0 0.0
    %1791 = vmatprep.subr.mxu0 0.0
    %1792 = vmatpush1.msra.mxu0 0.0
    %1793 = vmatprep.subr.mxu0 0.0
    %1794 = vmatpush1.msra.mxu0 0.0
    %1795 = vmatprep.mubr.f32.mxu0 0.0
    %1796 = vmatmul.mubr.f32.gmra.mrb[0].mxu0 %v1713
    %v1797 = vpop.f32.mrb[0].mxu0
    %v1798 = vadd.f32 0.0, %v1797
    %v1799 = vpop.f32.mrb[0].mxu0
    %1800 = vdwg.mxu0
    %v1801 = vadd.f32 %v1712, %v1798
    %v1802 = vld [vmem:[#allocation2 + $0x28] sm:$0x1f]
    %s1803 = scalar_lea.vmem %s3, 1024
    %v1804 = vld [vmem:[%s1803] sm:$0xff]
    %v1805 = vld [vmem:[%s1803 + $0x8] sm:$0xff]
    %v1806 = vld [vmem:[%s1803 + $0x10] sm:$0xff]
    %v1807 = vld [vmem:[%s1803 + $0x18] sm:$0xff]
    %v1808 = vld [vmem:[%s1803 + $0x20] sm:$0xff]
    %v1809 = vld [vmem:[%s1803 + $0x28] sm:$0xff]
    %v1810 = vld [vmem:[%s1803 + $0x30] sm:$0xff]
    %v1811 = vld [vmem:[%s1803 + $0x38] sm:$0xff]
    %v1812 = vld [vmem:[%s1803 + $0x40] sm:$0xff]
    %v1813 = vld [vmem:[%s1803 + $0x48] sm:$0xff]
    %v1814 = vld [vmem:[%s1803 + $0x50] sm:$0xff]
    %v1815 = vld [vmem:[%s1803 + $0x58] sm:$0xff]
    %v1816 = vld [vmem:[%s1803 + $0x60] sm:$0xff]
    %v1817 = vld [vmem:[%s1803 + $0x68] sm:$0xff]
    %v1818 = vld [vmem:[%s1803 + $0x70] sm:$0xff]
    %v1819 = vld [vmem:[%s1803 + $0x78] sm:$0xff]
    %1820 = vmatprep.subr.mxu0 0.0
    %1821 = vmatpush1.msra.mxu0 %v1804
    %1822 = vmatprep.subr.mxu0 0.0
    %1823 = vmatpush1.msra.mxu0 %v1805
    %1824 = vmatprep.subr.mxu0 0.0
    %1825 = vmatpush1.msra.mxu0 %v1806
    %1826 = vmatprep.subr.mxu0 0.0
    %1827 = vmatpush1.msra.mxu0 %v1807
    %1828 = vmatprep.subr.mxu0 0.0
    %1829 = vmatpush1.msra.mxu0 %v1808
    %1830 = vmatprep.subr.mxu0 0.0
    %1831 = vmatpush1.msra.mxu0 %v1809
    %1832 = vmatprep.subr.mxu0 0.0
    %1833 = vmatpush1.msra.mxu0 %v1810
    %1834 = vmatprep.subr.mxu0 0.0
    %1835 = vmatpush1.msra.mxu0 %v1811
    %1836 = vmatprep.subr.mxu0 0.0
    %1837 = vmatpush1.msra.mxu0 %v1812
    %1838 = vmatprep.subr.mxu0 0.0
    %1839 = vmatpush1.msra.mxu0 %v1813
    %1840 = vmatprep.subr.mxu0 0.0
    %1841 = vmatpush1.msra.mxu0 %v1814
    %1842 = vmatprep.subr.mxu0 0.0
    %1843 = vmatpush1.msra.mxu0 %v1815
    %1844 = vmatprep.subr.mxu0 0.0
    %1845 = vmatpush1.msra.mxu0 %v1816
    %1846 = vmatprep.subr.mxu0 0.0
    %1847 = vmatpush1.msra.mxu0 %v1817
    %1848 = vmatprep.subr.mxu0 0.0
    %1849 = vmatpush1.msra.mxu0 %v1818
    %1850 = vmatprep.subr.mxu0 0.0
    %1851 = vmatpush1.msra.mxu0 %v1819
    %1852 = vmatprep.subr.mxu0 0.0
    %1853 = vmatpush1.msra.mxu0 0.0
    %1854 = vmatprep.subr.mxu0 0.0
    %1855 = vmatpush1.msra.mxu0 0.0
    %1856 = vmatprep.subr.mxu0 0.0
    %1857 = vmatpush1.msra.mxu0 0.0
    %1858 = vmatprep.subr.mxu0 0.0
    %1859 = vmatpush1.msra.mxu0 0.0
    %1860 = vmatprep.subr.mxu0 0.0
    %1861 = vmatpush1.msra.mxu0 0.0
    %1862 = vmatprep.subr.mxu0 0.0
    %1863 = vmatpush1.msra.mxu0 0.0
    %1864 = vmatprep.subr.mxu0 0.0
    %1865 = vmatpush1.msra.mxu0 0.0
    %1866 = vmatprep.subr.mxu0 0.0
    %1867 = vmatpush1.msra.mxu0 0.0
    %1868 = vmatprep.subr.mxu0 0.0
    %1869 = vmatpush1.msra.mxu0 0.0
    %1870 = vmatprep.subr.mxu0 0.0
    %1871 = vmatpush1.msra.mxu0 0.0
    %1872 = vmatprep.subr.mxu0 0.0
    %1873 = vmatpush1.msra.mxu0 0.0
    %1874 = vmatprep.subr.mxu0 0.0
    %1875 = vmatpush1.msra.mxu0 0.0
    %1876 = vmatprep.subr.mxu0 0.0
    %1877 = vmatpush1.msra.mxu0 0.0
    %1878 = vmatprep.subr.mxu0 0.0
    %1879 = vmatpush1.msra.mxu0 0.0
    %1880 = vmatprep.subr.mxu0 0.0
    %1881 = vmatpush1.msra.mxu0 0.0
    %1882 = vmatprep.subr.mxu0 0.0
    %1883 = vmatpush1.msra.mxu0 0.0
    %1884 = vmatprep.mubr.f32.mxu0 0.0
    %1885 = vmatmul.mubr.f32.gmra.mrb[0].mxu0 %v1802
    %v1886 = vpop.f32.mrb[0].mxu0
    %v1887 = vadd.f32 0.0, %v1886
    %v1888 = vpop.f32.mrb[0].mxu0
    %1889 = vdwg.mxu0
    %v1890 = vadd.f32 %v1801, %v1887
    %v1891 = vld [vmem:[#allocation2 + $0x2d] sm:$0x1f]
    %s1892 = scalar_lea.vmem %s3, 1152
    %v1893 = vld [vmem:[%s1892] sm:$0xff]
    %v1894 = vld [vmem:[%s1892 + $0x8] sm:$0xff]
    %v1895 = vld [vmem:[%s1892 + $0x10] sm:$0xff]
    %v1896 = vld [vmem:[%s1892 + $0x18] sm:$0xff]
    %v1897 = vld [vmem:[%s1892 + $0x20] sm:$0xff]
    %v1898 = vld [vmem:[%s1892 + $0x28] sm:$0xff]
    %v1899 = vld [vmem:[%s1892 + $0x30] sm:$0xff]
    %v1900 = vld [vmem:[%s1892 + $0x38] sm:$0xff]
    %v1901 = vld [vmem:[%s1892 + $0x40] sm:$0xff]
    %v1902 = vld [vmem:[%s1892 + $0x48] sm:$0xff]
    %v1903 = vld [vmem:[%s1892 + $0x50] sm:$0xff]
    %v1904 = vld [vmem:[%s1892 + $0x58] sm:$0xff]
    %v1905 = vld [vmem:[%s1892 + $0x60] sm:$0xff]
    %v1906 = vld [vmem:[%s1892 + $0x68] sm:$0xff]
    %v1907 = vld [vmem:[%s1892 + $0x70] sm:$0xff]
    %v1908 = vld [vmem:[%s1892 + $0x78] sm:$0xff]
    %1909 = vmatprep.subr.mxu0 0.0
    %1910 = vmatpush1.msra.mxu0 %v1893
    %1911 = vmatprep.subr.mxu0 0.0
    %1912 = vmatpush1.msra.mxu0 %v1894
    %1913 = vmatprep.subr.mxu0 0.0
    %1914 = vmatpush1.msra.mxu0 %v1895
    %1915 = vmatprep.subr.mxu0 0.0
    %1916 = vmatpush1.msra.mxu0 %v1896
    %1917 = vmatprep.subr.mxu0 0.0
    %1918 = vmatpush1.msra.mxu0 %v1897
    %1919 = vmatprep.subr.mxu0 0.0
    %1920 = vmatpush1.msra.mxu0 %v1898
    %1921 = vmatprep.subr.mxu0 0.0
    %1922 = vmatpush1.msra.mxu0 %v1899
    %1923 = vmatprep.subr.mxu0 0.0
    %1924 = vmatpush1.msra.mxu0 %v1900
    %1925 = vmatprep.subr.mxu0 0.0
    %1926 = vmatpush1.msra.mxu0 %v1901
    %1927 = vmatprep.subr.mxu0 0.0
    %1928 = vmatpush1.msra.mxu0 %v1902
    %1929 = vmatprep.subr.mxu0 0.0
    %1930 = vmatpush1.msra.mxu0 %v1903
    %1931 = vmatprep.subr.mxu0 0.0
    %1932 = vmatpush1.msra.mxu0 %v1904
    %1933 = vmatprep.subr.mxu0 0.0
    %1934 = vmatpush1.msra.mxu0 %v1905
    %1935 = vmatprep.subr.mxu0 0.0
    %1936 = vmatpush1.msra.mxu0 %v1906
    %1937 = vmatprep.subr.mxu0 0.0
    %1938 = vmatpush1.msra.mxu0 %v1907
    %1939 = vmatprep.subr.mxu0 0.0
    %1940 = vmatpush1.msra.mxu0 %v1908
    %1941 = vmatprep.subr.mxu0 0.0
    %1942 = vmatpush1.msra.mxu0 0.0
    %1943 = vmatprep.subr.mxu0 0.0
    %1944 = vmatpush1.msra.mxu0 0.0
    %1945 = vmatprep.subr.mxu0 0.0
    %1946 = vmatpush1.msra.mxu0 0.0
    %1947 = vmatprep.subr.mxu0 0.0
    %1948 = vmatpush1.msra.mxu0 0.0
    %1949 = vmatprep.subr.mxu0 0.0
    %1950 = vmatpush1.msra.mxu0 0.0
    %1951 = vmatprep.subr.mxu0 0.0
    %1952 = vmatpush1.msra.mxu0 0.0
    %1953 = vmatprep.subr.mxu0 0.0
    %1954 = vmatpush1.msra.mxu0 0.0
    %1955 = vmatprep.subr.mxu0 0.0
    %1956 = vmatpush1.msra.mxu0 0.0
    %1957 = vmatprep.subr.mxu0 0.0
    %1958 = vmatpush1.msra.mxu0 0.0
    %1959 = vmatprep.subr.mxu0 0.0
    %1960 = vmatpush1.msra.mxu0 0.0
    %1961 = vmatprep.subr.mxu0 0.0
    %1962 = vmatpush1.msra.mxu0 0.0
    %1963 = vmatprep.subr.mxu0 0.0
    %1964 = vmatpush1.msra.mxu0 0.0
    %1965 = vmatprep.subr.mxu0 0.0
    %1966 = vmatpush1.msra.mxu0 0.0
    %1967 = vmatprep.subr.mxu0 0.0
    %1968 = vmatpush1.msra.mxu0 0.0
    %1969 = vmatprep.subr.mxu0 0.0
    %1970 = vmatpush1.msra.mxu0 0.0
    %1971 = vmatprep.subr.mxu0 0.0
    %1972 = vmatpush1.msra.mxu0 0.0
    %1973 = vmatprep.mubr.f32.mxu0 0.0
    %1974 = vmatmul.mubr.f32.gmra.mrb[0].mxu0 %v1891
    %v1975 = vpop.f32.mrb[0].mxu0
    %v1976 = vadd.f32 0.0, %v1975
    %v1977 = vpop.f32.mrb[0].mxu0
    %1978 = vdwg.mxu0
    %v1979 = vadd.f32 %v1890, %v1976
    %v1980 = vld [vmem:[#allocation2 + $0x32] sm:$0x1f]
    %s1981 = scalar_lea.vmem %s3, 1280
    %v1982 = vld [vmem:[%s1981] sm:$0xff]
    %v1983 = vld [vmem:[%s1981 + $0x8] sm:$0xff]
    %v1984 = vld [vmem:[%s1981 + $0x10] sm:$0xff]
    %v1985 = vld [vmem:[%s1981 + $0x18] sm:$0xff]
    %v1986 = vld [vmem:[%s1981 + $0x20] sm:$0xff]
    %v1987 = vld [vmem:[%s1981 + $0x28] sm:$0xff]
    %v1988 = vld [vmem:[%s1981 + $0x30] sm:$0xff]
    %v1989 = vld [vmem:[%s1981 + $0x38] sm:$0xff]
    %v1990 = vld [vmem:[%s1981 + $0x40] sm:$0xff]
    %v1991 = vld [vmem:[%s1981 + $0x48] sm:$0xff]
    %v1992 = vld [vmem:[%s1981 + $0x50] sm:$0xff]
    %v1993 = vld [vmem:[%s1981 + $0x58] sm:$0xff]
    %v1994 = vld [vmem:[%s1981 + $0x60] sm:$0xff]
    %v1995 = vld [vmem:[%s1981 + $0x68] sm:$0xff]
    %v1996 = vld [vmem:[%s1981 + $0x70] sm:$0xff]
    %v1997 = vld [vmem:[%s1981 + $0x78] sm:$0xff]
    %1998 = vmatprep.subr.mxu0 0.0
    %1999 = vmatpush1.msra.mxu0 %v1982
    %2000 = vmatprep.subr.mxu0 0.0
    %2001 = vmatpush1.msra.mxu0 %v1983
    %2002 = vmatprep.subr.mxu0 0.0
    %2003 = vmatpush1.msra.mxu0 %v1984
    %2004 = vmatprep.subr.mxu0 0.0
    %2005 = vmatpush1.msra.mxu0 %v1985
    %2006 = vmatprep.subr.mxu0 0.0
    %2007 = vmatpush1.msra.mxu0 %v1986
    %2008 = vmatprep.subr.mxu0 0.0
    %2009 = vmatpush1.msra.mxu0 %v1987
    %2010 = vmatprep.subr.mxu0 0.0
    %2011 = vmatpush1.msra.mxu0 %v1988
    %2012 = vmatprep.subr.mxu0 0.0
    %2013 = vmatpush1.msra.mxu0 %v1989
    %2014 = vmatprep.subr.mxu0 0.0
    %2015 = vmatpush1.msra.mxu0 %v1990
    %2016 = vmatprep.subr.mxu0 0.0
    %2017 = vmatpush1.msra.mxu0 %v1991
    %2018 = vmatprep.subr.mxu0 0.0
    %2019 = vmatpush1.msra.mxu0 %v1992
    %2020 = vmatprep.subr.mxu0 0.0
    %2021 = vmatpush1.msra.mxu0 %v1993
    %2022 = vmatprep.subr.mxu0 0.0
    %2023 = vmatpush1.msra.mxu0 %v1994
    %2024 = vmatprep.subr.mxu0 0.0
    %2025 = vmatpush1.msra.mxu0 %v1995
    %2026 = vmatprep.subr.mxu0 0.0
    %2027 = vmatpush1.msra.mxu0 %v1996
    %2028 = vmatprep.subr.mxu0 0.0
    %2029 = vmatpush1.msra.mxu0 %v1997
    %2030 = vmatprep.subr.mxu0 0.0
    %2031 = vmatpush1.msra.mxu0 0.0
    %2032 = vmatprep.subr.mxu0 0.0
    %2033 = vmatpush1.msra.mxu0 0.0
    %2034 = vmatprep.subr.mxu0 0.0
    %2035 = vmatpush1.msra.mxu0 0.0
    %2036 = vmatprep.subr.mxu0 0.0
    %2037 = vmatpush1.msra.mxu0 0.0
    %2038 = vmatprep.subr.mxu0 0.0
    %2039 = vmatpush1.msra.mxu0 0.0
    %2040 = vmatprep.subr.mxu0 0.0
    %2041 = vmatpush1.msra.mxu0 0.0
    %2042 = vmatprep.subr.mxu0 0.0
    %2043 = vmatpush1.msra.mxu0 0.0
    %2044 = vmatprep.subr.mxu0 0.0
    %2045 = vmatpush1.msra.mxu0 0.0
    %2046 = vmatprep.subr.mxu0 0.0
    %2047 = vmatpush1.msra.mxu0 0.0
    %2048 = vmatprep.subr.mxu0 0.0
    %2049 = vmatpush1.msra.mxu0 0.0
    %2050 = vmatprep.subr.mxu0 0.0
    %2051 = vmatpush1.msra.mxu0 0.0
    %2052 = vmatprep.subr.mxu0 0.0
    %2053 = vmatpush1.msra.mxu0 0.0
    %2054 = vmatprep.subr.mxu0 0.0
    %2055 = vmatpush1.msra.mxu0 0.0
    %2056 = vmatprep.subr.mxu0 0.0
    %2057 = vmatpush1.msra.mxu0 0.0
    %2058 = vmatprep.subr.mxu0 0.0
    %2059 = vmatpush1.msra.mxu0 0.0
    %2060 = vmatprep.subr.mxu0 0.0
    %2061 = vmatpush1.msra.mxu0 0.0
    %2062 = vmatprep.mubr.f32.mxu0 0.0
    %2063 = vmatmul.mubr.f32.gmra.mrb[0].mxu0 %v1980
    %v2064 = vpop.f32.mrb[0].mxu0
    %v2065 = vadd.f32 0.0, %v2064
    %v2066 = vpop.f32.mrb[0].mxu0
    %2067 = vdwg.mxu0
    %v2068 = vadd.f32 %v1979, %v2065
    %v2069 = vld [vmem:[#allocation2 + $0x37] sm:$0x1f]
    %s2070 = scalar_lea.vmem %s3, 1408
    %v2071 = vld [vmem:[%s2070] sm:$0xff]
    %v2072 = vld [vmem:[%s2070 + $0x8] sm:$0xff]
    %v2073 = vld [vmem:[%s2070 + $0x10] sm:$0xff]
    %v2074 = vld [vmem:[%s2070 + $0x18] sm:$0xff]
    %v2075 = vld [vmem:[%s2070 + $0x20] sm:$0xff]
    %v2076 = vld [vmem:[%s2070 + $0x28] sm:$0xff]
    %v2077 = vld [vmem:[%s2070 + $0x30] sm:$0xff]
    %v2078 = vld [vmem:[%s2070 + $0x38] sm:$0xff]
    %v2079 = vld [vmem:[%s2070 + $0x40] sm:$0xff]
    %v2080 = vld [vmem:[%s2070 + $0x48] sm:$0xff]
    %v2081 = vld [vmem:[%s2070 + $0x50] sm:$0xff]
    %v2082 = vld [vmem:[%s2070 + $0x58] sm:$0xff]
    %v2083 = vld [vmem:[%s2070 + $0x60] sm:$0xff]
    %v2084 = vld [vmem:[%s2070 + $0x68] sm:$0xff]
    %v2085 = vld [vmem:[%s2070 + $0x70] sm:$0xff]
    %v2086 = vld [vmem:[%s2070 + $0x78] sm:$0xff]
    %2087 = vmatprep.subr.mxu0 0.0
    %2088 = vmatpush1.msra.mxu0 %v2071
    %2089 = vmatprep.subr.mxu0 0.0
    %2090 = vmatpush1.msra.mxu0 %v2072
    %2091 = vmatprep.subr.mxu0 0.0
    %2092 = vmatpush1.msra.mxu0 %v2073
    %2093 = vmatprep.subr.mxu0 0.0
    %2094 = vmatpush1.msra.mxu0 %v2074
    %2095 = vmatprep.subr.mxu0 0.0
    %2096 = vmatpush1.msra.mxu0 %v2075
    %2097 = vmatprep.subr.mxu0 0.0
    %2098 = vmatpush1.msra.mxu0 %v2076
    %2099 = vmatprep.subr.mxu0 0.0
    %2100 = vmatpush1.msra.mxu0 %v2077
    %2101 = vmatprep.subr.mxu0 0.0
    %2102 = vmatpush1.msra.mxu0 %v2078
    %2103 = vmatprep.subr.mxu0 0.0
    %2104 = vmatpush1.msra.mxu0 %v2079
    %2105 = vmatprep.subr.mxu0 0.0
    %2106 = vmatpush1.msra.mxu0 %v2080
    %2107 = vmatprep.subr.mxu0 0.0
    %2108 = vmatpush1.msra.mxu0 %v2081
    %2109 = vmatprep.subr.mxu0 0.0
    %2110 = vmatpush1.msra.mxu0 %v2082
    %2111 = vmatprep.subr.mxu0 0.0
    %2112 = vmatpush1.msra.mxu0 %v2083
    %2113 = vmatprep.subr.mxu0 0.0
    %2114 = vmatpush1.msra.mxu0 %v2084
    %2115 = vmatprep.subr.mxu0 0.0
    %2116 = vmatpush1.msra.mxu0 %v2085
    %2117 = vmatprep.subr.mxu0 0.0
    %2118 = vmatpush1.msra.mxu0 %v2086
    %2119 = vmatprep.subr.mxu0 0.0
    %2120 = vmatpush1.msra.mxu0 0.0
    %2121 = vmatprep.subr.mxu0 0.0
    %2122 = vmatpush1.msra.mxu0 0.0
    %2123 = vmatprep.subr.mxu0 0.0
    %2124 = vmatpush1.msra.mxu0 0.0
    %2125 = vmatprep.subr.mxu0 0.0
    %2126 = vmatpush1.msra.mxu0 0.0
    %2127 = vmatprep.subr.mxu0 0.0
    %2128 = vmatpush1.msra.mxu0 0.0
    %2129 = vmatprep.subr.mxu0 0.0
    %2130 = vmatpush1.msra.mxu0 0.0
    %2131 = vmatprep.subr.mxu0 0.0
    %2132 = vmatpush1.msra.mxu0 0.0
    %2133 = vmatprep.subr.mxu0 0.0
    %2134 = vmatpush1.msra.mxu0 0.0
    %2135 = vmatprep.subr.mxu0 0.0
    %2136 = vmatpush1.msra.mxu0 0.0
    %2137 = vmatprep.subr.mxu0 0.0
    %2138 = vmatpush1.msra.mxu0 0.0
    %2139 = vmatprep.subr.mxu0 0.0
    %2140 = vmatpush1.msra.mxu0 0.0
    %2141 = vmatprep.subr.mxu0 0.0
    %2142 = vmatpush1.msra.mxu0 0.0
    %2143 = vmatprep.subr.mxu0 0.0
    %2144 = vmatpush1.msra.mxu0 0.0
    %2145 = vmatprep.subr.mxu0 0.0
    %2146 = vmatpush1.msra.mxu0 0.0
    %2147 = vmatprep.subr.mxu0 0.0
    %2148 = vmatpush1.msra.mxu0 0.0
    %2149 = vmatprep.subr.mxu0 0.0
    %2150 = vmatpush1.msra.mxu0 0.0
    %2151 = vmatprep.mubr.f32.mxu0 0.0
    %2152 = vmatmul.mubr.f32.gmra.mrb[0].mxu0 %v2069
    %v2153 = vpop.f32.mrb[0].mxu0
    %v2154 = vadd.f32 0.0, %v2153
    %v2155 = vpop.f32.mrb[0].mxu0
    %2156 = vdwg.mxu0
    %v2157 = vadd.f32 %v2068, %v2154
    %v2158 = vld [vmem:[#allocation2 + $0x3c] sm:$0x1f]
    %s2159 = scalar_lea.vmem %s3, 1536
    %v2160 = vld [vmem:[%s2159] sm:$0xff]
    %v2161 = vld [vmem:[%s2159 + $0x8] sm:$0xff]
    %v2162 = vld [vmem:[%s2159 + $0x10] sm:$0xff]
    %v2163 = vld [vmem:[%s2159 + $0x18] sm:$0xff]
    %v2164 = vld [vmem:[%s2159 + $0x20] sm:$0xff]
    %v2165 = vld [vmem:[%s2159 + $0x28] sm:$0xff]
    %v2166 = vld [vmem:[%s2159 + $0x30] sm:$0xff]
    %v2167 = vld [vmem:[%s2159 + $0x38] sm:$0xff]
    %v2168 = vld [vmem:[%s2159 + $0x40] sm:$0xff]
    %v2169 = vld [vmem:[%s2159 + $0x48] sm:$0xff]
    %v2170 = vld [vmem:[%s2159 + $0x50] sm:$0xff]
    %v2171 = vld [vmem:[%s2159 + $0x58] sm:$0xff]
    %v2172 = vld [vmem:[%s2159 + $0x60] sm:$0xff]
    %v2173 = vld [vmem:[%s2159 + $0x68] sm:$0xff]
    %v2174 = vld [vmem:[%s2159 + $0x70] sm:$0xff]
    %v2175 = vld [vmem:[%s2159 + $0x78] sm:$0xff]
    %2176 = vmatprep.subr.mxu0 0.0
    %2177 = vmatpush1.msra.mxu0 %v2160
    %2178 = vmatprep.subr.mxu0 0.0
    %2179 = vmatpush1.msra.mxu0 %v2161
    %2180 = vmatprep.subr.mxu0 0.0
    %2181 = vmatpush1.msra.mxu0 %v2162
    %2182 = vmatprep.subr.mxu0 0.0
    %2183 = vmatpush1.msra.mxu0 %v2163
    %2184 = vmatprep.subr.mxu0 0.0
    %2185 = vmatpush1.msra.mxu0 %v2164
    %2186 = vmatprep.subr.mxu0 0.0
    %2187 = vmatpush1.msra.mxu0 %v2165
    %2188 = vmatprep.subr.mxu0 0.0
    %2189 = vmatpush1.msra.mxu0 %v2166
    %2190 = vmatprep.subr.mxu0 0.0
    %2191 = vmatpush1.msra.mxu0 %v2167
    %2192 = vmatprep.subr.mxu0 0.0
    %2193 = vmatpush1.msra.mxu0 %v2168
    %2194 = vmatprep.subr.mxu0 0.0
    %2195 = vmatpush1.msra.mxu0 %v2169
    %2196 = vmatprep.subr.mxu0 0.0
    %2197 = vmatpush1.msra.mxu0 %v2170
    %2198 = vmatprep.subr.mxu0 0.0
    %2199 = vmatpush1.msra.mxu0 %v2171
    %2200 = vmatprep.subr.mxu0 0.0
    %2201 = vmatpush1.msra.mxu0 %v2172
    %2202 = vmatprep.subr.mxu0 0.0
    %2203 = vmatpush1.msra.mxu0 %v2173
    %2204 = vmatprep.subr.mxu0 0.0
    %2205 = vmatpush1.msra.mxu0 %v2174
    %2206 = vmatprep.subr.mxu0 0.0
    %2207 = vmatpush1.msra.mxu0 %v2175
    %2208 = vmatprep.subr.mxu0 0.0
    %2209 = vmatpush1.msra.mxu0 0.0
    %2210 = vmatprep.subr.mxu0 0.0
    %2211 = vmatpush1.msra.mxu0 0.0
    %2212 = vmatprep.subr.mxu0 0.0
    %2213 = vmatpush1.msra.mxu0 0.0
    %2214 = vmatprep.subr.mxu0 0.0
    %2215 = vmatpush1.msra.mxu0 0.0
    %2216 = vmatprep.subr.mxu0 0.0
    %2217 = vmatpush1.msra.mxu0 0.0
    %2218 = vmatprep.subr.mxu0 0.0
    %2219 = vmatpush1.msra.mxu0 0.0
    %2220 = vmatprep.subr.mxu0 0.0
    %2221 = vmatpush1.msra.mxu0 0.0
    %2222 = vmatprep.subr.mxu0 0.0
    %2223 = vmatpush1.msra.mxu0 0.0
    %2224 = vmatprep.subr.mxu0 0.0
    %2225 = vmatpush1.msra.mxu0 0.0
    %2226 = vmatprep.subr.mxu0 0.0
    %2227 = vmatpush1.msra.mxu0 0.0
    %2228 = vmatprep.subr.mxu0 0.0
    %2229 = vmatpush1.msra.mxu0 0.0
    %2230 = vmatprep.subr.mxu0 0.0
    %2231 = vmatpush1.msra.mxu0 0.0
    %2232 = vmatprep.subr.mxu0 0.0
    %2233 = vmatpush1.msra.mxu0 0.0
    %2234 = vmatprep.subr.mxu0 0.0
    %2235 = vmatpush1.msra.mxu0 0.0
    %2236 = vmatprep.subr.mxu0 0.0
    %2237 = vmatpush1.msra.mxu0 0.0
    %2238 = vmatprep.subr.mxu0 0.0
    %2239 = vmatpush1.msra.mxu0 0.0
    %2240 = vmatprep.mubr.f32.mxu0 0.0
    %2241 = vmatmul.mubr.f32.gmra.mrb[0].mxu0 %v2158
    %v2242 = vpop.f32.mrb[0].mxu0
    %v2243 = vadd.f32 0.0, %v2242
    %v2244 = vpop.f32.mrb[0].mxu0
    %2245 = vdwg.mxu0
    %v2246 = vadd.f32 %v2157, %v2243
    %v2247 = vld [vmem:[#allocation2 + $0x41] sm:$0x1f]
    %s2248 = scalar_lea.vmem %s3, 1664
    %v2249 = vld [vmem:[%s2248] sm:$0xff]
    %v2250 = vld [vmem:[%s2248 + $0x8] sm:$0xff]
    %v2251 = vld [vmem:[%s2248 + $0x10] sm:$0xff]
    %v2252 = vld [vmem:[%s2248 + $0x18] sm:$0xff]
    %v2253 = vld [vmem:[%s2248 + $0x20] sm:$0xff]
    %v2254 = vld [vmem:[%s2248 + $0x28] sm:$0xff]
    %v2255 = vld [vmem:[%s2248 + $0x30] sm:$0xff]
    %v2256 = vld [vmem:[%s2248 + $0x38] sm:$0xff]
    %v2257 = vld [vmem:[%s2248 + $0x40] sm:$0xff]
    %v2258 = vld [vmem:[%s2248 + $0x48] sm:$0xff]
    %v2259 = vld [vmem:[%s2248 + $0x50] sm:$0xff]
    %v2260 = vld [vmem:[%s2248 + $0x58] sm:$0xff]
    %v2261 = vld [vmem:[%s2248 + $0x60] sm:$0xff]
    %v2262 = vld [vmem:[%s2248 + $0x68] sm:$0xff]
    %v2263 = vld [vmem:[%s2248 + $0x70] sm:$0xff]
    %v2264 = vld [vmem:[%s2248 + $0x78] sm:$0xff]
    %2265 = vmatprep.subr.mxu0 0.0
    %2266 = vmatpush1.msra.mxu0 %v2249
    %2267 = vmatprep.subr.mxu0 0.0
    %2268 = vmatpush1.msra.mxu0 %v2250
    %2269 = vmatprep.subr.mxu0 0.0
    %2270 = vmatpush1.msra.mxu0 %v2251
    %2271 = vmatprep.subr.mxu0 0.0
    %2272 = vmatpush1.msra.mxu0 %v2252
    %2273 = vmatprep.subr.mxu0 0.0
    %2274 = vmatpush1.msra.mxu0 %v2253
    %2275 = vmatprep.subr.mxu0 0.0
    %2276 = vmatpush1.msra.mxu0 %v2254
    %2277 = vmatprep.subr.mxu0 0.0
    %2278 = vmatpush1.msra.mxu0 %v2255
    %2279 = vmatprep.subr.mxu0 0.0
    %2280 = vmatpush1.msra.mxu0 %v2256
    %2281 = vmatprep.subr.mxu0 0.0
    %2282 = vmatpush1.msra.mxu0 %v2257
    %2283 = vmatprep.subr.mxu0 0.0
    %2284 = vmatpush1.msra.mxu0 %v2258
    %2285 = vmatprep.subr.mxu0 0.0
    %2286 = vmatpush1.msra.mxu0 %v2259
    %2287 = vmatprep.subr.mxu0 0.0
    %2288 = vmatpush1.msra.mxu0 %v2260
    %2289 = vmatprep.subr.mxu0 0.0
    %2290 = vmatpush1.msra.mxu0 %v2261
    %2291 = vmatprep.subr.mxu0 0.0
    %2292 = vmatpush1.msra.mxu0 %v2262
    %2293 = vmatprep.subr.mxu0 0.0
    %2294 = vmatpush1.msra.mxu0 %v2263
    %2295 = vmatprep.subr.mxu0 0.0
    %2296 = vmatpush1.msra.mxu0 %v2264
    %2297 = vmatprep.subr.mxu0 0.0
    %2298 = vmatpush1.msra.mxu0 0.0
    %2299 = vmatprep.subr.mxu0 0.0
    %2300 = vmatpush1.msra.mxu0 0.0
    %2301 = vmatprep.subr.mxu0 0.0
    %2302 = vmatpush1.msra.mxu0 0.0
    %2303 = vmatprep.subr.mxu0 0.0
    %2304 = vmatpush1.msra.mxu0 0.0
    %2305 = vmatprep.subr.mxu0 0.0
    %2306 = vmatpush1.msra.mxu0 0.0
    %2307 = vmatprep.subr.mxu0 0.0
    %2308 = vmatpush1.msra.mxu0 0.0
    %2309 = vmatprep.subr.mxu0 0.0
    %2310 = vmatpush1.msra.mxu0 0.0
    %2311 = vmatprep.subr.mxu0 0.0
    %2312 = vmatpush1.msra.mxu0 0.0
    %2313 = vmatprep.subr.mxu0 0.0
    %2314 = vmatpush1.msra.mxu0 0.0
    %2315 = vmatprep.subr.mxu0 0.0
    %2316 = vmatpush1.msra.mxu0 0.0
    %2317 = vmatprep.subr.mxu0 0.0
    %2318 = vmatpush1.msra.mxu0 0.0
    %2319 = vmatprep.subr.mxu0 0.0
    %2320 = vmatpush1.msra.mxu0 0.0
    %2321 = vmatprep.subr.mxu0 0.0
    %2322 = vmatpush1.msra.mxu0 0.0
    %2323 = vmatprep.subr.mxu0 0.0
    %2324 = vmatpush1.msra.mxu0 0.0
    %2325 = vmatprep.subr.mxu0 0.0
    %2326 = vmatpush1.msra.mxu0 0.0
    %2327 = vmatprep.subr.mxu0 0.0
    %2328 = vmatpush1.msra.mxu0 0.0
    %2329 = vmatprep.mubr.f32.mxu0 0.0
    %2330 = vmatmul.mubr.f32.gmra.mrb[0].mxu0 %v2247
    %v2331 = vpop.f32.mrb[0].mxu0
    %v2332 = vadd.f32 0.0, %v2331
    %v2333 = vpop.f32.mrb[0].mxu0
    %2334 = vdwg.mxu0
    %v2335 = vadd.f32 %v2246, %v2332
    %v2336 = vld [vmem:[#allocation2 + $0x46] sm:$0x1f]
    %s2337 = scalar_lea.vmem %s3, 1792
    %v2338 = vld [vmem:[%s2337] sm:$0xff]
    %v2339 = vld [vmem:[%s2337 + $0x8] sm:$0xff]
    %v2340 = vld [vmem:[%s2337 + $0x10] sm:$0xff]
    %v2341 = vld [vmem:[%s2337 + $0x18] sm:$0xff]
    %v2342 = vld [vmem:[%s2337 + $0x20] sm:$0xff]
    %v2343 = vld [vmem:[%s2337 + $0x28] sm:$0xff]
    %v2344 = vld [vmem:[%s2337 + $0x30] sm:$0xff]
    %v2345 = vld [vmem:[%s2337 + $0x38] sm:$0xff]
    %v2346 = vld [vmem:[%s2337 + $0x40] sm:$0xff]
    %v2347 = vld [vmem:[%s2337 + $0x48] sm:$0xff]
    %v2348 = vld [vmem:[%s2337 + $0x50] sm:$0xff]
    %v2349 = vld [vmem:[%s2337 + $0x58] sm:$0xff]
    %v2350 = vld [vmem:[%s2337 + $0x60] sm:$0xff]
    %v2351 = vld [vmem:[%s2337 + $0x68] sm:$0xff]
    %v2352 = vld [vmem:[%s2337 + $0x70] sm:$0xff]
    %v2353 = vld [vmem:[%s2337 + $0x78] sm:$0xff]
    %2354 = vmatprep.subr.mxu0 0.0
    %2355 = vmatpush1.msra.mxu0 %v2338
    %2356 = vmatprep.subr.mxu0 0.0
    %2357 = vmatpush1.msra.mxu0 %v2339
    %2358 = vmatprep.subr.mxu0 0.0
    %2359 = vmatpush1.msra.mxu0 %v2340
    %2360 = vmatprep.subr.mxu0 0.0
    %2361 = vmatpush1.msra.mxu0 %v2341
    %2362 = vmatprep.subr.mxu0 0.0
    %2363 = vmatpush1.msra.mxu0 %v2342
    %2364 = vmatprep.subr.mxu0 0.0
    %2365 = vmatpush1.msra.mxu0 %v2343
    %2366 = vmatprep.subr.mxu0 0.0
    %2367 = vmatpush1.msra.mxu0 %v2344
    %2368 = vmatprep.subr.mxu0 0.0
    %2369 = vmatpush1.msra.mxu0 %v2345
    %2370 = vmatprep.subr.mxu0 0.0
    %2371 = vmatpush1.msra.mxu0 %v2346
    %2372 = vmatprep.subr.mxu0 0.0
    %2373 = vmatpush1.msra.mxu0 %v2347
    %2374 = vmatprep.subr.mxu0 0.0
    %2375 = vmatpush1.msra.mxu0 %v2348
    %2376 = vmatprep.subr.mxu0 0.0
    %2377 = vmatpush1.msra.mxu0 %v2349
    %2378 = vmatprep.subr.mxu0 0.0
    %2379 = vmatpush1.msra.mxu0 %v2350
    %2380 = vmatprep.subr.mxu0 0.0
    %2381 = vmatpush1.msra.mxu0 %v2351
    %2382 = vmatprep.subr.mxu0 0.0
    %2383 = vmatpush1.msra.mxu0 %v2352
    %2384 = vmatprep.subr.mxu0 0.0
    %2385 = vmatpush1.msra.mxu0 %v2353
    %2386 = vmatprep.subr.mxu0 0.0
    %2387 = vmatpush1.msra.mxu0 0.0
    %2388 = vmatprep.subr.mxu0 0.0
    %2389 = vmatpush1.msra.mxu0 0.0
    %2390 = vmatprep.subr.mxu0 0.0
    %2391 = vmatpush1.msra.mxu0 0.0
    %2392 = vmatprep.subr.mxu0 0.0
    %2393 = vmatpush1.msra.mxu0 0.0
    %2394 = vmatprep.subr.mxu0 0.0
    %2395 = vmatpush1.msra.mxu0 0.0
    %2396 = vmatprep.subr.mxu0 0.0
    %2397 = vmatpush1.msra.mxu0 0.0
    %2398 = vmatprep.subr.mxu0 0.0
    %2399 = vmatpush1.msra.mxu0 0.0
    %2400 = vmatprep.subr.mxu0 0.0
    %2401 = vmatpush1.msra.mxu0 0.0
    %2402 = vmatprep.subr.mxu0 0.0
    %2403 = vmatpush1.msra.mxu0 0.0
    %2404 = vmatprep.subr.mxu0 0.0
    %2405 = vmatpush1.msra.mxu0 0.0
    %2406 = vmatprep.subr.mxu0 0.0
    %2407 = vmatpush1.msra.mxu0 0.0
    %2408 = vmatprep.subr.mxu0 0.0
    %2409 = vmatpush1.msra.mxu0 0.0
    %2410 = vmatprep.subr.mxu0 0.0
    %2411 = vmatpush1.msra.mxu0 0.0
    %2412 = vmatprep.subr.mxu0 0.0
    %2413 = vmatpush1.msra.mxu0 0.0
    %2414 = vmatprep.subr.mxu0 0.0
    %2415 = vmatpush1.msra.mxu0 0.0
    %2416 = vmatprep.subr.mxu0 0.0
    %2417 = vmatpush1.msra.mxu0 0.0
    %2418 = vmatprep.mubr.f32.mxu0 0.0
    %2419 = vmatmul.mubr.f32.gmra.mrb[0].mxu0 %v2336
    %v2420 = vpop.f32.mrb[0].mxu0
    %v2421 = vadd.f32 0.0, %v2420
    %v2422 = vpop.f32.mrb[0].mxu0
    %2423 = vdwg.mxu0
    %v2424 = vadd.f32 %v2335, %v2421
    %v2425 = vld [vmem:[#allocation2 + $0x4b] sm:$0x1f]
    %s2426 = scalar_lea.vmem %s3, 1920
    %v2427 = vld [vmem:[%s2426] sm:$0xff]
    %v2428 = vld [vmem:[%s2426 + $0x8] sm:$0xff]
    %v2429 = vld [vmem:[%s2426 + $0x10] sm:$0xff]
    %v2430 = vld [vmem:[%s2426 + $0x18] sm:$0xff]
    %v2431 = vld [vmem:[%s2426 + $0x20] sm:$0xff]
    %v2432 = vld [vmem:[%s2426 + $0x28] sm:$0xff]
    %v2433 = vld [vmem:[%s2426 + $0x30] sm:$0xff]
    %v2434 = vld [vmem:[%s2426 + $0x38] sm:$0xff]
    %v2435 = vld [vmem:[%s2426 + $0x40] sm:$0xff]
    %v2436 = vld [vmem:[%s2426 + $0x48] sm:$0xff]
    %v2437 = vld [vmem:[%s2426 + $0x50] sm:$0xff]
    %v2438 = vld [vmem:[%s2426 + $0x58] sm:$0xff]
    %v2439 = vld [vmem:[%s2426 + $0x60] sm:$0xff]
    %v2440 = vld [vmem:[%s2426 + $0x68] sm:$0xff]
    %v2441 = vld [vmem:[%s2426 + $0x70] sm:$0xff]
    %v2442 = vld [vmem:[%s2426 + $0x78] sm:$0xff]
    %2443 = vmatprep.subr.mxu0 0.0
    %2444 = vmatpush1.msra.mxu0 %v2427
    %2445 = vmatprep.subr.mxu0 0.0
    %2446 = vmatpush1.msra.mxu0 %v2428
    %2447 = vmatprep.subr.mxu0 0.0
    %2448 = vmatpush1.msra.mxu0 %v2429
    %2449 = vmatprep.subr.mxu0 0.0
    %2450 = vmatpush1.msra.mxu0 %v2430
    %2451 = vmatprep.subr.mxu0 0.0
    %2452 = vmatpush1.msra.mxu0 %v2431
    %2453 = vmatprep.subr.mxu0 0.0
    %2454 = vmatpush1.msra.mxu0 %v2432
    %2455 = vmatprep.subr.mxu0 0.0
    %2456 = vmatpush1.msra.mxu0 %v2433
    %2457 = vmatprep.subr.mxu0 0.0
    %2458 = vmatpush1.msra.mxu0 %v2434
    %2459 = vmatprep.subr.mxu0 0.0
    %2460 = vmatpush1.msra.mxu0 %v2435
    %2461 = vmatprep.subr.mxu0 0.0
    %2462 = vmatpush1.msra.mxu0 %v2436
    %2463 = vmatprep.subr.mxu0 0.0
    %2464 = vmatpush1.msra.mxu0 %v2437
    %2465 = vmatprep.subr.mxu0 0.0
    %2466 = vmatpush1.msra.mxu0 %v2438
    %2467 = vmatprep.subr.mxu0 0.0
    %2468 = vmatpush1.msra.mxu0 %v2439
    %2469 = vmatprep.subr.mxu0 0.0
    %2470 = vmatpush1.msra.mxu0 %v2440
    %2471 = vmatprep.subr.mxu0 0.0
    %2472 = vmatpush1.msra.mxu0 %v2441
    %2473 = vmatprep.subr.mxu0 0.0
    %2474 = vmatpush1.msra.mxu0 %v2442
    %2475 = vmatprep.subr.mxu0 0.0
    %2476 = vmatpush1.msra.mxu0 0.0
    %2477 = vmatprep.subr.mxu0 0.0
    %2478 = vmatpush1.msra.mxu0 0.0
    %2479 = vmatprep.subr.mxu0 0.0
    %2480 = vmatpush1.msra.mxu0 0.0
    %2481 = vmatprep.subr.mxu0 0.0
    %2482 = vmatpush1.msra.mxu0 0.0
    %2483 = vmatprep.subr.mxu0 0.0
    %2484 = vmatpush1.msra.mxu0 0.0
    %2485 = vmatprep.subr.mxu0 0.0
    %2486 = vmatpush1.msra.mxu0 0.0
    %2487 = vmatprep.subr.mxu0 0.0
    %2488 = vmatpush1.msra.mxu0 0.0
    %2489 = vmatprep.subr.mxu0 0.0
    %2490 = vmatpush1.msra.mxu0 0.0
    %2491 = vmatprep.subr.mxu0 0.0
    %2492 = vmatpush1.msra.mxu0 0.0
    %2493 = vmatprep.subr.mxu0 0.0
    %2494 = vmatpush1.msra.mxu0 0.0
    %2495 = vmatprep.subr.mxu0 0.0
    %2496 = vmatpush1.msra.mxu0 0.0
    %2497 = vmatprep.subr.mxu0 0.0
    %2498 = vmatpush1.msra.mxu0 0.0
    %2499 = vmatprep.subr.mxu0 0.0
    %2500 = vmatpush1.msra.mxu0 0.0
    %2501 = vmatprep.subr.mxu0 0.0
    %2502 = vmatpush1.msra.mxu0 0.0
    %2503 = vmatprep.subr.mxu0 0.0
    %2504 = vmatpush1.msra.mxu0 0.0
    %2505 = vmatprep.subr.mxu0 0.0
    %2506 = vmatpush1.msra.mxu0 0.0
    %2507 = vmatprep.mubr.f32.mxu0 0.0
    %2508 = vmatmul.mubr.f32.gmra.mrb[0].mxu0 %v2425
    %v2509 = vpop.f32.mrb[0].mxu0
    %v2510 = vadd.f32 0.0, %v2509
    %v2511 = vpop.f32.mrb[0].mxu0
    %2512 = vdwg.mxu0
    %v2513 = vadd.f32 %v2424, %v2510
    %v2514 = vld [vmem:[%s4] sm:$0x1]
    %v2516 = vlaneseq
    %v2517 = vshrl.u32 %v2516, 7
    %v2518 = vsub.s32 0, %v2517
    %v2519 = vrot.slane %v2514, %v2518
    %v2521 = vadd.f32 %v2513, %v2519
    %vm2522 = vcmask 258048
    %2523 = vst.msk [vmem:[#allocation3] sm:$0x1f] %vm2522, %v2521
    // Predicated region
    $region22: #{encode_mu.7} parent=1 // pred_check
      _
    $region23: #{encode_mu.7} parent=1 // pred_check_branch
      %2525 = sbr.rel (0) target = $region25
    $region24: #{encode_mu.7} parent=1 // pred_region
      %s2527 = ssub.s32 128, 128
      %2528 = vsyncadd [#allocation4], %s2527
      %s2530 = sshll.u32 [#allocation3], 4
      %s2531 = int_to_ptr.vmem [resolvable:$true] %s2530
      %2533 = dma.vmem_to_hbm [thread:$0]  %s2531, 128, %s5, [#allocation4]
    $region25: #{encode_mu.7} parent=1 // pred_fallthru
      _
    // Predicated region
    $region26: #{encode_mu.7} parent=1 // pred_check
      _
    $region27: #{encode_mu.7} parent=1 // pred_check_branch
      %2535 = sbr.rel (0) target = $region29
    $region28: #{encode_mu.7} parent=1 // pred_region
      %2536 = dma.done [#allocation4], 128
    $region29: #{encode_mu.7} parent=1 // pred_fallthru
      _
    %2537 = vsyncpa [#allocation4], 1

</llo_original>
